<compile_context>
chip_gen: v6e
topology: v6e:2x2x1
jax: 0.10.0
libtpu: 0.0.40
codegen_flags: <defaults>
</compile_context>

<pallas_src>
import functools

import jax
import jax.numpy as jnp
from jax.experimental import pallas as pl
from jax.experimental.pallas import tpu as pltpu

_LANE = 128
_BN_EPS = 1e-5


def _round_up(n, m):
    return ((n + m - 1) // m) * m


def _pick_tile(n):
    for t in (2048, 1024, 512, 256, 128, 64, 32, 16, 8):
        if n % t == 0:
            return t
    return n


def _silu(x):
    return x * (1.0 / (1.0 + jnp.exp(-x)))


def _leaky(x):
    return jnp.where(x >= 0.0, x, 0.1 * x)


# ----------------------------------------------------------------------------
# Kernel 1: pointwise head
#   a  = SiLU(BN1(x @ W_cv1))                       (CSP cv1)
#   p2 = LeakyReLU(BN_cat[c_:](x @ W_cv2))          (CSP cv2 + its half of bn/act)
# ----------------------------------------------------------------------------
def _csp_head_kernel(x_ref, w1_ref, s1_ref, h1_ref, w2_ref, s2_ref, h2_ref,
                     a_ref, p2_ref):
    x = x_ref[0]                                          # (TM, C1p) bf16
    a = jnp.dot(x, w1_ref[...], preferred_element_type=jnp.float32)
    a = _silu(a * s1_ref[...] + h1_ref[...])
    y2 = jnp.dot(x, w2_ref[...], preferred_element_type=jnp.float32)
    p2 = _leaky(y2 * s2_ref[...] + h2_ref[...])
    a_ref[0] = a.astype(a_ref.dtype)
    p2_ref[0] = p2.astype(p2_ref.dtype)


def _csp_head(x_flat, w1, s1, h1, w2, s2, h2):
    B, HW, C1p = x_flat.shape
    Cp = w1.shape[1]
    TM = _pick_tile(HW)
    tiled = lambda b, t: (b, t, 0)
    const2 = lambda b, t: (0, 0)
    return pl.pallas_call(
        _csp_head_kernel,
        out_shape=(jax.ShapeDtypeStruct((B, HW, Cp), jnp.bfloat16),
                   jax.ShapeDtypeStruct((B, HW, Cp), jnp.bfloat16)),
        grid=(B, HW // TM),
        in_specs=[
            pl.BlockSpec((1, TM, C1p), tiled),
            pl.BlockSpec((C1p, Cp), const2),
            pl.BlockSpec((1, Cp), const2),
            pl.BlockSpec((1, Cp), const2),
            pl.BlockSpec((C1p, Cp), const2),
            pl.BlockSpec((1, Cp), const2),
            pl.BlockSpec((1, Cp), const2),
        ],
        out_specs=(pl.BlockSpec((1, TM, Cp), tiled),
                   pl.BlockSpec((1, TM, Cp), tiled)),
        compiler_params=pltpu.CompilerParams(
            dimension_semantics=("parallel", "parallel")),
    )(x_flat, w1, s1, h1, w2, s2, h2)


# ----------------------------------------------------------------------------
# Kernel 2: one Bottleneck block, fully fused
#   b = SiLU(BN(a @ Wm1));  z = SiLU(BN(conv3x3(b)));  a_next = a + z
# The 3x3 conv is 9 shifted matmuls on a flattened (H+2, W+2) zero-padded grid.
# The halo ring of b (which is SiLU(shift) when computed from padded zeros) is
# masked back to exact zero so it matches PyTorch's zero padding of the conv
# input.  Output lives on the (H, W+2) grid; the 2 seam columns per row are
# junk and are sliced off by the wrapper.
# ----------------------------------------------------------------------------
def _bottleneck_kernel(ap_ref, mask_ref, wm1_ref, sm1_ref, hm1_ref,
                       wm2_ref, sm2_ref, hm2_ref, out_ref, *, H, Wp, add):
    Ni = H * Wp
    ap = ap_ref[0]                                        # (Np2, Cp) bf16
    b = jnp.dot(ap, wm1_ref[...], preferred_element_type=jnp.float32)
    b = _silu(b * sm1_ref[...] + hm1_ref[...]) * mask_ref[...]
    acc = jnp.zeros((Ni, b.shape[1]), jnp.float32)
    for dy in range(3):
        for dx in range(3):
            start = dy * Wp + dx
            tap = b[start:start + Ni, :].astype(jnp.bfloat16)
            acc = acc + jnp.dot(tap, wm2_ref[dy * 3 + dx],
                                preferred_element_type=jnp.float32)
    z = _silu(acc * sm2_ref[...] + hm2_ref[...])
    if add:                                               # shortcut
        z = z + ap[Wp + 1:Wp + 1 + Ni, :].astype(jnp.float32)
    out_ref[0] = z.astype(out_ref.dtype)


def _bottleneck_stage(a_pad, mask, wm1, sm1, hm1, wm2, sm2, hm2, *, H, Wp, add):
    B, Np2, Cp = a_pad.shape
    Ni = H * Wp
    kernel = functools.partial(_bottleneck_kernel, H=H, Wp=Wp, add=add)
    c2d = lambda b: (0, 0)
    return pl.pallas_call(
        kernel,
        out_shape=jax.ShapeDtypeStruct((B, Ni, Cp), jnp.bfloat16),
        grid=(B,),
        in_specs=[
            pl.BlockSpec((1, Np2, Cp), lambda b: (b, 0, 0)),
            pl.BlockSpec((Np2, 1), c2d),
            pl.BlockSpec((Cp, Cp), c2d),
            pl.BlockSpec((1, Cp), c2d),
            pl.BlockSpec((1, Cp), c2d),
            pl.BlockSpec((9, Cp, Cp), lambda b: (0, 0, 0)),
            pl.BlockSpec((1, Cp), c2d),
            pl.BlockSpec((1, Cp), c2d),
        ],
        out_specs=pl.BlockSpec((1, Ni, Cp), lambda b: (b, 0, 0)),
        compiler_params=pltpu.CompilerParams(
            dimension_semantics=("parallel",)),
    )(a_pad, mask, wm1, sm1, hm1, wm2, sm2, hm2)


# ----------------------------------------------------------------------------
# Kernel 3: tail
#   p1  = LeakyReLU(BN_cat[:c_](a @ W_cv3))
#   out = SiLU(BN4(p1 @ W_cv4[:c_] + p2 @ W_cv4[c_:]))
# ----------------------------------------------------------------------------
def _csp_tail_kernel(a_ref, p2_ref, w3_ref, sc1_ref, hc1_ref,
                     w4a_ref, w4b_ref, s4_ref, h4_ref, out_ref):
    a = a_ref[0]                                          # (TM, Cp) bf16
    p2 = p2_ref[0]                                        # (TM, Cp) bf16
    y1 = jnp.dot(a, w3_ref[...], preferred_element_type=jnp.float32)
    p1 = _leaky(y1 * sc1_ref[...] + hc1_ref[...]).astype(jnp.bfloat16)
    pre = (jnp.dot(p1, w4a_ref[...], preferred_element_type=jnp.float32)
           + jnp.dot(p2, w4b_ref[...], preferred_element_type=jnp.float32))
    out_ref[0] = _silu(pre * s4_ref[...] + h4_ref[...])


def _csp_tail(a_flat, p2_flat, w3, sc1, hc1, w4a, w4b, s4, h4):
    B, HW, Cp = a_flat.shape
    C2p = w4a.shape[1]
    TM = _pick_tile(HW)
    tiled = lambda b, t: (b, t, 0)
    const2 = lambda b, t: (0, 0)
    return pl.pallas_call(
        _csp_tail_kernel,
        out_shape=jax.ShapeDtypeStruct((B, HW, C2p), jnp.float32),
        grid=(B, HW // TM),
        in_specs=[
            pl.BlockSpec((1, TM, Cp), tiled),
            pl.BlockSpec((1, TM, Cp), tiled),
            pl.BlockSpec((Cp, Cp), const2),
            pl.BlockSpec((1, Cp), const2),
            pl.BlockSpec((1, Cp), const2),
            pl.BlockSpec((Cp, C2p), const2),
            pl.BlockSpec((Cp, C2p), const2),
            pl.BlockSpec((1, C2p), const2),
            pl.BlockSpec((1, C2p), const2),
        ],
        out_specs=pl.BlockSpec((1, TM, C2p), tiled),
        compiler_params=pltpu.CompilerParams(
            dimension_semantics=("parallel", "parallel")),
    )(a_flat, p2_flat, w3, sc1, hc1, w4a, w4b, s4, h4)


# ----------------------------------------------------------------------------
# Full BottleneckCSP forward
# ----------------------------------------------------------------------------
def bottleneck_csp_forward(x_nchw, params, *, shortcut=True):
    x_nchw = x_nchw.astype(jnp.float32)
    B, c1, H, W = x_nchw.shape
    c_ = params["cv1_w"].shape[0]
    c2 = params["cv4_w"].shape[0]

    C1p = _round_up(c1, _LANE)
    Cp = _round_up(c_, _LANE)
    C2p = _round_up(c2, _LANE)

    def pad_vec(v, to):
        return jnp.pad(v, (0, to - v.shape[0]))[None, :].astype(jnp.float32)

    def fold_bn(bn, to):
        scale = bn["gamma"] / jnp.sqrt(bn["var"] + _BN_EPS)
        shift = bn["beta"] - bn["mean"] * scale
        return pad_vec(scale, to), pad_vec(shift, to)

    def pad_mat(w, rows, cols):            # (in, out) -> zero-padded bf16
        return jnp.pad(w, ((0, rows - w.shape[0]),
                           (0, cols - w.shape[1]))).astype(jnp.bfloat16)

    def conv1x1_mat(w_oihw, rows, cols):   # torch (O, I, 1, 1) -> (I, O) padded
        return pad_mat(jnp.transpose(w_oihw[:, :, 0, 0], (1, 0)), rows, cols)

    # --- folded / padded parameters ---
    w1 = conv1x1_mat(params["cv1_w"], C1p, Cp)
    s1, h1 = fold_bn(params["bn1"], Cp)
    w2 = conv1x1_mat(params["cv2_w"], C1p, Cp)
    w3 = conv1x1_mat(params["cv3_w"], Cp, Cp)

    sc_all = params["bn_cat"]["gamma"] / jnp.sqrt(params["bn_cat"]["var"] + _BN_EPS)
    sh_all = params["bn_cat"]["beta"] - params["bn_cat"]["mean"] * sc_all
    sc1, hc1 = pad_vec(sc_all[:c_], Cp), pad_vec(sh_all[:c_], Cp)   # y1 half
    sc2, hc2 = pad_vec(sc_all[c_:], Cp), pad_vec(sh_all[c_:], Cp)   # y2 half

    w4 = jnp.transpose(params["cv4_w"][:, :, 0, 0], (1, 0))         # (2c_, c2)
    w4a = pad_mat(w4[:c_], Cp, C2p)
    w4b = pad_mat(w4[c_:], Cp, C2p)
    s4, h4 = fold_bn(params["bn4"], C2p)

    # --- stage 1: pointwise head (cv1 + cv2 paths, fused) ---
    x_flat = jnp.transpose(x_nchw, (0, 2, 3, 1)).reshape(B, H * W, c1)
    x_flat = jnp.pad(x_flat, ((0, 0), (0, 0), (0, C1p - c1))).astype(jnp.bfloat16)
    a, p2 = _csp_head(x_flat, w1, s1, h1, w2, sc2, hc2)             # (B, HW, Cp)

    # --- stage 2: Bottleneck chain ---
    Hp, Wp = H + 2, W + 2
    Np2 = Hp * Wp + 2                         # +2 rows keep all 3x3 taps in bounds
    rr = jnp.arange(Np2) // Wp
    cc = jnp.arange(Np2) % Wp
    mask = (((rr >= 1) & (rr <= H) & (cc >= 1) & (cc <= W))
            .astype(jnp.float32))[:, None]    # interior of the padded grid

    a = a.reshape(B, H, W, Cp)
    for mp in params["m"]:
        wm1 = conv1x1_mat(mp["cv1_w"], Cp, Cp)
        sm1, hm1 = fold_bn(mp["bn1"], Cp)
        w3x3 = jnp.transpose(mp["cv2_w"], (2, 3, 1, 0)).reshape(9, c_, c_)
        w3x3 = jnp.pad(w3x3, ((0, 0), (0, Cp - c_), (0, Cp - c_))).astype(jnp.bfloat16)
        sm2, hm2 = fold_bn(mp["bn2"], Cp)

        a_pad = jnp.pad(a, ((0, 0), (1, 1), (1, 1), (0, 0)))        # spatial zero-pad
        a_pad = a_pad.reshape(B, Hp * Wp, Cp)
        a_pad = jnp.pad(a_pad, ((0, 0), (0, 2), (0, 0)))            # (B, Np2, Cp)
        a_new = _bottleneck_stage(a_pad, mask, wm1, sm1, hm1, w3x3, sm2, hm2,
                                  H=H, Wp=Wp, add=shortcut)         # (B, H*Wp, Cp)
        a = a_new.reshape(B, H, Wp, Cp)[:, :, :W, :]                # drop seam cols

    # --- stage 3: cv3 + bn/act on the concat + cv4 (fused) ---
    a_flat = a.reshape(B, H * W, Cp)
    out_flat = _csp_tail(a_flat, p2, w3, sc1, hc1, w4a, w4b, s4, h4)
    out = out_flat[:, :, :c2].reshape(B, H, W, c2)
    return jnp.transpose(out, (0, 3, 1, 2))                         # NCHW


# ----------------------------------------------------------------------------
# Deterministic parameter init (PyTorch layouts, eval-mode BN statistics)
# ----------------------------------------------------------------------------
def init_params(key, c1, c2, n=1, e=0.5):
    c_ = int(c2 * e)
    keys = iter(jax.random.split(key, 64 + 16 * n))

    def conv_w(cout, cin, k):
        fan_in = cin * k * k
        return jax.random.normal(next(keys), (cout, cin, k, k),
                                 jnp.float32) * (1.0 / fan_in ** 0.5)

    def bn_p(c):
        return {
            "gamma": 1.0 + 0.1 * jax.random.normal(next(keys), (c,), jnp.float32),
            "beta": 0.1 * jax.random.normal(next(keys), (c,), jnp.float32),
            "mean": 0.1 * jax.random.normal(next(keys), (c,), jnp.float32),
            "var": jnp.abs(1.0 + 0.1 * jax.random.normal(next(keys), (c,),
                                                         jnp.float32)) + 0.1,
        }

    return {
        "cv1_w": conv_w(c_, c1, 1), "bn1": bn_p(c_),
        "cv2_w": conv_w(c_, c1, 1),
        "cv3_w": conv_w(c_, c_, 1),
        "cv4_w": conv_w(c2, 2 * c_, 1), "bn4": bn_p(c2),
        "bn_cat": bn_p(2 * c_),
        "m": [{"cv1_w": conv_w(c_, c_, 1), "bn1": bn_p(c_),
               "cv2_w": conv_w(c_, c_, 3), "bn2": bn_p(c_)} for _ in range(n)],
    }


if __name__ == "__main__":
    key = jax.random.PRNGKey(0)
    kx, kp = jax.random.split(key)
    B, c1, c2, H, W = 2, 8, 8, 16, 16
    x = jax.random.normal(kx, (B, c1, H, W), jnp.float32)
    params = init_params(kp, c1, c2, n=1, e=0.5)

    fwd = jax.jit(functools.partial(bottleneck_csp_forward, shortcut=True))
    out = fwd(x, params)
    jax.block_until_ready(out)
    assert out.shape == (B, c2, H, W), out.shape
    assert bool(jnp.all(jnp.isfinite(out)))
    print("KERNEL_OK")
</pallas_src>

<mosaic_0001>
module attributes {stable_mosaic.version = 11 : i64} {
  func.func @_csp_head_kernel(%arg0: i32, %arg1: i32, %arg2: memref<1x256x128xbf16, #tpu.memory_space<vmem>>, %arg3: memref<128x128xbf16, #tpu.memory_space<vmem>>, %arg4: memref<1x128xf32, #tpu.memory_space<vmem>>, %arg5: memref<1x128xf32, #tpu.memory_space<vmem>>, %arg6: memref<128x128xbf16, #tpu.memory_space<vmem>>, %arg7: memref<1x128xf32, #tpu.memory_space<vmem>>, %arg8: memref<1x128xf32, #tpu.memory_space<vmem>>, %arg9: memref<1x256x128xbf16, #tpu.memory_space<vmem>>, %arg10: memref<1x256x128xbf16, #tpu.memory_space<vmem>>) attributes {dimension_semantics = [#tpu.dimension_semantics<parallel>, #tpu.dimension_semantics<parallel>], iteration_bounds = array<i64: 2, 1>, scalar_prefetch = 0 : i64, scratch_operands = 0 : i64, tpu.core_type = #tpu.core_type<tc>, window_params = [{transform_indices = @transform_0, window_bounds = array<i64: 1, 256, 128>}, {pipeline_mode = #tpu.pipeline_mode<synchronous>, transform_indices = @transform_1, window_bounds = array<i64: 128, 128>}, {pipeline_mode = #tpu.pipeline_mode<synchronous>, transform_indices = @transform_2, window_bounds = array<i64: 1, 128>}, {pipeline_mode = #tpu.pipeline_mode<synchronous>, transform_indices = @transform_3, window_bounds = array<i64: 1, 128>}, {pipeline_mode = #tpu.pipeline_mode<synchronous>, transform_indices = @transform_4, window_bounds = array<i64: 128, 128>}, {pipeline_mode = #tpu.pipeline_mode<synchronous>, transform_indices = @transform_5, window_bounds = array<i64: 1, 128>}, {pipeline_mode = #tpu.pipeline_mode<synchronous>, transform_indices = @transform_6, window_bounds = array<i64: 1, 128>}, {transform_indices = @transform_7, window_bounds = array<i64: 1, 256, 128>}, {transform_indices = @transform_8, window_bounds = array<i64: 1, 256, 128>}]} {
    %c0 = arith.constant 0 : index
    %c0_0 = arith.constant 0 : index
    %c0_1 = arith.constant 0 : index
    %0 = vector.load %arg2[%c0, %c0_0, %c0_1] : memref<1x256x128xbf16, #tpu.memory_space<vmem>>, vector<1x256x128xbf16>
    %1 = vector.shape_cast %0 : vector<1x256x128xbf16> to vector<256x128xbf16>
    %c0_2 = arith.constant 0 : index
    %c0_3 = arith.constant 0 : index
    %2 = vector.load %arg3[%c0_2, %c0_3] : memref<128x128xbf16, #tpu.memory_space<vmem>>, vector<128x128xbf16>
    %cst = arith.constant dense<0.000000e+00> : vector<256x128xf32>
    %3 = tpu.matmul %1, %2, %cst {dimension_numbers = #tpu.dot_dimension_numbers<[1], [0], [0], [1], [0, 0, 1, 1], [], []>} : vector<256x128xbf16>, vector<128x128xbf16>, vector<256x128xf32> -> vector<256x128xf32>
    %c0_4 = arith.constant 0 : index
    %c0_5 = arith.constant 0 : index
    %4 = vector.load %arg4[%c0_4, %c0_5] : memref<1x128xf32, #tpu.memory_space<vmem>>, vector<1x128xf32>
    %5 = vector.broadcast %4 : vector<1x128xf32> to vector<256x128xf32>
    %6 = arith.mulf %3, %5 : vector<256x128xf32>
    %c0_6 = arith.constant 0 : index
    %c0_7 = arith.constant 0 : index
    %7 = vector.load %arg5[%c0_6, %c0_7] : memref<1x128xf32, #tpu.memory_space<vmem>>, vector<1x128xf32>
    %8 = vector.broadcast %7 : vector<1x128xf32> to vector<256x128xf32>
    %9 = arith.addf %6, %8 : vector<256x128xf32>
    %cst_8 = arith.constant 0.000000e+00 : f32
    %10 = vector.broadcast %cst_8 : f32 to vector<256x128xf32>
    %11 = arith.subf %10, %9 : vector<256x128xf32>
    %12 = math.exp %11 : vector<256x128xf32>
    %cst_9 = arith.constant 1.000000e+00 : f32
    %13 = vector.broadcast %cst_9 : f32 to vector<256x128xf32>
    %14 = arith.addf %13, %12 : vector<256x128xf32>
    %cst_10 = arith.constant 1.000000e+00 : f32
    %15 = vector.broadcast %cst_10 : f32 to vector<256x128xf32>
    %16 = arith.divf %15, %14 : vector<256x128xf32>
    %17 = arith.mulf %9, %16 : vector<256x128xf32>
    %c0_11 = arith.constant 0 : index
    %c0_12 = arith.constant 0 : index
    %18 = vector.load %arg6[%c0_11, %c0_12] : memref<128x128xbf16, #tpu.memory_space<vmem>>, vector<128x128xbf16>
    %cst_13 = arith.constant dense<0.000000e+00> : vector<256x128xf32>
    %19 = tpu.matmul %1, %18, %cst_13 {dimension_numbers = #tpu.dot_dimension_numbers<[1], [0], [0], [1], [0, 0, 1, 1], [], []>} : vector<256x128xbf16>, vector<128x128xbf16>, vector<256x128xf32> -> vector<256x128xf32>
    %c0_14 = arith.constant 0 : index
    %c0_15 = arith.constant 0 : index
    %20 = vector.load %arg7[%c0_14, %c0_15] : memref<1x128xf32, #tpu.memory_space<vmem>>, vector<1x128xf32>
    %21 = vector.broadcast %20 : vector<1x128xf32> to vector<256x128xf32>
    %22 = arith.mulf %19, %21 : vector<256x128xf32>
    %c0_16 = arith.constant 0 : index
    %c0_17 = arith.constant 0 : index
    %23 = vector.load %arg8[%c0_16, %c0_17] : memref<1x128xf32, #tpu.memory_space<vmem>>, vector<1x128xf32>
    %24 = vector.broadcast %23 : vector<1x128xf32> to vector<256x128xf32>
    %25 = arith.addf %22, %24 : vector<256x128xf32>
    %cst_18 = arith.constant 0.000000e+00 : f32
    %26 = vector.broadcast %cst_18 : f32 to vector<256x128xf32>
    %27 = arith.cmpf oge, %25, %26 : vector<256x128xf32>
    %cst_19 = arith.constant 1.000000e-01 : f32
    %28 = vector.broadcast %cst_19 : f32 to vector<256x128xf32>
    %29 = arith.mulf %28, %25 : vector<256x128xf32>
    %30 = arith.select %27, %25, %29 : vector<256x128xi1>, vector<256x128xf32>
    %31 = arith.truncf %17 : vector<256x128xf32> to vector<256x128xbf16>
    %c0_20 = arith.constant 0 : index
    %c0_21 = arith.constant 0 : index
    %c0_22 = arith.constant 0 : index
    %32 = vector.load %arg9[%c0_20, %c0_21, %c0_22] : memref<1x256x128xbf16, #tpu.memory_space<vmem>>, vector<1x256x128xbf16>
    %33 = vector.shape_cast %32 : vector<1x256x128xbf16> to vector<256x128xbf16>
    %34 = vector.shape_cast %31 : vector<256x128xbf16> to vector<1x256x128xbf16>
    tpu.vector_store %arg9[%c0_20, %c0_21, %c0_22], %34 {strides = array<i32>} : memref<1x256x128xbf16, #tpu.memory_space<vmem>>, vector<1x256x128xbf16>,
    %35 = arith.truncf %30 : vector<256x128xf32> to vector<256x128xbf16>
    %c0_23 = arith.constant 0 : index
    %c0_24 = arith.constant 0 : index
    %c0_25 = arith.constant 0 : index
    %36 = vector.load %arg10[%c0_23, %c0_24, %c0_25] : memref<1x256x128xbf16, #tpu.memory_space<vmem>>, vector<1x256x128xbf16>
    %37 = vector.shape_cast %36 : vector<1x256x128xbf16> to vector<256x128xbf16>
    %38 = vector.shape_cast %35 : vector<256x128xbf16> to vector<1x256x128xbf16>
    tpu.vector_store %arg10[%c0_23, %c0_24, %c0_25], %38 {strides = array<i32>} : memref<1x256x128xbf16, #tpu.memory_space<vmem>>, vector<1x256x128xbf16>,
    return
  }
  func.func @transform_0(%arg0: i32, %arg1: i32) -> (i32, i32, i32) {
    %c0_i32 = arith.constant 0 : i32
    %c0_i32_0 = arith.constant 0 : i32
    return %arg0, %arg1, %c0_i32 : i32, i32, i32
  }
  func.func @transform_1(%arg0: i32, %arg1: i32) -> (i32, i32) {
    %c0_i32 = arith.constant 0 : i32
    %c0_i32_0 = arith.constant 0 : i32
    %c0_i32_1 = arith.constant 0 : i32
    return %c0_i32, %c0_i32_0 : i32, i32
  }
  func.func @transform_2(%arg0: i32, %arg1: i32) -> (i32, i32) {
    %c0_i32 = arith.constant 0 : i32
    %c0_i32_0 = arith.constant 0 : i32
    %c0_i32_1 = arith.constant 0 : i32
    return %c0_i32, %c0_i32_0 : i32, i32
  }
  func.func @transform_3(%arg0: i32, %arg1: i32) -> (i32, i32) {
    %c0_i32 = arith.constant 0 : i32
    %c0_i32_0 = arith.constant 0 : i32
    %c0_i32_1 = arith.constant 0 : i32
    return %c0_i32, %c0_i32_0 : i32, i32
  }
  func.func @transform_4(%arg0: i32, %arg1: i32) -> (i32, i32) {
    %c0_i32 = arith.constant 0 : i32
    %c0_i32_0 = arith.constant 0 : i32
    %c0_i32_1 = arith.constant 0 : i32
    return %c0_i32, %c0_i32_0 : i32, i32
  }
  func.func @transform_5(%arg0: i32, %arg1: i32) -> (i32, i32) {
    %c0_i32 = arith.constant 0 : i32
    %c0_i32_0 = arith.constant 0 : i32
    %c0_i32_1 = arith.constant 0 : i32
    return %c0_i32, %c0_i32_0 : i32, i32
  }
  func.func @transform_6(%arg0: i32, %arg1: i32) -> (i32, i32) {
    %c0_i32 = arith.constant 0 : i32
    %c0_i32_0 = arith.constant 0 : i32
    %c0_i32_1 = arith.constant 0 : i32
    return %c0_i32, %c0_i32_0 : i32, i32
  }
  func.func @transform_7(%arg0: i32, %arg1: i32) -> (i32, i32, i32) {
    %c0_i32 = arith.constant 0 : i32
    %c0_i32_0 = arith.constant 0 : i32
    return %arg0, %arg1, %c0_i32 : i32, i32, i32
  }
  func.func @transform_8(%arg0: i32, %arg1: i32) -> (i32, i32, i32) {
    %c0_i32 = arith.constant 0 : i32
    %c0_i32_0 = arith.constant 0 : i32
    return %arg0, %arg1, %c0_i32 : i32, i32, i32
  }
}

module attributes {stable_mosaic.version = 11 : i64} {
  func.func @_bottleneck_kernel(%arg0: i32, %arg1: memref<1x326x128xbf16, #tpu.memory_space<vmem>>, %arg2: memref<326x1xf32, #tpu.memory_space<vmem>>, %arg3: memref<128x128xbf16, #tpu.memory_space<vmem>>, %arg4: memref<1x128xf32, #tpu.memory_space<vmem>>, %arg5: memref<1x128xf32, #tpu.memory_space<vmem>>, %arg6: memref<9x128x128xbf16, #tpu.memory_space<vmem>>, %arg7: memref<1x128xf32, #tpu.memory_space<vmem>>, %arg8: memref<1x128xf32, #tpu.memory_space<vmem>>, %arg9: memref<1x288x128xbf16, #tpu.memory_space<vmem>>) attributes {dimension_semantics = [#tpu.dimension_semantics<parallel>], iteration_bounds = array<i64: 2>, scalar_prefetch = 0 : i64, scratch_operands = 0 : i64, tpu.core_type = #tpu.core_type<tc>, window_params = [{transform_indices = @transform_0, window_bounds = array<i64: 1, 326, 128>}, {pipeline_mode = #tpu.pipeline_mode<synchronous>, transform_indices = @transform_1, window_bounds = array<i64: 326, 1>}, {pipeline_mode = #tpu.pipeline_mode<synchronous>, transform_indices = @transform_2, window_bounds = array<i64: 128, 128>}, {pipeline_mode = #tpu.pipeline_mode<synchronous>, transform_indices = @transform_3, window_bounds = array<i64: 1, 128>}, {pipeline_mode = #tpu.pipeline_mode<synchronous>, transform_indices = @transform_4, window_bounds = array<i64: 1, 128>}, {pipeline_mode = #tpu.pipeline_mode<synchronous>, transform_indices = @transform_5, window_bounds = array<i64: 9, 128, 128>}, {pipeline_mode = #tpu.pipeline_mode<synchronous>, transform_indices = @transform_6, window_bounds = array<i64: 1, 128>}, {pipeline_mode = #tpu.pipeline_mode<synchronous>, transform_indices = @transform_7, window_bounds = array<i64: 1, 128>}, {transform_indices = @transform_8, window_bounds = array<i64: 1, 288, 128>}]} {
    %c0 = arith.constant 0 : index
    %c0_0 = arith.constant 0 : index
    %c0_1 = arith.constant 0 : index
    %0 = vector.load %arg1[%c0, %c0_0, %c0_1] : memref<1x326x128xbf16, #tpu.memory_space<vmem>>, vector<1x326x128xbf16>
    %1 = vector.shape_cast %0 : vector<1x326x128xbf16> to vector<326x128xbf16>
    %c0_2 = arith.constant 0 : index
    %c0_3 = arith.constant 0 : index
    %2 = vector.load %arg3[%c0_2, %c0_3] : memref<128x128xbf16, #tpu.memory_space<vmem>>, vector<128x128xbf16>
    %cst = arith.constant dense<0.000000e+00> : vector<326x128xf32>
    %3 = tpu.matmul %1, %2, %cst {dimension_numbers = #tpu.dot_dimension_numbers<[1], [0], [0], [1], [0, 0, 1, 1], [], []>} : vector<326x128xbf16>, vector<128x128xbf16>, vector<326x128xf32> -> vector<326x128xf32>
    %c0_4 = arith.constant 0 : index
    %c0_5 = arith.constant 0 : index
    %4 = vector.load %arg4[%c0_4, %c0_5] : memref<1x128xf32, #tpu.memory_space<vmem>>, vector<1x128xf32>
    %5 = vector.broadcast %4 : vector<1x128xf32> to vector<326x128xf32>
    %6 = arith.mulf %3, %5 : vector<326x128xf32>
    %c0_6 = arith.constant 0 : index
    %c0_7 = arith.constant 0 : index
    %7 = vector.load %arg5[%c0_6, %c0_7] : memref<1x128xf32, #tpu.memory_space<vmem>>, vector<1x128xf32>
    %8 = vector.broadcast %7 : vector<1x128xf32> to vector<326x128xf32>
    %9 = arith.addf %6, %8 : vector<326x128xf32>
    %cst_8 = arith.constant 0.000000e+00 : f32
    %10 = vector.broadcast %cst_8 : f32 to vector<326x128xf32>
    %11 = arith.subf %10, %9 : vector<326x128xf32>
    %12 = math.exp %11 : vector<326x128xf32>
    %cst_9 = arith.constant 1.000000e+00 : f32
    %13 = vector.broadcast %cst_9 : f32 to vector<326x128xf32>
    %14 = arith.addf %13, %12 : vector<326x128xf32>
    %cst_10 = arith.constant 1.000000e+00 : f32
    %15 = vector.broadcast %cst_10 : f32 to vector<326x128xf32>
    %16 = arith.divf %15, %14 : vector<326x128xf32>
    %17 = arith.mulf %9, %16 : vector<326x128xf32>
    %c0_11 = arith.constant 0 : index
    %c0_12 = arith.constant 0 : index
    %18 = vector.load %arg2[%c0_11, %c0_12] : memref<326x1xf32, #tpu.memory_space<vmem>>, vector<326x1xf32>
    %19 = vector.broadcast %18 : vector<326x1xf32> to vector<326x128xf32>
    %20 = arith.mulf %17, %19 : vector<326x128xf32>
    %cst_13 = arith.constant 0.000000e+00 : f32
    %21 = vector.broadcast %cst_13 : f32 to vector<288x128xf32>
    %22 = vector.extract_strided_slice %20 {offsets = [0, 0], sizes = [288, 128], strides = [1, 1]} : vector<326x128xf32> to vector<288x128xf32>
    %23 = arith.truncf %22 : vector<288x128xf32> to vector<288x128xbf16>
    %c0_14 = arith.constant 0 : index
    %c0_15 = arith.constant 0 : index
    %c0_16 = arith.constant 0 : index
    %24 = vector.load %arg6[%c0_14, %c0_15, %c0_16] : memref<9x128x128xbf16, #tpu.memory_space<vmem>>, vector<1x128x128xbf16>
    %25 = vector.shape_cast %24 : vector<1x128x128xbf16> to vector<128x128xbf16>
    %cst_17 = arith.constant dense<0.000000e+00> : vector<288x128xf32>
    %26 = tpu.matmul %23, %25, %cst_17 {dimension_numbers = #tpu.dot_dimension_numbers<[1], [0], [0], [1], [0, 0, 1, 1], [], []>} : vector<288x128xbf16>, vector<128x128xbf16>, vector<288x128xf32> -> vector<288x128xf32>
    %27 = arith.addf %21, %26 : vector<288x128xf32>
    %28 = vector.extract_strided_slice %20 {offsets = [1, 0], sizes = [288, 128], strides = [1, 1]} : vector<326x128xf32> to vector<288x128xf32>
    %29 = arith.truncf %28 : vector<288x128xf32> to vector<288x128xbf16>
    %c1 = arith.constant 1 : index
    %c0_18 = arith.constant 0 : index
    %c0_19 = arith.constant 0 : index
    %30 = vector.load %arg6[%c1, %c0_18, %c0_19] : memref<9x128x128xbf16, #tpu.memory_space<vmem>>, vector<1x128x128xbf16>
    %31 = vector.shape_cast %30 : vector<1x128x128xbf16> to vector<128x128xbf16>
    %cst_20 = arith.constant dense<0.000000e+00> : vector<288x128xf32>
    %32 = tpu.matmul %29, %31, %cst_20 {dimension_numbers = #tpu.dot_dimension_numbers<[1], [0], [0], [1], [0, 0, 1, 1], [], []>} : vector<288x128xbf16>, vector<128x128xbf16>, vector<288x128xf32> -> vector<288x128xf32>
    %33 = arith.addf %27, %32 : vector<288x128xf32>
    %34 = vector.extract_strided_slice %20 {offsets = [2, 0], sizes = [288, 128], strides = [1, 1]} : vector<326x128xf32> to vector<288x128xf32>
    %35 = arith.truncf %34 : vector<288x128xf32> to vector<288x128xbf16>
    %c2 = arith.constant 2 : index
    %c0_21 = arith.constant 0 : index
    %c0_22 = arith.constant 0 : index
    %36 = vector.load %arg6[%c2, %c0_21, %c0_22] : memref<9x128x128xbf16, #tpu.memory_space<vmem>>, vector<1x128x128xbf16>
    %37 = vector.shape_cast %36 : vector<1x128x128xbf16> to vector<128x128xbf16>
    %cst_23 = arith.constant dense<0.000000e+00> : vector<288x128xf32>
    %38 = tpu.matmul %35, %37, %cst_23 {dimension_numbers = #tpu.dot_dimension_numbers<[1], [0], [0], [1], [0, 0, 1, 1], [], []>} : vector<288x128xbf16>, vector<128x128xbf16>, vector<288x128xf32> -> vector<288x128xf32>
    %39 = arith.addf %33, %38 : vector<288x128xf32>
    %40 = vector.extract_strided_slice %20 {offsets = [18, 0], sizes = [288, 128], strides = [1, 1]} : vector<326x128xf32> to vector<288x128xf32>
    %41 = arith.truncf %40 : vector<288x128xf32> to vector<288x128xbf16>
    %c3 = arith.constant 3 : index
    %c0_24 = arith.constant 0 : index
    %c0_25 = arith.constant 0 : index
    %42 = vector.load %arg6[%c3, %c0_24, %c0_25] : memref<9x128x128xbf16, #tpu.memory_space<vmem>>, vector<1x128x128xbf16>
    %43 = vector.shape_cast %42 : vector<1x128x128xbf16> to vector<128x128xbf16>
    %cst_26 = arith.constant dense<0.000000e+00> : vector<288x128xf32>
    %44 = tpu.matmul %41, %43, %cst_26 {dimension_numbers = #tpu.dot_dimension_numbers<[1], [0], [0], [1], [0, 0, 1, 1], [], []>} : vector<288x128xbf16>, vector<128x128xbf16>, vector<288x128xf32> -> vector<288x128xf32>
    %45 = arith.addf %39, %44 : vector<288x128xf32>
    %46 = vector.extract_strided_slice %20 {offsets = [19, 0], sizes = [288, 128], strides = [1, 1]} : vector<326x128xf32> to vector<288x128xf32>
    %47 = arith.truncf %46 : vector<288x128xf32> to vector<288x128xbf16>
    %c4 = arith.constant 4 : index
    %c0_27 = arith.constant 0 : index
    %c0_28 = arith.constant 0 : index
    %48 = vector.load %arg6[%c4, %c0_27, %c0_28] : memref<9x128x128xbf16, #tpu.memory_space<vmem>>, vector<1x128x128xbf16>
    %49 = vector.shape_cast %48 : vector<1x128x128xbf16> to vector<128x128xbf16>
    %cst_29 = arith.constant dense<0.000000e+00> : vector<288x128xf32>
    %50 = tpu.matmul %47, %49, %cst_29 {dimension_numbers = #tpu.dot_dimension_numbers<[1], [0], [0], [1], [0, 0, 1, 1], [], []>} : vector<288x128xbf16>, vector<128x128xbf16>, vector<288x128xf32> -> vector<288x128xf32>
    %51 = arith.addf %45, %50 : vector<288x128xf32>
    %52 = vector.extract_strided_slice %20 {offsets = [20, 0], sizes = [288, 128], strides = [1, 1]} : vector<326x128xf32> to vector<288x128xf32>
    %53 = arith.truncf %52 : vector<288x128xf32> to vector<288x128xbf16>
    %c5 = arith.constant 5 : index
    %c0_30 = arith.constant 0 : index
    %c0_31 = arith.constant 0 : index
    %54 = vector.load %arg6[%c5, %c0_30, %c0_31] : memref<9x128x128xbf16, #tpu.memory_space<vmem>>, vector<1x128x128xbf16>
    %55 = vector.shape_cast %54 : vector<1x128x128xbf16> to vector<128x128xbf16>
    %cst_32 = arith.constant dense<0.000000e+00> : vector<288x128xf32>
    %56 = tpu.matmul %53, %55, %cst_32 {dimension_numbers = #tpu.dot_dimension_numbers<[1], [0], [0], [1], [0, 0, 1, 1], [], []>} : vector<288x128xbf16>, vector<128x128xbf16>, vector<288x128xf32> -> vector<288x128xf32>
    %57 = arith.addf %51, %56 : vector<288x128xf32>
    %58 = vector.extract_strided_slice %20 {offsets = [36, 0], sizes = [288, 128], strides = [1, 1]} : vector<326x128xf32> to vector<288x128xf32>
    %59 = arith.truncf %58 : vector<288x128xf32> to vector<288x128xbf16>
    %c6 = arith.constant 6 : index
    %c0_33 = arith.constant 0 : index
    %c0_34 = arith.constant 0 : index
    %60 = vector.load %arg6[%c6, %c0_33, %c0_34] : memref<9x128x128xbf16, #tpu.memory_space<vmem>>, vector<1x128x128xbf16>
    %61 = vector.shape_cast %60 : vector<1x128x128xbf16> to vector<128x128xbf16>
    %cst_35 = arith.constant dense<0.000000e+00> : vector<288x128xf32>
    %62 = tpu.matmul %59, %61, %cst_35 {dimension_numbers = #tpu.dot_dimension_numbers<[1], [0], [0], [1], [0, 0, 1, 1], [], []>} : vector<288x128xbf16>, vector<128x128xbf16>, vector<288x128xf32> -> vector<288x128xf32>
    %63 = arith.addf %57, %62 : vector<288x128xf32>
    %64 = vector.extract_strided_slice %20 {offsets = [37, 0], sizes = [288, 128], strides = [1, 1]} : vector<326x128xf32> to vector<288x128xf32>
    %65 = arith.truncf %64 : vector<288x128xf32> to vector<288x128xbf16>
    %c7 = arith.constant 7 : index
    %c0_36 = arith.constant 0 : index
    %c0_37 = arith.constant 0 : index
    %66 = vector.load %arg6[%c7, %c0_36, %c0_37] : memref<9x128x128xbf16, #tpu.memory_space<vmem>>, vector<1x128x128xbf16>
    %67 = vector.shape_cast %66 : vector<1x128x128xbf16> to vector<128x128xbf16>
    %cst_38 = arith.constant dense<0.000000e+00> : vector<288x128xf32>
    %68 = tpu.matmul %65, %67, %cst_38 {dimension_numbers = #tpu.dot_dimension_numbers<[1], [0], [0], [1], [0, 0, 1, 1], [], []>} : vector<288x128xbf16>, vector<128x128xbf16>, vector<288x128xf32> -> vector<288x128xf32>
    %69 = arith.addf %63, %68 : vector<288x128xf32>
    %70 = vector.extract_strided_slice %20 {offsets = [38, 0], sizes = [288, 128], strides = [1, 1]} : vector<326x128xf32> to vector<288x128xf32>
    %71 = arith.truncf %70 : vector<288x128xf32> to vector<288x128xbf16>
    %c8 = arith.constant 8 : index
    %c0_39 = arith.constant 0 : index
    %c0_40 = arith.constant 0 : index
    %72 = vector.load %arg6[%c8, %c0_39, %c0_40] : memref<9x128x128xbf16, #tpu.memory_space<vmem>>, vector<1x128x128xbf16>
    %73 = vector.shape_cast %72 : vector<1x128x128xbf16> to vector<128x128xbf16>
    %cst_41 = arith.constant dense<0.000000e+00> : vector<288x128xf32>
    %74 = tpu.matmul %71, %73, %cst_41 {dimension_numbers = #tpu.dot_dimension_numbers<[1], [0], [0], [1], [0, 0, 1, 1], [], []>} : vector<288x128xbf16>, vector<128x128xbf16>, vector<288x128xf32> -> vector<288x128xf32>
    %75 = arith.addf %69, %74 : vector<288x128xf32>
    %c0_42 = arith.constant 0 : index
    %c0_43 = arith.constant 0 : index
    %76 = vector.load %arg7[%c0_42, %c0_43] : memref<1x128xf32, #tpu.memory_space<vmem>>, vector<1x128xf32>
    %77 = vector.broadcast %76 : vector<1x128xf32> to vector<288x128xf32>
    %78 = arith.mulf %75, %77 : vector<288x128xf32>
    %c0_44 = arith.constant 0 : index
    %c0_45 = arith.constant 0 : index
    %79 = vector.load %arg8[%c0_44, %c0_45] : memref<1x128xf32, #tpu.memory_space<vmem>>, vector<1x128xf32>
    %80 = vector.broadcast %79 : vector<1x128xf32> to vector<288x128xf32>
    %81 = arith.addf %78, %80 : vector<288x128xf32>
    %cst_46 = arith.constant 0.000000e+00 : f32
    %82 = vector.broadcast %cst_46 : f32 to vector<288x128xf32>
    %83 = arith.subf %82, %81 : vector<288x128xf32>
    %84 = math.exp %83 : vector<288x128xf32>
    %cst_47 = arith.constant 1.000000e+00 : f32
    %85 = vector.broadcast %cst_47 : f32 to vector<288x128xf32>
    %86 = arith.addf %85, %84 : vector<288x128xf32>
    %cst_48 = arith.constant 1.000000e+00 : f32
    %87 = vector.broadcast %cst_48 : f32 to vector<288x128xf32>
    %88 = arith.divf %87, %86 : vector<288x128xf32>
    %89 = arith.mulf %81, %88 : vector<288x128xf32>
    %90 = vector.extract_strided_slice %1 {offsets = [19, 0], sizes = [288, 128], strides = [1, 1]} : vector<326x128xbf16> to vector<288x128xbf16>
    %91 = arith.extf %90 : vector<288x128xbf16> to vector<288x128xf32>
    %92 = arith.addf %89, %91 : vector<288x128xf32>
    %93 = arith.truncf %92 : vector<288x128xf32> to vector<288x128xbf16>
    %c0_49 = arith.constant 0 : index
    %c0_50 = arith.constant 0 : index
    %c0_51 = arith.constant 0 : index
    %94 = vector.load %arg9[%c0_49, %c0_50, %c0_51] : memref<1x288x128xbf16, #tpu.memory_space<vmem>>, vector<1x288x128xbf16>
    %95 = vector.shape_cast %94 : vector<1x288x128xbf16> to vector<288x128xbf16>
    %96 = vector.shape_cast %93 : vector<288x128xbf16> to vector<1x288x128xbf16>
    tpu.vector_store %arg9[%c0_49, %c0_50, %c0_51], %96 {strides = array<i32>} : memref<1x288x128xbf16, #tpu.memory_space<vmem>>, vector<1x288x128xbf16>,
    return
  }
  func.func @transform_0(%arg0: i32) -> (i32, i32, i32) {
    %c0_i32 = arith.constant 0 : i32
    %c0_i32_0 = arith.constant 0 : i32
    %c0_i32_1 = arith.constant 0 : i32
    return %arg0, %c0_i32, %c0_i32_0 : i32, i32, i32
  }
  func.func @transform_1(%arg0: i32) -> (i32, i32) {
    %c0_i32 = arith.constant 0 : i32
    %c0_i32_0 = arith.constant 0 : i32
    %c0_i32_1 = arith.constant 0 : i32
    return %c0_i32, %c0_i32_0 : i32, i32
  }
  func.func @transform_2(%arg0: i32) -> (i32, i32) {
    %c0_i32 = arith.constant 0 : i32
    %c0_i32_0 = arith.constant 0 : i32
    %c0_i32_1 = arith.constant 0 : i32
    return %c0_i32, %c0_i32_0 : i32, i32
  }
  func.func @transform_3(%arg0: i32) -> (i32, i32) {
    %c0_i32 = arith.constant 0 : i32
    %c0_i32_0 = arith.constant 0 : i32
    %c0_i32_1 = arith.constant 0 : i32
    return %c0_i32, %c0_i32_0 : i32, i32
  }
  func.func @transform_4(%arg0: i32) -> (i32, i32) {
    %c0_i32 = arith.constant 0 : i32
    %c0_i32_0 = arith.constant 0 : i32
    %c0_i32_1 = arith.constant 0 : i32
    return %c0_i32, %c0_i32_0 : i32, i32
  }
  func.func @transform_5(%arg0: i32) -> (i32, i32, i32) {
    %c0_i32 = arith.constant 0 : i32
    %c0_i32_0 = arith.constant 0 : i32
    %c0_i32_1 = arith.constant 0 : i32
    %c0_i32_2 = arith.constant 0 : i32
    return %c0_i32, %c0_i32_0, %c0_i32_1 : i32, i32, i32
  }
  func.func @transform_6(%arg0: i32) -> (i32, i32) {
    %c0_i32 = arith.constant 0 : i32
    %c0_i32_0 = arith.constant 0 : i32
    %c0_i32_1 = arith.constant 0 : i32
    return %c0_i32, %c0_i32_0 : i32, i32
  }
  func.func @transform_7(%arg0: i32) -> (i32, i32) {
    %c0_i32 = arith.constant 0 : i32
    %c0_i32_0 = arith.constant 0 : i32
    %c0_i32_1 = arith.constant 0 : i32
    return %c0_i32, %c0_i32_0 : i32, i32
  }
  func.func @transform_8(%arg0: i32) -> (i32, i32, i32) {
    %c0_i32 = arith.constant 0 : i32
    %c0_i32_0 = arith.constant 0 : i32
    %c0_i32_1 = arith.constant 0 : i32
    return %arg0, %c0_i32, %c0_i32_0 : i32, i32, i32
  }
}

module attributes {stable_mosaic.version = 11 : i64} {
  func.func @_csp_tail_kernel(%arg0: i32, %arg1: i32, %arg2: memref<1x256x128xbf16, #tpu.memory_space<vmem>>, %arg3: memref<1x256x128xbf16, #tpu.memory_space<vmem>>, %arg4: memref<128x128xbf16, #tpu.memory_space<vmem>>, %arg5: memref<1x128xf32, #tpu.memory_space<vmem>>, %arg6: memref<1x128xf32, #tpu.memory_space<vmem>>, %arg7: memref<128x128xbf16, #tpu.memory_space<vmem>>, %arg8: memref<128x128xbf16, #tpu.memory_space<vmem>>, %arg9: memref<1x128xf32, #tpu.memory_space<vmem>>, %arg10: memref<1x128xf32, #tpu.memory_space<vmem>>, %arg11: memref<1x256x128xf32, #tpu.memory_space<vmem>>) attributes {dimension_semantics = [#tpu.dimension_semantics<parallel>, #tpu.dimension_semantics<parallel>], iteration_bounds = array<i64: 2, 1>, scalar_prefetch = 0 : i64, scratch_operands = 0 : i64, tpu.core_type = #tpu.core_type<tc>, window_params = [{transform_indices = @transform_0, window_bounds = array<i64: 1, 256, 128>}, {transform_indices = @transform_1, window_bounds = array<i64: 1, 256, 128>}, {pipeline_mode = #tpu.pipeline_mode<synchronous>, transform_indices = @transform_2, window_bounds = array<i64: 128, 128>}, {pipeline_mode = #tpu.pipeline_mode<synchronous>, transform_indices = @transform_3, window_bounds = array<i64: 1, 128>}, {pipeline_mode = #tpu.pipeline_mode<synchronous>, transform_indices = @transform_4, window_bounds = array<i64: 1, 128>}, {pipeline_mode = #tpu.pipeline_mode<synchronous>, transform_indices = @transform_5, window_bounds = array<i64: 128, 128>}, {pipeline_mode = #tpu.pipeline_mode<synchronous>, transform_indices = @transform_6, window_bounds = array<i64: 128, 128>}, {pipeline_mode = #tpu.pipeline_mode<synchronous>, transform_indices = @transform_7, window_bounds = array<i64: 1, 128>}, {pipeline_mode = #tpu.pipeline_mode<synchronous>, transform_indices = @transform_8, window_bounds = array<i64: 1, 128>}, {transform_indices = @transform_9, window_bounds = array<i64: 1, 256, 128>}]} {
    %c0 = arith.constant 0 : index
    %c0_0 = arith.constant 0 : index
    %c0_1 = arith.constant 0 : index
    %0 = vector.load %arg2[%c0, %c0_0, %c0_1] : memref<1x256x128xbf16, #tpu.memory_space<vmem>>, vector<1x256x128xbf16>
    %1 = vector.shape_cast %0 : vector<1x256x128xbf16> to vector<256x128xbf16>
    %c0_2 = arith.constant 0 : index
    %c0_3 = arith.constant 0 : index
    %c0_4 = arith.constant 0 : index
    %2 = vector.load %arg3[%c0_2, %c0_3, %c0_4] : memref<1x256x128xbf16, #tpu.memory_space<vmem>>, vector<1x256x128xbf16>
    %3 = vector.shape_cast %2 : vector<1x256x128xbf16> to vector<256x128xbf16>
    %c0_5 = arith.constant 0 : index
    %c0_6 = arith.constant 0 : index
    %4 = vector.load %arg4[%c0_5, %c0_6] : memref<128x128xbf16, #tpu.memory_space<vmem>>, vector<128x128xbf16>
    %cst = arith.constant dense<0.000000e+00> : vector<256x128xf32>
    %5 = tpu.matmul %1, %4, %cst {dimension_numbers = #tpu.dot_dimension_numbers<[1], [0], [0], [1], [0, 0, 1, 1], [], []>} : vector<256x128xbf16>, vector<128x128xbf16>, vector<256x128xf32> -> vector<256x128xf32>
    %c0_7 = arith.constant 0 : index
    %c0_8 = arith.constant 0 : index
    %6 = vector.load %arg5[%c0_7, %c0_8] : memref<1x128xf32, #tpu.memory_space<vmem>>, vector<1x128xf32>
    %7 = vector.broadcast %6 : vector<1x128xf32> to vector<256x128xf32>
    %8 = arith.mulf %5, %7 : vector<256x128xf32>
    %c0_9 = arith.constant 0 : index
    %c0_10 = arith.constant 0 : index
    %9 = vector.load %arg6[%c0_9, %c0_10] : memref<1x128xf32, #tpu.memory_space<vmem>>, vector<1x128xf32>
    %10 = vector.broadcast %9 : vector<1x128xf32> to vector<256x128xf32>
    %11 = arith.addf %8, %10 : vector<256x128xf32>
    %cst_11 = arith.constant 0.000000e+00 : f32
    %12 = vector.broadcast %cst_11 : f32 to vector<256x128xf32>
    %13 = arith.cmpf oge, %11, %12 : vector<256x128xf32>
    %cst_12 = arith.constant 1.000000e-01 : f32
    %14 = vector.broadcast %cst_12 : f32 to vector<256x128xf32>
    %15 = arith.mulf %14, %11 : vector<256x128xf32>
    %16 = arith.select %13, %11, %15 : vector<256x128xi1>, vector<256x128xf32>
    %17 = arith.truncf %16 : vector<256x128xf32> to vector<256x128xbf16>
    %c0_13 = arith.constant 0 : index
    %c0_14 = arith.constant 0 : index
    %18 = vector.load %arg7[%c0_13, %c0_14] : memref<128x128xbf16, #tpu.memory_space<vmem>>, vector<128x128xbf16>
    %cst_15 = arith.constant dense<0.000000e+00> : vector<256x128xf32>
    %19 = tpu.matmul %17, %18, %cst_15 {dimension_numbers = #tpu.dot_dimension_numbers<[1], [0], [0], [1], [0, 0, 1, 1], [], []>} : vector<256x128xbf16>, vector<128x128xbf16>, vector<256x128xf32> -> vector<256x128xf32>
    %c0_16 = arith.constant 0 : index
    %c0_17 = arith.constant 0 : index
    %20 = vector.load %arg8[%c0_16, %c0_17] : memref<128x128xbf16, #tpu.memory_space<vmem>>, vector<128x128xbf16>
    %cst_18 = arith.constant dense<0.000000e+00> : vector<256x128xf32>
    %21 = tpu.matmul %3, %20, %cst_18 {dimension_numbers = #tpu.dot_dimension_numbers<[1], [0], [0], [1], [0, 0, 1, 1], [], []>} : vector<256x128xbf16>, vector<128x128xbf16>, vector<256x128xf32> -> vector<256x128xf32>
    %22 = arith.addf %19, %21 : vector<256x128xf32>
    %c0_19 = arith.constant 0 : index
    %c0_20 = arith.constant 0 : index
    %23 = vector.load %arg9[%c0_19, %c0_20] : memref<1x128xf32, #tpu.memory_space<vmem>>, vector<1x128xf32>
    %24 = vector.broadcast %23 : vector<1x128xf32> to vector<256x128xf32>
    %25 = arith.mulf %22, %24 : vector<256x128xf32>
    %c0_21 = arith.constant 0 : index
    %c0_22 = arith.constant 0 : index
    %26 = vector.load %arg10[%c0_21, %c0_22] : memref<1x128xf32, #tpu.memory_space<vmem>>, vector<1x128xf32>
    %27 = vector.broadcast %26 : vector<1x128xf32> to vector<256x128xf32>
    %28 = arith.addf %25, %27 : vector<256x128xf32>
    %cst_23 = arith.constant 0.000000e+00 : f32
    %29 = vector.broadcast %cst_23 : f32 to vector<256x128xf32>
    %30 = arith.subf %29, %28 : vector<256x128xf32>
    %31 = math.exp %30 : vector<256x128xf32>
    %cst_24 = arith.constant 1.000000e+00 : f32
    %32 = vector.broadcast %cst_24 : f32 to vector<256x128xf32>
    %33 = arith.addf %32, %31 : vector<256x128xf32>
    %cst_25 = arith.constant 1.000000e+00 : f32
    %34 = vector.broadcast %cst_25 : f32 to vector<256x128xf32>
    %35 = arith.divf %34, %33 : vector<256x128xf32>
    %36 = arith.mulf %28, %35 : vector<256x128xf32>
    %c0_26 = arith.constant 0 : index
    %c0_27 = arith.constant 0 : index
    %c0_28 = arith.constant 0 : index
    %37 = vector.load %arg11[%c0_26, %c0_27, %c0_28] : memref<1x256x128xf32, #tpu.memory_space<vmem>>, vector<1x256x128xf32>
    %38 = vector.shape_cast %37 : vector<1x256x128xf32> to vector<256x128xf32>
    %39 = vector.shape_cast %36 : vector<256x128xf32> to vector<1x256x128xf32>
    tpu.vector_store %arg11[%c0_26, %c0_27, %c0_28], %39 {strides = array<i32>} : memref<1x256x128xf32, #tpu.memory_space<vmem>>, vector<1x256x128xf32>,
    return
  }
  func.func @transform_0(%arg0: i32, %arg1: i32) -> (i32, i32, i32) {
    %c0_i32 = arith.constant 0 : i32
    %c0_i32_0 = arith.constant 0 : i32
    return %arg0, %arg1, %c0_i32 : i32, i32, i32
  }
  func.func @transform_1(%arg0: i32, %arg1: i32) -> (i32, i32, i32) {
    %c0_i32 = arith.constant 0 : i32
    %c0_i32_0 = arith.constant 0 : i32
    return %arg0, %arg1, %c0_i32 : i32, i32, i32
  }
  func.func @transform_2(%arg0: i32, %arg1: i32) -> (i32, i32) {
    %c0_i32 = arith.constant 0 : i32
    %c0_i32_0 = arith.constant 0 : i32
    %c0_i32_1 = arith.constant 0 : i32
    return %c0_i32, %c0_i32_0 : i32, i32
  }
  func.func @transform_3(%arg0: i32, %arg1: i32) -> (i32, i32) {
    %c0_i32 = arith.constant 0 : i32
    %c0_i32_0 = arith.constant 0 : i32
    %c0_i32_1 = arith.constant 0 : i32
    return %c0_i32, %c0_i32_0 : i32, i32
  }
  func.func @transform_4(%arg0: i32, %arg1: i32) -> (i32, i32) {
    %c0_i32 = arith.constant 0 : i32
    %c0_i32_0 = arith.constant 0 : i32
    %c0_i32_1 = arith.constant 0 : i32
    return %c0_i32, %c0_i32_0 : i32, i32
  }
  func.func @transform_5(%arg0: i32, %arg1: i32) -> (i32, i32) {
    %c0_i32 = arith.constant 0 : i32
    %c0_i32_0 = arith.constant 0 : i32
    %c0_i32_1 = arith.constant 0 : i32
    return %c0_i32, %c0_i32_0 : i32, i32
  }
  func.func @transform_6(%arg0: i32, %arg1: i32) -> (i32, i32) {
    %c0_i32 = arith.constant 0 : i32
    %c0_i32_0 = arith.constant 0 : i32
    %c0_i32_1 = arith.constant 0 : i32
    return %c0_i32, %c0_i32_0 : i32, i32
  }
  func.func @transform_7(%arg0: i32, %arg1: i32) -> (i32, i32) {
    %c0_i32 = arith.constant 0 : i32
    %c0_i32_0 = arith.constant 0 : i32
    %c0_i32_1 = arith.constant 0 : i32
    return %c0_i32, %c0_i32_0 : i32, i32
  }
  func.func @transform_8(%arg0: i32, %arg1: i32) -> (i32, i32) {
    %c0_i32 = arith.constant 0 : i32
    %c0_i32_0 = arith.constant 0 : i32
    %c0_i32_1 = arith.constant 0 : i32
    return %c0_i32, %c0_i32_0 : i32, i32
  }
  func.func @transform_9(%arg0: i32, %arg1: i32) -> (i32, i32, i32) {
    %c0_i32 = arith.constant 0 : i32
    %c0_i32_0 = arith.constant 0 : i32
    return %arg0, %arg1, %c0_i32 : i32, i32, i32
  }
}

</mosaic_0001>

<llo_original>
// kernel: bottleneck_csp_forward.3
$region0: #{bottleneck_csp_forward.3}
  #allocation0 [shape = 'u32[]', space=smem, size = 0x4, offset = 0x4, fixed_abs, tag = 'smem constant byte address 0x4 - core index']
  #allocation1 [shape = 'u32[144,128]{1,0:T(1,128)}', space=vmem, size = 0x12000, scoped, tag = 'internal scratch']
  %s0 = inlined_call_operand.vmem [shape: bf16[2,256,128], index: 0, kind: input, shape index: {}]
  %s1 = inlined_call_operand.vmem [shape: bf16[128,128], index: 1, kind: input, shape index: {}]
  %s2 = inlined_call_operand.vmem [shape: f32[1,128], index: 2, kind: input, shape index: {}]
  %s3 = inlined_call_operand.vmem [shape: f32[1,128], index: 3, kind: input, shape index: {}]
  %s4 = inlined_call_operand.vmem [shape: bf16[128,128], index: 4, kind: input, shape index: {}]
  %s5 = inlined_call_operand.vmem [shape: f32[1,128], index: 5, kind: input, shape index: {}]
  %s6 = inlined_call_operand.vmem [shape: f32[1,128], index: 6, kind: input, shape index: {}]
  %s7 = inlined_call_operand.vmem [shape: bf16[2,256,128], index: 7, kind: output, shape index: {0}]
  %s8 = inlined_call_operand.vmem [shape: bf16[2,256,128], index: 8, kind: output, shape index: {1}]
  %9 = xla_tuple %s7, %s8
  %s10 = sld [smem:[#allocation0]]
  $region69: #{bottleneck_csp_forward.3} parent=0
    _
  %s12 = ssub.s32 1, %s10
  %s13 = scalar_select 0, %s12, %s10
  loop: start=0, step=1, limit=4
  $region2: #{bottleneck_csp_forward.3} parent=0 // loop_pre_header
    _
  $region3: #{bottleneck_csp_forward.3} parent=0 // loop_header
    %s15 = sphi 0, %s19
    %p16 = scmp.ge.s32.totalorder %s15, 4
    %s22 = sphi 0, %s34
    %s23 = sphi 0, %s30
    %s24 = sphi 0, %s22
    %s25 = sphi 0, %s23
    %s26 = sphi 0, %s24
    %s27 = sphi 0, %s25
    %s39 = sphi 0, %s41
    %s42 = sphi 0, %s39
    %s43 = sphi 0, %s42
    %s59 = sphi 0, %s43
    %s63 = sphi 0, %s63
    %s65 = sphi 0, %s63
    %s66 = sphi 0, %s65
    %s80 = sphi 0, %s66
    %s84 = sphi 0, %s84
    %s86 = sphi 0, %s84
    %s87 = sphi 0, %s86
    %s101 = sphi 0, %s87
    %s105 = sphi 0, %s105
    %s107 = sphi 0, %s105
    %s108 = sphi 0, %s107
    %s122 = sphi 0, %s108
    %s126 = sphi 0, %s126
    %s128 = sphi 0, %s126
    %s129 = sphi 0, %s128
    %s143 = sphi 0, %s129
    %s147 = sphi 0, %s147
    %s149 = sphi 0, %s147
    %s150 = sphi 0, %s149
    %s164 = sphi 0, %s150
    %s168 = sphi 0, %s168
    %s170 = sphi 0, %s168
    %s171 = sphi 0, %s170
    %s185 = sphi 0, %s171
    %s193 = sphi 0, %s195
    %s196 = sphi 0, %s193
    %s197 = sphi 0, %s196
    %s213 = sphi 0, %s197
    %s221 = sphi 0, %s223
    %s224 = sphi 0, %s221
    %s225 = sphi 0, %s224
    %s241 = sphi 0, %s225
  $region4: #{bottleneck_csp_forward.3} parent=0 // loop_header_branch
    %18 = sbr.rel (%p16) target = $region8
  $region5: #{bottleneck_csp_forward.3} parent=0 // loop_body
    %s20 = ssub.s32 %s15, 1
    %s21 = ssub.s32 %s15, 2
    %s28 = sadd.s32 1, %s23
    %p29 = scmp.ge.s32.totalorder %s28, 1
    %s30 = scalar_select %p29, 0, %s28
    %s31 = sadd.s32 1, %s22
    %s32 = scalar_select %p29, %s31, %s22
    %p33 = scmp.ge.s32.totalorder %s32, 2
    %s34 = scalar_select %p33, 0, %s32
    %s35 = ssub.s32 %s22, %s34
    %s36 = ssub.s32 %s23, %s30
    %s37 = sor.u32 %s35, %s36
    %p38 = scmp.eq.s32.totalorder %s37, 0
    %s40 = sadd.s32 %s39, 1
    %s41 = scalar_select %p38, %s39, %s40
    %p44 = pneg %p38
    %p45 = scmp.eq.s32.totalorder %s15, 1
    %p46 = por %p44, %p45
    %p47 = scmp.ne.s32.totalorder %s39, %s42
    %p48 = scmp.eq.s32.totalorder %s15, 0
    %p49 = por %p47, %p48
    %p50 = scmp.ne.s32.totalorder %s39, %s42
    %p51 = scmp.eq.s32.totalorder %s20, 1
    %p52 = por %p50, %p51
    %p53 = scmp.ne.s32.totalorder %s42, %s43
    %p54 = scmp.eq.s32.totalorder %s20, 0
    %p55 = por %p53, %p54
    %p56 = scmp.ne.s32.totalorder %s42, %s43
    %p57 = scmp.eq.s32.totalorder %s21, 1
    %p58 = por %p56, %p57
    %p60 = scmp.ne.s32.totalorder %s43, %s59
    %p61 = scmp.eq.s32.totalorder %s21, 0
    %p62 = por %p60, %p61
    %s64 = sadd.s32 %s63, 1
    %p67 = scmp.eq.s32.totalorder %s15, 1
    %p68 = scmp.ne.s32.totalorder %s63, %s65
    %p69 = scmp.eq.s32.totalorder %s15, 0
    %p70 = por %p68, %p69
    %p71 = scmp.ne.s32.totalorder %s63, %s65
    %p72 = scmp.eq.s32.totalorder %s20, 1
    %p73 = por %p71, %p72
    %p74 = scmp.ne.s32.totalorder %s65, %s66
    %p75 = scmp.eq.s32.totalorder %s20, 0
    %p76 = por %p74, %p75
    %p77 = scmp.ne.s32.totalorder %s65, %s66
    %p78 = scmp.eq.s32.totalorder %s21, 1
    %p79 = por %p77, %p78
    %p81 = scmp.ne.s32.totalorder %s66, %s80
    %p82 = scmp.eq.s32.totalorder %s21, 0
    %p83 = por %p81, %p82
    %s85 = sadd.s32 %s84, 1
    %p88 = scmp.eq.s32.totalorder %s15, 1
    %p89 = scmp.ne.s32.totalorder %s84, %s86
    %p90 = scmp.eq.s32.totalorder %s15, 0
    %p91 = por %p89, %p90
    %p92 = scmp.ne.s32.totalorder %s84, %s86
    %p93 = scmp.eq.s32.totalorder %s20, 1
    %p94 = por %p92, %p93
    %p95 = scmp.ne.s32.totalorder %s86, %s87
    %p96 = scmp.eq.s32.totalorder %s20, 0
    %p97 = por %p95, %p96
    %p98 = scmp.ne.s32.totalorder %s86, %s87
    %p99 = scmp.eq.s32.totalorder %s21, 1
    %p100 = por %p98, %p99
    %p102 = scmp.ne.s32.totalorder %s87, %s101
    %p103 = scmp.eq.s32.totalorder %s21, 0
    %p104 = por %p102, %p103
    %s106 = sadd.s32 %s105, 1
    %p109 = scmp.eq.s32.totalorder %s15, 1
    %p110 = scmp.ne.s32.totalorder %s105, %s107
    %p111 = scmp.eq.s32.totalorder %s15, 0
    %p112 = por %p110, %p111
    %p113 = scmp.ne.s32.totalorder %s105, %s107
    %p114 = scmp.eq.s32.totalorder %s20, 1
    %p115 = por %p113, %p114
    %p116 = scmp.ne.s32.totalorder %s107, %s108
    %p117 = scmp.eq.s32.totalorder %s20, 0
    %p118 = por %p116, %p117
    %p119 = scmp.ne.s32.totalorder %s107, %s108
    %p120 = scmp.eq.s32.totalorder %s21, 1
    %p121 = por %p119, %p120
    %p123 = scmp.ne.s32.totalorder %s108, %s122
    %p124 = scmp.eq.s32.totalorder %s21, 0
    %p125 = por %p123, %p124
    %s127 = sadd.s32 %s126, 1
    %p130 = scmp.eq.s32.totalorder %s15, 1
    %p131 = scmp.ne.s32.totalorder %s126, %s128
    %p132 = scmp.eq.s32.totalorder %s15, 0
    %p133 = por %p131, %p132
    %p134 = scmp.ne.s32.totalorder %s126, %s128
    %p135 = scmp.eq.s32.totalorder %s20, 1
    %p136 = por %p134, %p135
    %p137 = scmp.ne.s32.totalorder %s128, %s129
    %p138 = scmp.eq.s32.totalorder %s20, 0
    %p139 = por %p137, %p138
    %p140 = scmp.ne.s32.totalorder %s128, %s129
    %p141 = scmp.eq.s32.totalorder %s21, 1
    %p142 = por %p140, %p141
    %p144 = scmp.ne.s32.totalorder %s129, %s143
    %p145 = scmp.eq.s32.totalorder %s21, 0
    %p146 = por %p144, %p145
    %s148 = sadd.s32 %s147, 1
    %p151 = scmp.eq.s32.totalorder %s15, 1
    %p152 = scmp.ne.s32.totalorder %s147, %s149
    %p153 = scmp.eq.s32.totalorder %s15, 0
    %p154 = por %p152, %p153
    %p155 = scmp.ne.s32.totalorder %s147, %s149
    %p156 = scmp.eq.s32.totalorder %s20, 1
    %p157 = por %p155, %p156
    %p158 = scmp.ne.s32.totalorder %s149, %s150
    %p159 = scmp.eq.s32.totalorder %s20, 0
    %p160 = por %p158, %p159
    %p161 = scmp.ne.s32.totalorder %s149, %s150
    %p162 = scmp.eq.s32.totalorder %s21, 1
    %p163 = por %p161, %p162
    %p165 = scmp.ne.s32.totalorder %s150, %s164
    %p166 = scmp.eq.s32.totalorder %s21, 0
    %p167 = por %p165, %p166
    %s169 = sadd.s32 %s168, 1
    %p172 = scmp.eq.s32.totalorder %s15, 1
    %p173 = scmp.ne.s32.totalorder %s168, %s170
    %p174 = scmp.eq.s32.totalorder %s15, 0
    %p175 = por %p173, %p174
    %p176 = scmp.ne.s32.totalorder %s168, %s170
    %p177 = scmp.eq.s32.totalorder %s20, 1
    %p178 = por %p176, %p177
    %p179 = scmp.ne.s32.totalorder %s170, %s171
    %p180 = scmp.eq.s32.totalorder %s20, 0
    %p181 = por %p179, %p180
    %p182 = scmp.ne.s32.totalorder %s170, %s171
    %p183 = scmp.eq.s32.totalorder %s21, 1
    %p184 = por %p182, %p183
    %p186 = scmp.ne.s32.totalorder %s171, %s185
    %p187 = scmp.eq.s32.totalorder %s21, 0
    %p188 = por %p186, %p187
    %s189 = ssub.s32 %s22, %s34
    %s190 = ssub.s32 %s23, %s30
    %s191 = sor.u32 %s189, %s190
    %p192 = scmp.eq.s32.totalorder %s191, 0
    %s194 = sadd.s32 %s193, 1
    %s195 = scalar_select %p192, %s193, %s194
    %p198 = pneg %p192
    %p199 = scmp.eq.s32.totalorder %s15, 1
    %p200 = por %p198, %p199
    %p201 = scmp.ne.s32.totalorder %s193, %s196
    %p202 = scmp.eq.s32.totalorder %s15, 0
    %p203 = por %p201, %p202
    %p204 = scmp.ne.s32.totalorder %s193, %s196
    %p205 = scmp.eq.s32.totalorder %s20, 1
    %p206 = por %p204, %p205
    %p207 = scmp.ne.s32.totalorder %s196, %s197
    %p208 = scmp.eq.s32.totalorder %s20, 0
    %p209 = por %p207, %p208
    %p210 = scmp.ne.s32.totalorder %s196, %s197
    %p211 = scmp.eq.s32.totalorder %s21, 1
    %p212 = por %p210, %p211
    %p214 = scmp.ne.s32.totalorder %s197, %s213
    %p215 = scmp.eq.s32.totalorder %s21, 0
    %p216 = por %p214, %p215
    %s217 = ssub.s32 %s22, %s34
    %s218 = ssub.s32 %s23, %s30
    %s219 = sor.u32 %s217, %s218
    %p220 = scmp.eq.s32.totalorder %s219, 0
    %s222 = sadd.s32 %s221, 1
    %s223 = scalar_select %p220, %s221, %s222
    %p226 = pneg %p220
    %p227 = scmp.eq.s32.totalorder %s15, 1
    %p228 = por %p226, %p227
    %p229 = scmp.ne.s32.totalorder %s221, %s224
    %p230 = scmp.eq.s32.totalorder %s15, 0
    %p231 = por %p229, %p230
    %p232 = scmp.ne.s32.totalorder %s221, %s224
    %p233 = scmp.eq.s32.totalorder %s20, 1
    %p234 = por %p232, %p233
    %p235 = scmp.ne.s32.totalorder %s224, %s225
    %p236 = scmp.eq.s32.totalorder %s20, 0
    %p237 = por %p235, %p236
    %p238 = scmp.ne.s32.totalorder %s224, %s225
    %p239 = scmp.eq.s32.totalorder %s21, 1
    %p240 = por %p238, %p239
    %p242 = scmp.ne.s32.totalorder %s225, %s241
    %p243 = scmp.eq.s32.totalorder %s21, 0
    %p244 = por %p242, %p243
    %p245 = scmp.le.s32.totalorder 1, %s15
    %p246 = scmp.lt.s32.totalorder %s15, 3
    %p247 = pnand %p245, %p246
    %p248 = pneg %p247
    // Predicated region
    $region9: #{bottleneck_csp_forward.3} parent=5 // pred_check
      _
    $region10: #{bottleneck_csp_forward.3} parent=5 // pred_check_branch
      %250 = sbr.rel (%p247) target = $region12
    $region11: #{bottleneck_csp_forward.3} parent=5 // pred_region
      %s251 = ssub.s32 %s15, 1
      // Predicated region
      $region13: #{bottleneck_csp_forward.3} parent=11 // pred_check
        %p252 = pneg %p76
      $region14: #{bottleneck_csp_forward.3} parent=11 // pred_check_branch
        %254 = sbr.rel (%p252) target = $region16
      $region15: #{bottleneck_csp_forward.3} parent=11 // pred_region
        _
      $region16: #{bottleneck_csp_forward.3} parent=11 // pred_fallthru
        _
      // Predicated region
      $region17: #{bottleneck_csp_forward.3} parent=11 // pred_check
        %p255 = pneg %p97
      $region18: #{bottleneck_csp_forward.3} parent=11 // pred_check_branch
        %257 = sbr.rel (%p255) target = $region20
      $region19: #{bottleneck_csp_forward.3} parent=11 // pred_region
        _
      $region20: #{bottleneck_csp_forward.3} parent=11 // pred_fallthru
        _
      // Predicated region
      $region21: #{bottleneck_csp_forward.3} parent=11 // pred_check
        %p258 = pneg %p118
      $region22: #{bottleneck_csp_forward.3} parent=11 // pred_check_branch
        %260 = sbr.rel (%p258) target = $region24
      $region23: #{bottleneck_csp_forward.3} parent=11 // pred_region
        _
      $region24: #{bottleneck_csp_forward.3} parent=11 // pred_fallthru
        _
      // Predicated region
      $region25: #{bottleneck_csp_forward.3} parent=11 // pred_check
        %p261 = pneg %p139
      $region26: #{bottleneck_csp_forward.3} parent=11 // pred_check_branch
        %263 = sbr.rel (%p261) target = $region28
      $region27: #{bottleneck_csp_forward.3} parent=11 // pred_region
        _
      $region28: #{bottleneck_csp_forward.3} parent=11 // pred_fallthru
        _
      // Predicated region
      $region29: #{bottleneck_csp_forward.3} parent=11 // pred_check
        %p264 = pneg %p160
      $region30: #{bottleneck_csp_forward.3} parent=11 // pred_check_branch
        %266 = sbr.rel (%p264) target = $region32
      $region31: #{bottleneck_csp_forward.3} parent=11 // pred_region
        _
      $region32: #{bottleneck_csp_forward.3} parent=11 // pred_fallthru
        _
      // Predicated region
      $region33: #{bottleneck_csp_forward.3} parent=11 // pred_check
        %p267 = pneg %p181
      $region34: #{bottleneck_csp_forward.3} parent=11 // pred_check_branch
        %269 = sbr.rel (%p267) target = $region36
      $region35: #{bottleneck_csp_forward.3} parent=11 // pred_region
        _
      $region36: #{bottleneck_csp_forward.3} parent=11 // pred_fallthru
        _
    $region12: #{bottleneck_csp_forward.3} parent=5 // pred_fallthru
      _
    %p270 = scmp.lt.s32.totalorder %s15, 2
    // Predicated region
    $region37: #{bottleneck_csp_forward.3} parent=5 // pred_check
      %p271 = pneg %p270
    $region38: #{bottleneck_csp_forward.3} parent=5 // pred_check_branch
      %273 = sbr.rel (%p271) target = $region40
    $region39: #{bottleneck_csp_forward.3} parent=5 // pred_region
      // Predicated region
      $region41: #{bottleneck_csp_forward.3} parent=39 // pred_check
        %p274 = pneg %p49
      $region42: #{bottleneck_csp_forward.3} parent=39 // pred_check_branch
        %276 = sbr.rel (%p274) target = $region44
      $region43: #{bottleneck_csp_forward.3} parent=39 // pred_region
        %s277 = smul.u32 32, %s23
        %p278 = scmp.lt.s32.totalorder %s22, 1
        %s279 = scalar_select %p278, %s22, 1
        %p280 = scmp.lt.s32.totalorder %s277, 31
        %s281 = scalar_select %p280, %s277, 31
        %s282 = smul.addr %s279, 32
        %s283 = sadd.s32 %s281, %s282
        %s284 = smul.addr %s283, 4
        %s285 = scalar_lea.vmem %s0, %s284
        %s286 = smul.u32 32, %s23
      $region44: #{bottleneck_csp_forward.3} parent=39 // pred_fallthru
        _
    $region40: #{bottleneck_csp_forward.3} parent=5 // pred_fallthru
      _
    %p287 = scmp.le.s32.totalorder 1, %s15
    %p288 = scmp.lt.s32.totalorder %s15, 3
    %p289 = pnand %p287, %p288
    %p290 = pneg %p289
    // Predicated region
    $region45: #{bottleneck_csp_forward.3} parent=5 // pred_check
      _
    $region46: #{bottleneck_csp_forward.3} parent=5 // pred_check_branch
      %292 = sbr.rel (%p289) target = $region48
    $region47: #{bottleneck_csp_forward.3} parent=5 // pred_region
      %s293 = ssub.s32 %s15, 1
      %s294 = smul.u32 32, %s25
      %p295 = scmp.lt.s32.totalorder %s24, 1
      %s296 = scalar_select %p295, %s24, 1
      %p297 = scmp.lt.s32.totalorder %s294, 31
      %s298 = scalar_select %p297, %s294, 31
      %s299 = smul.addr %s296, 32
      %s300 = sadd.s32 %s298, %s299
      %s301 = smul.addr %s300, 4
      %s302 = scalar_lea.vmem %s0, %s301
      %p303 = pneg %p55
      %p304 = pneg %p52
      %p305 = pneg %p76
      %p306 = pneg %p73
      %p307 = pneg %p97
      %p308 = pneg %p94
      %p309 = pneg %p118
      %p310 = pneg %p115
      %p311 = pneg %p139
      %p312 = pneg %p136
      %p313 = pneg %p160
      %p314 = pneg %p157
      %p315 = pneg %p181
      %p316 = pneg %p178
      %p317 = pneg %p209
      %p318 = pneg %p206
      %s319 = smul.u32 32, %s25
      %p320 = scmp.lt.s32.totalorder %s24, 1
      %s321 = scalar_select %p320, %s24, 1
      %p322 = scmp.lt.s32.totalorder %s319, 31
      %s323 = scalar_select %p322, %s319, 31
      %s324 = smul.addr %s321, 32
      %s325 = sadd.s32 %s323, %s324
      %s326 = smul.addr %s325, 4
      %s327 = scalar_lea.vmem %s7, %s326
      %p328 = pneg %p237
      %p329 = pneg %p234
      %s330 = smul.u32 32, %s25
      %p331 = scmp.lt.s32.totalorder %s24, 1
      %s332 = scalar_select %p331, %s24, 1
      %p333 = scmp.lt.s32.totalorder %s330, 31
      %s334 = scalar_select %p333, %s330, 31
      %s335 = smul.addr %s332, 32
      %s336 = sadd.s32 %s334, %s335
      %s337 = smul.addr %s336, 4
      %s338 = scalar_lea.vmem %s8, %s337
      %s339 = smul.u32 32, %s25
      %p340 = scmp.lt.s32.totalorder %s24, 1
      %s341 = scalar_select %p340, %s24, 1
      %p342 = scmp.lt.s32.totalorder %s339, 31
      %s343 = scalar_select %p342, %s339, 31
      %s344 = smul.addr %s341, 32
      %s345 = sadd.s32 %s343, %s344
      %s346 = smul.addr %s345, 4
      %s347 = scalar_lea.vmem %s0, %s346
      %s348 = smul.u32 32, %s25
      %s349 = smul.u32 32, %s25
      %p350 = scmp.lt.s32.totalorder %s24, 1
      %s351 = scalar_select %p350, %s24, 1
      %p352 = scmp.lt.s32.totalorder %s349, 31
      %s353 = scalar_select %p352, %s349, 31
      %s354 = smul.addr %s351, 32
      %s355 = sadd.s32 %s353, %s354
      %s356 = smul.addr %s355, 4
      %s357 = scalar_lea.vmem %s7, %s356
      %s358 = smul.u32 32, %s25
      %s359 = smul.u32 32, %s25
      %p360 = scmp.lt.s32.totalorder %s24, 1
      %s361 = scalar_select %p360, %s24, 1
      %p362 = scmp.lt.s32.totalorder %s359, 31
      %s363 = scalar_select %p362, %s359, 31
      %s364 = smul.addr %s361, 32
      %s365 = sadd.s32 %s363, %s364
      %s366 = smul.addr %s365, 4
      %s367 = scalar_lea.vmem %s8, %s366
      %s368 = smul.u32 32, %s25
      %v370 = vld [vmem:[%s347] sm:$0xf]
      %v371 = vld [vmem:[%s347 + $0x4] sm:$0xf]
      %v372 = vld [vmem:[%s347 + $0x8] sm:$0xf]
      %v373 = vld [vmem:[%s347 + $0xc] sm:$0xf]
      %v374 = vld [vmem:[%s347 + $0x10] sm:$0xf]
      %v375 = vld [vmem:[%s347 + $0x14] sm:$0xf]
      %v376 = vld [vmem:[%s347 + $0x18] sm:$0xf]
      %v377 = vld [vmem:[%s347 + $0x1c] sm:$0xf]
      %v378 = vld [vmem:[%s347 + $0x20] sm:$0xf]
      %v379 = vld [vmem:[%s347 + $0x24] sm:$0xf]
      %v380 = vld [vmem:[%s347 + $0x28] sm:$0xf]
      %v381 = vld [vmem:[%s347 + $0x2c] sm:$0xf]
      %v382 = vld [vmem:[%s347 + $0x30] sm:$0xf]
      %v383 = vld [vmem:[%s347 + $0x34] sm:$0xf]
      %v384 = vld [vmem:[%s347 + $0x38] sm:$0xf]
      %v385 = vld [vmem:[%s347 + $0x3c] sm:$0xf]
      %v386 = vld [vmem:[%s347 + $0x40] sm:$0xf]
      %v387 = vld [vmem:[%s347 + $0x44] sm:$0xf]
      %v388 = vld [vmem:[%s347 + $0x48] sm:$0xf]
      %v389 = vld [vmem:[%s347 + $0x4c] sm:$0xf]
      %v390 = vld [vmem:[%s347 + $0x50] sm:$0xf]
      %v391 = vld [vmem:[%s347 + $0x54] sm:$0xf]
      %v392 = vld [vmem:[%s347 + $0x58] sm:$0xf]
      %v393 = vld [vmem:[%s347 + $0x5c] sm:$0xf]
      %v394 = vld [vmem:[%s347 + $0x60] sm:$0xf]
      %v395 = vld [vmem:[%s347 + $0x64] sm:$0xf]
      %v396 = vld [vmem:[%s347 + $0x68] sm:$0xf]
      %v397 = vld [vmem:[%s347 + $0x6c] sm:$0xf]
      %v398 = vld [vmem:[%s347 + $0x70] sm:$0xf]
      %v399 = vld [vmem:[%s347 + $0x74] sm:$0xf]
      %v400 = vld [vmem:[%s347 + $0x78] sm:$0xf]
      %v401 = vld [vmem:[%s347 + $0x7c] sm:$0xf]
      %v402 = vld [vmem:[%s1] sm:$0xf]
      %v403 = vld [vmem:[%s1 + $0x4] sm:$0xf]
      %v404 = vld [vmem:[%s1 + $0x8] sm:$0xf]
      %v405 = vld [vmem:[%s1 + $0xc] sm:$0xf]
      %v406 = vld [vmem:[%s1 + $0x10] sm:$0xf]
      %v407 = vld [vmem:[%s1 + $0x14] sm:$0xf]
      %v408 = vld [vmem:[%s1 + $0x18] sm:$0xf]
      %v409 = vld [vmem:[%s1 + $0x1c] sm:$0xf]
      %v410 = vld [vmem:[%s1 + $0x20] sm:$0xf]
      %v411 = vld [vmem:[%s1 + $0x24] sm:$0xf]
      %v412 = vld [vmem:[%s1 + $0x28] sm:$0xf]
      %v413 = vld [vmem:[%s1 + $0x2c] sm:$0xf]
      %v414 = vld [vmem:[%s1 + $0x30] sm:$0xf]
      %v415 = vld [vmem:[%s1 + $0x34] sm:$0xf]
      %v416 = vld [vmem:[%s1 + $0x38] sm:$0xf]
      %v417 = vld [vmem:[%s1 + $0x3c] sm:$0xf]
      %v450 = vunpack.c.l.b16 %v370
      %v451 = vunpack.c.l.b16 %v371
      %v452 = vunpack.c.l.b16 %v372
      %v453 = vunpack.c.l.b16 %v373
      %v454 = vunpack.c.l.b16 %v374
      %v455 = vunpack.c.l.b16 %v375
      %v456 = vunpack.c.l.b16 %v376
      %v457 = vunpack.c.l.b16 %v377
      %v458 = vunpack.c.l.b16 %v378
      %v459 = vunpack.c.l.b16 %v379
      %v460 = vunpack.c.l.b16 %v380
      %v461 = vunpack.c.l.b16 %v381
      %v462 = vunpack.c.l.b16 %v382
      %v463 = vunpack.c.l.b16 %v383
      %v464 = vunpack.c.l.b16 %v384
      %v465 = vunpack.c.l.b16 %v385
      %v466 = vunpack.c.l.b16 %v386
      %v467 = vunpack.c.l.b16 %v387
      %v468 = vunpack.c.l.b16 %v388
      %v469 = vunpack.c.l.b16 %v389
      %v470 = vunpack.c.l.b16 %v390
      %v471 = vunpack.c.l.b16 %v391
      %v472 = vunpack.c.l.b16 %v392
      %v473 = vunpack.c.l.b16 %v393
      %v474 = vunpack.c.l.b16 %v394
      %v475 = vunpack.c.l.b16 %v395
      %v476 = vunpack.c.l.b16 %v396
      %v477 = vunpack.c.l.b16 %v397
      %v478 = vunpack.c.l.b16 %v398
      %v479 = vunpack.c.l.b16 %v399
      %v480 = vunpack.c.l.b16 %v400
      %v481 = vunpack.c.l.b16 %v401
      %v482 = vpack.c.b16 %v451, %v450
      %v483 = vpack.c.b16 %v453, %v452
      %v484 = vpack.c.b16 %v455, %v454
      %v485 = vpack.c.b16 %v457, %v456
      %v486 = vpack.c.b16 %v459, %v458
      %v487 = vpack.c.b16 %v461, %v460
      %v488 = vpack.c.b16 %v463, %v462
      %v489 = vpack.c.b16 %v465, %v464
      %v490 = vpack.c.b16 %v467, %v466
      %v491 = vpack.c.b16 %v469, %v468
      %v492 = vpack.c.b16 %v471, %v470
      %v493 = vpack.c.b16 %v473, %v472
      %v494 = vpack.c.b16 %v475, %v474
      %v495 = vpack.c.b16 %v477, %v476
      %v496 = vpack.c.b16 %v479, %v478
      %v497 = vpack.c.b16 %v481, %v480
      %v530 = vunpack.c.l.b16 %v402
      %v531 = vunpack.c.l.b16 %v403
      %v532 = vunpack.c.l.b16 %v404
      %v533 = vunpack.c.l.b16 %v405
      %v534 = vunpack.c.l.b16 %v406
      %v535 = vunpack.c.l.b16 %v407
      %v536 = vunpack.c.l.b16 %v408
      %v537 = vunpack.c.l.b16 %v409
      %v538 = vunpack.c.l.b16 %v410
      %v539 = vunpack.c.l.b16 %v411
      %v540 = vunpack.c.l.b16 %v412
      %v541 = vunpack.c.l.b16 %v413
      %v542 = vunpack.c.l.b16 %v414
      %v543 = vunpack.c.l.b16 %v415
      %v544 = vunpack.c.l.b16 %v416
      %v545 = vunpack.c.l.b16 %v417
      %v546 = vpack.c.b16 %v531, %v530
      %v547 = vpack.c.b16 %v533, %v532
      %v548 = vpack.c.b16 %v535, %v534
      %v549 = vpack.c.b16 %v537, %v536
      %v550 = vpack.c.b16 %v539, %v538
      %v551 = vpack.c.b16 %v541, %v540
      %v552 = vpack.c.b16 %v543, %v542
      %v553 = vpack.c.b16 %v545, %v544
      %562 = vmatprep.subr.bf16.mxu0 0
      %563 = vmatpush1.bf16.msra.mxu0 %v553
      %564 = vmatprep.subr.bf16.mxu0 0
      %565 = vmatpush1.bf16.msra.mxu0 %v552
      %566 = vmatprep.subr.bf16.mxu0 0
      %567 = vmatpush1.bf16.msra.mxu0 %v551
      %568 = vmatprep.subr.bf16.mxu0 0
      %569 = vmatpush1.bf16.msra.mxu0 %v550
      %570 = vmatprep.subr.bf16.mxu0 0
      %571 = vmatpush1.bf16.msra.mxu0 %v549
      %572 = vmatprep.subr.bf16.mxu0 0
      %573 = vmatpush1.bf16.msra.mxu0 %v548
      %574 = vmatprep.subr.bf16.mxu0 0
      %575 = vmatpush1.bf16.msra.mxu0 %v547
      %576 = vmatprep.subr.bf16.mxu0 0
      %577 = vmatpush1.bf16.msra.mxu0 %v546
      %578 = vmatprep.subr.bf16.mxu0 0
      %579 = vmatpush2.bf16.msra.mxu0 0
      %580 = vmatprep.subr.bf16.mxu0 0
      %581 = vmatpush2.bf16.msra.mxu0 0
      %582 = vmatprep.subr.bf16.mxu0 0
      %583 = vmatpush2.bf16.msra.mxu0 0
      %584 = vmatprep.subr.bf16.mxu0 0
      %585 = vmatpush2.bf16.msra.mxu0 0
      %586 = vmatprep.subr.bf16.mxu0 0
      %587 = vmatpush2.bf16.msra.mxu0 0
      %588 = vmatprep.subr.bf16.mxu0 0
      %589 = vmatpush2.bf16.msra.mxu0 0
      %590 = vmatprep.subr.bf16.mxu0 0
      %591 = vmatpush2.bf16.msra.mxu0 0
      %592 = vmatprep.subr.bf16.mxu0 0
      %593 = vmatpush2.bf16.msra.mxu0 0
      %594 = vmatprep.mubr.bf16.mxu0 0
      %595 = vmatmul.mubr.bf16.gmra.mxu0 %v482
      %v596 = vpop.f32.mrf.mxu0
      %v597 = vadd.f32 0.0, %v596
      %v598 = vpop.f32.mrf.mxu0
      %v599 = vpop.f32.mrf.mxu0
      %v600 = vadd.f32 0.0, %v599
      %v601 = vpop.f32.mrf.mxu0
      %602 = vmatprep.mubr.bf16.mxu0 0
      %603 = vmatmul.mubr.bf16.gmra.mxu0 %v483
      %v604 = vpop.f32.mrf.mxu0
      %v605 = vadd.f32 0.0, %v604
      %v606 = vpop.f32.mrf.mxu0
      %v607 = vpop.f32.mrf.mxu0
      %v608 = vadd.f32 0.0, %v607
      %v609 = vpop.f32.mrf.mxu0
      %610 = vmatprep.mubr.bf16.mxu0 0
      %611 = vmatmul.mubr.bf16.gmra.mxu0 %v484
      %v612 = vpop.f32.mrf.mxu0
      %v613 = vadd.f32 0.0, %v612
      %v614 = vpop.f32.mrf.mxu0
      %v615 = vpop.f32.mrf.mxu0
      %v616 = vadd.f32 0.0, %v615
      %v617 = vpop.f32.mrf.mxu0
      %618 = vmatprep.mubr.bf16.mxu0 0
      %619 = vmatmul.mubr.bf16.gmra.mxu0 %v485
      %v620 = vpop.f32.mrf.mxu0
      %v621 = vadd.f32 0.0, %v620
      %v622 = vpop.f32.mrf.mxu0
      %v623 = vpop.f32.mrf.mxu0
      %v624 = vadd.f32 0.0, %v623
      %v625 = vpop.f32.mrf.mxu0
      %626 = vmatprep.mubr.bf16.mxu0 0
      %627 = vmatmul.mubr.bf16.gmra.mxu0 %v486
      %v628 = vpop.f32.mrf.mxu0
      %v629 = vadd.f32 0.0, %v628
      %v630 = vpop.f32.mrf.mxu0
      %v631 = vpop.f32.mrf.mxu0
      %v632 = vadd.f32 0.0, %v631
      %v633 = vpop.f32.mrf.mxu0
      %634 = vmatprep.mubr.bf16.mxu0 0
      %635 = vmatmul.mubr.bf16.gmra.mxu0 %v487
      %v636 = vpop.f32.mrf.mxu0
      %v637 = vadd.f32 0.0, %v636
      %v638 = vpop.f32.mrf.mxu0
      %v639 = vpop.f32.mrf.mxu0
      %v640 = vadd.f32 0.0, %v639
      %v641 = vpop.f32.mrf.mxu0
      %642 = vmatprep.mubr.bf16.mxu0 0
      %643 = vmatmul.mubr.bf16.gmra.mxu0 %v488
      %v644 = vpop.f32.mrf.mxu0
      %v645 = vadd.f32 0.0, %v644
      %v646 = vpop.f32.mrf.mxu0
      %v647 = vpop.f32.mrf.mxu0
      %v648 = vadd.f32 0.0, %v647
      %v649 = vpop.f32.mrf.mxu0
      %650 = vmatprep.mubr.bf16.mxu0 0
      %651 = vmatmul.mubr.bf16.gmra.mxu0 %v489
      %v652 = vpop.f32.mrf.mxu0
      %v653 = vadd.f32 0.0, %v652
      %v654 = vpop.f32.mrf.mxu0
      %v655 = vpop.f32.mrf.mxu0
      %v656 = vadd.f32 0.0, %v655
      %v657 = vpop.f32.mrf.mxu0
      %658 = vmatprep.mubr.bf16.mxu0 0
      %659 = vmatmul.mubr.bf16.gmra.mxu0 %v490
      %v660 = vpop.f32.mrf.mxu0
      %v661 = vadd.f32 0.0, %v660
      %v662 = vpop.f32.mrf.mxu0
      %v663 = vpop.f32.mrf.mxu0
      %v664 = vadd.f32 0.0, %v663
      %v665 = vpop.f32.mrf.mxu0
      %666 = vmatprep.mubr.bf16.mxu0 0
      %667 = vmatmul.mubr.bf16.gmra.mxu0 %v491
      %v668 = vpop.f32.mrf.mxu0
      %v669 = vadd.f32 0.0, %v668
      %v670 = vpop.f32.mrf.mxu0
      %v671 = vpop.f32.mrf.mxu0
      %v672 = vadd.f32 0.0, %v671
      %v673 = vpop.f32.mrf.mxu0
      %674 = vmatprep.mubr.bf16.mxu0 0
      %675 = vmatmul.mubr.bf16.gmra.mxu0 %v492
      %v676 = vpop.f32.mrf.mxu0
      %v677 = vadd.f32 0.0, %v676
      %v678 = vpop.f32.mrf.mxu0
      %v679 = vpop.f32.mrf.mxu0
      %v680 = vadd.f32 0.0, %v679
      %v681 = vpop.f32.mrf.mxu0
      %682 = vmatprep.mubr.bf16.mxu0 0
      %683 = vmatmul.mubr.bf16.gmra.mxu0 %v493
      %v684 = vpop.f32.mrf.mxu0
      %v685 = vadd.f32 0.0, %v684
      %v686 = vpop.f32.mrf.mxu0
      %v687 = vpop.f32.mrf.mxu0
      %v688 = vadd.f32 0.0, %v687
      %v689 = vpop.f32.mrf.mxu0
      %690 = vmatprep.mubr.bf16.mxu0 0
      %691 = vmatmul.mubr.bf16.gmra.mxu0 %v494
      %v692 = vpop.f32.mrf.mxu0
      %v693 = vadd.f32 0.0, %v692
      %v694 = vpop.f32.mrf.mxu0
      %v695 = vpop.f32.mrf.mxu0
      %v696 = vadd.f32 0.0, %v695
      %v697 = vpop.f32.mrf.mxu0
      %698 = vmatprep.mubr.bf16.mxu0 0
      %699 = vmatmul.mubr.bf16.gmra.mxu0 %v495
      %v700 = vpop.f32.mrf.mxu0
      %v701 = vadd.f32 0.0, %v700
      %v702 = vpop.f32.mrf.mxu0
      %v703 = vpop.f32.mrf.mxu0
      %v704 = vadd.f32 0.0, %v703
      %v705 = vpop.f32.mrf.mxu0
      %706 = vmatprep.mubr.bf16.mxu0 0
      %707 = vmatmul.mubr.bf16.gmra.mxu0 %v496
      %v708 = vpop.f32.mrf.mxu0
      %v709 = vadd.f32 0.0, %v708
      %v710 = vpop.f32.mrf.mxu0
      %v711 = vpop.f32.mrf.mxu0
      %v712 = vadd.f32 0.0, %v711
      %v713 = vpop.f32.mrf.mxu0
      %714 = vmatprep.mubr.bf16.mxu0 0
      %715 = vmatmul.mubr.bf16.gmra.mxu0 %v497
      %v716 = vpop.f32.mrf.mxu0
      %v717 = vadd.f32 0.0, %v716
      %v718 = vpop.f32.mrf.mxu0
      %v719 = vpop.f32.mrf.mxu0
      %v720 = vadd.f32 0.0, %v719
      %v721 = vpop.f32.mrf.mxu0
      %722 = vdwg.mxu0
      %v723 = vld [vmem:[%s2] sm:$0x1]
      %v725 = vlaneseq
      %v726 = vshrl.u32 %v725, 7
      %v727 = vsub.s32 0, %v726
      %v728 = vrot.slane %v723, %v727
      %v730 = vmul.f32 %v597, %v728
      %v731 = vmul.f32 %v600, %v728
      %v732 = vmul.f32 %v605, %v728
      %v733 = vmul.f32 %v608, %v728
      %v734 = vmul.f32 %v613, %v728
      %v735 = vmul.f32 %v616, %v728
      %v736 = vmul.f32 %v621, %v728
      %v737 = vmul.f32 %v624, %v728
      %v738 = vmul.f32 %v629, %v728
      %v739 = vmul.f32 %v632, %v728
      %v740 = vmul.f32 %v637, %v728
      %v741 = vmul.f32 %v640, %v728
      %v742 = vmul.f32 %v645, %v728
      %v743 = vmul.f32 %v648, %v728
      %v744 = vmul.f32 %v653, %v728
      %v745 = vmul.f32 %v656, %v728
      %v746 = vmul.f32 %v661, %v728
      %v747 = vmul.f32 %v664, %v728
      %v748 = vmul.f32 %v669, %v728
      %v749 = vmul.f32 %v672, %v728
      %v750 = vmul.f32 %v677, %v728
      %v751 = vmul.f32 %v680, %v728
      %v752 = vmul.f32 %v685, %v728
      %v753 = vmul.f32 %v688, %v728
      %v754 = vmul.f32 %v693, %v728
      %v755 = vmul.f32 %v696, %v728
      %v756 = vmul.f32 %v701, %v728
      %v757 = vmul.f32 %v704, %v728
      %v758 = vmul.f32 %v709, %v728
      %v759 = vmul.f32 %v712, %v728
      %v760 = vmul.f32 %v717, %v728
      %v761 = vmul.f32 %v720, %v728
      %v762 = vld [vmem:[%s3] sm:$0x1]
      %v764 = vlaneseq
      %v765 = vshrl.u32 %v764, 7
      %v766 = vsub.s32 0, %v765
      %v767 = vrot.slane %v762, %v766
      %v769 = vadd.f32 %v730, %v767
      %v770 = vadd.f32 %v731, %v767
      %v771 = vadd.f32 %v732, %v767
      %v772 = vadd.f32 %v733, %v767
      %v773 = vadd.f32 %v734, %v767
      %v774 = vadd.f32 %v735, %v767
      %v775 = vadd.f32 %v736, %v767
      %v776 = vadd.f32 %v737, %v767
      %v777 = vadd.f32 %v738, %v767
      %v778 = vadd.f32 %v739, %v767
      %v779 = vadd.f32 %v740, %v767
      %v780 = vadd.f32 %v741, %v767
      %v781 = vadd.f32 %v742, %v767
      %v782 = vadd.f32 %v743, %v767
      %v783 = vadd.f32 %v744, %v767
      %v784 = vadd.f32 %v745, %v767
      %v785 = vadd.f32 %v746, %v767
      %v786 = vadd.f32 %v747, %v767
      %v787 = vadd.f32 %v748, %v767
      %v788 = vadd.f32 %v749, %v767
      %v789 = vadd.f32 %v750, %v767
      %v790 = vadd.f32 %v751, %v767
      %v791 = vadd.f32 %v752, %v767
      %v792 = vadd.f32 %v753, %v767
      %v793 = vadd.f32 %v754, %v767
      %v794 = vadd.f32 %v755, %v767
      %v795 = vadd.f32 %v756, %v767
      %v796 = vadd.f32 %v757, %v767
      %v797 = vadd.f32 %v758, %v767
      %v798 = vadd.f32 %v759, %v767
      %v799 = vadd.f32 %v760, %v767
      %v800 = vadd.f32 %v761, %v767
      %v801 = vsub.f32 0.0, %v769
      %v802 = vsub.f32 0.0, %v770
      %v803 = vsub.f32 0.0, %v771
      %v804 = vsub.f32 0.0, %v772
      %v805 = vsub.f32 0.0, %v773
      %v806 = vsub.f32 0.0, %v774
      %v807 = vsub.f32 0.0, %v775
      %v808 = vsub.f32 0.0, %v776
      %v809 = vsub.f32 0.0, %v777
      %v810 = vsub.f32 0.0, %v778
      %v811 = vsub.f32 0.0, %v779
      %v812 = vsub.f32 0.0, %v780
      %v813 = vsub.f32 0.0, %v781
      %v814 = vsub.f32 0.0, %v782
      %v815 = vsub.f32 0.0, %v783
      %v816 = vsub.f32 0.0, %v784
      %v817 = vsub.f32 0.0, %v785
      %v818 = vsub.f32 0.0, %v786
      %v819 = vsub.f32 0.0, %v787
      %v820 = vsub.f32 0.0, %v788
      %v821 = vsub.f32 0.0, %v789
      %v822 = vsub.f32 0.0, %v790
      %v823 = vsub.f32 0.0, %v791
      %v824 = vsub.f32 0.0, %v792
      %v825 = vsub.f32 0.0, %v793
      %v826 = vsub.f32 0.0, %v794
      %v827 = vsub.f32 0.0, %v795
      %v828 = vsub.f32 0.0, %v796
      %v829 = vsub.f32 0.0, %v797
      %v830 = vsub.f32 0.0, %v798
      %v831 = vsub.f32 0.0, %v799
      %v832 = vsub.f32 0.0, %v800
      %v833 = vmul.f32 %v801, 1.442695
      %v834 = vpow.pop %v833
      %v835 = vmul.f32 %v802, 1.442695
      %v836 = vpow.pop %v835
      %v837 = vmul.f32 %v803, 1.442695
      %v838 = vpow.pop %v837
      %v839 = vmul.f32 %v804, 1.442695
      %v840 = vpow.pop %v839
      %v841 = vmul.f32 %v805, 1.442695
      %v842 = vpow.pop %v841
      %v843 = vmul.f32 %v806, 1.442695
      %v844 = vpow.pop %v843
      %v845 = vmul.f32 %v807, 1.442695
      %v846 = vpow.pop %v845
      %v847 = vmul.f32 %v808, 1.442695
      %v848 = vpow.pop %v847
      %v849 = vmul.f32 %v809, 1.442695
      %v850 = vpow.pop %v849
      %v851 = vmul.f32 %v810, 1.442695
      %v852 = vpow.pop %v851
      %v853 = vmul.f32 %v811, 1.442695
      %v854 = vpow.pop %v853
      %v855 = vmul.f32 %v812, 1.442695
      %v856 = vpow.pop %v855
      %v857 = vmul.f32 %v813, 1.442695
      %v858 = vpow.pop %v857
      %v859 = vmul.f32 %v814, 1.442695
      %v860 = vpow.pop %v859
      %v861 = vmul.f32 %v815, 1.442695
      %v862 = vpow.pop %v861
      %v863 = vmul.f32 %v816, 1.442695
      %v864 = vpow.pop %v863
      %v865 = vmul.f32 %v817, 1.442695
      %v866 = vpow.pop %v865
      %v867 = vmul.f32 %v818, 1.442695
      %v868 = vpow.pop %v867
      %v869 = vmul.f32 %v819, 1.442695
      %v870 = vpow.pop %v869
      %v871 = vmul.f32 %v820, 1.442695
      %v872 = vpow.pop %v871
      %v873 = vmul.f32 %v821, 1.442695
      %v874 = vpow.pop %v873
      %v875 = vmul.f32 %v822, 1.442695
      %v876 = vpow.pop %v875
      %v877 = vmul.f32 %v823, 1.442695
      %v878 = vpow.pop %v877
      %v879 = vmul.f32 %v824, 1.442695
      %v880 = vpow.pop %v879
      %v881 = vmul.f32 %v825, 1.442695
      %v882 = vpow.pop %v881
      %v883 = vmul.f32 %v826, 1.442695
      %v884 = vpow.pop %v883
      %v885 = vmul.f32 %v827, 1.442695
      %v886 = vpow.pop %v885
      %v887 = vmul.f32 %v828, 1.442695
      %v888 = vpow.pop %v887
      %v889 = vmul.f32 %v829, 1.442695
      %v890 = vpow.pop %v889
      %v891 = vmul.f32 %v830, 1.442695
      %v892 = vpow.pop %v891
      %v893 = vmul.f32 %v831, 1.442695
      %v894 = vpow.pop %v893
      %v895 = vmul.f32 %v832, 1.442695
      %v896 = vpow.pop %v895
      %v897 = vadd.f32 %v834, 1.0
      %v898 = vadd.f32 %v836, 1.0
      %v899 = vadd.f32 %v838, 1.0
      %v900 = vadd.f32 %v840, 1.0
      %v901 = vadd.f32 %v842, 1.0
      %v902 = vadd.f32 %v844, 1.0
      %v903 = vadd.f32 %v846, 1.0
      %v904 = vadd.f32 %v848, 1.0
      %v905 = vadd.f32 %v850, 1.0
      %v906 = vadd.f32 %v852, 1.0
      %v907 = vadd.f32 %v854, 1.0
      %v908 = vadd.f32 %v856, 1.0
      %v909 = vadd.f32 %v858, 1.0
      %v910 = vadd.f32 %v860, 1.0
      %v911 = vadd.f32 %v862, 1.0
      %v912 = vadd.f32 %v864, 1.0
      %v913 = vadd.f32 %v866, 1.0
      %v914 = vadd.f32 %v868, 1.0
      %v915 = vadd.f32 %v870, 1.0
      %v916 = vadd.f32 %v872, 1.0
      %v917 = vadd.f32 %v874, 1.0
      %v918 = vadd.f32 %v876, 1.0
      %v919 = vadd.f32 %v878, 1.0
      %v920 = vadd.f32 %v880, 1.0
      %v921 = vadd.f32 %v882, 1.0
      %v922 = vadd.f32 %v884, 1.0
      %v923 = vadd.f32 %v886, 1.0
      %v924 = vadd.f32 %v888, 1.0
      %v925 = vadd.f32 %v890, 1.0
      %v926 = vadd.f32 %v892, 1.0
      %v927 = vadd.f32 %v894, 1.0
      %v928 = vadd.f32 %v896, 1.0
      %v929 = vrcp.pop %v897
      %v930 = vmul.f32 1.0, %v929
      %v931 = vrcp.pop %v898
      %v932 = vmul.f32 1.0, %v931
      %v933 = vrcp.pop %v899
      %v934 = vmul.f32 1.0, %v933
      %v935 = vrcp.pop %v900
      %v936 = vmul.f32 1.0, %v935
      %v937 = vrcp.pop %v901
      %v938 = vmul.f32 1.0, %v937
      %v939 = vrcp.pop %v902
      %v940 = vmul.f32 1.0, %v939
      %v941 = vrcp.pop %v903
      %v942 = vmul.f32 1.0, %v941
      %v943 = vrcp.pop %v904
      %v944 = vmul.f32 1.0, %v943
      %v945 = vrcp.pop %v905
      %v946 = vmul.f32 1.0, %v945
      %v947 = vrcp.pop %v906
      %v948 = vmul.f32 1.0, %v947
      %v949 = vrcp.pop %v907
      %v950 = vmul.f32 1.0, %v949
      %v951 = vrcp.pop %v908
      %v952 = vmul.f32 1.0, %v951
      %v953 = vrcp.pop %v909
      %v954 = vmul.f32 1.0, %v953
      %v955 = vrcp.pop %v910
      %v956 = vmul.f32 1.0, %v955
      %v957 = vrcp.pop %v911
      %v958 = vmul.f32 1.0, %v957
      %v959 = vrcp.pop %v912
      %v960 = vmul.f32 1.0, %v959
      %v961 = vrcp.pop %v913
      %v962 = vmul.f32 1.0, %v961
      %v963 = vrcp.pop %v914
      %v964 = vmul.f32 1.0, %v963
      %v965 = vrcp.pop %v915
      %v966 = vmul.f32 1.0, %v965
      %v967 = vrcp.pop %v916
      %v968 = vmul.f32 1.0, %v967
      %v969 = vrcp.pop %v917
      %v970 = vmul.f32 1.0, %v969
      %v971 = vrcp.pop %v918
      %v972 = vmul.f32 1.0, %v971
      %v973 = vrcp.pop %v919
      %v974 = vmul.f32 1.0, %v973
      %v975 = vrcp.pop %v920
      %v976 = vmul.f32 1.0, %v975
      %v977 = vrcp.pop %v921
      %v978 = vmul.f32 1.0, %v977
      %v979 = vrcp.pop %v922
      %v980 = vmul.f32 1.0, %v979
      %v981 = vrcp.pop %v923
      %v982 = vmul.f32 1.0, %v981
      %v983 = vrcp.pop %v924
      %v984 = vmul.f32 1.0, %v983
      %v985 = vrcp.pop %v925
      %v986 = vmul.f32 1.0, %v985
      %v987 = vrcp.pop %v926
      %v988 = vmul.f32 1.0, %v987
      %v989 = vrcp.pop %v927
      %v990 = vmul.f32 1.0, %v989
      %v991 = vrcp.pop %v928
      %v992 = vmul.f32 1.0, %v991
      %v993 = vmul.f32 %v769, %v930
      %v994 = vmul.f32 %v770, %v932
      %v995 = vmul.f32 %v771, %v934
      %v996 = vmul.f32 %v772, %v936
      %v997 = vmul.f32 %v773, %v938
      %v998 = vmul.f32 %v774, %v940
      %v999 = vmul.f32 %v775, %v942
      %v1000 = vmul.f32 %v776, %v944
      %v1001 = vmul.f32 %v777, %v946
      %v1002 = vmul.f32 %v778, %v948
      %v1003 = vmul.f32 %v779, %v950
      %v1004 = vmul.f32 %v780, %v952
      %v1005 = vmul.f32 %v781, %v954
      %v1006 = vmul.f32 %v782, %v956
      %v1007 = vmul.f32 %v783, %v958
      %v1008 = vmul.f32 %v784, %v960
      %v1009 = vmul.f32 %v785, %v962
      %v1010 = vmul.f32 %v786, %v964
      %v1011 = vmul.f32 %v787, %v966
      %v1012 = vmul.f32 %v788, %v968
      %v1013 = vmul.f32 %v789, %v970
      %v1014 = vmul.f32 %v790, %v972
      %v1015 = vmul.f32 %v791, %v974
      %v1016 = vmul.f32 %v792, %v976
      %v1017 = vmul.f32 %v793, %v978
      %v1018 = vmul.f32 %v794, %v980
      %v1019 = vmul.f32 %v795, %v982
      %v1020 = vmul.f32 %v796, %v984
      %v1021 = vmul.f32 %v797, %v986
      %v1022 = vmul.f32 %v798, %v988
      %v1023 = vmul.f32 %v799, %v990
      %v1024 = vmul.f32 %v800, %v992
      %v1025 = vld [vmem:[%s4] sm:$0xf]
      %v1026 = vld [vmem:[%s4 + $0x4] sm:$0xf]
      %v1027 = vld [vmem:[%s4 + $0x8] sm:$0xf]
      %v1028 = vld [vmem:[%s4 + $0xc] sm:$0xf]
      %v1029 = vld [vmem:[%s4 + $0x10] sm:$0xf]
      %v1030 = vld [vmem:[%s4 + $0x14] sm:$0xf]
      %v1031 = vld [vmem:[%s4 + $0x18] sm:$0xf]
      %v1032 = vld [vmem:[%s4 + $0x1c] sm:$0xf]
      %v1033 = vld [vmem:[%s4 + $0x20] sm:$0xf]
      %v1034 = vld [vmem:[%s4 + $0x24] sm:$0xf]
      %v1035 = vld [vmem:[%s4 + $0x28] sm:$0xf]
      %v1036 = vld [vmem:[%s4 + $0x2c] sm:$0xf]
      %v1037 = vld [vmem:[%s4 + $0x30] sm:$0xf]
      %v1038 = vld [vmem:[%s4 + $0x34] sm:$0xf]
      %v1039 = vld [vmem:[%s4 + $0x38] sm:$0xf]
      %v1040 = vld [vmem:[%s4 + $0x3c] sm:$0xf]
      %v1057 = vunpack.c.l.b16 %v1025
      %v1058 = vunpack.c.l.b16 %v1026
      %v1059 = vunpack.c.l.b16 %v1027
      %v1060 = vunpack.c.l.b16 %v1028
      %v1061 = vunpack.c.l.b16 %v1029
      %v1062 = vunpack.c.l.b16 %v1030
      %v1063 = vunpack.c.l.b16 %v1031
      %v1064 = vunpack.c.l.b16 %v1032
      %v1065 = vunpack.c.l.b16 %v1033
      %v1066 = vunpack.c.l.b16 %v1034
      %v1067 = vunpack.c.l.b16 %v1035
      %v1068 = vunpack.c.l.b16 %v1036
      %v1069 = vunpack.c.l.b16 %v1037
      %v1070 = vunpack.c.l.b16 %v1038
      %v1071 = vunpack.c.l.b16 %v1039
      %v1072 = vunpack.c.l.b16 %v1040
      %v1073 = vpack.c.b16 %v1058, %v1057
      %v1074 = vpack.c.b16 %v1060, %v1059
      %v1075 = vpack.c.b16 %v1062, %v1061
      %v1076 = vpack.c.b16 %v1064, %v1063
      %v1077 = vpack.c.b16 %v1066, %v1065
      %v1078 = vpack.c.b16 %v1068, %v1067
      %v1079 = vpack.c.b16 %v1070, %v1069
      %v1080 = vpack.c.b16 %v1072, %v1071
      %1089 = vmatprep.subr.bf16.mxu0 0
      %1090 = vmatpush1.bf16.msra.mxu0 %v1080
      %1091 = vmatprep.subr.bf16.mxu0 0
      %1092 = vmatpush1.bf16.msra.mxu0 %v1079
      %1093 = vmatprep.subr.bf16.mxu0 0
      %1094 = vmatpush1.bf16.msra.mxu0 %v1078
      %1095 = vmatprep.subr.bf16.mxu0 0
      %1096 = vmatpush1.bf16.msra.mxu0 %v1077
      %1097 = vmatprep.subr.bf16.mxu0 0
      %1098 = vmatpush1.bf16.msra.mxu0 %v1076
      %1099 = vmatprep.subr.bf16.mxu0 0
      %1100 = vmatpush1.bf16.msra.mxu0 %v1075
      %1101 = vmatprep.subr.bf16.mxu0 0
      %1102 = vmatpush1.bf16.msra.mxu0 %v1074
      %1103 = vmatprep.subr.bf16.mxu0 0
      %1104 = vmatpush1.bf16.msra.mxu0 %v1073
      %1105 = vmatprep.subr.bf16.mxu0 0
      %1106 = vmatpush2.bf16.msra.mxu0 0
      %1107 = vmatprep.subr.bf16.mxu0 0
      %1108 = vmatpush2.bf16.msra.mxu0 0
      %1109 = vmatprep.subr.bf16.mxu0 0
      %1110 = vmatpush2.bf16.msra.mxu0 0
      %1111 = vmatprep.subr.bf16.mxu0 0
      %1112 = vmatpush2.bf16.msra.mxu0 0
      %1113 = vmatprep.subr.bf16.mxu0 0
      %1114 = vmatpush2.bf16.msra.mxu0 0
      %1115 = vmatprep.subr.bf16.mxu0 0
      %1116 = vmatpush2.bf16.msra.mxu0 0
      %1117 = vmatprep.subr.bf16.mxu0 0
      %1118 = vmatpush2.bf16.msra.mxu0 0
      %1119 = vmatprep.subr.bf16.mxu0 0
      %1120 = vmatpush2.bf16.msra.mxu0 0
      %1121 = vmatprep.mubr.bf16.mxu0 0
      %1122 = vmatmul.mubr.bf16.gmra.mxu0 %v482
      %v1123 = vpop.f32.mrf.mxu0
      %v1124 = vadd.f32 0.0, %v1123
      %v1125 = vpop.f32.mrf.mxu0
      %v1126 = vpop.f32.mrf.mxu0
      %v1127 = vadd.f32 0.0, %v1126
      %v1128 = vpop.f32.mrf.mxu0
      %1129 = vmatprep.mubr.bf16.mxu0 0
      %1130 = vmatmul.mubr.bf16.gmra.mxu0 %v483
      %v1131 = vpop.f32.mrf.mxu0
      %v1132 = vadd.f32 0.0, %v1131
      %v1133 = vpop.f32.mrf.mxu0
      %v1134 = vpop.f32.mrf.mxu0
      %v1135 = vadd.f32 0.0, %v1134
      %v1136 = vpop.f32.mrf.mxu0
      %1137 = vmatprep.mubr.bf16.mxu0 0
      %1138 = vmatmul.mubr.bf16.gmra.mxu0 %v484
      %v1139 = vpop.f32.mrf.mxu0
      %v1140 = vadd.f32 0.0, %v1139
      %v1141 = vpop.f32.mrf.mxu0
      %v1142 = vpop.f32.mrf.mxu0
      %v1143 = vadd.f32 0.0, %v1142
      %v1144 = vpop.f32.mrf.mxu0
      %1145 = vmatprep.mubr.bf16.mxu0 0
      %1146 = vmatmul.mubr.bf16.gmra.mxu0 %v485
      %v1147 = vpop.f32.mrf.mxu0
      %v1148 = vadd.f32 0.0, %v1147
      %v1149 = vpop.f32.mrf.mxu0
      %v1150 = vpop.f32.mrf.mxu0
      %v1151 = vadd.f32 0.0, %v1150
      %v1152 = vpop.f32.mrf.mxu0
      %1153 = vmatprep.mubr.bf16.mxu0 0
      %1154 = vmatmul.mubr.bf16.gmra.mxu0 %v486
      %v1155 = vpop.f32.mrf.mxu0
      %v1156 = vadd.f32 0.0, %v1155
      %v1157 = vpop.f32.mrf.mxu0
      %v1158 = vpop.f32.mrf.mxu0
      %v1159 = vadd.f32 0.0, %v1158
      %v1160 = vpop.f32.mrf.mxu0
      %1161 = vmatprep.mubr.bf16.mxu0 0
      %1162 = vmatmul.mubr.bf16.gmra.mxu0 %v487
      %v1163 = vpop.f32.mrf.mxu0
      %v1164 = vadd.f32 0.0, %v1163
      %v1165 = vpop.f32.mrf.mxu0
      %v1166 = vpop.f32.mrf.mxu0
      %v1167 = vadd.f32 0.0, %v1166
      %v1168 = vpop.f32.mrf.mxu0
      %1169 = vmatprep.mubr.bf16.mxu0 0
      %1170 = vmatmul.mubr.bf16.gmra.mxu0 %v488
      %v1171 = vpop.f32.mrf.mxu0
      %v1172 = vadd.f32 0.0, %v1171
      %v1173 = vpop.f32.mrf.mxu0
      %v1174 = vpop.f32.mrf.mxu0
      %v1175 = vadd.f32 0.0, %v1174
      %v1176 = vpop.f32.mrf.mxu0
      %1177 = vmatprep.mubr.bf16.mxu0 0
      %1178 = vmatmul.mubr.bf16.gmra.mxu0 %v489
      %v1179 = vpop.f32.mrf.mxu0
      %v1180 = vadd.f32 0.0, %v1179
      %v1181 = vpop.f32.mrf.mxu0
      %v1182 = vpop.f32.mrf.mxu0
      %v1183 = vadd.f32 0.0, %v1182
      %v1184 = vpop.f32.mrf.mxu0
      %1185 = vmatprep.mubr.bf16.mxu0 0
      %1186 = vmatmul.mubr.bf16.gmra.mxu0 %v490
      %v1187 = vpop.f32.mrf.mxu0
      %v1188 = vadd.f32 0.0, %v1187
      %v1189 = vpop.f32.mrf.mxu0
      %v1190 = vpop.f32.mrf.mxu0
      %v1191 = vadd.f32 0.0, %v1190
      %v1192 = vpop.f32.mrf.mxu0
      %1193 = vmatprep.mubr.bf16.mxu0 0
      %1194 = vmatmul.mubr.bf16.gmra.mxu0 %v491
      %v1195 = vpop.f32.mrf.mxu0
      %v1196 = vadd.f32 0.0, %v1195
      %v1197 = vpop.f32.mrf.mxu0
      %v1198 = vpop.f32.mrf.mxu0
      %v1199 = vadd.f32 0.0, %v1198
      %v1200 = vpop.f32.mrf.mxu0
      %1201 = vmatprep.mubr.bf16.mxu0 0
      %1202 = vmatmul.mubr.bf16.gmra.mxu0 %v492
      %v1203 = vpop.f32.mrf.mxu0
      %v1204 = vadd.f32 0.0, %v1203
      %v1205 = vpop.f32.mrf.mxu0
      %v1206 = vpop.f32.mrf.mxu0
      %v1207 = vadd.f32 0.0, %v1206
      %v1208 = vpop.f32.mrf.mxu0
      %1209 = vmatprep.mubr.bf16.mxu0 0
      %1210 = vmatmul.mubr.bf16.gmra.mxu0 %v493
      %v1211 = vpop.f32.mrf.mxu0
      %v1212 = vadd.f32 0.0, %v1211
      %v1213 = vpop.f32.mrf.mxu0
      %v1214 = vpop.f32.mrf.mxu0
      %v1215 = vadd.f32 0.0, %v1214
      %v1216 = vpop.f32.mrf.mxu0
      %1217 = vmatprep.mubr.bf16.mxu0 0
      %1218 = vmatmul.mubr.bf16.gmra.mxu0 %v494
      %v1219 = vpop.f32.mrf.mxu0
      %v1220 = vadd.f32 0.0, %v1219
      %v1221 = vpop.f32.mrf.mxu0
      %v1222 = vpop.f32.mrf.mxu0
      %v1223 = vadd.f32 0.0, %v1222
      %v1224 = vpop.f32.mrf.mxu0
      %1225 = vmatprep.mubr.bf16.mxu0 0
      %1226 = vmatmul.mubr.bf16.gmra.mxu0 %v495
      %v1227 = vpop.f32.mrf.mxu0
      %v1228 = vadd.f32 0.0, %v1227
      %v1229 = vpop.f32.mrf.mxu0
      %v1230 = vpop.f32.mrf.mxu0
      %v1231 = vadd.f32 0.0, %v1230
      %v1232 = vpop.f32.mrf.mxu0
      %1233 = vmatprep.mubr.bf16.mxu0 0
      %1234 = vmatmul.mubr.bf16.gmra.mxu0 %v496
      %v1235 = vpop.f32.mrf.mxu0
      %v1236 = vadd.f32 0.0, %v1235
      %v1237 = vpop.f32.mrf.mxu0
      %v1238 = vpop.f32.mrf.mxu0
      %v1239 = vadd.f32 0.0, %v1238
      %v1240 = vpop.f32.mrf.mxu0
      %1241 = vmatprep.mubr.bf16.mxu0 0
      %1242 = vmatmul.mubr.bf16.gmra.mxu0 %v497
      %v1243 = vpop.f32.mrf.mxu0
      %v1244 = vadd.f32 0.0, %v1243
      %v1245 = vpop.f32.mrf.mxu0
      %v1246 = vpop.f32.mrf.mxu0
      %v1247 = vadd.f32 0.0, %v1246
      %v1248 = vpop.f32.mrf.mxu0
      %1249 = vdwg.mxu0
      %v1250 = vld [vmem:[%s5] sm:$0x1]
      %v1252 = vlaneseq
      %v1253 = vshrl.u32 %v1252, 7
      %v1254 = vsub.s32 0, %v1253
      %v1255 = vrot.slane %v1250, %v1254
      %v1257 = vmul.f32 %v1124, %v1255
      %v1258 = vmul.f32 %v1127, %v1255
      %v1259 = vmul.f32 %v1132, %v1255
      %v1260 = vmul.f32 %v1135, %v1255
      %v1261 = vmul.f32 %v1140, %v1255
      %v1262 = vmul.f32 %v1143, %v1255
      %v1263 = vmul.f32 %v1148, %v1255
      %v1264 = vmul.f32 %v1151, %v1255
      %v1265 = vmul.f32 %v1156, %v1255
      %v1266 = vmul.f32 %v1159, %v1255
      %v1267 = vmul.f32 %v1164, %v1255
      %v1268 = vmul.f32 %v1167, %v1255
      %v1269 = vmul.f32 %v1172, %v1255
      %v1270 = vmul.f32 %v1175, %v1255
      %v1271 = vmul.f32 %v1180, %v1255
      %v1272 = vmul.f32 %v1183, %v1255
      %v1273 = vmul.f32 %v1188, %v1255
      %v1274 = vmul.f32 %v1191, %v1255
      %v1275 = vmul.f32 %v1196, %v1255
      %v1276 = vmul.f32 %v1199, %v1255
      %v1277 = vmul.f32 %v1204, %v1255
      %v1278 = vmul.f32 %v1207, %v1255
      %v1279 = vmul.f32 %v1212, %v1255
      %v1280 = vmul.f32 %v1215, %v1255
      %v1281 = vmul.f32 %v1220, %v1255
      %v1282 = vmul.f32 %v1223, %v1255
      %v1283 = vmul.f32 %v1228, %v1255
      %v1284 = vmul.f32 %v1231, %v1255
      %v1285 = vmul.f32 %v1236, %v1255
      %v1286 = vmul.f32 %v1239, %v1255
      %v1287 = vmul.f32 %v1244, %v1255
      %v1288 = vmul.f32 %v1247, %v1255
      %v1289 = vld [vmem:[%s6] sm:$0x1]
      %v1291 = vlaneseq
      %v1292 = vshrl.u32 %v1291, 7
      %v1293 = vsub.s32 0, %v1292
      %v1294 = vrot.slane %v1289, %v1293
      %v1296 = vadd.f32 %v1257, %v1294
      %v1297 = vadd.f32 %v1258, %v1294
      %v1298 = vadd.f32 %v1259, %v1294
      %v1299 = vadd.f32 %v1260, %v1294
      %v1300 = vadd.f32 %v1261, %v1294
      %v1301 = vadd.f32 %v1262, %v1294
      %v1302 = vadd.f32 %v1263, %v1294
      %v1303 = vadd.f32 %v1264, %v1294
      %v1304 = vadd.f32 %v1265, %v1294
      %v1305 = vadd.f32 %v1266, %v1294
      %v1306 = vadd.f32 %v1267, %v1294
      %v1307 = vadd.f32 %v1268, %v1294
      %v1308 = vadd.f32 %v1269, %v1294
      %v1309 = vadd.f32 %v1270, %v1294
      %v1310 = vadd.f32 %v1271, %v1294
      %v1311 = vadd.f32 %v1272, %v1294
      %v1312 = vadd.f32 %v1273, %v1294
      %v1313 = vadd.f32 %v1274, %v1294
      %v1314 = vadd.f32 %v1275, %v1294
      %v1315 = vadd.f32 %v1276, %v1294
      %v1316 = vadd.f32 %v1277, %v1294
      %v1317 = vadd.f32 %v1278, %v1294
      %v1318 = vadd.f32 %v1279, %v1294
      %v1319 = vadd.f32 %v1280, %v1294
      %v1320 = vadd.f32 %v1281, %v1294
      %v1321 = vadd.f32 %v1282, %v1294
      %v1322 = vadd.f32 %v1283, %v1294
      %v1323 = vadd.f32 %v1284, %v1294
      %v1324 = vadd.f32 %v1285, %v1294
      %v1325 = vadd.f32 %v1286, %v1294
      %v1326 = vadd.f32 %v1287, %v1294
      %v1327 = vadd.f32 %v1288, %v1294
      %vm1328 = vcmp.ge.f32.partialorder %v1296, 0.0
      %vm1329 = vcmp.ge.f32.partialorder %v1297, 0.0
      %vm1330 = vcmp.ge.f32.partialorder %v1298, 0.0
      %vm1331 = vcmp.ge.f32.partialorder %v1299, 0.0
      %vm1332 = vcmp.ge.f32.partialorder %v1300, 0.0
      %vm1333 = vcmp.ge.f32.partialorder %v1301, 0.0
      %vm1334 = vcmp.ge.f32.partialorder %v1302, 0.0
      %vm1335 = vcmp.ge.f32.partialorder %v1303, 0.0
      %vm1336 = vcmp.ge.f32.partialorder %v1304, 0.0
      %vm1337 = vcmp.ge.f32.partialorder %v1305, 0.0
      %vm1338 = vcmp.ge.f32.partialorder %v1306, 0.0
      %vm1339 = vcmp.ge.f32.partialorder %v1307, 0.0
      %vm1340 = vcmp.ge.f32.partialorder %v1308, 0.0
      %vm1341 = vcmp.ge.f32.partialorder %v1309, 0.0
      %vm1342 = vcmp.ge.f32.partialorder %v1310, 0.0
      %vm1343 = vcmp.ge.f32.partialorder %v1311, 0.0
      %vm1344 = vcmp.ge.f32.partialorder %v1312, 0.0
      %vm1345 = vcmp.ge.f32.partialorder %v1313, 0.0
      %vm1346 = vcmp.ge.f32.partialorder %v1314, 0.0
      %vm1347 = vcmp.ge.f32.partialorder %v1315, 0.0
      %vm1348 = vcmp.ge.f32.partialorder %v1316, 0.0
      %vm1349 = vcmp.ge.f32.partialorder %v1317, 0.0
      %vm1350 = vcmp.ge.f32.partialorder %v1318, 0.0
      %vm1351 = vcmp.ge.f32.partialorder %v1319, 0.0
      %vm1352 = vcmp.ge.f32.partialorder %v1320, 0.0
      %vm1353 = vcmp.ge.f32.partialorder %v1321, 0.0
      %vm1354 = vcmp.ge.f32.partialorder %v1322, 0.0
      %vm1355 = vcmp.ge.f32.partialorder %v1323, 0.0
      %vm1356 = vcmp.ge.f32.partialorder %v1324, 0.0
      %vm1357 = vcmp.ge.f32.partialorder %v1325, 0.0
      %vm1358 = vcmp.ge.f32.partialorder %v1326, 0.0
      %vm1359 = vcmp.ge.f32.partialorder %v1327, 0.0
      %v1360 = vmul.f32 %v1296, 0.1
      %v1361 = vmul.f32 %v1297, 0.1
      %v1362 = vmul.f32 %v1298, 0.1
      %v1363 = vmul.f32 %v1299, 0.1
      %v1364 = vmul.f32 %v1300, 0.1
      %v1365 = vmul.f32 %v1301, 0.1
      %v1366 = vmul.f32 %v1302, 0.1
      %v1367 = vmul.f32 %v1303, 0.1
      %v1368 = vmul.f32 %v1304, 0.1
      %v1369 = vmul.f32 %v1305, 0.1
      %v1370 = vmul.f32 %v1306, 0.1
      %v1371 = vmul.f32 %v1307, 0.1
      %v1372 = vmul.f32 %v1308, 0.1
      %v1373 = vmul.f32 %v1309, 0.1
      %v1374 = vmul.f32 %v1310, 0.1
      %v1375 = vmul.f32 %v1311, 0.1
      %v1376 = vmul.f32 %v1312, 0.1
      %v1377 = vmul.f32 %v1313, 0.1
      %v1378 = vmul.f32 %v1314, 0.1
      %v1379 = vmul.f32 %v1315, 0.1
      %v1380 = vmul.f32 %v1316, 0.1
      %v1381 = vmul.f32 %v1317, 0.1
      %v1382 = vmul.f32 %v1318, 0.1
      %v1383 = vmul.f32 %v1319, 0.1
      %v1384 = vmul.f32 %v1320, 0.1
      %v1385 = vmul.f32 %v1321, 0.1
      %v1386 = vmul.f32 %v1322, 0.1
      %v1387 = vmul.f32 %v1323, 0.1
      %v1388 = vmul.f32 %v1324, 0.1
      %v1389 = vmul.f32 %v1325, 0.1
      %v1390 = vmul.f32 %v1326, 0.1
      %v1391 = vmul.f32 %v1327, 0.1
      %v1392 = vsel %vm1328, %v1296, %v1360
      %v1393 = vsel %vm1329, %v1297, %v1361
      %v1394 = vsel %vm1330, %v1298, %v1362
      %v1395 = vsel %vm1331, %v1299, %v1363
      %v1396 = vsel %vm1332, %v1300, %v1364
      %v1397 = vsel %vm1333, %v1301, %v1365
      %v1398 = vsel %vm1334, %v1302, %v1366
      %v1399 = vsel %vm1335, %v1303, %v1367
      %v1400 = vsel %vm1336, %v1304, %v1368
      %v1401 = vsel %vm1337, %v1305, %v1369
      %v1402 = vsel %vm1338, %v1306, %v1370
      %v1403 = vsel %vm1339, %v1307, %v1371
      %v1404 = vsel %vm1340, %v1308, %v1372
      %v1405 = vsel %vm1341, %v1309, %v1373
      %v1406 = vsel %vm1342, %v1310, %v1374
      %v1407 = vsel %vm1343, %v1311, %v1375
      %v1408 = vsel %vm1344, %v1312, %v1376
      %v1409 = vsel %vm1345, %v1313, %v1377
      %v1410 = vsel %vm1346, %v1314, %v1378
      %v1411 = vsel %vm1347, %v1315, %v1379
      %v1412 = vsel %vm1348, %v1316, %v1380
      %v1413 = vsel %vm1349, %v1317, %v1381
      %v1414 = vsel %vm1350, %v1318, %v1382
      %v1415 = vsel %vm1351, %v1319, %v1383
      %v1416 = vsel %vm1352, %v1320, %v1384
      %v1417 = vsel %vm1353, %v1321, %v1385
      %v1418 = vsel %vm1354, %v1322, %v1386
      %v1419 = vsel %vm1355, %v1323, %v1387
      %v1420 = vsel %vm1356, %v1324, %v1388
      %v1421 = vsel %vm1357, %v1325, %v1389
      %v1422 = vsel %vm1358, %v1326, %v1390
      %v1423 = vsel %vm1359, %v1327, %v1391
      %v1424 = vpack.c.bf16 %v994, %v993
      %v1425 = vpack.c.bf16 %v996, %v995
      %v1426 = vpack.c.bf16 %v998, %v997
      %v1427 = vpack.c.bf16 %v1000, %v999
      %v1428 = vpack.c.bf16 %v1002, %v1001
      %v1429 = vpack.c.bf16 %v1004, %v1003
      %v1430 = vpack.c.bf16 %v1006, %v1005
      %v1431 = vpack.c.bf16 %v1008, %v1007
      %v1432 = vpack.c.bf16 %v1010, %v1009
      %v1433 = vpack.c.bf16 %v1012, %v1011
      %v1434 = vpack.c.bf16 %v1014, %v1013
      %v1435 = vpack.c.bf16 %v1016, %v1015
      %v1436 = vpack.c.bf16 %v1018, %v1017
      %v1437 = vpack.c.bf16 %v1020, %v1019
      %v1438 = vpack.c.bf16 %v1022, %v1021
      %v1439 = vpack.c.bf16 %v1024, %v1023
      %v1456 = vunpack.c.l.b16 %v1424
      %v1457 = vunpack.c.h.b16 %v1424
      %v1458 = vunpack.c.l.b16 %v1425
      %v1459 = vunpack.c.h.b16 %v1425
      %v1460 = vunpack.c.l.b16 %v1426
      %v1461 = vunpack.c.h.b16 %v1426
      %v1462 = vunpack.c.l.b16 %v1427
      %v1463 = vunpack.c.h.b16 %v1427
      %v1464 = vunpack.c.l.b16 %v1428
      %v1465 = vunpack.c.h.b16 %v1428
      %v1466 = vunpack.c.l.b16 %v1429
      %v1467 = vunpack.c.h.b16 %v1429
      %v1468 = vunpack.c.l.b16 %v1430
      %v1469 = vunpack.c.h.b16 %v1430
      %v1470 = vunpack.c.l.b16 %v1431
      %v1471 = vunpack.c.h.b16 %v1431
      %v1472 = vunpack.c.l.b16 %v1432
      %v1473 = vunpack.c.h.b16 %v1432
      %v1474 = vunpack.c.l.b16 %v1433
      %v1475 = vunpack.c.h.b16 %v1433
      %v1476 = vunpack.c.l.b16 %v1434
      %v1477 = vunpack.c.h.b16 %v1434
      %v1478 = vunpack.c.l.b16 %v1435
      %v1479 = vunpack.c.h.b16 %v1435
      %v1480 = vunpack.c.l.b16 %v1436
      %v1481 = vunpack.c.h.b16 %v1436
      %v1482 = vunpack.c.l.b16 %v1437
      %v1483 = vunpack.c.h.b16 %v1437
      %v1484 = vunpack.c.l.b16 %v1438
      %v1485 = vunpack.c.h.b16 %v1438
      %v1486 = vunpack.c.l.b16 %v1439
      %v1487 = vunpack.c.h.b16 %v1439
      %v1488 = vpack.c.b16 %v1456, %v1456
      %v1489 = vpack.c.b16 %v1457, %v1457
      %v1490 = vpack.c.b16 %v1458, %v1458
      %v1491 = vpack.c.b16 %v1459, %v1459
      %v1492 = vpack.c.b16 %v1460, %v1460
      %v1493 = vpack.c.b16 %v1461, %v1461
      %v1494 = vpack.c.b16 %v1462, %v1462
      %v1495 = vpack.c.b16 %v1463, %v1463
      %v1496 = vpack.c.b16 %v1464, %v1464
      %v1497 = vpack.c.b16 %v1465, %v1465
      %v1498 = vpack.c.b16 %v1466, %v1466
      %v1499 = vpack.c.b16 %v1467, %v1467
      %v1500 = vpack.c.b16 %v1468, %v1468
      %v1501 = vpack.c.b16 %v1469, %v1469
      %v1502 = vpack.c.b16 %v1470, %v1470
      %v1503 = vpack.c.b16 %v1471, %v1471
      %v1504 = vpack.c.b16 %v1472, %v1472
      %v1505 = vpack.c.b16 %v1473, %v1473
      %v1506 = vpack.c.b16 %v1474, %v1474
      %v1507 = vpack.c.b16 %v1475, %v1475
      %v1508 = vpack.c.b16 %v1476, %v1476
      %v1509 = vpack.c.b16 %v1477, %v1477
      %v1510 = vpack.c.b16 %v1478, %v1478
      %v1511 = vpack.c.b16 %v1479, %v1479
      %v1512 = vpack.c.b16 %v1480, %v1480
      %v1513 = vpack.c.b16 %v1481, %v1481
      %v1514 = vpack.c.b16 %v1482, %v1482
      %v1515 = vpack.c.b16 %v1483, %v1483
      %v1516 = vpack.c.b16 %v1484, %v1484
      %v1517 = vpack.c.b16 %v1485, %v1485
      %v1518 = vpack.c.b16 %v1486, %v1486
      %v1519 = vpack.c.b16 %v1487, %v1487
      %1552 = vst [vmem:[%s357] sm:$0xf] %v1488
      %1553 = vst [vmem:[%s357 + $0x4] sm:$0xf] %v1489
      %1554 = vst [vmem:[%s357 + $0x8] sm:$0xf] %v1490
      %1555 = vst [vmem:[%s357 + $0xc] sm:$0xf] %v1491
      %1556 = vst [vmem:[%s357 + $0x10] sm:$0xf] %v1492
      %1557 = vst [vmem:[%s357 + $0x14] sm:$0xf] %v1493
      %1558 = vst [vmem:[%s357 + $0x18] sm:$0xf] %v1494
      %1559 = vst [vmem:[%s357 + $0x1c] sm:$0xf] %v1495
      %1560 = vst [vmem:[%s357 + $0x20] sm:$0xf] %v1496
      %1561 = vst [vmem:[%s357 + $0x24] sm:$0xf] %v1497
      %1562 = vst [vmem:[%s357 + $0x28] sm:$0xf] %v1498
      %1563 = vst [vmem:[%s357 + $0x2c] sm:$0xf] %v1499
      %1564 = vst [vmem:[%s357 + $0x30] sm:$0xf] %v1500
      %1565 = vst [vmem:[%s357 + $0x34] sm:$0xf] %v1501
      %1566 = vst [vmem:[%s357 + $0x38] sm:$0xf] %v1502
      %1567 = vst [vmem:[%s357 + $0x3c] sm:$0xf] %v1503
      %1568 = vst [vmem:[%s357 + $0x40] sm:$0xf] %v1504
      %1569 = vst [vmem:[%s357 + $0x44] sm:$0xf] %v1505
      %1570 = vst [vmem:[%s357 + $0x48] sm:$0xf] %v1506
      %1571 = vst [vmem:[%s357 + $0x4c] sm:$0xf] %v1507
      %1572 = vst [vmem:[%s357 + $0x50] sm:$0xf] %v1508
      %1573 = vst [vmem:[%s357 + $0x54] sm:$0xf] %v1509
      %1574 = vst [vmem:[%s357 + $0x58] sm:$0xf] %v1510
      %1575 = vst [vmem:[%s357 + $0x5c] sm:$0xf] %v1511
      %1576 = vst [vmem:[%s357 + $0x60] sm:$0xf] %v1512
      %1577 = vst [vmem:[%s357 + $0x64] sm:$0xf] %v1513
      %1578 = vst [vmem:[%s357 + $0x68] sm:$0xf] %v1514
      %1579 = vst [vmem:[%s357 + $0x6c] sm:$0xf] %v1515
      %1580 = vst [vmem:[%s357 + $0x70] sm:$0xf] %v1516
      %1581 = vst [vmem:[%s357 + $0x74] sm:$0xf] %v1517
      %1582 = vst [vmem:[%s357 + $0x78] sm:$0xf] %v1518
      %1583 = vst [vmem:[%s357 + $0x7c] sm:$0xf] %v1519
      %v1584 = vpack.c.bf16 %v1393, %v1392
      %v1585 = vpack.c.bf16 %v1395, %v1394
      %v1586 = vpack.c.bf16 %v1397, %v1396
      %v1587 = vpack.c.bf16 %v1399, %v1398
      %v1588 = vpack.c.bf16 %v1401, %v1400
      %v1589 = vpack.c.bf16 %v1403, %v1402
      %v1590 = vpack.c.bf16 %v1405, %v1404
      %v1591 = vpack.c.bf16 %v1407, %v1406
      %v1592 = vpack.c.bf16 %v1409, %v1408
      %v1593 = vpack.c.bf16 %v1411, %v1410
      %v1594 = vpack.c.bf16 %v1413, %v1412
      %v1595 = vpack.c.bf16 %v1415, %v1414
      %v1596 = vpack.c.bf16 %v1417, %v1416
      %v1597 = vpack.c.bf16 %v1419, %v1418
      %v1598 = vpack.c.bf16 %v1421, %v1420
      %v1599 = vpack.c.bf16 %v1423, %v1422
      %v1616 = vunpack.c.l.b16 %v1584
      %v1617 = vunpack.c.h.b16 %v1584
      %v1618 = vunpack.c.l.b16 %v1585
      %v1619 = vunpack.c.h.b16 %v1585
      %v1620 = vunpack.c.l.b16 %v1586
      %v1621 = vunpack.c.h.b16 %v1586
      %v1622 = vunpack.c.l.b16 %v1587
      %v1623 = vunpack.c.h.b16 %v1587
      %v1624 = vunpack.c.l.b16 %v1588
      %v1625 = vunpack.c.h.b16 %v1588
      %v1626 = vunpack.c.l.b16 %v1589
      %v1627 = vunpack.c.h.b16 %v1589
      %v1628 = vunpack.c.l.b16 %v1590
      %v1629 = vunpack.c.h.b16 %v1590
      %v1630 = vunpack.c.l.b16 %v1591
      %v1631 = vunpack.c.h.b16 %v1591
      %v1632 = vunpack.c.l.b16 %v1592
      %v1633 = vunpack.c.h.b16 %v1592
      %v1634 = vunpack.c.l.b16 %v1593
      %v1635 = vunpack.c.h.b16 %v1593
      %v1636 = vunpack.c.l.b16 %v1594
      %v1637 = vunpack.c.h.b16 %v1594
      %v1638 = vunpack.c.l.b16 %v1595
      %v1639 = vunpack.c.h.b16 %v1595
      %v1640 = vunpack.c.l.b16 %v1596
      %v1641 = vunpack.c.h.b16 %v1596
      %v1642 = vunpack.c.l.b16 %v1597
      %v1643 = vunpack.c.h.b16 %v1597
      %v1644 = vunpack.c.l.b16 %v1598
      %v1645 = vunpack.c.h.b16 %v1598
      %v1646 = vunpack.c.l.b16 %v1599
      %v1647 = vunpack.c.h.b16 %v1599
      %v1648 = vpack.c.b16 %v1616, %v1616
      %v1649 = vpack.c.b16 %v1617, %v1617
      %v1650 = vpack.c.b16 %v1618, %v1618
      %v1651 = vpack.c.b16 %v1619, %v1619
      %v1652 = vpack.c.b16 %v1620, %v1620
      %v1653 = vpack.c.b16 %v1621, %v1621
      %v1654 = vpack.c.b16 %v1622, %v1622
      %v1655 = vpack.c.b16 %v1623, %v1623
      %v1656 = vpack.c.b16 %v1624, %v1624
      %v1657 = vpack.c.b16 %v1625, %v1625
      %v1658 = vpack.c.b16 %v1626, %v1626
      %v1659 = vpack.c.b16 %v1627, %v1627
      %v1660 = vpack.c.b16 %v1628, %v1628
      %v1661 = vpack.c.b16 %v1629, %v1629
      %v1662 = vpack.c.b16 %v1630, %v1630
      %v1663 = vpack.c.b16 %v1631, %v1631
      %v1664 = vpack.c.b16 %v1632, %v1632
      %v1665 = vpack.c.b16 %v1633, %v1633
      %v1666 = vpack.c.b16 %v1634, %v1634
      %v1667 = vpack.c.b16 %v1635, %v1635
      %v1668 = vpack.c.b16 %v1636, %v1636
      %v1669 = vpack.c.b16 %v1637, %v1637
      %v1670 = vpack.c.b16 %v1638, %v1638
      %v1671 = vpack.c.b16 %v1639, %v1639
      %v1672 = vpack.c.b16 %v1640, %v1640
      %v1673 = vpack.c.b16 %v1641, %v1641
      %v1674 = vpack.c.b16 %v1642, %v1642
      %v1675 = vpack.c.b16 %v1643, %v1643
      %v1676 = vpack.c.b16 %v1644, %v1644
      %v1677 = vpack.c.b16 %v1645, %v1645
      %v1678 = vpack.c.b16 %v1646, %v1646
      %v1679 = vpack.c.b16 %v1647, %v1647
      %1712 = vst [vmem:[%s367] sm:$0xf] %v1648
      %1713 = vst [vmem:[%s367 + $0x4] sm:$0xf] %v1649
      %1714 = vst [vmem:[%s367 + $0x8] sm:$0xf] %v1650
      %1715 = vst [vmem:[%s367 + $0xc] sm:$0xf] %v1651
      %1716 = vst [vmem:[%s367 + $0x10] sm:$0xf] %v1652
      %1717 = vst [vmem:[%s367 + $0x14] sm:$0xf] %v1653
      %1718 = vst [vmem:[%s367 + $0x18] sm:$0xf] %v1654
      %1719 = vst [vmem:[%s367 + $0x1c] sm:$0xf] %v1655
      %1720 = vst [vmem:[%s367 + $0x20] sm:$0xf] %v1656
      %1721 = vst [vmem:[%s367 + $0x24] sm:$0xf] %v1657
      %1722 = vst [vmem:[%s367 + $0x28] sm:$0xf] %v1658
      %1723 = vst [vmem:[%s367 + $0x2c] sm:$0xf] %v1659
      %1724 = vst [vmem:[%s367 + $0x30] sm:$0xf] %v1660
      %1725 = vst [vmem:[%s367 + $0x34] sm:$0xf] %v1661
      %1726 = vst [vmem:[%s367 + $0x38] sm:$0xf] %v1662
      %1727 = vst [vmem:[%s367 + $0x3c] sm:$0xf] %v1663
      %1728 = vst [vmem:[%s367 + $0x40] sm:$0xf] %v1664
      %1729 = vst [vmem:[%s367 + $0x44] sm:$0xf] %v1665
      %1730 = vst [vmem:[%s367 + $0x48] sm:$0xf] %v1666
      %1731 = vst [vmem:[%s367 + $0x4c] sm:$0xf] %v1667
      %1732 = vst [vmem:[%s367 + $0x50] sm:$0xf] %v1668
      %1733 = vst [vmem:[%s367 + $0x54] sm:$0xf] %v1669
      %1734 = vst [vmem:[%s367 + $0x58] sm:$0xf] %v1670
      %1735 = vst [vmem:[%s367 + $0x5c] sm:$0xf] %v1671
      %1736 = vst [vmem:[%s367 + $0x60] sm:$0xf] %v1672
      %1737 = vst [vmem:[%s367 + $0x64] sm:$0xf] %v1673
      %1738 = vst [vmem:[%s367 + $0x68] sm:$0xf] %v1674
      %1739 = vst [vmem:[%s367 + $0x6c] sm:$0xf] %v1675
      %1740 = vst [vmem:[%s367 + $0x70] sm:$0xf] %v1676
      %1741 = vst [vmem:[%s367 + $0x74] sm:$0xf] %v1677
      %1742 = vst [vmem:[%s367 + $0x78] sm:$0xf] %v1678
      %1743 = vst [vmem:[%s367 + $0x7c] sm:$0xf] %v1679
      %s1744 = smul.u32 32, %s25
      %p1745 = scmp.lt.s32.totalorder %s24, 1
      %s1746 = scalar_select %p1745, %s24, 1
      %p1747 = scmp.lt.s32.totalorder %s1744, 31
      %s1748 = scalar_select %p1747, %s1744, 31
      %s1749 = smul.addr %s1746, 32
      %s1750 = sadd.s32 %s1748, %s1749
      %s1751 = smul.addr %s1750, 4
      %s1752 = scalar_lea.vmem %s7, %s1751
      %s1753 = smul.u32 32, %s25
      %p1754 = scmp.lt.s32.totalorder %s24, 1
      %s1755 = scalar_select %p1754, %s24, 1
      %p1756 = scmp.lt.s32.totalorder %s1753, 31
      %s1757 = scalar_select %p1756, %s1753, 31
      %s1758 = smul.addr %s1755, 32
      %s1759 = sadd.s32 %s1757, %s1758
      %s1760 = smul.addr %s1759, 4
      %s1761 = scalar_lea.vmem %s8, %s1760
      // Predicated region
      $region49: #{bottleneck_csp_forward.3} parent=47 // pred_check
        %p1762 = pneg %p206
      $region50: #{bottleneck_csp_forward.3} parent=47 // pred_check_branch
        %1764 = sbr.rel (%p1762) target = $region52
      $region51: #{bottleneck_csp_forward.3} parent=47 // pred_region
        %s1765 = smul.u32 32, %s25
      $region52: #{bottleneck_csp_forward.3} parent=47 // pred_fallthru
        _
      // Predicated region
      $region53: #{bottleneck_csp_forward.3} parent=47 // pred_check
        %p1766 = pneg %p234
      $region54: #{bottleneck_csp_forward.3} parent=47 // pred_check_branch
        %1768 = sbr.rel (%p1766) target = $region56
      $region55: #{bottleneck_csp_forward.3} parent=47 // pred_region
        %s1769 = smul.u32 32, %s25
      $region56: #{bottleneck_csp_forward.3} parent=47 // pred_fallthru
        _
    $region48: #{bottleneck_csp_forward.3} parent=5 // pred_fallthru
      _
    %p1770 = scmp.le.s32.totalorder 2, %s15
    // Predicated region
    $region57: #{bottleneck_csp_forward.3} parent=5 // pred_check
      %p1771 = pneg %p1770
    $region58: #{bottleneck_csp_forward.3} parent=5 // pred_check_branch
      %1773 = sbr.rel (%p1771) target = $region60
    $region59: #{bottleneck_csp_forward.3} parent=5 // pred_region
      %s1774 = ssub.s32 %s15, 2
      // Predicated region
      $region61: #{bottleneck_csp_forward.3} parent=59 // pred_check
        %p1775 = pneg %p212
      $region62: #{bottleneck_csp_forward.3} parent=59 // pred_check_branch
        %1777 = sbr.rel (%p1775) target = $region64
      $region63: #{bottleneck_csp_forward.3} parent=59 // pred_region
        %s1778 = smul.u32 32, %s27
        %p1779 = scmp.lt.s32.totalorder %s26, 1
        %s1780 = scalar_select %p1779, %s26, 1
        %p1781 = scmp.lt.s32.totalorder %s1778, 31
        %s1782 = scalar_select %p1781, %s1778, 31
        %s1783 = smul.addr %s1780, 32
        %s1784 = sadd.s32 %s1782, %s1783
        %s1785 = smul.addr %s1784, 4
        %s1786 = scalar_lea.vmem %s7, %s1785
      $region64: #{bottleneck_csp_forward.3} parent=59 // pred_fallthru
        _
      // Predicated region
      $region65: #{bottleneck_csp_forward.3} parent=59 // pred_check
        %p1787 = pneg %p240
      $region66: #{bottleneck_csp_forward.3} parent=59 // pred_check_branch
        %1789 = sbr.rel (%p1787) target = $region68
      $region67: #{bottleneck_csp_forward.3} parent=59 // pred_region
        %s1790 = smul.u32 32, %s27
        %p1791 = scmp.lt.s32.totalorder %s26, 1
        %s1792 = scalar_select %p1791, %s26, 1
        %p1793 = scmp.lt.s32.totalorder %s1790, 31
        %s1794 = scalar_select %p1793, %s1790, 31
        %s1795 = smul.addr %s1792, 32
        %s1796 = sadd.s32 %s1794, %s1795
        %s1797 = smul.addr %s1796, 4
        %s1798 = scalar_lea.vmem %s8, %s1797
      $region68: #{bottleneck_csp_forward.3} parent=59 // pred_fallthru
        _
    $region60: #{bottleneck_csp_forward.3} parent=5 // pred_fallthru
      _
  $region6: #{bottleneck_csp_forward.3} parent=0 // loop_footer
    %s19 = sadd.s32 1, %s15
  $region7: #{bottleneck_csp_forward.3} parent=0 // loop_footer_branch
    %14 = sbr.rel target = $region3
  $region8: #{bottleneck_csp_forward.3} parent=0 // loop_exit
    _

// kernel: bottleneck_csp_forward.5
$region0: #{bottleneck_csp_forward.5}
  #allocation0 [shape = 'u32[]', space=smem, size = 0x4, offset = 0x4, fixed_abs, tag = 'smem constant byte address 0x4 - core index']
  #allocation1 [shape = 'u32[144,128]{1,0:T(1,128)}', space=vmem, size = 0x12000, scoped, tag = 'internal scratch']
  %s0 = inlined_call_operand.vmem [shape: bf16[2,256,128], index: 0, kind: input, shape index: {}]
  %s1 = inlined_call_operand.vmem [shape: bf16[2,256,128], index: 1, kind: input, shape index: {}]
  %s2 = inlined_call_operand.vmem [shape: bf16[128,128], index: 2, kind: input, shape index: {}]
  %s3 = inlined_call_operand.vmem [shape: f32[1,128], index: 3, kind: input, shape index: {}]
  %s4 = inlined_call_operand.vmem [shape: f32[1,128], index: 4, kind: input, shape index: {}]
  %s5 = inlined_call_operand.vmem [shape: bf16[128,128], index: 5, kind: input, shape index: {}]
  %s6 = inlined_call_operand.vmem [shape: bf16[128,128], index: 6, kind: input, shape index: {}]
  %s7 = inlined_call_operand.vmem [shape: f32[1,128], index: 7, kind: input, shape index: {}]
  %s8 = inlined_call_operand.vmem [shape: f32[1,128], index: 8, kind: input, shape index: {}]
  %s9 = inlined_call_operand.vmem [shape: f32[2,256,128], index: 9, kind: output, shape index: {}]
  %s10 = sld [smem:[#allocation0]]
  $region69: #{bottleneck_csp_forward.5} parent=0
    _
  %s12 = ssub.s32 1, %s10
  %s13 = scalar_select 0, %s12, %s10
  loop: start=0, step=1, limit=4
  $region2: #{bottleneck_csp_forward.5} parent=0 // loop_pre_header
    _
  $region3: #{bottleneck_csp_forward.5} parent=0 // loop_header
    %s15 = sphi 0, %s19
    %p16 = scmp.ge.s32.totalorder %s15, 4
    %s22 = sphi 0, %s34
    %s23 = sphi 0, %s30
    %s24 = sphi 0, %s22
    %s25 = sphi 0, %s23
    %s26 = sphi 0, %s24
    %s27 = sphi 0, %s25
    %s39 = sphi 0, %s41
    %s42 = sphi 0, %s39
    %s43 = sphi 0, %s42
    %s59 = sphi 0, %s43
    %s67 = sphi 0, %s69
    %s70 = sphi 0, %s67
    %s71 = sphi 0, %s70
    %s87 = sphi 0, %s71
    %s91 = sphi 0, %s91
    %s93 = sphi 0, %s91
    %s94 = sphi 0, %s93
    %s108 = sphi 0, %s94
    %s112 = sphi 0, %s112
    %s114 = sphi 0, %s112
    %s115 = sphi 0, %s114
    %s129 = sphi 0, %s115
    %s133 = sphi 0, %s133
    %s135 = sphi 0, %s133
    %s136 = sphi 0, %s135
    %s150 = sphi 0, %s136
    %s154 = sphi 0, %s154
    %s156 = sphi 0, %s154
    %s157 = sphi 0, %s156
    %s171 = sphi 0, %s157
    %s175 = sphi 0, %s175
    %s177 = sphi 0, %s175
    %s178 = sphi 0, %s177
    %s192 = sphi 0, %s178
    %s196 = sphi 0, %s196
    %s198 = sphi 0, %s196
    %s199 = sphi 0, %s198
    %s213 = sphi 0, %s199
    %s217 = sphi 0, %s217
    %s219 = sphi 0, %s217
    %s220 = sphi 0, %s219
    %s234 = sphi 0, %s220
    %s242 = sphi 0, %s244
    %s245 = sphi 0, %s242
    %s246 = sphi 0, %s245
    %s262 = sphi 0, %s246
  $region4: #{bottleneck_csp_forward.5} parent=0 // loop_header_branch
    %18 = sbr.rel (%p16) target = $region8
  $region5: #{bottleneck_csp_forward.5} parent=0 // loop_body
    %s20 = ssub.s32 %s15, 1
    %s21 = ssub.s32 %s15, 2
    %s28 = sadd.s32 1, %s23
    %p29 = scmp.ge.s32.totalorder %s28, 1
    %s30 = scalar_select %p29, 0, %s28
    %s31 = sadd.s32 1, %s22
    %s32 = scalar_select %p29, %s31, %s22
    %p33 = scmp.ge.s32.totalorder %s32, 2
    %s34 = scalar_select %p33, 0, %s32
    %s35 = ssub.s32 %s22, %s34
    %s36 = ssub.s32 %s23, %s30
    %s37 = sor.u32 %s35, %s36
    %p38 = scmp.eq.s32.totalorder %s37, 0
    %s40 = sadd.s32 %s39, 1
    %s41 = scalar_select %p38, %s39, %s40
    %p44 = pneg %p38
    %p45 = scmp.eq.s32.totalorder %s15, 1
    %p46 = por %p44, %p45
    %p47 = scmp.ne.s32.totalorder %s39, %s42
    %p48 = scmp.eq.s32.totalorder %s15, 0
    %p49 = por %p47, %p48
    %p50 = scmp.ne.s32.totalorder %s39, %s42
    %p51 = scmp.eq.s32.totalorder %s20, 1
    %p52 = por %p50, %p51
    %p53 = scmp.ne.s32.totalorder %s42, %s43
    %p54 = scmp.eq.s32.totalorder %s20, 0
    %p55 = por %p53, %p54
    %p56 = scmp.ne.s32.totalorder %s42, %s43
    %p57 = scmp.eq.s32.totalorder %s21, 1
    %p58 = por %p56, %p57
    %p60 = scmp.ne.s32.totalorder %s43, %s59
    %p61 = scmp.eq.s32.totalorder %s21, 0
    %p62 = por %p60, %p61
    %s63 = ssub.s32 %s22, %s34
    %s64 = ssub.s32 %s23, %s30
    %s65 = sor.u32 %s63, %s64
    %p66 = scmp.eq.s32.totalorder %s65, 0
    %s68 = sadd.s32 %s67, 1
    %s69 = scalar_select %p66, %s67, %s68
    %p72 = pneg %p66
    %p73 = scmp.eq.s32.totalorder %s15, 1
    %p74 = por %p72, %p73
    %p75 = scmp.ne.s32.totalorder %s67, %s70
    %p76 = scmp.eq.s32.totalorder %s15, 0
    %p77 = por %p75, %p76
    %p78 = scmp.ne.s32.totalorder %s67, %s70
    %p79 = scmp.eq.s32.totalorder %s20, 1
    %p80 = por %p78, %p79
    %p81 = scmp.ne.s32.totalorder %s70, %s71
    %p82 = scmp.eq.s32.totalorder %s20, 0
    %p83 = por %p81, %p82
    %p84 = scmp.ne.s32.totalorder %s70, %s71
    %p85 = scmp.eq.s32.totalorder %s21, 1
    %p86 = por %p84, %p85
    %p88 = scmp.ne.s32.totalorder %s71, %s87
    %p89 = scmp.eq.s32.totalorder %s21, 0
    %p90 = por %p88, %p89
    %s92 = sadd.s32 %s91, 1
    %p95 = scmp.eq.s32.totalorder %s15, 1
    %p96 = scmp.ne.s32.totalorder %s91, %s93
    %p97 = scmp.eq.s32.totalorder %s15, 0
    %p98 = por %p96, %p97
    %p99 = scmp.ne.s32.totalorder %s91, %s93
    %p100 = scmp.eq.s32.totalorder %s20, 1
    %p101 = por %p99, %p100
    %p102 = scmp.ne.s32.totalorder %s93, %s94
    %p103 = scmp.eq.s32.totalorder %s20, 0
    %p104 = por %p102, %p103
    %p105 = scmp.ne.s32.totalorder %s93, %s94
    %p106 = scmp.eq.s32.totalorder %s21, 1
    %p107 = por %p105, %p106
    %p109 = scmp.ne.s32.totalorder %s94, %s108
    %p110 = scmp.eq.s32.totalorder %s21, 0
    %p111 = por %p109, %p110
    %s113 = sadd.s32 %s112, 1
    %p116 = scmp.eq.s32.totalorder %s15, 1
    %p117 = scmp.ne.s32.totalorder %s112, %s114
    %p118 = scmp.eq.s32.totalorder %s15, 0
    %p119 = por %p117, %p118
    %p120 = scmp.ne.s32.totalorder %s112, %s114
    %p121 = scmp.eq.s32.totalorder %s20, 1
    %p122 = por %p120, %p121
    %p123 = scmp.ne.s32.totalorder %s114, %s115
    %p124 = scmp.eq.s32.totalorder %s20, 0
    %p125 = por %p123, %p124
    %p126 = scmp.ne.s32.totalorder %s114, %s115
    %p127 = scmp.eq.s32.totalorder %s21, 1
    %p128 = por %p126, %p127
    %p130 = scmp.ne.s32.totalorder %s115, %s129
    %p131 = scmp.eq.s32.totalorder %s21, 0
    %p132 = por %p130, %p131
    %s134 = sadd.s32 %s133, 1
    %p137 = scmp.eq.s32.totalorder %s15, 1
    %p138 = scmp.ne.s32.totalorder %s133, %s135
    %p139 = scmp.eq.s32.totalorder %s15, 0
    %p140 = por %p138, %p139
    %p141 = scmp.ne.s32.totalorder %s133, %s135
    %p142 = scmp.eq.s32.totalorder %s20, 1
    %p143 = por %p141, %p142
    %p144 = scmp.ne.s32.totalorder %s135, %s136
    %p145 = scmp.eq.s32.totalorder %s20, 0
    %p146 = por %p144, %p145
    %p147 = scmp.ne.s32.totalorder %s135, %s136
    %p148 = scmp.eq.s32.totalorder %s21, 1
    %p149 = por %p147, %p148
    %p151 = scmp.ne.s32.totalorder %s136, %s150
    %p152 = scmp.eq.s32.totalorder %s21, 0
    %p153 = por %p151, %p152
    %s155 = sadd.s32 %s154, 1
    %p158 = scmp.eq.s32.totalorder %s15, 1
    %p159 = scmp.ne.s32.totalorder %s154, %s156
    %p160 = scmp.eq.s32.totalorder %s15, 0
    %p161 = por %p159, %p160
    %p162 = scmp.ne.s32.totalorder %s154, %s156
    %p163 = scmp.eq.s32.totalorder %s20, 1
    %p164 = por %p162, %p163
    %p165 = scmp.ne.s32.totalorder %s156, %s157
    %p166 = scmp.eq.s32.totalorder %s20, 0
    %p167 = por %p165, %p166
    %p168 = scmp.ne.s32.totalorder %s156, %s157
    %p169 = scmp.eq.s32.totalorder %s21, 1
    %p170 = por %p168, %p169
    %p172 = scmp.ne.s32.totalorder %s157, %s171
    %p173 = scmp.eq.s32.totalorder %s21, 0
    %p174 = por %p172, %p173
    %s176 = sadd.s32 %s175, 1
    %p179 = scmp.eq.s32.totalorder %s15, 1
    %p180 = scmp.ne.s32.totalorder %s175, %s177
    %p181 = scmp.eq.s32.totalorder %s15, 0
    %p182 = por %p180, %p181
    %p183 = scmp.ne.s32.totalorder %s175, %s177
    %p184 = scmp.eq.s32.totalorder %s20, 1
    %p185 = por %p183, %p184
    %p186 = scmp.ne.s32.totalorder %s177, %s178
    %p187 = scmp.eq.s32.totalorder %s20, 0
    %p188 = por %p186, %p187
    %p189 = scmp.ne.s32.totalorder %s177, %s178
    %p190 = scmp.eq.s32.totalorder %s21, 1
    %p191 = por %p189, %p190
    %p193 = scmp.ne.s32.totalorder %s178, %s192
    %p194 = scmp.eq.s32.totalorder %s21, 0
    %p195 = por %p193, %p194
    %s197 = sadd.s32 %s196, 1
    %p200 = scmp.eq.s32.totalorder %s15, 1
    %p201 = scmp.ne.s32.totalorder %s196, %s198
    %p202 = scmp.eq.s32.totalorder %s15, 0
    %p203 = por %p201, %p202
    %p204 = scmp.ne.s32.totalorder %s196, %s198
    %p205 = scmp.eq.s32.totalorder %s20, 1
    %p206 = por %p204, %p205
    %p207 = scmp.ne.s32.totalorder %s198, %s199
    %p208 = scmp.eq.s32.totalorder %s20, 0
    %p209 = por %p207, %p208
    %p210 = scmp.ne.s32.totalorder %s198, %s199
    %p211 = scmp.eq.s32.totalorder %s21, 1
    %p212 = por %p210, %p211
    %p214 = scmp.ne.s32.totalorder %s199, %s213
    %p215 = scmp.eq.s32.totalorder %s21, 0
    %p216 = por %p214, %p215
    %s218 = sadd.s32 %s217, 1
    %p221 = scmp.eq.s32.totalorder %s15, 1
    %p222 = scmp.ne.s32.totalorder %s217, %s219
    %p223 = scmp.eq.s32.totalorder %s15, 0
    %p224 = por %p222, %p223
    %p225 = scmp.ne.s32.totalorder %s217, %s219
    %p226 = scmp.eq.s32.totalorder %s20, 1
    %p227 = por %p225, %p226
    %p228 = scmp.ne.s32.totalorder %s219, %s220
    %p229 = scmp.eq.s32.totalorder %s20, 0
    %p230 = por %p228, %p229
    %p231 = scmp.ne.s32.totalorder %s219, %s220
    %p232 = scmp.eq.s32.totalorder %s21, 1
    %p233 = por %p231, %p232
    %p235 = scmp.ne.s32.totalorder %s220, %s234
    %p236 = scmp.eq.s32.totalorder %s21, 0
    %p237 = por %p235, %p236
    %s238 = ssub.s32 %s22, %s34
    %s239 = ssub.s32 %s23, %s30
    %s240 = sor.u32 %s238, %s239
    %p241 = scmp.eq.s32.totalorder %s240, 0
    %s243 = sadd.s32 %s242, 1
    %s244 = scalar_select %p241, %s242, %s243
    %p247 = pneg %p241
    %p248 = scmp.eq.s32.totalorder %s15, 1
    %p249 = por %p247, %p248
    %p250 = scmp.ne.s32.totalorder %s242, %s245
    %p251 = scmp.eq.s32.totalorder %s15, 0
    %p252 = por %p250, %p251
    %p253 = scmp.ne.s32.totalorder %s242, %s245
    %p254 = scmp.eq.s32.totalorder %s20, 1
    %p255 = por %p253, %p254
    %p256 = scmp.ne.s32.totalorder %s245, %s246
    %p257 = scmp.eq.s32.totalorder %s20, 0
    %p258 = por %p256, %p257
    %p259 = scmp.ne.s32.totalorder %s245, %s246
    %p260 = scmp.eq.s32.totalorder %s21, 1
    %p261 = por %p259, %p260
    %p263 = scmp.ne.s32.totalorder %s246, %s262
    %p264 = scmp.eq.s32.totalorder %s21, 0
    %p265 = por %p263, %p264
    %p266 = scmp.le.s32.totalorder 1, %s15
    %p267 = scmp.lt.s32.totalorder %s15, 3
    %p268 = pnand %p266, %p267
    %p269 = pneg %p268
    // Predicated region
    $region9: #{bottleneck_csp_forward.5} parent=5 // pred_check
      _
    $region10: #{bottleneck_csp_forward.5} parent=5 // pred_check_branch
      %271 = sbr.rel (%p268) target = $region12
    $region11: #{bottleneck_csp_forward.5} parent=5 // pred_region
      %s272 = ssub.s32 %s15, 1
      // Predicated region
      $region13: #{bottleneck_csp_forward.5} parent=11 // pred_check
        %p273 = pneg %p104
      $region14: #{bottleneck_csp_forward.5} parent=11 // pred_check_branch
        %275 = sbr.rel (%p273) target = $region16
      $region15: #{bottleneck_csp_forward.5} parent=11 // pred_region
        _
      $region16: #{bottleneck_csp_forward.5} parent=11 // pred_fallthru
        _
      // Predicated region
      $region17: #{bottleneck_csp_forward.5} parent=11 // pred_check
        %p276 = pneg %p125
      $region18: #{bottleneck_csp_forward.5} parent=11 // pred_check_branch
        %278 = sbr.rel (%p276) target = $region20
      $region19: #{bottleneck_csp_forward.5} parent=11 // pred_region
        _
      $region20: #{bottleneck_csp_forward.5} parent=11 // pred_fallthru
        _
      // Predicated region
      $region21: #{bottleneck_csp_forward.5} parent=11 // pred_check
        %p279 = pneg %p146
      $region22: #{bottleneck_csp_forward.5} parent=11 // pred_check_branch
        %281 = sbr.rel (%p279) target = $region24
      $region23: #{bottleneck_csp_forward.5} parent=11 // pred_region
        _
      $region24: #{bottleneck_csp_forward.5} parent=11 // pred_fallthru
        _
      // Predicated region
      $region25: #{bottleneck_csp_forward.5} parent=11 // pred_check
        %p282 = pneg %p167
      $region26: #{bottleneck_csp_forward.5} parent=11 // pred_check_branch
        %284 = sbr.rel (%p282) target = $region28
      $region27: #{bottleneck_csp_forward.5} parent=11 // pred_region
        _
      $region28: #{bottleneck_csp_forward.5} parent=11 // pred_fallthru
        _
      // Predicated region
      $region29: #{bottleneck_csp_forward.5} parent=11 // pred_check
        %p285 = pneg %p188
      $region30: #{bottleneck_csp_forward.5} parent=11 // pred_check_branch
        %287 = sbr.rel (%p285) target = $region32
      $region31: #{bottleneck_csp_forward.5} parent=11 // pred_region
        _
      $region32: #{bottleneck_csp_forward.5} parent=11 // pred_fallthru
        _
      // Predicated region
      $region33: #{bottleneck_csp_forward.5} parent=11 // pred_check
        %p288 = pneg %p209
      $region34: #{bottleneck_csp_forward.5} parent=11 // pred_check_branch
        %290 = sbr.rel (%p288) target = $region36
      $region35: #{bottleneck_csp_forward.5} parent=11 // pred_region
        _
      $region36: #{bottleneck_csp_forward.5} parent=11 // pred_fallthru
        _
      // Predicated region
      $region37: #{bottleneck_csp_forward.5} parent=11 // pred_check
        %p291 = pneg %p230
      $region38: #{bottleneck_csp_forward.5} parent=11 // pred_check_branch
        %293 = sbr.rel (%p291) target = $region40
      $region39: #{bottleneck_csp_forward.5} parent=11 // pred_region
        _
      $region40: #{bottleneck_csp_forward.5} parent=11 // pred_fallthru
        _
    $region12: #{bottleneck_csp_forward.5} parent=5 // pred_fallthru
      _
    %p294 = scmp.lt.s32.totalorder %s15, 2
    // Predicated region
    $region41: #{bottleneck_csp_forward.5} parent=5 // pred_check
      %p295 = pneg %p294
    $region42: #{bottleneck_csp_forward.5} parent=5 // pred_check_branch
      %297 = sbr.rel (%p295) target = $region44
    $region43: #{bottleneck_csp_forward.5} parent=5 // pred_region
      // Predicated region
      $region45: #{bottleneck_csp_forward.5} parent=43 // pred_check
        %p298 = pneg %p49
      $region46: #{bottleneck_csp_forward.5} parent=43 // pred_check_branch
        %300 = sbr.rel (%p298) target = $region48
      $region47: #{bottleneck_csp_forward.5} parent=43 // pred_region
        %s301 = smul.u32 32, %s23
        %p302 = scmp.lt.s32.totalorder %s22, 1
        %s303 = scalar_select %p302, %s22, 1
        %p304 = scmp.lt.s32.totalorder %s301, 31
        %s305 = scalar_select %p304, %s301, 31
        %s306 = smul.addr %s303, 32
        %s307 = sadd.s32 %s305, %s306
        %s308 = smul.addr %s307, 4
        %s309 = scalar_lea.vmem %s0, %s308
        %s310 = smul.u32 32, %s23
      $region48: #{bottleneck_csp_forward.5} parent=43 // pred_fallthru
        _
      // Predicated region
      $region49: #{bottleneck_csp_forward.5} parent=43 // pred_check
        %p311 = pneg %p77
      $region50: #{bottleneck_csp_forward.5} parent=43 // pred_check_branch
        %313 = sbr.rel (%p311) target = $region52
      $region51: #{bottleneck_csp_forward.5} parent=43 // pred_region
        %s314 = smul.u32 32, %s23
        %p315 = scmp.lt.s32.totalorder %s22, 1
        %s316 = scalar_select %p315, %s22, 1
        %p317 = scmp.lt.s32.totalorder %s314, 31
        %s318 = scalar_select %p317, %s314, 31
        %s319 = smul.addr %s316, 32
        %s320 = sadd.s32 %s318, %s319
        %s321 = smul.addr %s320, 4
        %s322 = scalar_lea.vmem %s1, %s321
        %s323 = smul.u32 32, %s23
      $region52: #{bottleneck_csp_forward.5} parent=43 // pred_fallthru
        _
    $region44: #{bottleneck_csp_forward.5} parent=5 // pred_fallthru
      _
    %p324 = scmp.le.s32.totalorder 1, %s15
    %p325 = scmp.lt.s32.totalorder %s15, 3
    %p326 = pnand %p324, %p325
    %p327 = pneg %p326
    // Predicated region
    $region53: #{bottleneck_csp_forward.5} parent=5 // pred_check
      _
    $region54: #{bottleneck_csp_forward.5} parent=5 // pred_check_branch
      %329 = sbr.rel (%p326) target = $region56
    $region55: #{bottleneck_csp_forward.5} parent=5 // pred_region
      %s330 = ssub.s32 %s15, 1
      %s331 = smul.u32 32, %s25
      %p332 = scmp.lt.s32.totalorder %s24, 1
      %s333 = scalar_select %p332, %s24, 1
      %p334 = scmp.lt.s32.totalorder %s331, 31
      %s335 = scalar_select %p334, %s331, 31
      %s336 = smul.addr %s333, 32
      %s337 = sadd.s32 %s335, %s336
      %s338 = smul.addr %s337, 4
      %s339 = scalar_lea.vmem %s0, %s338
      %p340 = pneg %p55
      %p341 = pneg %p52
      %s342 = smul.u32 32, %s25
      %p343 = scmp.lt.s32.totalorder %s24, 1
      %s344 = scalar_select %p343, %s24, 1
      %p345 = scmp.lt.s32.totalorder %s342, 31
      %s346 = scalar_select %p345, %s342, 31
      %s347 = smul.addr %s344, 32
      %s348 = sadd.s32 %s346, %s347
      %s349 = smul.addr %s348, 4
      %s350 = scalar_lea.vmem %s1, %s349
      %p351 = pneg %p83
      %p352 = pneg %p80
      %p353 = pneg %p104
      %p354 = pneg %p101
      %p355 = pneg %p125
      %p356 = pneg %p122
      %p357 = pneg %p146
      %p358 = pneg %p143
      %p359 = pneg %p167
      %p360 = pneg %p164
      %p361 = pneg %p188
      %p362 = pneg %p185
      %p363 = pneg %p209
      %p364 = pneg %p206
      %p365 = pneg %p230
      %p366 = pneg %p227
      %p367 = pneg %p258
      %p368 = pneg %p255
      %s369 = smul.u32 32, %s25
      %p370 = scmp.lt.s32.totalorder %s24, 1
      %s371 = scalar_select %p370, %s24, 1
      %p372 = scmp.lt.s32.totalorder %s369, 31
      %s373 = scalar_select %p372, %s369, 31
      %s374 = smul.addr %s371, 32
      %s375 = sadd.s32 %s373, %s374
      %s376 = smul.addr %s375, 8
      %s377 = scalar_lea.vmem %s9, %s376
      %s378 = smul.u32 32, %s25
      %p379 = scmp.lt.s32.totalorder %s24, 1
      %s380 = scalar_select %p379, %s24, 1
      %p381 = scmp.lt.s32.totalorder %s378, 31
      %s382 = scalar_select %p381, %s378, 31
      %s383 = smul.addr %s380, 32
      %s384 = sadd.s32 %s382, %s383
      %s385 = smul.addr %s384, 4
      %s386 = scalar_lea.vmem %s0, %s385
      %s387 = smul.u32 32, %s25
      %s388 = smul.u32 32, %s25
      %p389 = scmp.lt.s32.totalorder %s24, 1
      %s390 = scalar_select %p389, %s24, 1
      %p391 = scmp.lt.s32.totalorder %s388, 31
      %s392 = scalar_select %p391, %s388, 31
      %s393 = smul.addr %s390, 32
      %s394 = sadd.s32 %s392, %s393
      %s395 = smul.addr %s394, 4
      %s396 = scalar_lea.vmem %s1, %s395
      %s397 = smul.u32 32, %s25
      %s398 = smul.u32 32, %s25
      %p399 = scmp.lt.s32.totalorder %s24, 1
      %s400 = scalar_select %p399, %s24, 1
      %p401 = scmp.lt.s32.totalorder %s398, 31
      %s402 = scalar_select %p401, %s398, 31
      %s403 = smul.addr %s400, 32
      %s404 = sadd.s32 %s402, %s403
      %s405 = smul.addr %s404, 8
      %s406 = scalar_lea.vmem %s9, %s405
      %s407 = smul.u32 32, %s25
      %v409 = vld [vmem:[%s386] sm:$0xf]
      %v410 = vld [vmem:[%s386 + $0x4] sm:$0xf]
      %v411 = vld [vmem:[%s386 + $0x8] sm:$0xf]
      %v412 = vld [vmem:[%s386 + $0xc] sm:$0xf]
      %v413 = vld [vmem:[%s386 + $0x10] sm:$0xf]
      %v414 = vld [vmem:[%s386 + $0x14] sm:$0xf]
      %v415 = vld [vmem:[%s386 + $0x18] sm:$0xf]
      %v416 = vld [vmem:[%s386 + $0x1c] sm:$0xf]
      %v417 = vld [vmem:[%s386 + $0x20] sm:$0xf]
      %v418 = vld [vmem:[%s386 + $0x24] sm:$0xf]
      %v419 = vld [vmem:[%s386 + $0x28] sm:$0xf]
      %v420 = vld [vmem:[%s386 + $0x2c] sm:$0xf]
      %v421 = vld [vmem:[%s386 + $0x30] sm:$0xf]
      %v422 = vld [vmem:[%s386 + $0x34] sm:$0xf]
      %v423 = vld [vmem:[%s386 + $0x38] sm:$0xf]
      %v424 = vld [vmem:[%s386 + $0x3c] sm:$0xf]
      %v425 = vld [vmem:[%s386 + $0x40] sm:$0xf]
      %v426 = vld [vmem:[%s386 + $0x44] sm:$0xf]
      %v427 = vld [vmem:[%s386 + $0x48] sm:$0xf]
      %v428 = vld [vmem:[%s386 + $0x4c] sm:$0xf]
      %v429 = vld [vmem:[%s386 + $0x50] sm:$0xf]
      %v430 = vld [vmem:[%s386 + $0x54] sm:$0xf]
      %v431 = vld [vmem:[%s386 + $0x58] sm:$0xf]
      %v432 = vld [vmem:[%s386 + $0x5c] sm:$0xf]
      %v433 = vld [vmem:[%s386 + $0x60] sm:$0xf]
      %v434 = vld [vmem:[%s386 + $0x64] sm:$0xf]
      %v435 = vld [vmem:[%s386 + $0x68] sm:$0xf]
      %v436 = vld [vmem:[%s386 + $0x6c] sm:$0xf]
      %v437 = vld [vmem:[%s386 + $0x70] sm:$0xf]
      %v438 = vld [vmem:[%s386 + $0x74] sm:$0xf]
      %v439 = vld [vmem:[%s386 + $0x78] sm:$0xf]
      %v440 = vld [vmem:[%s386 + $0x7c] sm:$0xf]
      %v441 = vld [vmem:[%s396] sm:$0xf]
      %v442 = vld [vmem:[%s396 + $0x4] sm:$0xf]
      %v443 = vld [vmem:[%s396 + $0x8] sm:$0xf]
      %v444 = vld [vmem:[%s396 + $0xc] sm:$0xf]
      %v445 = vld [vmem:[%s396 + $0x10] sm:$0xf]
      %v446 = vld [vmem:[%s396 + $0x14] sm:$0xf]
      %v447 = vld [vmem:[%s396 + $0x18] sm:$0xf]
      %v448 = vld [vmem:[%s396 + $0x1c] sm:$0xf]
      %v449 = vld [vmem:[%s396 + $0x20] sm:$0xf]
      %v450 = vld [vmem:[%s396 + $0x24] sm:$0xf]
      %v451 = vld [vmem:[%s396 + $0x28] sm:$0xf]
      %v452 = vld [vmem:[%s396 + $0x2c] sm:$0xf]
      %v453 = vld [vmem:[%s396 + $0x30] sm:$0xf]
      %v454 = vld [vmem:[%s396 + $0x34] sm:$0xf]
      %v455 = vld [vmem:[%s396 + $0x38] sm:$0xf]
      %v456 = vld [vmem:[%s396 + $0x3c] sm:$0xf]
      %v457 = vld [vmem:[%s396 + $0x40] sm:$0xf]
      %v458 = vld [vmem:[%s396 + $0x44] sm:$0xf]
      %v459 = vld [vmem:[%s396 + $0x48] sm:$0xf]
      %v460 = vld [vmem:[%s396 + $0x4c] sm:$0xf]
      %v461 = vld [vmem:[%s396 + $0x50] sm:$0xf]
      %v462 = vld [vmem:[%s396 + $0x54] sm:$0xf]
      %v463 = vld [vmem:[%s396 + $0x58] sm:$0xf]
      %v464 = vld [vmem:[%s396 + $0x5c] sm:$0xf]
      %v465 = vld [vmem:[%s396 + $0x60] sm:$0xf]
      %v466 = vld [vmem:[%s396 + $0x64] sm:$0xf]
      %v467 = vld [vmem:[%s396 + $0x68] sm:$0xf]
      %v468 = vld [vmem:[%s396 + $0x6c] sm:$0xf]
      %v469 = vld [vmem:[%s396 + $0x70] sm:$0xf]
      %v470 = vld [vmem:[%s396 + $0x74] sm:$0xf]
      %v471 = vld [vmem:[%s396 + $0x78] sm:$0xf]
      %v472 = vld [vmem:[%s396 + $0x7c] sm:$0xf]
      %v473 = vld [vmem:[%s2] sm:$0xf]
      %v474 = vld [vmem:[%s2 + $0x4] sm:$0xf]
      %v475 = vld [vmem:[%s2 + $0x8] sm:$0xf]
      %v476 = vld [vmem:[%s2 + $0xc] sm:$0xf]
      %v477 = vld [vmem:[%s2 + $0x10] sm:$0xf]
      %v478 = vld [vmem:[%s2 + $0x14] sm:$0xf]
      %v479 = vld [vmem:[%s2 + $0x18] sm:$0xf]
      %v480 = vld [vmem:[%s2 + $0x1c] sm:$0xf]
      %v481 = vld [vmem:[%s2 + $0x20] sm:$0xf]
      %v482 = vld [vmem:[%s2 + $0x24] sm:$0xf]
      %v483 = vld [vmem:[%s2 + $0x28] sm:$0xf]
      %v484 = vld [vmem:[%s2 + $0x2c] sm:$0xf]
      %v485 = vld [vmem:[%s2 + $0x30] sm:$0xf]
      %v486 = vld [vmem:[%s2 + $0x34] sm:$0xf]
      %v487 = vld [vmem:[%s2 + $0x38] sm:$0xf]
      %v488 = vld [vmem:[%s2 + $0x3c] sm:$0xf]
      %v521 = vunpack.c.l.b16 %v409
      %v522 = vunpack.c.l.b16 %v410
      %v523 = vunpack.c.l.b16 %v411
      %v524 = vunpack.c.l.b16 %v412
      %v525 = vunpack.c.l.b16 %v413
      %v526 = vunpack.c.l.b16 %v414
      %v527 = vunpack.c.l.b16 %v415
      %v528 = vunpack.c.l.b16 %v416
      %v529 = vunpack.c.l.b16 %v417
      %v530 = vunpack.c.l.b16 %v418
      %v531 = vunpack.c.l.b16 %v419
      %v532 = vunpack.c.l.b16 %v420
      %v533 = vunpack.c.l.b16 %v421
      %v534 = vunpack.c.l.b16 %v422
      %v535 = vunpack.c.l.b16 %v423
      %v536 = vunpack.c.l.b16 %v424
      %v537 = vunpack.c.l.b16 %v425
      %v538 = vunpack.c.l.b16 %v426
      %v539 = vunpack.c.l.b16 %v427
      %v540 = vunpack.c.l.b16 %v428
      %v541 = vunpack.c.l.b16 %v429
      %v542 = vunpack.c.l.b16 %v430
      %v543 = vunpack.c.l.b16 %v431
      %v544 = vunpack.c.l.b16 %v432
      %v545 = vunpack.c.l.b16 %v433
      %v546 = vunpack.c.l.b16 %v434
      %v547 = vunpack.c.l.b16 %v435
      %v548 = vunpack.c.l.b16 %v436
      %v549 = vunpack.c.l.b16 %v437
      %v550 = vunpack.c.l.b16 %v438
      %v551 = vunpack.c.l.b16 %v439
      %v552 = vunpack.c.l.b16 %v440
      %v553 = vpack.c.b16 %v522, %v521
      %v554 = vpack.c.b16 %v524, %v523
      %v555 = vpack.c.b16 %v526, %v525
      %v556 = vpack.c.b16 %v528, %v527
      %v557 = vpack.c.b16 %v530, %v529
      %v558 = vpack.c.b16 %v532, %v531
      %v559 = vpack.c.b16 %v534, %v533
      %v560 = vpack.c.b16 %v536, %v535
      %v561 = vpack.c.b16 %v538, %v537
      %v562 = vpack.c.b16 %v540, %v539
      %v563 = vpack.c.b16 %v542, %v541
      %v564 = vpack.c.b16 %v544, %v543
      %v565 = vpack.c.b16 %v546, %v545
      %v566 = vpack.c.b16 %v548, %v547
      %v567 = vpack.c.b16 %v550, %v549
      %v568 = vpack.c.b16 %v552, %v551
      %v601 = vunpack.c.l.b16 %v473
      %v602 = vunpack.c.l.b16 %v474
      %v603 = vunpack.c.l.b16 %v475
      %v604 = vunpack.c.l.b16 %v476
      %v605 = vunpack.c.l.b16 %v477
      %v606 = vunpack.c.l.b16 %v478
      %v607 = vunpack.c.l.b16 %v479
      %v608 = vunpack.c.l.b16 %v480
      %v609 = vunpack.c.l.b16 %v481
      %v610 = vunpack.c.l.b16 %v482
      %v611 = vunpack.c.l.b16 %v483
      %v612 = vunpack.c.l.b16 %v484
      %v613 = vunpack.c.l.b16 %v485
      %v614 = vunpack.c.l.b16 %v486
      %v615 = vunpack.c.l.b16 %v487
      %v616 = vunpack.c.l.b16 %v488
      %v617 = vpack.c.b16 %v602, %v601
      %v618 = vpack.c.b16 %v604, %v603
      %v619 = vpack.c.b16 %v606, %v605
      %v620 = vpack.c.b16 %v608, %v607
      %v621 = vpack.c.b16 %v610, %v609
      %v622 = vpack.c.b16 %v612, %v611
      %v623 = vpack.c.b16 %v614, %v613
      %v624 = vpack.c.b16 %v616, %v615
      %633 = vmatprep.subr.bf16.mxu0 0
      %634 = vmatpush1.bf16.msra.mxu0 %v624
      %635 = vmatprep.subr.bf16.mxu0 0
      %636 = vmatpush1.bf16.msra.mxu0 %v623
      %637 = vmatprep.subr.bf16.mxu0 0
      %638 = vmatpush1.bf16.msra.mxu0 %v622
      %639 = vmatprep.subr.bf16.mxu0 0
      %640 = vmatpush1.bf16.msra.mxu0 %v621
      %641 = vmatprep.subr.bf16.mxu0 0
      %642 = vmatpush1.bf16.msra.mxu0 %v620
      %643 = vmatprep.subr.bf16.mxu0 0
      %644 = vmatpush1.bf16.msra.mxu0 %v619
      %645 = vmatprep.subr.bf16.mxu0 0
      %646 = vmatpush1.bf16.msra.mxu0 %v618
      %647 = vmatprep.subr.bf16.mxu0 0
      %648 = vmatpush1.bf16.msra.mxu0 %v617
      %649 = vmatprep.subr.bf16.mxu0 0
      %650 = vmatpush2.bf16.msra.mxu0 0
      %651 = vmatprep.subr.bf16.mxu0 0
      %652 = vmatpush2.bf16.msra.mxu0 0
      %653 = vmatprep.subr.bf16.mxu0 0
      %654 = vmatpush2.bf16.msra.mxu0 0
      %655 = vmatprep.subr.bf16.mxu0 0
      %656 = vmatpush2.bf16.msra.mxu0 0
      %657 = vmatprep.subr.bf16.mxu0 0
      %658 = vmatpush2.bf16.msra.mxu0 0
      %659 = vmatprep.subr.bf16.mxu0 0
      %660 = vmatpush2.bf16.msra.mxu0 0
      %661 = vmatprep.subr.bf16.mxu0 0
      %662 = vmatpush2.bf16.msra.mxu0 0
      %663 = vmatprep.subr.bf16.mxu0 0
      %664 = vmatpush2.bf16.msra.mxu0 0
      %665 = vmatprep.mubr.bf16.mxu0 0
      %666 = vmatmul.mubr.bf16.gmra.mxu0 %v553
      %v667 = vpop.f32.mrf.mxu0
      %v668 = vadd.f32 0.0, %v667
      %v669 = vpop.f32.mrf.mxu0
      %v670 = vpop.f32.mrf.mxu0
      %v671 = vadd.f32 0.0, %v670
      %v672 = vpop.f32.mrf.mxu0
      %673 = vmatprep.mubr.bf16.mxu0 0
      %674 = vmatmul.mubr.bf16.gmra.mxu0 %v554
      %v675 = vpop.f32.mrf.mxu0
      %v676 = vadd.f32 0.0, %v675
      %v677 = vpop.f32.mrf.mxu0
      %v678 = vpop.f32.mrf.mxu0
      %v679 = vadd.f32 0.0, %v678
      %v680 = vpop.f32.mrf.mxu0
      %681 = vmatprep.mubr.bf16.mxu0 0
      %682 = vmatmul.mubr.bf16.gmra.mxu0 %v555
      %v683 = vpop.f32.mrf.mxu0
      %v684 = vadd.f32 0.0, %v683
      %v685 = vpop.f32.mrf.mxu0
      %v686 = vpop.f32.mrf.mxu0
      %v687 = vadd.f32 0.0, %v686
      %v688 = vpop.f32.mrf.mxu0
      %689 = vmatprep.mubr.bf16.mxu0 0
      %690 = vmatmul.mubr.bf16.gmra.mxu0 %v556
      %v691 = vpop.f32.mrf.mxu0
      %v692 = vadd.f32 0.0, %v691
      %v693 = vpop.f32.mrf.mxu0
      %v694 = vpop.f32.mrf.mxu0
      %v695 = vadd.f32 0.0, %v694
      %v696 = vpop.f32.mrf.mxu0
      %697 = vmatprep.mubr.bf16.mxu0 0
      %698 = vmatmul.mubr.bf16.gmra.mxu0 %v557
      %v699 = vpop.f32.mrf.mxu0
      %v700 = vadd.f32 0.0, %v699
      %v701 = vpop.f32.mrf.mxu0
      %v702 = vpop.f32.mrf.mxu0
      %v703 = vadd.f32 0.0, %v702
      %v704 = vpop.f32.mrf.mxu0
      %705 = vmatprep.mubr.bf16.mxu0 0
      %706 = vmatmul.mubr.bf16.gmra.mxu0 %v558
      %v707 = vpop.f32.mrf.mxu0
      %v708 = vadd.f32 0.0, %v707
      %v709 = vpop.f32.mrf.mxu0
      %v710 = vpop.f32.mrf.mxu0
      %v711 = vadd.f32 0.0, %v710
      %v712 = vpop.f32.mrf.mxu0
      %713 = vmatprep.mubr.bf16.mxu0 0
      %714 = vmatmul.mubr.bf16.gmra.mxu0 %v559
      %v715 = vpop.f32.mrf.mxu0
      %v716 = vadd.f32 0.0, %v715
      %v717 = vpop.f32.mrf.mxu0
      %v718 = vpop.f32.mrf.mxu0
      %v719 = vadd.f32 0.0, %v718
      %v720 = vpop.f32.mrf.mxu0
      %721 = vmatprep.mubr.bf16.mxu0 0
      %722 = vmatmul.mubr.bf16.gmra.mxu0 %v560
      %v723 = vpop.f32.mrf.mxu0
      %v724 = vadd.f32 0.0, %v723
      %v725 = vpop.f32.mrf.mxu0
      %v726 = vpop.f32.mrf.mxu0
      %v727 = vadd.f32 0.0, %v726
      %v728 = vpop.f32.mrf.mxu0
      %729 = vmatprep.mubr.bf16.mxu0 0
      %730 = vmatmul.mubr.bf16.gmra.mxu0 %v561
      %v731 = vpop.f32.mrf.mxu0
      %v732 = vadd.f32 0.0, %v731
      %v733 = vpop.f32.mrf.mxu0
      %v734 = vpop.f32.mrf.mxu0
      %v735 = vadd.f32 0.0, %v734
      %v736 = vpop.f32.mrf.mxu0
      %737 = vmatprep.mubr.bf16.mxu0 0
      %738 = vmatmul.mubr.bf16.gmra.mxu0 %v562
      %v739 = vpop.f32.mrf.mxu0
      %v740 = vadd.f32 0.0, %v739
      %v741 = vpop.f32.mrf.mxu0
      %v742 = vpop.f32.mrf.mxu0
      %v743 = vadd.f32 0.0, %v742
      %v744 = vpop.f32.mrf.mxu0
      %745 = vmatprep.mubr.bf16.mxu0 0
      %746 = vmatmul.mubr.bf16.gmra.mxu0 %v563
      %v747 = vpop.f32.mrf.mxu0
      %v748 = vadd.f32 0.0, %v747
      %v749 = vpop.f32.mrf.mxu0
      %v750 = vpop.f32.mrf.mxu0
      %v751 = vadd.f32 0.0, %v750
      %v752 = vpop.f32.mrf.mxu0
      %753 = vmatprep.mubr.bf16.mxu0 0
      %754 = vmatmul.mubr.bf16.gmra.mxu0 %v564
      %v755 = vpop.f32.mrf.mxu0
      %v756 = vadd.f32 0.0, %v755
      %v757 = vpop.f32.mrf.mxu0
      %v758 = vpop.f32.mrf.mxu0
      %v759 = vadd.f32 0.0, %v758
      %v760 = vpop.f32.mrf.mxu0
      %761 = vmatprep.mubr.bf16.mxu0 0
      %762 = vmatmul.mubr.bf16.gmra.mxu0 %v565
      %v763 = vpop.f32.mrf.mxu0
      %v764 = vadd.f32 0.0, %v763
      %v765 = vpop.f32.mrf.mxu0
      %v766 = vpop.f32.mrf.mxu0
      %v767 = vadd.f32 0.0, %v766
      %v768 = vpop.f32.mrf.mxu0
      %769 = vmatprep.mubr.bf16.mxu0 0
      %770 = vmatmul.mubr.bf16.gmra.mxu0 %v566
      %v771 = vpop.f32.mrf.mxu0
      %v772 = vadd.f32 0.0, %v771
      %v773 = vpop.f32.mrf.mxu0
      %v774 = vpop.f32.mrf.mxu0
      %v775 = vadd.f32 0.0, %v774
      %v776 = vpop.f32.mrf.mxu0
      %777 = vmatprep.mubr.bf16.mxu0 0
      %778 = vmatmul.mubr.bf16.gmra.mxu0 %v567
      %v779 = vpop.f32.mrf.mxu0
      %v780 = vadd.f32 0.0, %v779
      %v781 = vpop.f32.mrf.mxu0
      %v782 = vpop.f32.mrf.mxu0
      %v783 = vadd.f32 0.0, %v782
      %v784 = vpop.f32.mrf.mxu0
      %785 = vmatprep.mubr.bf16.mxu0 0
      %786 = vmatmul.mubr.bf16.gmra.mxu0 %v568
      %v787 = vpop.f32.mrf.mxu0
      %v788 = vadd.f32 0.0, %v787
      %v789 = vpop.f32.mrf.mxu0
      %v790 = vpop.f32.mrf.mxu0
      %v791 = vadd.f32 0.0, %v790
      %v792 = vpop.f32.mrf.mxu0
      %793 = vdwg.mxu0
      %v794 = vld [vmem:[%s3] sm:$0x1]
      %v796 = vlaneseq
      %v797 = vshrl.u32 %v796, 7
      %v798 = vsub.s32 0, %v797
      %v799 = vrot.slane %v794, %v798
      %v801 = vmul.f32 %v668, %v799
      %v802 = vmul.f32 %v671, %v799
      %v803 = vmul.f32 %v676, %v799
      %v804 = vmul.f32 %v679, %v799
      %v805 = vmul.f32 %v684, %v799
      %v806 = vmul.f32 %v687, %v799
      %v807 = vmul.f32 %v692, %v799
      %v808 = vmul.f32 %v695, %v799
      %v809 = vmul.f32 %v700, %v799
      %v810 = vmul.f32 %v703, %v799
      %v811 = vmul.f32 %v708, %v799
      %v812 = vmul.f32 %v711, %v799
      %v813 = vmul.f32 %v716, %v799
      %v814 = vmul.f32 %v719, %v799
      %v815 = vmul.f32 %v724, %v799
      %v816 = vmul.f32 %v727, %v799
      %v817 = vmul.f32 %v732, %v799
      %v818 = vmul.f32 %v735, %v799
      %v819 = vmul.f32 %v740, %v799
      %v820 = vmul.f32 %v743, %v799
      %v821 = vmul.f32 %v748, %v799
      %v822 = vmul.f32 %v751, %v799
      %v823 = vmul.f32 %v756, %v799
      %v824 = vmul.f32 %v759, %v799
      %v825 = vmul.f32 %v764, %v799
      %v826 = vmul.f32 %v767, %v799
      %v827 = vmul.f32 %v772, %v799
      %v828 = vmul.f32 %v775, %v799
      %v829 = vmul.f32 %v780, %v799
      %v830 = vmul.f32 %v783, %v799
      %v831 = vmul.f32 %v788, %v799
      %v832 = vmul.f32 %v791, %v799
      %v833 = vld [vmem:[%s4] sm:$0x1]
      %v835 = vlaneseq
      %v836 = vshrl.u32 %v835, 7
      %v837 = vsub.s32 0, %v836
      %v838 = vrot.slane %v833, %v837
      %v840 = vadd.f32 %v801, %v838
      %v841 = vadd.f32 %v802, %v838
      %v842 = vadd.f32 %v803, %v838
      %v843 = vadd.f32 %v804, %v838
      %v844 = vadd.f32 %v805, %v838
      %v845 = vadd.f32 %v806, %v838
      %v846 = vadd.f32 %v807, %v838
      %v847 = vadd.f32 %v808, %v838
      %v848 = vadd.f32 %v809, %v838
      %v849 = vadd.f32 %v810, %v838
      %v850 = vadd.f32 %v811, %v838
      %v851 = vadd.f32 %v812, %v838
      %v852 = vadd.f32 %v813, %v838
      %v853 = vadd.f32 %v814, %v838
      %v854 = vadd.f32 %v815, %v838
      %v855 = vadd.f32 %v816, %v838
      %v856 = vadd.f32 %v817, %v838
      %v857 = vadd.f32 %v818, %v838
      %v858 = vadd.f32 %v819, %v838
      %v859 = vadd.f32 %v820, %v838
      %v860 = vadd.f32 %v821, %v838
      %v861 = vadd.f32 %v822, %v838
      %v862 = vadd.f32 %v823, %v838
      %v863 = vadd.f32 %v824, %v838
      %v864 = vadd.f32 %v825, %v838
      %v865 = vadd.f32 %v826, %v838
      %v866 = vadd.f32 %v827, %v838
      %v867 = vadd.f32 %v828, %v838
      %v868 = vadd.f32 %v829, %v838
      %v869 = vadd.f32 %v830, %v838
      %v870 = vadd.f32 %v831, %v838
      %v871 = vadd.f32 %v832, %v838
      %vm872 = vcmp.ge.f32.partialorder %v840, 0.0
      %vm873 = vcmp.ge.f32.partialorder %v841, 0.0
      %vm874 = vcmp.ge.f32.partialorder %v842, 0.0
      %vm875 = vcmp.ge.f32.partialorder %v843, 0.0
      %vm876 = vcmp.ge.f32.partialorder %v844, 0.0
      %vm877 = vcmp.ge.f32.partialorder %v845, 0.0
      %vm878 = vcmp.ge.f32.partialorder %v846, 0.0
      %vm879 = vcmp.ge.f32.partialorder %v847, 0.0
      %vm880 = vcmp.ge.f32.partialorder %v848, 0.0
      %vm881 = vcmp.ge.f32.partialorder %v849, 0.0
      %vm882 = vcmp.ge.f32.partialorder %v850, 0.0
      %vm883 = vcmp.ge.f32.partialorder %v851, 0.0
      %vm884 = vcmp.ge.f32.partialorder %v852, 0.0
      %vm885 = vcmp.ge.f32.partialorder %v853, 0.0
      %vm886 = vcmp.ge.f32.partialorder %v854, 0.0
      %vm887 = vcmp.ge.f32.partialorder %v855, 0.0
      %vm888 = vcmp.ge.f32.partialorder %v856, 0.0
      %vm889 = vcmp.ge.f32.partialorder %v857, 0.0
      %vm890 = vcmp.ge.f32.partialorder %v858, 0.0
      %vm891 = vcmp.ge.f32.partialorder %v859, 0.0
      %vm892 = vcmp.ge.f32.partialorder %v860, 0.0
      %vm893 = vcmp.ge.f32.partialorder %v861, 0.0
      %vm894 = vcmp.ge.f32.partialorder %v862, 0.0
      %vm895 = vcmp.ge.f32.partialorder %v863, 0.0
      %vm896 = vcmp.ge.f32.partialorder %v864, 0.0
      %vm897 = vcmp.ge.f32.partialorder %v865, 0.0
      %vm898 = vcmp.ge.f32.partialorder %v866, 0.0
      %vm899 = vcmp.ge.f32.partialorder %v867, 0.0
      %vm900 = vcmp.ge.f32.partialorder %v868, 0.0
      %vm901 = vcmp.ge.f32.partialorder %v869, 0.0
      %vm902 = vcmp.ge.f32.partialorder %v870, 0.0
      %vm903 = vcmp.ge.f32.partialorder %v871, 0.0
      %v904 = vmul.f32 %v840, 0.1
      %v905 = vmul.f32 %v841, 0.1
      %v906 = vmul.f32 %v842, 0.1
      %v907 = vmul.f32 %v843, 0.1
      %v908 = vmul.f32 %v844, 0.1
      %v909 = vmul.f32 %v845, 0.1
      %v910 = vmul.f32 %v846, 0.1
      %v911 = vmul.f32 %v847, 0.1
      %v912 = vmul.f32 %v848, 0.1
      %v913 = vmul.f32 %v849, 0.1
      %v914 = vmul.f32 %v850, 0.1
      %v915 = vmul.f32 %v851, 0.1
      %v916 = vmul.f32 %v852, 0.1
      %v917 = vmul.f32 %v853, 0.1
      %v918 = vmul.f32 %v854, 0.1
      %v919 = vmul.f32 %v855, 0.1
      %v920 = vmul.f32 %v856, 0.1
      %v921 = vmul.f32 %v857, 0.1
      %v922 = vmul.f32 %v858, 0.1
      %v923 = vmul.f32 %v859, 0.1
      %v924 = vmul.f32 %v860, 0.1
      %v925 = vmul.f32 %v861, 0.1
      %v926 = vmul.f32 %v862, 0.1
      %v927 = vmul.f32 %v863, 0.1
      %v928 = vmul.f32 %v864, 0.1
      %v929 = vmul.f32 %v865, 0.1
      %v930 = vmul.f32 %v866, 0.1
      %v931 = vmul.f32 %v867, 0.1
      %v932 = vmul.f32 %v868, 0.1
      %v933 = vmul.f32 %v869, 0.1
      %v934 = vmul.f32 %v870, 0.1
      %v935 = vmul.f32 %v871, 0.1
      %v936 = vsel %vm872, %v840, %v904
      %v937 = vsel %vm873, %v841, %v905
      %v938 = vsel %vm874, %v842, %v906
      %v939 = vsel %vm875, %v843, %v907
      %v940 = vsel %vm876, %v844, %v908
      %v941 = vsel %vm877, %v845, %v909
      %v942 = vsel %vm878, %v846, %v910
      %v943 = vsel %vm879, %v847, %v911
      %v944 = vsel %vm880, %v848, %v912
      %v945 = vsel %vm881, %v849, %v913
      %v946 = vsel %vm882, %v850, %v914
      %v947 = vsel %vm883, %v851, %v915
      %v948 = vsel %vm884, %v852, %v916
      %v949 = vsel %vm885, %v853, %v917
      %v950 = vsel %vm886, %v854, %v918
      %v951 = vsel %vm887, %v855, %v919
      %v952 = vsel %vm888, %v856, %v920
      %v953 = vsel %vm889, %v857, %v921
      %v954 = vsel %vm890, %v858, %v922
      %v955 = vsel %vm891, %v859, %v923
      %v956 = vsel %vm892, %v860, %v924
      %v957 = vsel %vm893, %v861, %v925
      %v958 = vsel %vm894, %v862, %v926
      %v959 = vsel %vm895, %v863, %v927
      %v960 = vsel %vm896, %v864, %v928
      %v961 = vsel %vm897, %v865, %v929
      %v962 = vsel %vm898, %v866, %v930
      %v963 = vsel %vm899, %v867, %v931
      %v964 = vsel %vm900, %v868, %v932
      %v965 = vsel %vm901, %v869, %v933
      %v966 = vsel %vm902, %v870, %v934
      %v967 = vsel %vm903, %v871, %v935
      %v968 = vpack.c.bf16 %v937, %v936
      %v969 = vpack.c.bf16 %v939, %v938
      %v970 = vpack.c.bf16 %v941, %v940
      %v971 = vpack.c.bf16 %v943, %v942
      %v972 = vpack.c.bf16 %v945, %v944
      %v973 = vpack.c.bf16 %v947, %v946
      %v974 = vpack.c.bf16 %v949, %v948
      %v975 = vpack.c.bf16 %v951, %v950
      %v976 = vpack.c.bf16 %v953, %v952
      %v977 = vpack.c.bf16 %v955, %v954
      %v978 = vpack.c.bf16 %v957, %v956
      %v979 = vpack.c.bf16 %v959, %v958
      %v980 = vpack.c.bf16 %v961, %v960
      %v981 = vpack.c.bf16 %v963, %v962
      %v982 = vpack.c.bf16 %v965, %v964
      %v983 = vpack.c.bf16 %v967, %v966
      %v984 = vld [vmem:[%s5] sm:$0xf]
      %v985 = vld [vmem:[%s5 + $0x4] sm:$0xf]
      %v986 = vld [vmem:[%s5 + $0x8] sm:$0xf]
      %v987 = vld [vmem:[%s5 + $0xc] sm:$0xf]
      %v988 = vld [vmem:[%s5 + $0x10] sm:$0xf]
      %v989 = vld [vmem:[%s5 + $0x14] sm:$0xf]
      %v990 = vld [vmem:[%s5 + $0x18] sm:$0xf]
      %v991 = vld [vmem:[%s5 + $0x1c] sm:$0xf]
      %v992 = vld [vmem:[%s5 + $0x20] sm:$0xf]
      %v993 = vld [vmem:[%s5 + $0x24] sm:$0xf]
      %v994 = vld [vmem:[%s5 + $0x28] sm:$0xf]
      %v995 = vld [vmem:[%s5 + $0x2c] sm:$0xf]
      %v996 = vld [vmem:[%s5 + $0x30] sm:$0xf]
      %v997 = vld [vmem:[%s5 + $0x34] sm:$0xf]
      %v998 = vld [vmem:[%s5 + $0x38] sm:$0xf]
      %v999 = vld [vmem:[%s5 + $0x3c] sm:$0xf]
      %v1000 = vld [vmem:[%s6] sm:$0xf]
      %v1001 = vld [vmem:[%s6 + $0x4] sm:$0xf]
      %v1002 = vld [vmem:[%s6 + $0x8] sm:$0xf]
      %v1003 = vld [vmem:[%s6 + $0xc] sm:$0xf]
      %v1004 = vld [vmem:[%s6 + $0x10] sm:$0xf]
      %v1005 = vld [vmem:[%s6 + $0x14] sm:$0xf]
      %v1006 = vld [vmem:[%s6 + $0x18] sm:$0xf]
      %v1007 = vld [vmem:[%s6 + $0x1c] sm:$0xf]
      %v1008 = vld [vmem:[%s6 + $0x20] sm:$0xf]
      %v1009 = vld [vmem:[%s6 + $0x24] sm:$0xf]
      %v1010 = vld [vmem:[%s6 + $0x28] sm:$0xf]
      %v1011 = vld [vmem:[%s6 + $0x2c] sm:$0xf]
      %v1012 = vld [vmem:[%s6 + $0x30] sm:$0xf]
      %v1013 = vld [vmem:[%s6 + $0x34] sm:$0xf]
      %v1014 = vld [vmem:[%s6 + $0x38] sm:$0xf]
      %v1015 = vld [vmem:[%s6 + $0x3c] sm:$0xf]
      %v1048 = vunpack.c.l.b16 %v441
      %v1049 = vunpack.c.l.b16 %v442
      %v1050 = vunpack.c.l.b16 %v443
      %v1051 = vunpack.c.l.b16 %v444
      %v1052 = vunpack.c.l.b16 %v445
      %v1053 = vunpack.c.l.b16 %v446
      %v1054 = vunpack.c.l.b16 %v447
      %v1055 = vunpack.c.l.b16 %v448
      %v1056 = vunpack.c.l.b16 %v449
      %v1057 = vunpack.c.l.b16 %v450
      %v1058 = vunpack.c.l.b16 %v451
      %v1059 = vunpack.c.l.b16 %v452
      %v1060 = vunpack.c.l.b16 %v453
      %v1061 = vunpack.c.l.b16 %v454
      %v1062 = vunpack.c.l.b16 %v455
      %v1063 = vunpack.c.l.b16 %v456
      %v1064 = vunpack.c.l.b16 %v457
      %v1065 = vunpack.c.l.b16 %v458
      %v1066 = vunpack.c.l.b16 %v459
      %v1067 = vunpack.c.l.b16 %v460
      %v1068 = vunpack.c.l.b16 %v461
      %v1069 = vunpack.c.l.b16 %v462
      %v1070 = vunpack.c.l.b16 %v463
      %v1071 = vunpack.c.l.b16 %v464
      %v1072 = vunpack.c.l.b16 %v465
      %v1073 = vunpack.c.l.b16 %v466
      %v1074 = vunpack.c.l.b16 %v467
      %v1075 = vunpack.c.l.b16 %v468
      %v1076 = vunpack.c.l.b16 %v469
      %v1077 = vunpack.c.l.b16 %v470
      %v1078 = vunpack.c.l.b16 %v471
      %v1079 = vunpack.c.l.b16 %v472
      %v1080 = vpack.c.b16 %v1049, %v1048
      %v1081 = vpack.c.b16 %v1051, %v1050
      %v1082 = vpack.c.b16 %v1053, %v1052
      %v1083 = vpack.c.b16 %v1055, %v1054
      %v1084 = vpack.c.b16 %v1057, %v1056
      %v1085 = vpack.c.b16 %v1059, %v1058
      %v1086 = vpack.c.b16 %v1061, %v1060
      %v1087 = vpack.c.b16 %v1063, %v1062
      %v1088 = vpack.c.b16 %v1065, %v1064
      %v1089 = vpack.c.b16 %v1067, %v1066
      %v1090 = vpack.c.b16 %v1069, %v1068
      %v1091 = vpack.c.b16 %v1071, %v1070
      %v1092 = vpack.c.b16 %v1073, %v1072
      %v1093 = vpack.c.b16 %v1075, %v1074
      %v1094 = vpack.c.b16 %v1077, %v1076
      %v1095 = vpack.c.b16 %v1079, %v1078
      %v1128 = vunpack.c.l.b16 %v1000
      %v1129 = vunpack.c.l.b16 %v1001
      %v1130 = vunpack.c.l.b16 %v1002
      %v1131 = vunpack.c.l.b16 %v1003
      %v1132 = vunpack.c.l.b16 %v1004
      %v1133 = vunpack.c.l.b16 %v1005
      %v1134 = vunpack.c.l.b16 %v1006
      %v1135 = vunpack.c.l.b16 %v1007
      %v1136 = vunpack.c.l.b16 %v1008
      %v1137 = vunpack.c.l.b16 %v1009
      %v1138 = vunpack.c.l.b16 %v1010
      %v1139 = vunpack.c.l.b16 %v1011
      %v1140 = vunpack.c.l.b16 %v1012
      %v1141 = vunpack.c.l.b16 %v1013
      %v1142 = vunpack.c.l.b16 %v1014
      %v1143 = vunpack.c.l.b16 %v1015
      %v1144 = vpack.c.b16 %v1129, %v1128
      %v1145 = vpack.c.b16 %v1131, %v1130
      %v1146 = vpack.c.b16 %v1133, %v1132
      %v1147 = vpack.c.b16 %v1135, %v1134
      %v1148 = vpack.c.b16 %v1137, %v1136
      %v1149 = vpack.c.b16 %v1139, %v1138
      %v1150 = vpack.c.b16 %v1141, %v1140
      %v1151 = vpack.c.b16 %v1143, %v1142
      %1160 = vmatprep.subr.bf16.mxu0 0
      %1161 = vmatpush1.bf16.msra.mxu0 %v1151
      %1162 = vmatprep.subr.bf16.mxu0 0
      %1163 = vmatpush1.bf16.msra.mxu0 %v1150
      %1164 = vmatprep.subr.bf16.mxu0 0
      %1165 = vmatpush1.bf16.msra.mxu0 %v1149
      %1166 = vmatprep.subr.bf16.mxu0 0
      %1167 = vmatpush1.bf16.msra.mxu0 %v1148
      %1168 = vmatprep.subr.bf16.mxu0 0
      %1169 = vmatpush1.bf16.msra.mxu0 %v1147
      %1170 = vmatprep.subr.bf16.mxu0 0
      %1171 = vmatpush1.bf16.msra.mxu0 %v1146
      %1172 = vmatprep.subr.bf16.mxu0 0
      %1173 = vmatpush1.bf16.msra.mxu0 %v1145
      %1174 = vmatprep.subr.bf16.mxu0 0
      %1175 = vmatpush1.bf16.msra.mxu0 %v1144
      %1176 = vmatprep.subr.bf16.mxu0 0
      %1177 = vmatpush2.bf16.msra.mxu0 0
      %1178 = vmatprep.subr.bf16.mxu0 0
      %1179 = vmatpush2.bf16.msra.mxu0 0
      %1180 = vmatprep.subr.bf16.mxu0 0
      %1181 = vmatpush2.bf16.msra.mxu0 0
      %1182 = vmatprep.subr.bf16.mxu0 0
      %1183 = vmatpush2.bf16.msra.mxu0 0
      %1184 = vmatprep.subr.bf16.mxu0 0
      %1185 = vmatpush2.bf16.msra.mxu0 0
      %1186 = vmatprep.subr.bf16.mxu0 0
      %1187 = vmatpush2.bf16.msra.mxu0 0
      %1188 = vmatprep.subr.bf16.mxu0 0
      %1189 = vmatpush2.bf16.msra.mxu0 0
      %1190 = vmatprep.subr.bf16.mxu0 0
      %1191 = vmatpush2.bf16.msra.mxu0 0
      %1192 = vmatprep.mubr.bf16.mxu0 0
      %1193 = vmatmul.mubr.bf16.gmra.mxu0 %v1080
      %v1194 = vpop.f32.mrf.mxu0
      %v1195 = vadd.f32 0.0, %v1194
      %v1196 = vpop.f32.mrf.mxu0
      %v1197 = vpop.f32.mrf.mxu0
      %v1198 = vadd.f32 0.0, %v1197
      %v1199 = vpop.f32.mrf.mxu0
      %1200 = vmatprep.mubr.bf16.mxu0 0
      %1201 = vmatmul.mubr.bf16.gmra.mxu0 %v1081
      %v1202 = vpop.f32.mrf.mxu0
      %v1203 = vadd.f32 0.0, %v1202
      %v1204 = vpop.f32.mrf.mxu0
      %v1205 = vpop.f32.mrf.mxu0
      %v1206 = vadd.f32 0.0, %v1205
      %v1207 = vpop.f32.mrf.mxu0
      %1208 = vmatprep.mubr.bf16.mxu0 0
      %1209 = vmatmul.mubr.bf16.gmra.mxu0 %v1082
      %v1210 = vpop.f32.mrf.mxu0
      %v1211 = vadd.f32 0.0, %v1210
      %v1212 = vpop.f32.mrf.mxu0
      %v1213 = vpop.f32.mrf.mxu0
      %v1214 = vadd.f32 0.0, %v1213
      %v1215 = vpop.f32.mrf.mxu0
      %1216 = vmatprep.mubr.bf16.mxu0 0
      %1217 = vmatmul.mubr.bf16.gmra.mxu0 %v1083
      %v1218 = vpop.f32.mrf.mxu0
      %v1219 = vadd.f32 0.0, %v1218
      %v1220 = vpop.f32.mrf.mxu0
      %v1221 = vpop.f32.mrf.mxu0
      %v1222 = vadd.f32 0.0, %v1221
      %v1223 = vpop.f32.mrf.mxu0
      %1224 = vmatprep.mubr.bf16.mxu0 0
      %1225 = vmatmul.mubr.bf16.gmra.mxu0 %v1084
      %v1226 = vpop.f32.mrf.mxu0
      %v1227 = vadd.f32 0.0, %v1226
      %v1228 = vpop.f32.mrf.mxu0
      %v1229 = vpop.f32.mrf.mxu0
      %v1230 = vadd.f32 0.0, %v1229
      %v1231 = vpop.f32.mrf.mxu0
      %1232 = vmatprep.mubr.bf16.mxu0 0
      %1233 = vmatmul.mubr.bf16.gmra.mxu0 %v1085
      %v1234 = vpop.f32.mrf.mxu0
      %v1235 = vadd.f32 0.0, %v1234
      %v1236 = vpop.f32.mrf.mxu0
      %v1237 = vpop.f32.mrf.mxu0
      %v1238 = vadd.f32 0.0, %v1237
      %v1239 = vpop.f32.mrf.mxu0
      %1240 = vmatprep.mubr.bf16.mxu0 0
      %1241 = vmatmul.mubr.bf16.gmra.mxu0 %v1086
      %v1242 = vpop.f32.mrf.mxu0
      %v1243 = vadd.f32 0.0, %v1242
      %v1244 = vpop.f32.mrf.mxu0
      %v1245 = vpop.f32.mrf.mxu0
      %v1246 = vadd.f32 0.0, %v1245
      %v1247 = vpop.f32.mrf.mxu0
      %1248 = vmatprep.mubr.bf16.mxu0 0
      %1249 = vmatmul.mubr.bf16.gmra.mxu0 %v1087
      %v1250 = vpop.f32.mrf.mxu0
      %v1251 = vadd.f32 0.0, %v1250
      %v1252 = vpop.f32.mrf.mxu0
      %v1253 = vpop.f32.mrf.mxu0
      %v1254 = vadd.f32 0.0, %v1253
      %v1255 = vpop.f32.mrf.mxu0
      %1256 = vmatprep.mubr.bf16.mxu0 0
      %1257 = vmatmul.mubr.bf16.gmra.mxu0 %v1088
      %v1258 = vpop.f32.mrf.mxu0
      %v1259 = vadd.f32 0.0, %v1258
      %v1260 = vpop.f32.mrf.mxu0
      %v1261 = vpop.f32.mrf.mxu0
      %v1262 = vadd.f32 0.0, %v1261
      %v1263 = vpop.f32.mrf.mxu0
      %1264 = vmatprep.mubr.bf16.mxu0 0
      %1265 = vmatmul.mubr.bf16.gmra.mxu0 %v1089
      %v1266 = vpop.f32.mrf.mxu0
      %v1267 = vadd.f32 0.0, %v1266
      %v1268 = vpop.f32.mrf.mxu0
      %v1269 = vpop.f32.mrf.mxu0
      %v1270 = vadd.f32 0.0, %v1269
      %v1271 = vpop.f32.mrf.mxu0
      %1272 = vmatprep.mubr.bf16.mxu0 0
      %1273 = vmatmul.mubr.bf16.gmra.mxu0 %v1090
      %v1274 = vpop.f32.mrf.mxu0
      %v1275 = vadd.f32 0.0, %v1274
      %v1276 = vpop.f32.mrf.mxu0
      %v1277 = vpop.f32.mrf.mxu0
      %v1278 = vadd.f32 0.0, %v1277
      %v1279 = vpop.f32.mrf.mxu0
      %1280 = vmatprep.mubr.bf16.mxu0 0
      %1281 = vmatmul.mubr.bf16.gmra.mxu0 %v1091
      %v1282 = vpop.f32.mrf.mxu0
      %v1283 = vadd.f32 0.0, %v1282
      %v1284 = vpop.f32.mrf.mxu0
      %v1285 = vpop.f32.mrf.mxu0
      %v1286 = vadd.f32 0.0, %v1285
      %v1287 = vpop.f32.mrf.mxu0
      %1288 = vmatprep.mubr.bf16.mxu0 0
      %1289 = vmatmul.mubr.bf16.gmra.mxu0 %v1092
      %v1290 = vpop.f32.mrf.mxu0
      %v1291 = vadd.f32 0.0, %v1290
      %v1292 = vpop.f32.mrf.mxu0
      %v1293 = vpop.f32.mrf.mxu0
      %v1294 = vadd.f32 0.0, %v1293
      %v1295 = vpop.f32.mrf.mxu0
      %1296 = vmatprep.mubr.bf16.mxu0 0
      %1297 = vmatmul.mubr.bf16.gmra.mxu0 %v1093
      %v1298 = vpop.f32.mrf.mxu0
      %v1299 = vadd.f32 0.0, %v1298
      %v1300 = vpop.f32.mrf.mxu0
      %v1301 = vpop.f32.mrf.mxu0
      %v1302 = vadd.f32 0.0, %v1301
      %v1303 = vpop.f32.mrf.mxu0
      %1304 = vmatprep.mubr.bf16.mxu0 0
      %1305 = vmatmul.mubr.bf16.gmra.mxu0 %v1094
      %v1306 = vpop.f32.mrf.mxu0
      %v1307 = vadd.f32 0.0, %v1306
      %v1308 = vpop.f32.mrf.mxu0
      %v1309 = vpop.f32.mrf.mxu0
      %v1310 = vadd.f32 0.0, %v1309
      %v1311 = vpop.f32.mrf.mxu0
      %1312 = vmatprep.mubr.bf16.mxu0 0
      %1313 = vmatmul.mubr.bf16.gmra.mxu0 %v1095
      %v1314 = vpop.f32.mrf.mxu0
      %v1315 = vadd.f32 0.0, %v1314
      %v1316 = vpop.f32.mrf.mxu0
      %v1317 = vpop.f32.mrf.mxu0
      %v1318 = vadd.f32 0.0, %v1317
      %v1319 = vpop.f32.mrf.mxu0
      %1320 = vdwg.mxu0
      %v1337 = vunpack.c.l.b16 %v984
      %v1338 = vunpack.c.l.b16 %v985
      %v1339 = vunpack.c.l.b16 %v986
      %v1340 = vunpack.c.l.b16 %v987
      %v1341 = vunpack.c.l.b16 %v988
      %v1342 = vunpack.c.l.b16 %v989
      %v1343 = vunpack.c.l.b16 %v990
      %v1344 = vunpack.c.l.b16 %v991
      %v1345 = vunpack.c.l.b16 %v992
      %v1346 = vunpack.c.l.b16 %v993
      %v1347 = vunpack.c.l.b16 %v994
      %v1348 = vunpack.c.l.b16 %v995
      %v1349 = vunpack.c.l.b16 %v996
      %v1350 = vunpack.c.l.b16 %v997
      %v1351 = vunpack.c.l.b16 %v998
      %v1352 = vunpack.c.l.b16 %v999
      %v1353 = vpack.c.b16 %v1338, %v1337
      %v1354 = vpack.c.b16 %v1340, %v1339
      %v1355 = vpack.c.b16 %v1342, %v1341
      %v1356 = vpack.c.b16 %v1344, %v1343
      %v1357 = vpack.c.b16 %v1346, %v1345
      %v1358 = vpack.c.b16 %v1348, %v1347
      %v1359 = vpack.c.b16 %v1350, %v1349
      %v1360 = vpack.c.b16 %v1352, %v1351
      %1369 = vmatprep.subr.bf16.mxu0 0
      %1370 = vmatpush1.bf16.msra.mxu0 %v1360
      %1371 = vmatprep.subr.bf16.mxu0 0
      %1372 = vmatpush1.bf16.msra.mxu0 %v1359
      %1373 = vmatprep.subr.bf16.mxu0 0
      %1374 = vmatpush1.bf16.msra.mxu0 %v1358
      %1375 = vmatprep.subr.bf16.mxu0 0
      %1376 = vmatpush1.bf16.msra.mxu0 %v1357
      %1377 = vmatprep.subr.bf16.mxu0 0
      %1378 = vmatpush1.bf16.msra.mxu0 %v1356
      %1379 = vmatprep.subr.bf16.mxu0 0
      %1380 = vmatpush1.bf16.msra.mxu0 %v1355
      %1381 = vmatprep.subr.bf16.mxu0 0
      %1382 = vmatpush1.bf16.msra.mxu0 %v1354
      %1383 = vmatprep.subr.bf16.mxu0 0
      %1384 = vmatpush1.bf16.msra.mxu0 %v1353
      %1385 = vmatprep.subr.bf16.mxu0 0
      %1386 = vmatpush2.bf16.msra.mxu0 0
      %1387 = vmatprep.subr.bf16.mxu0 0
      %1388 = vmatpush2.bf16.msra.mxu0 0
      %1389 = vmatprep.subr.bf16.mxu0 0
      %1390 = vmatpush2.bf16.msra.mxu0 0
      %1391 = vmatprep.subr.bf16.mxu0 0
      %1392 = vmatpush2.bf16.msra.mxu0 0
      %1393 = vmatprep.subr.bf16.mxu0 0
      %1394 = vmatpush2.bf16.msra.mxu0 0
      %1395 = vmatprep.subr.bf16.mxu0 0
      %1396 = vmatpush2.bf16.msra.mxu0 0
      %1397 = vmatprep.subr.bf16.mxu0 0
      %1398 = vmatpush2.bf16.msra.mxu0 0
      %1399 = vmatprep.subr.bf16.mxu0 0
      %1400 = vmatpush2.bf16.msra.mxu0 0
      %1401 = vmatprep.mubr.bf16.mxu0 0
      %1402 = vmatmul.mubr.bf16.gmra.mxu0 %v968
      %v1403 = vpop.f32.mrf.mxu0
      %v1404 = vadd.f32 %v1195, %v1403
      %v1405 = vpop.f32.mrf.mxu0
      %v1406 = vpop.f32.mrf.mxu0
      %v1407 = vadd.f32 %v1198, %v1406
      %v1408 = vpop.f32.mrf.mxu0
      %1409 = vmatprep.mubr.bf16.mxu0 0
      %1410 = vmatmul.mubr.bf16.gmra.mxu0 %v969
      %v1411 = vpop.f32.mrf.mxu0
      %v1412 = vadd.f32 %v1203, %v1411
      %v1413 = vpop.f32.mrf.mxu0
      %v1414 = vpop.f32.mrf.mxu0
      %v1415 = vadd.f32 %v1206, %v1414
      %v1416 = vpop.f32.mrf.mxu0
      %1417 = vmatprep.mubr.bf16.mxu0 0
      %1418 = vmatmul.mubr.bf16.gmra.mxu0 %v970
      %v1419 = vpop.f32.mrf.mxu0
      %v1420 = vadd.f32 %v1211, %v1419
      %v1421 = vpop.f32.mrf.mxu0
      %v1422 = vpop.f32.mrf.mxu0
      %v1423 = vadd.f32 %v1214, %v1422
      %v1424 = vpop.f32.mrf.mxu0
      %1425 = vmatprep.mubr.bf16.mxu0 0
      %1426 = vmatmul.mubr.bf16.gmra.mxu0 %v971
      %v1427 = vpop.f32.mrf.mxu0
      %v1428 = vadd.f32 %v1219, %v1427
      %v1429 = vpop.f32.mrf.mxu0
      %v1430 = vpop.f32.mrf.mxu0
      %v1431 = vadd.f32 %v1222, %v1430
      %v1432 = vpop.f32.mrf.mxu0
      %1433 = vmatprep.mubr.bf16.mxu0 0
      %1434 = vmatmul.mubr.bf16.gmra.mxu0 %v972
      %v1435 = vpop.f32.mrf.mxu0
      %v1436 = vadd.f32 %v1227, %v1435
      %v1437 = vpop.f32.mrf.mxu0
      %v1438 = vpop.f32.mrf.mxu0
      %v1439 = vadd.f32 %v1230, %v1438
      %v1440 = vpop.f32.mrf.mxu0
      %1441 = vmatprep.mubr.bf16.mxu0 0
      %1442 = vmatmul.mubr.bf16.gmra.mxu0 %v973
      %v1443 = vpop.f32.mrf.mxu0
      %v1444 = vadd.f32 %v1235, %v1443
      %v1445 = vpop.f32.mrf.mxu0
      %v1446 = vpop.f32.mrf.mxu0
      %v1447 = vadd.f32 %v1238, %v1446
      %v1448 = vpop.f32.mrf.mxu0
      %1449 = vmatprep.mubr.bf16.mxu0 0
      %1450 = vmatmul.mubr.bf16.gmra.mxu0 %v974
      %v1451 = vpop.f32.mrf.mxu0
      %v1452 = vadd.f32 %v1243, %v1451
      %v1453 = vpop.f32.mrf.mxu0
      %v1454 = vpop.f32.mrf.mxu0
      %v1455 = vadd.f32 %v1246, %v1454
      %v1456 = vpop.f32.mrf.mxu0
      %1457 = vmatprep.mubr.bf16.mxu0 0
      %1458 = vmatmul.mubr.bf16.gmra.mxu0 %v975
      %v1459 = vpop.f32.mrf.mxu0
      %v1460 = vadd.f32 %v1251, %v1459
      %v1461 = vpop.f32.mrf.mxu0
      %v1462 = vpop.f32.mrf.mxu0
      %v1463 = vadd.f32 %v1254, %v1462
      %v1464 = vpop.f32.mrf.mxu0
      %1465 = vmatprep.mubr.bf16.mxu0 0
      %1466 = vmatmul.mubr.bf16.gmra.mxu0 %v976
      %v1467 = vpop.f32.mrf.mxu0
      %v1468 = vadd.f32 %v1259, %v1467
      %v1469 = vpop.f32.mrf.mxu0
      %v1470 = vpop.f32.mrf.mxu0
      %v1471 = vadd.f32 %v1262, %v1470
      %v1472 = vpop.f32.mrf.mxu0
      %1473 = vmatprep.mubr.bf16.mxu0 0
      %1474 = vmatmul.mubr.bf16.gmra.mxu0 %v977
      %v1475 = vpop.f32.mrf.mxu0
      %v1476 = vadd.f32 %v1267, %v1475
      %v1477 = vpop.f32.mrf.mxu0
      %v1478 = vpop.f32.mrf.mxu0
      %v1479 = vadd.f32 %v1270, %v1478
      %v1480 = vpop.f32.mrf.mxu0
      %1481 = vmatprep.mubr.bf16.mxu0 0
      %1482 = vmatmul.mubr.bf16.gmra.mxu0 %v978
      %v1483 = vpop.f32.mrf.mxu0
      %v1484 = vadd.f32 %v1275, %v1483
      %v1485 = vpop.f32.mrf.mxu0
      %v1486 = vpop.f32.mrf.mxu0
      %v1487 = vadd.f32 %v1278, %v1486
      %v1488 = vpop.f32.mrf.mxu0
      %1489 = vmatprep.mubr.bf16.mxu0 0
      %1490 = vmatmul.mubr.bf16.gmra.mxu0 %v979
      %v1491 = vpop.f32.mrf.mxu0
      %v1492 = vadd.f32 %v1283, %v1491
      %v1493 = vpop.f32.mrf.mxu0
      %v1494 = vpop.f32.mrf.mxu0
      %v1495 = vadd.f32 %v1286, %v1494
      %v1496 = vpop.f32.mrf.mxu0
      %1497 = vmatprep.mubr.bf16.mxu0 0
      %1498 = vmatmul.mubr.bf16.gmra.mxu0 %v980
      %v1499 = vpop.f32.mrf.mxu0
      %v1500 = vadd.f32 %v1291, %v1499
      %v1501 = vpop.f32.mrf.mxu0
      %v1502 = vpop.f32.mrf.mxu0
      %v1503 = vadd.f32 %v1294, %v1502
      %v1504 = vpop.f32.mrf.mxu0
      %1505 = vmatprep.mubr.bf16.mxu0 0
      %1506 = vmatmul.mubr.bf16.gmra.mxu0 %v981
      %v1507 = vpop.f32.mrf.mxu0
      %v1508 = vadd.f32 %v1299, %v1507
      %v1509 = vpop.f32.mrf.mxu0
      %v1510 = vpop.f32.mrf.mxu0
      %v1511 = vadd.f32 %v1302, %v1510
      %v1512 = vpop.f32.mrf.mxu0
      %1513 = vmatprep.mubr.bf16.mxu0 0
      %1514 = vmatmul.mubr.bf16.gmra.mxu0 %v982
      %v1515 = vpop.f32.mrf.mxu0
      %v1516 = vadd.f32 %v1307, %v1515
      %v1517 = vpop.f32.mrf.mxu0
      %v1518 = vpop.f32.mrf.mxu0
      %v1519 = vadd.f32 %v1310, %v1518
      %v1520 = vpop.f32.mrf.mxu0
      %1521 = vmatprep.mubr.bf16.mxu0 0
      %1522 = vmatmul.mubr.bf16.gmra.mxu0 %v983
      %v1523 = vpop.f32.mrf.mxu0
      %v1524 = vadd.f32 %v1315, %v1523
      %v1525 = vpop.f32.mrf.mxu0
      %v1526 = vpop.f32.mrf.mxu0
      %v1527 = vadd.f32 %v1318, %v1526
      %v1528 = vpop.f32.mrf.mxu0
      %1529 = vdwg.mxu0
      %v1530 = vld [vmem:[%s7] sm:$0x1]
      %v1532 = vlaneseq
      %v1533 = vshrl.u32 %v1532, 7
      %v1534 = vsub.s32 0, %v1533
      %v1535 = vrot.slane %v1530, %v1534
      %v1537 = vmul.f32 %v1404, %v1535
      %v1538 = vmul.f32 %v1407, %v1535
      %v1539 = vmul.f32 %v1412, %v1535
      %v1540 = vmul.f32 %v1415, %v1535
      %v1541 = vmul.f32 %v1420, %v1535
      %v1542 = vmul.f32 %v1423, %v1535
      %v1543 = vmul.f32 %v1428, %v1535
      %v1544 = vmul.f32 %v1431, %v1535
      %v1545 = vmul.f32 %v1436, %v1535
      %v1546 = vmul.f32 %v1439, %v1535
      %v1547 = vmul.f32 %v1444, %v1535
      %v1548 = vmul.f32 %v1447, %v1535
      %v1549 = vmul.f32 %v1452, %v1535
      %v1550 = vmul.f32 %v1455, %v1535
      %v1551 = vmul.f32 %v1460, %v1535
      %v1552 = vmul.f32 %v1463, %v1535
      %v1553 = vmul.f32 %v1468, %v1535
      %v1554 = vmul.f32 %v1471, %v1535
      %v1555 = vmul.f32 %v1476, %v1535
      %v1556 = vmul.f32 %v1479, %v1535
      %v1557 = vmul.f32 %v1484, %v1535
      %v1558 = vmul.f32 %v1487, %v1535
      %v1559 = vmul.f32 %v1492, %v1535
      %v1560 = vmul.f32 %v1495, %v1535
      %v1561 = vmul.f32 %v1500, %v1535
      %v1562 = vmul.f32 %v1503, %v1535
      %v1563 = vmul.f32 %v1508, %v1535
      %v1564 = vmul.f32 %v1511, %v1535
      %v1565 = vmul.f32 %v1516, %v1535
      %v1566 = vmul.f32 %v1519, %v1535
      %v1567 = vmul.f32 %v1524, %v1535
      %v1568 = vmul.f32 %v1527, %v1535
      %v1569 = vld [vmem:[%s8] sm:$0x1]
      %v1571 = vlaneseq
      %v1572 = vshrl.u32 %v1571, 7
      %v1573 = vsub.s32 0, %v1572
      %v1574 = vrot.slane %v1569, %v1573
      %v1576 = vadd.f32 %v1537, %v1574
      %v1577 = vadd.f32 %v1538, %v1574
      %v1578 = vadd.f32 %v1539, %v1574
      %v1579 = vadd.f32 %v1540, %v1574
      %v1580 = vadd.f32 %v1541, %v1574
      %v1581 = vadd.f32 %v1542, %v1574
      %v1582 = vadd.f32 %v1543, %v1574
      %v1583 = vadd.f32 %v1544, %v1574
      %v1584 = vadd.f32 %v1545, %v1574
      %v1585 = vadd.f32 %v1546, %v1574
      %v1586 = vadd.f32 %v1547, %v1574
      %v1587 = vadd.f32 %v1548, %v1574
      %v1588 = vadd.f32 %v1549, %v1574
      %v1589 = vadd.f32 %v1550, %v1574
      %v1590 = vadd.f32 %v1551, %v1574
      %v1591 = vadd.f32 %v1552, %v1574
      %v1592 = vadd.f32 %v1553, %v1574
      %v1593 = vadd.f32 %v1554, %v1574
      %v1594 = vadd.f32 %v1555, %v1574
      %v1595 = vadd.f32 %v1556, %v1574
      %v1596 = vadd.f32 %v1557, %v1574
      %v1597 = vadd.f32 %v1558, %v1574
      %v1598 = vadd.f32 %v1559, %v1574
      %v1599 = vadd.f32 %v1560, %v1574
      %v1600 = vadd.f32 %v1561, %v1574
      %v1601 = vadd.f32 %v1562, %v1574
      %v1602 = vadd.f32 %v1563, %v1574
      %v1603 = vadd.f32 %v1564, %v1574
      %v1604 = vadd.f32 %v1565, %v1574
      %v1605 = vadd.f32 %v1566, %v1574
      %v1606 = vadd.f32 %v1567, %v1574
      %v1607 = vadd.f32 %v1568, %v1574
      %v1608 = vsub.f32 0.0, %v1576
      %v1609 = vsub.f32 0.0, %v1577
      %v1610 = vsub.f32 0.0, %v1578
      %v1611 = vsub.f32 0.0, %v1579
      %v1612 = vsub.f32 0.0, %v1580
      %v1613 = vsub.f32 0.0, %v1581
      %v1614 = vsub.f32 0.0, %v1582
      %v1615 = vsub.f32 0.0, %v1583
      %v1616 = vsub.f32 0.0, %v1584
      %v1617 = vsub.f32 0.0, %v1585
      %v1618 = vsub.f32 0.0, %v1586
      %v1619 = vsub.f32 0.0, %v1587
      %v1620 = vsub.f32 0.0, %v1588
      %v1621 = vsub.f32 0.0, %v1589
      %v1622 = vsub.f32 0.0, %v1590
      %v1623 = vsub.f32 0.0, %v1591
      %v1624 = vsub.f32 0.0, %v1592
      %v1625 = vsub.f32 0.0, %v1593
      %v1626 = vsub.f32 0.0, %v1594
      %v1627 = vsub.f32 0.0, %v1595
      %v1628 = vsub.f32 0.0, %v1596
      %v1629 = vsub.f32 0.0, %v1597
      %v1630 = vsub.f32 0.0, %v1598
      %v1631 = vsub.f32 0.0, %v1599
      %v1632 = vsub.f32 0.0, %v1600
      %v1633 = vsub.f32 0.0, %v1601
      %v1634 = vsub.f32 0.0, %v1602
      %v1635 = vsub.f32 0.0, %v1603
      %v1636 = vsub.f32 0.0, %v1604
      %v1637 = vsub.f32 0.0, %v1605
      %v1638 = vsub.f32 0.0, %v1606
      %v1639 = vsub.f32 0.0, %v1607
      %v1640 = vmul.f32 %v1608, 1.442695
      %v1641 = vpow.pop %v1640
      %v1642 = vmul.f32 %v1609, 1.442695
      %v1643 = vpow.pop %v1642
      %v1644 = vmul.f32 %v1610, 1.442695
      %v1645 = vpow.pop %v1644
      %v1646 = vmul.f32 %v1611, 1.442695
      %v1647 = vpow.pop %v1646
      %v1648 = vmul.f32 %v1612, 1.442695
      %v1649 = vpow.pop %v1648
      %v1650 = vmul.f32 %v1613, 1.442695
      %v1651 = vpow.pop %v1650
      %v1652 = vmul.f32 %v1614, 1.442695
      %v1653 = vpow.pop %v1652
      %v1654 = vmul.f32 %v1615, 1.442695
      %v1655 = vpow.pop %v1654
      %v1656 = vmul.f32 %v1616, 1.442695
      %v1657 = vpow.pop %v1656
      %v1658 = vmul.f32 %v1617, 1.442695
      %v1659 = vpow.pop %v1658
      %v1660 = vmul.f32 %v1618, 1.442695
      %v1661 = vpow.pop %v1660
      %v1662 = vmul.f32 %v1619, 1.442695
      %v1663 = vpow.pop %v1662
      %v1664 = vmul.f32 %v1620, 1.442695
      %v1665 = vpow.pop %v1664
      %v1666 = vmul.f32 %v1621, 1.442695
      %v1667 = vpow.pop %v1666
      %v1668 = vmul.f32 %v1622, 1.442695
      %v1669 = vpow.pop %v1668
      %v1670 = vmul.f32 %v1623, 1.442695
      %v1671 = vpow.pop %v1670
      %v1672 = vmul.f32 %v1624, 1.442695
      %v1673 = vpow.pop %v1672
      %v1674 = vmul.f32 %v1625, 1.442695
      %v1675 = vpow.pop %v1674
      %v1676 = vmul.f32 %v1626, 1.442695
      %v1677 = vpow.pop %v1676
      %v1678 = vmul.f32 %v1627, 1.442695
      %v1679 = vpow.pop %v1678
      %v1680 = vmul.f32 %v1628, 1.442695
      %v1681 = vpow.pop %v1680
      %v1682 = vmul.f32 %v1629, 1.442695
      %v1683 = vpow.pop %v1682
      %v1684 = vmul.f32 %v1630, 1.442695
      %v1685 = vpow.pop %v1684
      %v1686 = vmul.f32 %v1631, 1.442695
      %v1687 = vpow.pop %v1686
      %v1688 = vmul.f32 %v1632, 1.442695
      %v1689 = vpow.pop %v1688
      %v1690 = vmul.f32 %v1633, 1.442695
      %v1691 = vpow.pop %v1690
      %v1692 = vmul.f32 %v1634, 1.442695
      %v1693 = vpow.pop %v1692
      %v1694 = vmul.f32 %v1635, 1.442695
      %v1695 = vpow.pop %v1694
      %v1696 = vmul.f32 %v1636, 1.442695
      %v1697 = vpow.pop %v1696
      %v1698 = vmul.f32 %v1637, 1.442695
      %v1699 = vpow.pop %v1698
      %v1700 = vmul.f32 %v1638, 1.442695
      %v1701 = vpow.pop %v1700
      %v1702 = vmul.f32 %v1639, 1.442695
      %v1703 = vpow.pop %v1702
      %v1704 = vadd.f32 %v1641, 1.0
      %v1705 = vadd.f32 %v1643, 1.0
      %v1706 = vadd.f32 %v1645, 1.0
      %v1707 = vadd.f32 %v1647, 1.0
      %v1708 = vadd.f32 %v1649, 1.0
      %v1709 = vadd.f32 %v1651, 1.0
      %v1710 = vadd.f32 %v1653, 1.0
      %v1711 = vadd.f32 %v1655, 1.0
      %v1712 = vadd.f32 %v1657, 1.0
      %v1713 = vadd.f32 %v1659, 1.0
      %v1714 = vadd.f32 %v1661, 1.0
      %v1715 = vadd.f32 %v1663, 1.0
      %v1716 = vadd.f32 %v1665, 1.0
      %v1717 = vadd.f32 %v1667, 1.0
      %v1718 = vadd.f32 %v1669, 1.0
      %v1719 = vadd.f32 %v1671, 1.0
      %v1720 = vadd.f32 %v1673, 1.0
      %v1721 = vadd.f32 %v1675, 1.0
      %v1722 = vadd.f32 %v1677, 1.0
      %v1723 = vadd.f32 %v1679, 1.0
      %v1724 = vadd.f32 %v1681, 1.0
      %v1725 = vadd.f32 %v1683, 1.0
      %v1726 = vadd.f32 %v1685, 1.0
      %v1727 = vadd.f32 %v1687, 1.0
      %v1728 = vadd.f32 %v1689, 1.0
      %v1729 = vadd.f32 %v1691, 1.0
      %v1730 = vadd.f32 %v1693, 1.0
      %v1731 = vadd.f32 %v1695, 1.0
      %v1732 = vadd.f32 %v1697, 1.0
      %v1733 = vadd.f32 %v1699, 1.0
      %v1734 = vadd.f32 %v1701, 1.0
      %v1735 = vadd.f32 %v1703, 1.0
      %v1736 = vrcp.pop %v1704
      %v1737 = vmul.f32 1.0, %v1736
      %v1738 = vrcp.pop %v1705
      %v1739 = vmul.f32 1.0, %v1738
      %v1740 = vrcp.pop %v1706
      %v1741 = vmul.f32 1.0, %v1740
      %v1742 = vrcp.pop %v1707
      %v1743 = vmul.f32 1.0, %v1742
      %v1744 = vrcp.pop %v1708
      %v1745 = vmul.f32 1.0, %v1744
      %v1746 = vrcp.pop %v1709
      %v1747 = vmul.f32 1.0, %v1746
      %v1748 = vrcp.pop %v1710
      %v1749 = vmul.f32 1.0, %v1748
      %v1750 = vrcp.pop %v1711
      %v1751 = vmul.f32 1.0, %v1750
      %v1752 = vrcp.pop %v1712
      %v1753 = vmul.f32 1.0, %v1752
      %v1754 = vrcp.pop %v1713
      %v1755 = vmul.f32 1.0, %v1754
      %v1756 = vrcp.pop %v1714
      %v1757 = vmul.f32 1.0, %v1756
      %v1758 = vrcp.pop %v1715
      %v1759 = vmul.f32 1.0, %v1758
      %v1760 = vrcp.pop %v1716
      %v1761 = vmul.f32 1.0, %v1760
      %v1762 = vrcp.pop %v1717
      %v1763 = vmul.f32 1.0, %v1762
      %v1764 = vrcp.pop %v1718
      %v1765 = vmul.f32 1.0, %v1764
      %v1766 = vrcp.pop %v1719
      %v1767 = vmul.f32 1.0, %v1766
      %v1768 = vrcp.pop %v1720
      %v1769 = vmul.f32 1.0, %v1768
      %v1770 = vrcp.pop %v1721
      %v1771 = vmul.f32 1.0, %v1770
      %v1772 = vrcp.pop %v1722
      %v1773 = vmul.f32 1.0, %v1772
      %v1774 = vrcp.pop %v1723
      %v1775 = vmul.f32 1.0, %v1774
      %v1776 = vrcp.pop %v1724
      %v1777 = vmul.f32 1.0, %v1776
      %v1778 = vrcp.pop %v1725
      %v1779 = vmul.f32 1.0, %v1778
      %v1780 = vrcp.pop %v1726
      %v1781 = vmul.f32 1.0, %v1780
      %v1782 = vrcp.pop %v1727
      %v1783 = vmul.f32 1.0, %v1782
      %v1784 = vrcp.pop %v1728
      %v1785 = vmul.f32 1.0, %v1784
      %v1786 = vrcp.pop %v1729
      %v1787 = vmul.f32 1.0, %v1786
      %v1788 = vrcp.pop %v1730
      %v1789 = vmul.f32 1.0, %v1788
      %v1790 = vrcp.pop %v1731
      %v1791 = vmul.f32 1.0, %v1790
      %v1792 = vrcp.pop %v1732
      %v1793 = vmul.f32 1.0, %v1792
      %v1794 = vrcp.pop %v1733
      %v1795 = vmul.f32 1.0, %v1794
      %v1796 = vrcp.pop %v1734
      %v1797 = vmul.f32 1.0, %v1796
      %v1798 = vrcp.pop %v1735
      %v1799 = vmul.f32 1.0, %v1798
      %v1800 = vmul.f32 %v1576, %v1737
      %v1801 = vmul.f32 %v1577, %v1739
      %v1802 = vmul.f32 %v1578, %v1741
      %v1803 = vmul.f32 %v1579, %v1743
      %v1804 = vmul.f32 %v1580, %v1745
      %v1805 = vmul.f32 %v1581, %v1747
      %v1806 = vmul.f32 %v1582, %v1749
      %v1807 = vmul.f32 %v1583, %v1751
      %v1808 = vmul.f32 %v1584, %v1753
      %v1809 = vmul.f32 %v1585, %v1755
      %v1810 = vmul.f32 %v1586, %v1757
      %v1811 = vmul.f32 %v1587, %v1759
      %v1812 = vmul.f32 %v1588, %v1761
      %v1813 = vmul.f32 %v1589, %v1763
      %v1814 = vmul.f32 %v1590, %v1765
      %v1815 = vmul.f32 %v1591, %v1767
      %v1816 = vmul.f32 %v1592, %v1769
      %v1817 = vmul.f32 %v1593, %v1771
      %v1818 = vmul.f32 %v1594, %v1773
      %v1819 = vmul.f32 %v1595, %v1775
      %v1820 = vmul.f32 %v1596, %v1777
      %v1821 = vmul.f32 %v1597, %v1779
      %v1822 = vmul.f32 %v1598, %v1781
      %v1823 = vmul.f32 %v1599, %v1783
      %v1824 = vmul.f32 %v1600, %v1785
      %v1825 = vmul.f32 %v1601, %v1787
      %v1826 = vmul.f32 %v1602, %v1789
      %v1827 = vmul.f32 %v1603, %v1791
      %v1828 = vmul.f32 %v1604, %v1793
      %v1829 = vmul.f32 %v1605, %v1795
      %v1830 = vmul.f32 %v1606, %v1797
      %v1831 = vmul.f32 %v1607, %v1799
      %1832 = vst [vmem:[%s406] sm:$0xff] %v1800
      %1833 = vst [vmem:[%s406 + $0x8] sm:$0xff] %v1801
      %1834 = vst [vmem:[%s406 + $0x10] sm:$0xff] %v1802
      %1835 = vst [vmem:[%s406 + $0x18] sm:$0xff] %v1803
      %1836 = vst [vmem:[%s406 + $0x20] sm:$0xff] %v1804
      %1837 = vst [vmem:[%s406 + $0x28] sm:$0xff] %v1805
      %1838 = vst [vmem:[%s406 + $0x30] sm:$0xff] %v1806
      %1839 = vst [vmem:[%s406 + $0x38] sm:$0xff] %v1807
      %1840 = vst [vmem:[%s406 + $0x40] sm:$0xff] %v1808
      %1841 = vst [vmem:[%s406 + $0x48] sm:$0xff] %v1809
      %1842 = vst [vmem:[%s406 + $0x50] sm:$0xff] %v1810
      %1843 = vst [vmem:[%s406 + $0x58] sm:$0xff] %v1811
      %1844 = vst [vmem:[%s406 + $0x60] sm:$0xff] %v1812
      %1845 = vst [vmem:[%s406 + $0x68] sm:$0xff] %v1813
      %1846 = vst [vmem:[%s406 + $0x70] sm:$0xff] %v1814
      %1847 = vst [vmem:[%s406 + $0x78] sm:$0xff] %v1815
      %1848 = vst [vmem:[%s406 + $0x80] sm:$0xff] %v1816
      %1849 = vst [vmem:[%s406 + $0x88] sm:$0xff] %v1817
      %1850 = vst [vmem:[%s406 + $0x90] sm:$0xff] %v1818
      %1851 = vst [vmem:[%s406 + $0x98] sm:$0xff] %v1819
      %1852 = vst [vmem:[%s406 + $0xa0] sm:$0xff] %v1820
      %1853 = vst [vmem:[%s406 + $0xa8] sm:$0xff] %v1821
      %1854 = vst [vmem:[%s406 + $0xb0] sm:$0xff] %v1822
      %1855 = vst [vmem:[%s406 + $0xb8] sm:$0xff] %v1823
      %1856 = vst [vmem:[%s406 + $0xc0] sm:$0xff] %v1824
      %1857 = vst [vmem:[%s406 + $0xc8] sm:$0xff] %v1825
      %1858 = vst [vmem:[%s406 + $0xd0] sm:$0xff] %v1826
      %1859 = vst [vmem:[%s406 + $0xd8] sm:$0xff] %v1827
      %1860 = vst [vmem:[%s406 + $0xe0] sm:$0xff] %v1828
      %1861 = vst [vmem:[%s406 + $0xe8] sm:$0xff] %v1829
      %1862 = vst [vmem:[%s406 + $0xf0] sm:$0xff] %v1830
      %1863 = vst [vmem:[%s406 + $0xf8] sm:$0xff] %v1831
      %s1864 = smul.u32 32, %s25
      %p1865 = scmp.lt.s32.totalorder %s24, 1
      %s1866 = scalar_select %p1865, %s24, 1
      %p1867 = scmp.lt.s32.totalorder %s1864, 31
      %s1868 = scalar_select %p1867, %s1864, 31
      %s1869 = smul.addr %s1866, 32
      %s1870 = sadd.s32 %s1868, %s1869
      %s1871 = smul.addr %s1870, 8
      %s1872 = scalar_lea.vmem %s9, %s1871
      // Predicated region
      $region57: #{bottleneck_csp_forward.5} parent=55 // pred_check
        %p1873 = pneg %p255
      $region58: #{bottleneck_csp_forward.5} parent=55 // pred_check_branch
        %1875 = sbr.rel (%p1873) target = $region60
      $region59: #{bottleneck_csp_forward.5} parent=55 // pred_region
        %s1876 = smul.u32 32, %s25
      $region60: #{bottleneck_csp_forward.5} parent=55 // pred_fallthru
        _
    $region56: #{bottleneck_csp_forward.5} parent=5 // pred_fallthru
      _
    %p1877 = scmp.le.s32.totalorder 2, %s15
    // Predicated region
    $region61: #{bottleneck_csp_forward.5} parent=5 // pred_check
      %p1878 = pneg %p1877
    $region62: #{bottleneck_csp_forward.5} parent=5 // pred_check_branch
      %1880 = sbr.rel (%p1878) target = $region64
    $region63: #{bottleneck_csp_forward.5} parent=5 // pred_region
      %s1881 = ssub.s32 %s15, 2
      // Predicated region
      $region65: #{bottleneck_csp_forward.5} parent=63 // pred_check
        %p1882 = pneg %p261
      $region66: #{bottleneck_csp_forward.5} parent=63 // pred_check_branch
        %1884 = sbr.rel (%p1882) target = $region68
      $region67: #{bottleneck_csp_forward.5} parent=63 // pred_region
        %s1885 = smul.u32 32, %s27
        %p1886 = scmp.lt.s32.totalorder %s26, 1
        %s1887 = scalar_select %p1886, %s26, 1
        %p1888 = scmp.lt.s32.totalorder %s1885, 31
        %s1889 = scalar_select %p1888, %s1885, 31
        %s1890 = smul.addr %s1887, 32
        %s1891 = sadd.s32 %s1889, %s1890
        %s1892 = smul.addr %s1891, 8
        %s1893 = scalar_lea.vmem %s9, %s1892
      $region68: #{bottleneck_csp_forward.5} parent=63 // pred_fallthru
        _
    $region64: #{bottleneck_csp_forward.5} parent=5 // pred_fallthru
      _
  $region6: #{bottleneck_csp_forward.5} parent=0 // loop_footer
    %s19 = sadd.s32 1, %s15
  $region7: #{bottleneck_csp_forward.5} parent=0 // loop_footer_branch
    %14 = sbr.rel target = $region3
  $region8: #{bottleneck_csp_forward.5} parent=0 // loop_exit
    _

// kernel: bottleneck_csp_forward.4
$region0: #{bottleneck_csp_forward.4}
  #allocation0 [shape = 'u32[]', space=smem, size = 0x4, offset = 0x4, fixed_abs, tag = 'smem constant byte address 0x4 - core index']
  #allocation1 [shape = 'u32[144,128]{1,0:T(1,128)}', space=vmem, size = 0x12000, scoped, tag = 'internal scratch']
  %s0 = inlined_call_operand.vmem [shape: bf16[2,326,128], index: 0, kind: input, shape index: {}]
  %s1 = inlined_call_operand.vmem [shape: f32[326,1], index: 1, kind: input, shape index: {}]
  %s2 = inlined_call_operand.vmem [shape: bf16[128,128], index: 2, kind: input, shape index: {}]
  %s3 = inlined_call_operand.vmem [shape: f32[1,128], index: 3, kind: input, shape index: {}]
  %s4 = inlined_call_operand.vmem [shape: f32[1,128], index: 4, kind: input, shape index: {}]
  %s5 = inlined_call_operand.vmem [shape: bf16[9,128,128], index: 5, kind: input, shape index: {}]
  %s6 = inlined_call_operand.vmem [shape: f32[1,128], index: 6, kind: input, shape index: {}]
  %s7 = inlined_call_operand.vmem [shape: f32[1,128], index: 7, kind: input, shape index: {}]
  %s8 = inlined_call_operand.vmem [shape: bf16[2,288,128], index: 8, kind: output, shape index: {}]
  %s9 = sld [smem:[#allocation0]]
  $region65: #{bottleneck_csp_forward.4} parent=0
    _
  %s11 = ssub.s32 1, %s9
  %s12 = scalar_select 0, %s11, %s9
  loop: start=0, step=1, limit=4
  $region2: #{bottleneck_csp_forward.4} parent=0 // loop_pre_header
    _
  $region3: #{bottleneck_csp_forward.4} parent=0 // loop_header
    %s14 = sphi 0, %s18
    %p15 = scmp.ge.s32.totalorder %s14, 4
    %s24 = sphi 0, %s26
    %s27 = sphi 0, %s24
    %s28 = sphi 0, %s27
    %s44 = sphi 0, %s28
    %s48 = sphi 0, %s48
    %s50 = sphi 0, %s48
    %s51 = sphi 0, %s50
    %s65 = sphi 0, %s51
    %s69 = sphi 0, %s69
    %s71 = sphi 0, %s69
    %s72 = sphi 0, %s71
    %s86 = sphi 0, %s72
    %s90 = sphi 0, %s90
    %s92 = sphi 0, %s90
    %s93 = sphi 0, %s92
    %s107 = sphi 0, %s93
    %s111 = sphi 0, %s111
    %s113 = sphi 0, %s111
    %s114 = sphi 0, %s113
    %s128 = sphi 0, %s114
    %s132 = sphi 0, %s132
    %s134 = sphi 0, %s132
    %s135 = sphi 0, %s134
    %s149 = sphi 0, %s135
    %s153 = sphi 0, %s153
    %s155 = sphi 0, %s153
    %s156 = sphi 0, %s155
    %s170 = sphi 0, %s156
    %s174 = sphi 0, %s174
    %s176 = sphi 0, %s174
    %s177 = sphi 0, %s176
    %s191 = sphi 0, %s177
    %s197 = sphi 0, %s199
    %s200 = sphi 0, %s197
    %s201 = sphi 0, %s200
    %s217 = sphi 0, %s201
  $region4: #{bottleneck_csp_forward.4} parent=0 // loop_header_branch
    %17 = sbr.rel (%p15) target = $region8
  $region5: #{bottleneck_csp_forward.4} parent=0 // loop_body
    %s19 = ssub.s32 %s14, 1
    %s20 = ssub.s32 %s14, 2
    %s21 = sadd.s32 %s14, 1
    %s22 = ssub.s32 %s14, %s21
    %p23 = scmp.eq.s32.totalorder %s22, 0
    %s25 = sadd.s32 %s24, 1
    %s26 = scalar_select %p23, %s24, %s25
    %p29 = pneg %p23
    %p30 = scmp.eq.s32.totalorder %s14, 1
    %p31 = por %p29, %p30
    %p32 = scmp.ne.s32.totalorder %s24, %s27
    %p33 = scmp.eq.s32.totalorder %s14, 0
    %p34 = por %p32, %p33
    %p35 = scmp.ne.s32.totalorder %s24, %s27
    %p36 = scmp.eq.s32.totalorder %s19, 1
    %p37 = por %p35, %p36
    %p38 = scmp.ne.s32.totalorder %s27, %s28
    %p39 = scmp.eq.s32.totalorder %s19, 0
    %p40 = por %p38, %p39
    %p41 = scmp.ne.s32.totalorder %s27, %s28
    %p42 = scmp.eq.s32.totalorder %s20, 1
    %p43 = por %p41, %p42
    %p45 = scmp.ne.s32.totalorder %s28, %s44
    %p46 = scmp.eq.s32.totalorder %s20, 0
    %p47 = por %p45, %p46
    %s49 = sadd.s32 %s48, 1
    %p52 = scmp.eq.s32.totalorder %s14, 1
    %p53 = scmp.ne.s32.totalorder %s48, %s50
    %p54 = scmp.eq.s32.totalorder %s14, 0
    %p55 = por %p53, %p54
    %p56 = scmp.ne.s32.totalorder %s48, %s50
    %p57 = scmp.eq.s32.totalorder %s19, 1
    %p58 = por %p56, %p57
    %p59 = scmp.ne.s32.totalorder %s50, %s51
    %p60 = scmp.eq.s32.totalorder %s19, 0
    %p61 = por %p59, %p60
    %p62 = scmp.ne.s32.totalorder %s50, %s51
    %p63 = scmp.eq.s32.totalorder %s20, 1
    %p64 = por %p62, %p63
    %p66 = scmp.ne.s32.totalorder %s51, %s65
    %p67 = scmp.eq.s32.totalorder %s20, 0
    %p68 = por %p66, %p67
    %s70 = sadd.s32 %s69, 1
    %p73 = scmp.eq.s32.totalorder %s14, 1
    %p74 = scmp.ne.s32.totalorder %s69, %s71
    %p75 = scmp.eq.s32.totalorder %s14, 0
    %p76 = por %p74, %p75
    %p77 = scmp.ne.s32.totalorder %s69, %s71
    %p78 = scmp.eq.s32.totalorder %s19, 1
    %p79 = por %p77, %p78
    %p80 = scmp.ne.s32.totalorder %s71, %s72
    %p81 = scmp.eq.s32.totalorder %s19, 0
    %p82 = por %p80, %p81
    %p83 = scmp.ne.s32.totalorder %s71, %s72
    %p84 = scmp.eq.s32.totalorder %s20, 1
    %p85 = por %p83, %p84
    %p87 = scmp.ne.s32.totalorder %s72, %s86
    %p88 = scmp.eq.s32.totalorder %s20, 0
    %p89 = por %p87, %p88
    %s91 = sadd.s32 %s90, 1
    %p94 = scmp.eq.s32.totalorder %s14, 1
    %p95 = scmp.ne.s32.totalorder %s90, %s92
    %p96 = scmp.eq.s32.totalorder %s14, 0
    %p97 = por %p95, %p96
    %p98 = scmp.ne.s32.totalorder %s90, %s92
    %p99 = scmp.eq.s32.totalorder %s19, 1
    %p100 = por %p98, %p99
    %p101 = scmp.ne.s32.totalorder %s92, %s93
    %p102 = scmp.eq.s32.totalorder %s19, 0
    %p103 = por %p101, %p102
    %p104 = scmp.ne.s32.totalorder %s92, %s93
    %p105 = scmp.eq.s32.totalorder %s20, 1
    %p106 = por %p104, %p105
    %p108 = scmp.ne.s32.totalorder %s93, %s107
    %p109 = scmp.eq.s32.totalorder %s20, 0
    %p110 = por %p108, %p109
    %s112 = sadd.s32 %s111, 1
    %p115 = scmp.eq.s32.totalorder %s14, 1
    %p116 = scmp.ne.s32.totalorder %s111, %s113
    %p117 = scmp.eq.s32.totalorder %s14, 0
    %p118 = por %p116, %p117
    %p119 = scmp.ne.s32.totalorder %s111, %s113
    %p120 = scmp.eq.s32.totalorder %s19, 1
    %p121 = por %p119, %p120
    %p122 = scmp.ne.s32.totalorder %s113, %s114
    %p123 = scmp.eq.s32.totalorder %s19, 0
    %p124 = por %p122, %p123
    %p125 = scmp.ne.s32.totalorder %s113, %s114
    %p126 = scmp.eq.s32.totalorder %s20, 1
    %p127 = por %p125, %p126
    %p129 = scmp.ne.s32.totalorder %s114, %s128
    %p130 = scmp.eq.s32.totalorder %s20, 0
    %p131 = por %p129, %p130
    %s133 = sadd.s32 %s132, 1
    %p136 = scmp.eq.s32.totalorder %s14, 1
    %p137 = scmp.ne.s32.totalorder %s132, %s134
    %p138 = scmp.eq.s32.totalorder %s14, 0
    %p139 = por %p137, %p138
    %p140 = scmp.ne.s32.totalorder %s132, %s134
    %p141 = scmp.eq.s32.totalorder %s19, 1
    %p142 = por %p140, %p141
    %p143 = scmp.ne.s32.totalorder %s134, %s135
    %p144 = scmp.eq.s32.totalorder %s19, 0
    %p145 = por %p143, %p144
    %p146 = scmp.ne.s32.totalorder %s134, %s135
    %p147 = scmp.eq.s32.totalorder %s20, 1
    %p148 = por %p146, %p147
    %p150 = scmp.ne.s32.totalorder %s135, %s149
    %p151 = scmp.eq.s32.totalorder %s20, 0
    %p152 = por %p150, %p151
    %s154 = sadd.s32 %s153, 1
    %p157 = scmp.eq.s32.totalorder %s14, 1
    %p158 = scmp.ne.s32.totalorder %s153, %s155
    %p159 = scmp.eq.s32.totalorder %s14, 0
    %p160 = por %p158, %p159
    %p161 = scmp.ne.s32.totalorder %s153, %s155
    %p162 = scmp.eq.s32.totalorder %s19, 1
    %p163 = por %p161, %p162
    %p164 = scmp.ne.s32.totalorder %s155, %s156
    %p165 = scmp.eq.s32.totalorder %s19, 0
    %p166 = por %p164, %p165
    %p167 = scmp.ne.s32.totalorder %s155, %s156
    %p168 = scmp.eq.s32.totalorder %s20, 1
    %p169 = por %p167, %p168
    %p171 = scmp.ne.s32.totalorder %s156, %s170
    %p172 = scmp.eq.s32.totalorder %s20, 0
    %p173 = por %p171, %p172
    %s175 = sadd.s32 %s174, 1
    %p178 = scmp.eq.s32.totalorder %s14, 1
    %p179 = scmp.ne.s32.totalorder %s174, %s176
    %p180 = scmp.eq.s32.totalorder %s14, 0
    %p181 = por %p179, %p180
    %p182 = scmp.ne.s32.totalorder %s174, %s176
    %p183 = scmp.eq.s32.totalorder %s19, 1
    %p184 = por %p182, %p183
    %p185 = scmp.ne.s32.totalorder %s176, %s177
    %p186 = scmp.eq.s32.totalorder %s19, 0
    %p187 = por %p185, %p186
    %p188 = scmp.ne.s32.totalorder %s176, %s177
    %p189 = scmp.eq.s32.totalorder %s20, 1
    %p190 = por %p188, %p189
    %p192 = scmp.ne.s32.totalorder %s177, %s191
    %p193 = scmp.eq.s32.totalorder %s20, 0
    %p194 = por %p192, %p193
    %s195 = ssub.s32 %s14, %s21
    %p196 = scmp.eq.s32.totalorder %s195, 0
    %s198 = sadd.s32 %s197, 1
    %s199 = scalar_select %p196, %s197, %s198
    %p202 = pneg %p196
    %p203 = scmp.eq.s32.totalorder %s14, 1
    %p204 = por %p202, %p203
    %p205 = scmp.ne.s32.totalorder %s197, %s200
    %p206 = scmp.eq.s32.totalorder %s14, 0
    %p207 = por %p205, %p206
    %p208 = scmp.ne.s32.totalorder %s197, %s200
    %p209 = scmp.eq.s32.totalorder %s19, 1
    %p210 = por %p208, %p209
    %p211 = scmp.ne.s32.totalorder %s200, %s201
    %p212 = scmp.eq.s32.totalorder %s19, 0
    %p213 = por %p211, %p212
    %p214 = scmp.ne.s32.totalorder %s200, %s201
    %p215 = scmp.eq.s32.totalorder %s20, 1
    %p216 = por %p214, %p215
    %p218 = scmp.ne.s32.totalorder %s201, %s217
    %p219 = scmp.eq.s32.totalorder %s20, 0
    %p220 = por %p218, %p219
    %p221 = scmp.le.s32.totalorder 1, %s14
    %p222 = scmp.lt.s32.totalorder %s14, 3
    %p223 = pnand %p221, %p222
    %p224 = pneg %p223
    // Predicated region
    $region9: #{bottleneck_csp_forward.4} parent=5 // pred_check
      _
    $region10: #{bottleneck_csp_forward.4} parent=5 // pred_check_branch
      %226 = sbr.rel (%p223) target = $region12
    $region11: #{bottleneck_csp_forward.4} parent=5 // pred_region
      %s227 = ssub.s32 %s14, 1
      // Predicated region
      $region13: #{bottleneck_csp_forward.4} parent=11 // pred_check
        %p228 = pneg %p61
      $region14: #{bottleneck_csp_forward.4} parent=11 // pred_check_branch
        %230 = sbr.rel (%p228) target = $region16
      $region15: #{bottleneck_csp_forward.4} parent=11 // pred_region
        _
      $region16: #{bottleneck_csp_forward.4} parent=11 // pred_fallthru
        _
      // Predicated region
      $region17: #{bottleneck_csp_forward.4} parent=11 // pred_check
        %p231 = pneg %p82
      $region18: #{bottleneck_csp_forward.4} parent=11 // pred_check_branch
        %233 = sbr.rel (%p231) target = $region20
      $region19: #{bottleneck_csp_forward.4} parent=11 // pred_region
        _
      $region20: #{bottleneck_csp_forward.4} parent=11 // pred_fallthru
        _
      // Predicated region
      $region21: #{bottleneck_csp_forward.4} parent=11 // pred_check
        %p234 = pneg %p103
      $region22: #{bottleneck_csp_forward.4} parent=11 // pred_check_branch
        %236 = sbr.rel (%p234) target = $region24
      $region23: #{bottleneck_csp_forward.4} parent=11 // pred_region
        _
      $region24: #{bottleneck_csp_forward.4} parent=11 // pred_fallthru
        _
      // Predicated region
      $region25: #{bottleneck_csp_forward.4} parent=11 // pred_check
        %p237 = pneg %p124
      $region26: #{bottleneck_csp_forward.4} parent=11 // pred_check_branch
        %239 = sbr.rel (%p237) target = $region28
      $region27: #{bottleneck_csp_forward.4} parent=11 // pred_region
        _
      $region28: #{bottleneck_csp_forward.4} parent=11 // pred_fallthru
        _
      // Predicated region
      $region29: #{bottleneck_csp_forward.4} parent=11 // pred_check
        %p240 = pneg %p145
      $region30: #{bottleneck_csp_forward.4} parent=11 // pred_check_branch
        %242 = sbr.rel (%p240) target = $region32
      $region31: #{bottleneck_csp_forward.4} parent=11 // pred_region
        _
      $region32: #{bottleneck_csp_forward.4} parent=11 // pred_fallthru
        _
      // Predicated region
      $region33: #{bottleneck_csp_forward.4} parent=11 // pred_check
        %p243 = pneg %p166
      $region34: #{bottleneck_csp_forward.4} parent=11 // pred_check_branch
        %245 = sbr.rel (%p243) target = $region36
      $region35: #{bottleneck_csp_forward.4} parent=11 // pred_region
        _
      $region36: #{bottleneck_csp_forward.4} parent=11 // pred_fallthru
        _
      // Predicated region
      $region37: #{bottleneck_csp_forward.4} parent=11 // pred_check
        %p246 = pneg %p187
      $region38: #{bottleneck_csp_forward.4} parent=11 // pred_check_branch
        %248 = sbr.rel (%p246) target = $region40
      $region39: #{bottleneck_csp_forward.4} parent=11 // pred_region
        _
      $region40: #{bottleneck_csp_forward.4} parent=11 // pred_fallthru
        _
    $region12: #{bottleneck_csp_forward.4} parent=5 // pred_fallthru
      _
    %p249 = scmp.lt.s32.totalorder %s14, 2
    // Predicated region
    $region41: #{bottleneck_csp_forward.4} parent=5 // pred_check
      %p250 = pneg %p249
    $region42: #{bottleneck_csp_forward.4} parent=5 // pred_check_branch
      %252 = sbr.rel (%p250) target = $region44
    $region43: #{bottleneck_csp_forward.4} parent=5 // pred_region
      // Predicated region
      $region45: #{bottleneck_csp_forward.4} parent=43 // pred_check
        %p253 = pneg %p34
      $region46: #{bottleneck_csp_forward.4} parent=43 // pred_check_branch
        %255 = sbr.rel (%p253) target = $region48
      $region47: #{bottleneck_csp_forward.4} parent=43 // pred_region
        %p256 = scmp.lt.s32.totalorder %s14, 1
        %s257 = scalar_select %p256, %s14, 1
        %s258 = smul.addr %s257, 41
        %s259 = smul.addr %s258, 4
        %s260 = scalar_lea.vmem %s0, %s259
      $region48: #{bottleneck_csp_forward.4} parent=43 // pred_fallthru
        _
    $region44: #{bottleneck_csp_forward.4} parent=5 // pred_fallthru
      _
    %p261 = scmp.le.s32.totalorder 1, %s14
    %p262 = scmp.lt.s32.totalorder %s14, 3
    %p263 = pnand %p261, %p262
    %p264 = pneg %p263
    // Predicated region
    $region49: #{bottleneck_csp_forward.4} parent=5 // pred_check
      _
    $region50: #{bottleneck_csp_forward.4} parent=5 // pred_check_branch
      %266 = sbr.rel (%p263) target = $region52
    $region51: #{bottleneck_csp_forward.4} parent=5 // pred_region
      %s267 = ssub.s32 %s14, 1
      %p268 = scmp.lt.s32.totalorder %s19, 1
      %s269 = scalar_select %p268, %s19, 1
      %s270 = smul.addr %s269, 41
      %s271 = smul.addr %s270, 4
      %s272 = scalar_lea.vmem %s0, %s271
      %p273 = pneg %p40
      %p274 = pneg %p37
      %p275 = pneg %p61
      %p276 = pneg %p58
      %p277 = pneg %p82
      %p278 = pneg %p79
      %p279 = pneg %p103
      %p280 = pneg %p100
      %p281 = pneg %p124
      %p282 = pneg %p121
      %p283 = pneg %p145
      %p284 = pneg %p142
      %p285 = pneg %p166
      %p286 = pneg %p163
      %p287 = pneg %p187
      %p288 = pneg %p184
      %p289 = pneg %p213
      %p290 = pneg %p210
      %p291 = scmp.lt.s32.totalorder %s19, 1
      %s292 = scalar_select %p291, %s19, 1
      %s293 = smul.addr %s292, 36
      %s294 = smul.addr %s293, 4
      %s295 = scalar_lea.vmem %s8, %s294
      %p296 = scmp.lt.s32.totalorder %s19, 1
      %s297 = scalar_select %p296, %s19, 1
      %s298 = smul.addr %s297, 41
      %s299 = smul.addr %s298, 4
      %s300 = scalar_lea.vmem %s0, %s299
      %p301 = scmp.lt.s32.totalorder %s19, 1
      %s302 = scalar_select %p301, %s19, 1
      %s303 = smul.addr %s302, 36
      %s304 = smul.addr %s303, 4
      %s305 = scalar_lea.vmem %s8, %s304
      %v307 = vld [vmem:[%s300] sm:$0xf]
      %v308 = vld [vmem:[%s300 + $0x4] sm:$0xf]
      %v309 = vld [vmem:[%s300 + $0x8] sm:$0xf]
      %v310 = vld [vmem:[%s300 + $0xc] sm:$0xf]
      %v311 = vld [vmem:[%s300 + $0x10] sm:$0xf]
      %v312 = vld [vmem:[%s300 + $0x14] sm:$0xf]
      %v313 = vld [vmem:[%s300 + $0x18] sm:$0xf]
      %v314 = vld [vmem:[%s300 + $0x1c] sm:$0xf]
      %v315 = vld [vmem:[%s300 + $0x20] sm:$0xf]
      %v316 = vld [vmem:[%s300 + $0x24] sm:$0xf]
      %v317 = vld [vmem:[%s300 + $0x28] sm:$0xf]
      %v318 = vld [vmem:[%s300 + $0x2c] sm:$0xf]
      %v319 = vld [vmem:[%s300 + $0x30] sm:$0xf]
      %v320 = vld [vmem:[%s300 + $0x34] sm:$0xf]
      %v321 = vld [vmem:[%s300 + $0x38] sm:$0xf]
      %v322 = vld [vmem:[%s300 + $0x3c] sm:$0xf]
      %v323 = vld [vmem:[%s300 + $0x40] sm:$0xf]
      %v324 = vld [vmem:[%s300 + $0x44] sm:$0xf]
      %v325 = vld [vmem:[%s300 + $0x48] sm:$0xf]
      %v326 = vld [vmem:[%s300 + $0x4c] sm:$0xf]
      %v327 = vld [vmem:[%s300 + $0x50] sm:$0xf]
      %v328 = vld [vmem:[%s300 + $0x54] sm:$0xf]
      %v329 = vld [vmem:[%s300 + $0x58] sm:$0xf]
      %v330 = vld [vmem:[%s300 + $0x5c] sm:$0xf]
      %v331 = vld [vmem:[%s300 + $0x60] sm:$0xf]
      %v332 = vld [vmem:[%s300 + $0x64] sm:$0xf]
      %v333 = vld [vmem:[%s300 + $0x68] sm:$0xf]
      %v334 = vld [vmem:[%s300 + $0x6c] sm:$0xf]
      %v335 = vld [vmem:[%s300 + $0x70] sm:$0xf]
      %v336 = vld [vmem:[%s300 + $0x74] sm:$0xf]
      %v337 = vld [vmem:[%s300 + $0x78] sm:$0xf]
      %v338 = vld [vmem:[%s300 + $0x7c] sm:$0xf]
      %v339 = vld [vmem:[%s300 + $0x80] sm:$0xf]
      %v340 = vld [vmem:[%s300 + $0x84] sm:$0xf]
      %v341 = vld [vmem:[%s300 + $0x88] sm:$0xf]
      %v342 = vld [vmem:[%s300 + $0x8c] sm:$0xf]
      %v343 = vld [vmem:[%s300 + $0x90] sm:$0xf]
      %v344 = vld [vmem:[%s300 + $0x94] sm:$0xf]
      %v345 = vld [vmem:[%s300 + $0x98] sm:$0xf]
      %v346 = vld [vmem:[%s300 + $0x9c] sm:$0xf]
      %v347 = vld [vmem:[%s300 + $0xa0] sm:$0x7]
      %v348 = vld [vmem:[%s2] sm:$0xf]
      %v349 = vld [vmem:[%s2 + $0x4] sm:$0xf]
      %v350 = vld [vmem:[%s2 + $0x8] sm:$0xf]
      %v351 = vld [vmem:[%s2 + $0xc] sm:$0xf]
      %v352 = vld [vmem:[%s2 + $0x10] sm:$0xf]
      %v353 = vld [vmem:[%s2 + $0x14] sm:$0xf]
      %v354 = vld [vmem:[%s2 + $0x18] sm:$0xf]
      %v355 = vld [vmem:[%s2 + $0x1c] sm:$0xf]
      %v356 = vld [vmem:[%s2 + $0x20] sm:$0xf]
      %v357 = vld [vmem:[%s2 + $0x24] sm:$0xf]
      %v358 = vld [vmem:[%s2 + $0x28] sm:$0xf]
      %v359 = vld [vmem:[%s2 + $0x2c] sm:$0xf]
      %v360 = vld [vmem:[%s2 + $0x30] sm:$0xf]
      %v361 = vld [vmem:[%s2 + $0x34] sm:$0xf]
      %v362 = vld [vmem:[%s2 + $0x38] sm:$0xf]
      %v363 = vld [vmem:[%s2 + $0x3c] sm:$0xf]
      %v405 = vunpack.c.l.b16 %v307
      %v406 = vunpack.c.l.b16 %v308
      %v407 = vunpack.c.l.b16 %v309
      %v408 = vunpack.c.l.b16 %v310
      %v409 = vunpack.c.l.b16 %v311
      %v410 = vunpack.c.l.b16 %v312
      %v411 = vunpack.c.l.b16 %v313
      %v412 = vunpack.c.l.b16 %v314
      %v413 = vunpack.c.l.b16 %v315
      %v414 = vunpack.c.l.b16 %v316
      %v415 = vunpack.c.l.b16 %v317
      %v416 = vunpack.c.l.b16 %v318
      %v417 = vunpack.c.l.b16 %v319
      %v418 = vunpack.c.l.b16 %v320
      %v419 = vunpack.c.l.b16 %v321
      %v420 = vunpack.c.l.b16 %v322
      %v421 = vunpack.c.l.b16 %v323
      %v422 = vunpack.c.l.b16 %v324
      %v423 = vunpack.c.l.b16 %v325
      %v424 = vunpack.c.l.b16 %v326
      %v425 = vunpack.c.l.b16 %v327
      %v426 = vunpack.c.l.b16 %v328
      %v427 = vunpack.c.l.b16 %v329
      %v428 = vunpack.c.l.b16 %v330
      %v429 = vunpack.c.l.b16 %v331
      %v430 = vunpack.c.l.b16 %v332
      %v431 = vunpack.c.l.b16 %v333
      %v432 = vunpack.c.l.b16 %v334
      %v433 = vunpack.c.l.b16 %v335
      %v434 = vunpack.c.l.b16 %v336
      %v435 = vunpack.c.l.b16 %v337
      %v436 = vunpack.c.l.b16 %v338
      %v437 = vunpack.c.l.b16 %v339
      %v438 = vunpack.c.l.b16 %v340
      %v439 = vunpack.c.l.b16 %v341
      %v440 = vunpack.c.l.b16 %v342
      %v441 = vunpack.c.l.b16 %v343
      %v442 = vunpack.c.l.b16 %v344
      %v443 = vunpack.c.l.b16 %v345
      %v444 = vunpack.c.l.b16 %v346
      %v445 = vunpack.c.l.b16 %v347
      %v446 = vpack.c.b16 %v406, %v405
      %v447 = vpack.c.b16 %v408, %v407
      %v448 = vpack.c.b16 %v410, %v409
      %v449 = vpack.c.b16 %v412, %v411
      %v450 = vpack.c.b16 %v414, %v413
      %v451 = vpack.c.b16 %v416, %v415
      %v452 = vpack.c.b16 %v418, %v417
      %v453 = vpack.c.b16 %v420, %v419
      %v454 = vpack.c.b16 %v422, %v421
      %v455 = vpack.c.b16 %v424, %v423
      %v456 = vpack.c.b16 %v426, %v425
      %v457 = vpack.c.b16 %v428, %v427
      %v458 = vpack.c.b16 %v430, %v429
      %v459 = vpack.c.b16 %v432, %v431
      %v460 = vpack.c.b16 %v434, %v433
      %v461 = vpack.c.b16 %v436, %v435
      %v462 = vpack.c.b16 %v438, %v437
      %v463 = vpack.c.b16 %v440, %v439
      %v464 = vpack.c.b16 %v442, %v441
      %v465 = vpack.c.b16 %v444, %v443
      %v466 = vpack.c.b16 %v445, %v445
      %v504 = vunpack.c.l.b16 %v348
      %v505 = vunpack.c.l.b16 %v349
      %v506 = vunpack.c.l.b16 %v350
      %v507 = vunpack.c.l.b16 %v351
      %v508 = vunpack.c.l.b16 %v352
      %v509 = vunpack.c.l.b16 %v353
      %v510 = vunpack.c.l.b16 %v354
      %v511 = vunpack.c.l.b16 %v355
      %v512 = vunpack.c.l.b16 %v356
      %v513 = vunpack.c.l.b16 %v357
      %v514 = vunpack.c.l.b16 %v358
      %v515 = vunpack.c.l.b16 %v359
      %v516 = vunpack.c.l.b16 %v360
      %v517 = vunpack.c.l.b16 %v361
      %v518 = vunpack.c.l.b16 %v362
      %v519 = vunpack.c.l.b16 %v363
      %v520 = vpack.c.b16 %v505, %v504
      %v521 = vpack.c.b16 %v507, %v506
      %v522 = vpack.c.b16 %v509, %v508
      %v523 = vpack.c.b16 %v511, %v510
      %v524 = vpack.c.b16 %v513, %v512
      %v525 = vpack.c.b16 %v515, %v514
      %v526 = vpack.c.b16 %v517, %v516
      %v527 = vpack.c.b16 %v519, %v518
      %536 = vmatprep.subr.bf16.mxu0 0
      %537 = vmatpush1.bf16.msra.mxu0 %v527
      %538 = vmatprep.subr.bf16.mxu0 0
      %539 = vmatpush1.bf16.msra.mxu0 %v526
      %540 = vmatprep.subr.bf16.mxu0 0
      %541 = vmatpush1.bf16.msra.mxu0 %v525
      %542 = vmatprep.subr.bf16.mxu0 0
      %543 = vmatpush1.bf16.msra.mxu0 %v524
      %544 = vmatprep.subr.bf16.mxu0 0
      %545 = vmatpush1.bf16.msra.mxu0 %v523
      %546 = vmatprep.subr.bf16.mxu0 0
      %547 = vmatpush1.bf16.msra.mxu0 %v522
      %548 = vmatprep.subr.bf16.mxu0 0
      %549 = vmatpush1.bf16.msra.mxu0 %v521
      %550 = vmatprep.subr.bf16.mxu0 0
      %551 = vmatpush1.bf16.msra.mxu0 %v520
      %552 = vmatprep.subr.bf16.mxu0 0
      %553 = vmatpush2.bf16.msra.mxu0 0
      %554 = vmatprep.subr.bf16.mxu0 0
      %555 = vmatpush2.bf16.msra.mxu0 0
      %556 = vmatprep.subr.bf16.mxu0 0
      %557 = vmatpush2.bf16.msra.mxu0 0
      %558 = vmatprep.subr.bf16.mxu0 0
      %559 = vmatpush2.bf16.msra.mxu0 0
      %560 = vmatprep.subr.bf16.mxu0 0
      %561 = vmatpush2.bf16.msra.mxu0 0
      %562 = vmatprep.subr.bf16.mxu0 0
      %563 = vmatpush2.bf16.msra.mxu0 0
      %564 = vmatprep.subr.bf16.mxu0 0
      %565 = vmatpush2.bf16.msra.mxu0 0
      %566 = vmatprep.subr.bf16.mxu0 0
      %567 = vmatpush2.bf16.msra.mxu0 0
      %568 = vmatprep.mubr.bf16.mxu0 0
      %569 = vmatmul.mubr.bf16.gmra.mxu0 %v446
      %v570 = vpop.f32.mrf.mxu0
      %v571 = vadd.f32 0.0, %v570
      %v572 = vpop.f32.mrf.mxu0
      %v573 = vpop.f32.mrf.mxu0
      %v574 = vadd.f32 0.0, %v573
      %v575 = vpop.f32.mrf.mxu0
      %576 = vmatprep.mubr.bf16.mxu0 0
      %577 = vmatmul.mubr.bf16.gmra.mxu0 %v447
      %v578 = vpop.f32.mrf.mxu0
      %v579 = vadd.f32 0.0, %v578
      %v580 = vpop.f32.mrf.mxu0
      %v581 = vpop.f32.mrf.mxu0
      %v582 = vadd.f32 0.0, %v581
      %v583 = vpop.f32.mrf.mxu0
      %584 = vmatprep.mubr.bf16.mxu0 0
      %585 = vmatmul.mubr.bf16.gmra.mxu0 %v448
      %v586 = vpop.f32.mrf.mxu0
      %v587 = vadd.f32 0.0, %v586
      %v588 = vpop.f32.mrf.mxu0
      %v589 = vpop.f32.mrf.mxu0
      %v590 = vadd.f32 0.0, %v589
      %v591 = vpop.f32.mrf.mxu0
      %592 = vmatprep.mubr.bf16.mxu0 0
      %593 = vmatmul.mubr.bf16.gmra.mxu0 %v449
      %v594 = vpop.f32.mrf.mxu0
      %v595 = vadd.f32 0.0, %v594
      %v596 = vpop.f32.mrf.mxu0
      %v597 = vpop.f32.mrf.mxu0
      %v598 = vadd.f32 0.0, %v597
      %v599 = vpop.f32.mrf.mxu0
      %600 = vmatprep.mubr.bf16.mxu0 0
      %601 = vmatmul.mubr.bf16.gmra.mxu0 %v450
      %v602 = vpop.f32.mrf.mxu0
      %v603 = vadd.f32 0.0, %v602
      %v604 = vpop.f32.mrf.mxu0
      %v605 = vpop.f32.mrf.mxu0
      %v606 = vadd.f32 0.0, %v605
      %v607 = vpop.f32.mrf.mxu0
      %608 = vmatprep.mubr.bf16.mxu0 0
      %609 = vmatmul.mubr.bf16.gmra.mxu0 %v451
      %v610 = vpop.f32.mrf.mxu0
      %v611 = vadd.f32 0.0, %v610
      %v612 = vpop.f32.mrf.mxu0
      %v613 = vpop.f32.mrf.mxu0
      %v614 = vadd.f32 0.0, %v613
      %v615 = vpop.f32.mrf.mxu0
      %616 = vmatprep.mubr.bf16.mxu0 0
      %617 = vmatmul.mubr.bf16.gmra.mxu0 %v452
      %v618 = vpop.f32.mrf.mxu0
      %v619 = vadd.f32 0.0, %v618
      %v620 = vpop.f32.mrf.mxu0
      %v621 = vpop.f32.mrf.mxu0
      %v622 = vadd.f32 0.0, %v621
      %v623 = vpop.f32.mrf.mxu0
      %624 = vmatprep.mubr.bf16.mxu0 0
      %625 = vmatmul.mubr.bf16.gmra.mxu0 %v453
      %v626 = vpop.f32.mrf.mxu0
      %v627 = vadd.f32 0.0, %v626
      %v628 = vpop.f32.mrf.mxu0
      %v629 = vpop.f32.mrf.mxu0
      %v630 = vadd.f32 0.0, %v629
      %v631 = vpop.f32.mrf.mxu0
      %632 = vmatprep.mubr.bf16.mxu0 0
      %633 = vmatmul.mubr.bf16.gmra.mxu0 %v454
      %v634 = vpop.f32.mrf.mxu0
      %v635 = vadd.f32 0.0, %v634
      %v636 = vpop.f32.mrf.mxu0
      %v637 = vpop.f32.mrf.mxu0
      %v638 = vadd.f32 0.0, %v637
      %v639 = vpop.f32.mrf.mxu0
      %640 = vmatprep.mubr.bf16.mxu0 0
      %641 = vmatmul.mubr.bf16.gmra.mxu0 %v455
      %v642 = vpop.f32.mrf.mxu0
      %v643 = vadd.f32 0.0, %v642
      %v644 = vpop.f32.mrf.mxu0
      %v645 = vpop.f32.mrf.mxu0
      %v646 = vadd.f32 0.0, %v645
      %v647 = vpop.f32.mrf.mxu0
      %648 = vmatprep.mubr.bf16.mxu0 0
      %649 = vmatmul.mubr.bf16.gmra.mxu0 %v456
      %v650 = vpop.f32.mrf.mxu0
      %v651 = vadd.f32 0.0, %v650
      %v652 = vpop.f32.mrf.mxu0
      %v653 = vpop.f32.mrf.mxu0
      %v654 = vadd.f32 0.0, %v653
      %v655 = vpop.f32.mrf.mxu0
      %656 = vmatprep.mubr.bf16.mxu0 0
      %657 = vmatmul.mubr.bf16.gmra.mxu0 %v457
      %v658 = vpop.f32.mrf.mxu0
      %v659 = vadd.f32 0.0, %v658
      %v660 = vpop.f32.mrf.mxu0
      %v661 = vpop.f32.mrf.mxu0
      %v662 = vadd.f32 0.0, %v661
      %v663 = vpop.f32.mrf.mxu0
      %664 = vmatprep.mubr.bf16.mxu0 0
      %665 = vmatmul.mubr.bf16.gmra.mxu0 %v458
      %v666 = vpop.f32.mrf.mxu0
      %v667 = vadd.f32 0.0, %v666
      %v668 = vpop.f32.mrf.mxu0
      %v669 = vpop.f32.mrf.mxu0
      %v670 = vadd.f32 0.0, %v669
      %v671 = vpop.f32.mrf.mxu0
      %672 = vmatprep.mubr.bf16.mxu0 0
      %673 = vmatmul.mubr.bf16.gmra.mxu0 %v459
      %v674 = vpop.f32.mrf.mxu0
      %v675 = vadd.f32 0.0, %v674
      %v676 = vpop.f32.mrf.mxu0
      %v677 = vpop.f32.mrf.mxu0
      %v678 = vadd.f32 0.0, %v677
      %v679 = vpop.f32.mrf.mxu0
      %680 = vmatprep.mubr.bf16.mxu0 0
      %681 = vmatmul.mubr.bf16.gmra.mxu0 %v460
      %v682 = vpop.f32.mrf.mxu0
      %v683 = vadd.f32 0.0, %v682
      %v684 = vpop.f32.mrf.mxu0
      %v685 = vpop.f32.mrf.mxu0
      %v686 = vadd.f32 0.0, %v685
      %v687 = vpop.f32.mrf.mxu0
      %688 = vmatprep.mubr.bf16.mxu0 0
      %689 = vmatmul.mubr.bf16.gmra.mxu0 %v461
      %v690 = vpop.f32.mrf.mxu0
      %v691 = vadd.f32 0.0, %v690
      %v692 = vpop.f32.mrf.mxu0
      %v693 = vpop.f32.mrf.mxu0
      %v694 = vadd.f32 0.0, %v693
      %v695 = vpop.f32.mrf.mxu0
      %696 = vmatprep.mubr.bf16.mxu0 0
      %697 = vmatmul.mubr.bf16.gmra.mxu0 %v462
      %v698 = vpop.f32.mrf.mxu0
      %v699 = vadd.f32 0.0, %v698
      %v700 = vpop.f32.mrf.mxu0
      %v701 = vpop.f32.mrf.mxu0
      %v702 = vadd.f32 0.0, %v701
      %v703 = vpop.f32.mrf.mxu0
      %704 = vmatprep.mubr.bf16.mxu0 0
      %705 = vmatmul.mubr.bf16.gmra.mxu0 %v463
      %v706 = vpop.f32.mrf.mxu0
      %v707 = vadd.f32 0.0, %v706
      %v708 = vpop.f32.mrf.mxu0
      %v709 = vpop.f32.mrf.mxu0
      %v710 = vadd.f32 0.0, %v709
      %v711 = vpop.f32.mrf.mxu0
      %712 = vmatprep.mubr.bf16.mxu0 0
      %713 = vmatmul.mubr.bf16.gmra.mxu0 %v464
      %v714 = vpop.f32.mrf.mxu0
      %v715 = vadd.f32 0.0, %v714
      %v716 = vpop.f32.mrf.mxu0
      %v717 = vpop.f32.mrf.mxu0
      %v718 = vadd.f32 0.0, %v717
      %v719 = vpop.f32.mrf.mxu0
      %720 = vmatprep.mubr.bf16.mxu0 0
      %721 = vmatmul.mubr.bf16.gmra.mxu0 %v465
      %v722 = vpop.f32.mrf.mxu0
      %v723 = vadd.f32 0.0, %v722
      %v724 = vpop.f32.mrf.mxu0
      %v725 = vpop.f32.mrf.mxu0
      %v726 = vadd.f32 0.0, %v725
      %v727 = vpop.f32.mrf.mxu0
      %728 = vmatprep.mubr.bf16.mxu0 0
      %729 = vmatmul.mubr.bf16.gmra.mxu0 %v466
      %v730 = vpop.f32.mrf.mxu0
      %v731 = vadd.f32 0.0, %v730
      %v732 = vpop.f32.mrf.mxu0
      %v733 = vpop.f32.mrf.mxu0
      %v734 = vpop.f32.mrf.mxu0
      %735 = vdwg.mxu0
      %v736 = vld [vmem:[%s3] sm:$0x1]
      %v738 = vlaneseq
      %v739 = vshrl.u32 %v738, 7
      %v740 = vsub.s32 0, %v739
      %v741 = vrot.slane %v736, %v740
      %v743 = vmul.f32 %v571, %v741
      %v744 = vmul.f32 %v574, %v741
      %v745 = vmul.f32 %v579, %v741
      %v746 = vmul.f32 %v582, %v741
      %v747 = vmul.f32 %v587, %v741
      %v748 = vmul.f32 %v590, %v741
      %v749 = vmul.f32 %v595, %v741
      %v750 = vmul.f32 %v598, %v741
      %v751 = vmul.f32 %v603, %v741
      %v752 = vmul.f32 %v606, %v741
      %v753 = vmul.f32 %v611, %v741
      %v754 = vmul.f32 %v614, %v741
      %v755 = vmul.f32 %v619, %v741
      %v756 = vmul.f32 %v622, %v741
      %v757 = vmul.f32 %v627, %v741
      %v758 = vmul.f32 %v630, %v741
      %v759 = vmul.f32 %v635, %v741
      %v760 = vmul.f32 %v638, %v741
      %v761 = vmul.f32 %v643, %v741
      %v762 = vmul.f32 %v646, %v741
      %v763 = vmul.f32 %v651, %v741
      %v764 = vmul.f32 %v654, %v741
      %v765 = vmul.f32 %v659, %v741
      %v766 = vmul.f32 %v662, %v741
      %v767 = vmul.f32 %v667, %v741
      %v768 = vmul.f32 %v670, %v741
      %v769 = vmul.f32 %v675, %v741
      %v770 = vmul.f32 %v678, %v741
      %v771 = vmul.f32 %v683, %v741
      %v772 = vmul.f32 %v686, %v741
      %v773 = vmul.f32 %v691, %v741
      %v774 = vmul.f32 %v694, %v741
      %v775 = vmul.f32 %v699, %v741
      %v776 = vmul.f32 %v702, %v741
      %v777 = vmul.f32 %v707, %v741
      %v778 = vmul.f32 %v710, %v741
      %v779 = vmul.f32 %v715, %v741
      %v780 = vmul.f32 %v718, %v741
      %v781 = vmul.f32 %v723, %v741
      %v782 = vmul.f32 %v726, %v741
      %v783 = vmul.f32 %v731, %v741
      %v784 = vld [vmem:[%s4] sm:$0x1]
      %v786 = vlaneseq
      %v787 = vshrl.u32 %v786, 7
      %v788 = vsub.s32 0, %v787
      %v789 = vrot.slane %v784, %v788
      %v791 = vadd.f32 %v743, %v789
      %v792 = vadd.f32 %v744, %v789
      %v793 = vadd.f32 %v745, %v789
      %v794 = vadd.f32 %v746, %v789
      %v795 = vadd.f32 %v747, %v789
      %v796 = vadd.f32 %v748, %v789
      %v797 = vadd.f32 %v749, %v789
      %v798 = vadd.f32 %v750, %v789
      %v799 = vadd.f32 %v751, %v789
      %v800 = vadd.f32 %v752, %v789
      %v801 = vadd.f32 %v753, %v789
      %v802 = vadd.f32 %v754, %v789
      %v803 = vadd.f32 %v755, %v789
      %v804 = vadd.f32 %v756, %v789
      %v805 = vadd.f32 %v757, %v789
      %v806 = vadd.f32 %v758, %v789
      %v807 = vadd.f32 %v759, %v789
      %v808 = vadd.f32 %v760, %v789
      %v809 = vadd.f32 %v761, %v789
      %v810 = vadd.f32 %v762, %v789
      %v811 = vadd.f32 %v763, %v789
      %v812 = vadd.f32 %v764, %v789
      %v813 = vadd.f32 %v765, %v789
      %v814 = vadd.f32 %v766, %v789
      %v815 = vadd.f32 %v767, %v789
      %v816 = vadd.f32 %v768, %v789
      %v817 = vadd.f32 %v769, %v789
      %v818 = vadd.f32 %v770, %v789
      %v819 = vadd.f32 %v771, %v789
      %v820 = vadd.f32 %v772, %v789
      %v821 = vadd.f32 %v773, %v789
      %v822 = vadd.f32 %v774, %v789
      %v823 = vadd.f32 %v775, %v789
      %v824 = vadd.f32 %v776, %v789
      %v825 = vadd.f32 %v777, %v789
      %v826 = vadd.f32 %v778, %v789
      %v827 = vadd.f32 %v779, %v789
      %v828 = vadd.f32 %v780, %v789
      %v829 = vadd.f32 %v781, %v789
      %v830 = vadd.f32 %v782, %v789
      %v831 = vadd.f32 %v783, %v789
      %v832 = vsub.f32 0.0, %v791
      %v833 = vsub.f32 0.0, %v792
      %v834 = vsub.f32 0.0, %v793
      %v835 = vsub.f32 0.0, %v794
      %v836 = vsub.f32 0.0, %v795
      %v837 = vsub.f32 0.0, %v796
      %v838 = vsub.f32 0.0, %v797
      %v839 = vsub.f32 0.0, %v798
      %v840 = vsub.f32 0.0, %v799
      %v841 = vsub.f32 0.0, %v800
      %v842 = vsub.f32 0.0, %v801
      %v843 = vsub.f32 0.0, %v802
      %v844 = vsub.f32 0.0, %v803
      %v845 = vsub.f32 0.0, %v804
      %v846 = vsub.f32 0.0, %v805
      %v847 = vsub.f32 0.0, %v806
      %v848 = vsub.f32 0.0, %v807
      %v849 = vsub.f32 0.0, %v808
      %v850 = vsub.f32 0.0, %v809
      %v851 = vsub.f32 0.0, %v810
      %v852 = vsub.f32 0.0, %v811
      %v853 = vsub.f32 0.0, %v812
      %v854 = vsub.f32 0.0, %v813
      %v855 = vsub.f32 0.0, %v814
      %v856 = vsub.f32 0.0, %v815
      %v857 = vsub.f32 0.0, %v816
      %v858 = vsub.f32 0.0, %v817
      %v859 = vsub.f32 0.0, %v818
      %v860 = vsub.f32 0.0, %v819
      %v861 = vsub.f32 0.0, %v820
      %v862 = vsub.f32 0.0, %v821
      %v863 = vsub.f32 0.0, %v822
      %v864 = vsub.f32 0.0, %v823
      %v865 = vsub.f32 0.0, %v824
      %v866 = vsub.f32 0.0, %v825
      %v867 = vsub.f32 0.0, %v826
      %v868 = vsub.f32 0.0, %v827
      %v869 = vsub.f32 0.0, %v828
      %v870 = vsub.f32 0.0, %v829
      %v871 = vsub.f32 0.0, %v830
      %v872 = vsub.f32 0.0, %v831
      %v873 = vmul.f32 %v832, 1.442695
      %v874 = vpow.pop %v873
      %v875 = vmul.f32 %v833, 1.442695
      %v876 = vpow.pop %v875
      %v877 = vmul.f32 %v834, 1.442695
      %v878 = vpow.pop %v877
      %v879 = vmul.f32 %v835, 1.442695
      %v880 = vpow.pop %v879
      %v881 = vmul.f32 %v836, 1.442695
      %v882 = vpow.pop %v881
      %v883 = vmul.f32 %v837, 1.442695
      %v884 = vpow.pop %v883
      %v885 = vmul.f32 %v838, 1.442695
      %v886 = vpow.pop %v885
      %v887 = vmul.f32 %v839, 1.442695
      %v888 = vpow.pop %v887
      %v889 = vmul.f32 %v840, 1.442695
      %v890 = vpow.pop %v889
      %v891 = vmul.f32 %v841, 1.442695
      %v892 = vpow.pop %v891
      %v893 = vmul.f32 %v842, 1.442695
      %v894 = vpow.pop %v893
      %v895 = vmul.f32 %v843, 1.442695
      %v896 = vpow.pop %v895
      %v897 = vmul.f32 %v844, 1.442695
      %v898 = vpow.pop %v897
      %v899 = vmul.f32 %v845, 1.442695
      %v900 = vpow.pop %v899
      %v901 = vmul.f32 %v846, 1.442695
      %v902 = vpow.pop %v901
      %v903 = vmul.f32 %v847, 1.442695
      %v904 = vpow.pop %v903
      %v905 = vmul.f32 %v848, 1.442695
      %v906 = vpow.pop %v905
      %v907 = vmul.f32 %v849, 1.442695
      %v908 = vpow.pop %v907
      %v909 = vmul.f32 %v850, 1.442695
      %v910 = vpow.pop %v909
      %v911 = vmul.f32 %v851, 1.442695
      %v912 = vpow.pop %v911
      %v913 = vmul.f32 %v852, 1.442695
      %v914 = vpow.pop %v913
      %v915 = vmul.f32 %v853, 1.442695
      %v916 = vpow.pop %v915
      %v917 = vmul.f32 %v854, 1.442695
      %v918 = vpow.pop %v917
      %v919 = vmul.f32 %v855, 1.442695
      %v920 = vpow.pop %v919
      %v921 = vmul.f32 %v856, 1.442695
      %v922 = vpow.pop %v921
      %v923 = vmul.f32 %v857, 1.442695
      %v924 = vpow.pop %v923
      %v925 = vmul.f32 %v858, 1.442695
      %v926 = vpow.pop %v925
      %v927 = vmul.f32 %v859, 1.442695
      %v928 = vpow.pop %v927
      %v929 = vmul.f32 %v860, 1.442695
      %v930 = vpow.pop %v929
      %v931 = vmul.f32 %v861, 1.442695
      %v932 = vpow.pop %v931
      %v933 = vmul.f32 %v862, 1.442695
      %v934 = vpow.pop %v933
      %v935 = vmul.f32 %v863, 1.442695
      %v936 = vpow.pop %v935
      %v937 = vmul.f32 %v864, 1.442695
      %v938 = vpow.pop %v937
      %v939 = vmul.f32 %v865, 1.442695
      %v940 = vpow.pop %v939
      %v941 = vmul.f32 %v866, 1.442695
      %v942 = vpow.pop %v941
      %v943 = vmul.f32 %v867, 1.442695
      %v944 = vpow.pop %v943
      %v945 = vmul.f32 %v868, 1.442695
      %v946 = vpow.pop %v945
      %v947 = vmul.f32 %v869, 1.442695
      %v948 = vpow.pop %v947
      %v949 = vmul.f32 %v870, 1.442695
      %v950 = vpow.pop %v949
      %v951 = vmul.f32 %v871, 1.442695
      %v952 = vpow.pop %v951
      %v953 = vmul.f32 %v872, 1.442695
      %v954 = vpow.pop %v953
      %v955 = vadd.f32 %v874, 1.0
      %v956 = vadd.f32 %v876, 1.0
      %v957 = vadd.f32 %v878, 1.0
      %v958 = vadd.f32 %v880, 1.0
      %v959 = vadd.f32 %v882, 1.0
      %v960 = vadd.f32 %v884, 1.0
      %v961 = vadd.f32 %v886, 1.0
      %v962 = vadd.f32 %v888, 1.0
      %v963 = vadd.f32 %v890, 1.0
      %v964 = vadd.f32 %v892, 1.0
      %v965 = vadd.f32 %v894, 1.0
      %v966 = vadd.f32 %v896, 1.0
      %v967 = vadd.f32 %v898, 1.0
      %v968 = vadd.f32 %v900, 1.0
      %v969 = vadd.f32 %v902, 1.0
      %v970 = vadd.f32 %v904, 1.0
      %v971 = vadd.f32 %v906, 1.0
      %v972 = vadd.f32 %v908, 1.0
      %v973 = vadd.f32 %v910, 1.0
      %v974 = vadd.f32 %v912, 1.0
      %v975 = vadd.f32 %v914, 1.0
      %v976 = vadd.f32 %v916, 1.0
      %v977 = vadd.f32 %v918, 1.0
      %v978 = vadd.f32 %v920, 1.0
      %v979 = vadd.f32 %v922, 1.0
      %v980 = vadd.f32 %v924, 1.0
      %v981 = vadd.f32 %v926, 1.0
      %v982 = vadd.f32 %v928, 1.0
      %v983 = vadd.f32 %v930, 1.0
      %v984 = vadd.f32 %v932, 1.0
      %v985 = vadd.f32 %v934, 1.0
      %v986 = vadd.f32 %v936, 1.0
      %v987 = vadd.f32 %v938, 1.0
      %v988 = vadd.f32 %v940, 1.0
      %v989 = vadd.f32 %v942, 1.0
      %v990 = vadd.f32 %v944, 1.0
      %v991 = vadd.f32 %v946, 1.0
      %v992 = vadd.f32 %v948, 1.0
      %v993 = vadd.f32 %v950, 1.0
      %v994 = vadd.f32 %v952, 1.0
      %v995 = vadd.f32 %v954, 1.0
      %v996 = vrcp.pop %v955
      %v997 = vmul.f32 1.0, %v996
      %v998 = vrcp.pop %v956
      %v999 = vmul.f32 1.0, %v998
      %v1000 = vrcp.pop %v957
      %v1001 = vmul.f32 1.0, %v1000
      %v1002 = vrcp.pop %v958
      %v1003 = vmul.f32 1.0, %v1002
      %v1004 = vrcp.pop %v959
      %v1005 = vmul.f32 1.0, %v1004
      %v1006 = vrcp.pop %v960
      %v1007 = vmul.f32 1.0, %v1006
      %v1008 = vrcp.pop %v961
      %v1009 = vmul.f32 1.0, %v1008
      %v1010 = vrcp.pop %v962
      %v1011 = vmul.f32 1.0, %v1010
      %v1012 = vrcp.pop %v963
      %v1013 = vmul.f32 1.0, %v1012
      %v1014 = vrcp.pop %v964
      %v1015 = vmul.f32 1.0, %v1014
      %v1016 = vrcp.pop %v965
      %v1017 = vmul.f32 1.0, %v1016
      %v1018 = vrcp.pop %v966
      %v1019 = vmul.f32 1.0, %v1018
      %v1020 = vrcp.pop %v967
      %v1021 = vmul.f32 1.0, %v1020
      %v1022 = vrcp.pop %v968
      %v1023 = vmul.f32 1.0, %v1022
      %v1024 = vrcp.pop %v969
      %v1025 = vmul.f32 1.0, %v1024
      %v1026 = vrcp.pop %v970
      %v1027 = vmul.f32 1.0, %v1026
      %v1028 = vrcp.pop %v971
      %v1029 = vmul.f32 1.0, %v1028
      %v1030 = vrcp.pop %v972
      %v1031 = vmul.f32 1.0, %v1030
      %v1032 = vrcp.pop %v973
      %v1033 = vmul.f32 1.0, %v1032
      %v1034 = vrcp.pop %v974
      %v1035 = vmul.f32 1.0, %v1034
      %v1036 = vrcp.pop %v975
      %v1037 = vmul.f32 1.0, %v1036
      %v1038 = vrcp.pop %v976
      %v1039 = vmul.f32 1.0, %v1038
      %v1040 = vrcp.pop %v977
      %v1041 = vmul.f32 1.0, %v1040
      %v1042 = vrcp.pop %v978
      %v1043 = vmul.f32 1.0, %v1042
      %v1044 = vrcp.pop %v979
      %v1045 = vmul.f32 1.0, %v1044
      %v1046 = vrcp.pop %v980
      %v1047 = vmul.f32 1.0, %v1046
      %v1048 = vrcp.pop %v981
      %v1049 = vmul.f32 1.0, %v1048
      %v1050 = vrcp.pop %v982
      %v1051 = vmul.f32 1.0, %v1050
      %v1052 = vrcp.pop %v983
      %v1053 = vmul.f32 1.0, %v1052
      %v1054 = vrcp.pop %v984
      %v1055 = vmul.f32 1.0, %v1054
      %v1056 = vrcp.pop %v985
      %v1057 = vmul.f32 1.0, %v1056
      %v1058 = vrcp.pop %v986
      %v1059 = vmul.f32 1.0, %v1058
      %v1060 = vrcp.pop %v987
      %v1061 = vmul.f32 1.0, %v1060
      %v1062 = vrcp.pop %v988
      %v1063 = vmul.f32 1.0, %v1062
      %v1064 = vrcp.pop %v989
      %v1065 = vmul.f32 1.0, %v1064
      %v1066 = vrcp.pop %v990
      %v1067 = vmul.f32 1.0, %v1066
      %v1068 = vrcp.pop %v991
      %v1069 = vmul.f32 1.0, %v1068
      %v1070 = vrcp.pop %v992
      %v1071 = vmul.f32 1.0, %v1070
      %v1072 = vrcp.pop %v993
      %v1073 = vmul.f32 1.0, %v1072
      %v1074 = vrcp.pop %v994
      %v1075 = vmul.f32 1.0, %v1074
      %v1076 = vrcp.pop %v995
      %v1077 = vmul.f32 1.0, %v1076
      %v1078 = vmul.f32 %v791, %v997
      %v1079 = vmul.f32 %v792, %v999
      %v1080 = vmul.f32 %v793, %v1001
      %v1081 = vmul.f32 %v794, %v1003
      %v1082 = vmul.f32 %v795, %v1005
      %v1083 = vmul.f32 %v796, %v1007
      %v1084 = vmul.f32 %v797, %v1009
      %v1085 = vmul.f32 %v798, %v1011
      %v1086 = vmul.f32 %v799, %v1013
      %v1087 = vmul.f32 %v800, %v1015
      %v1088 = vmul.f32 %v801, %v1017
      %v1089 = vmul.f32 %v802, %v1019
      %v1090 = vmul.f32 %v803, %v1021
      %v1091 = vmul.f32 %v804, %v1023
      %v1092 = vmul.f32 %v805, %v1025
      %v1093 = vmul.f32 %v806, %v1027
      %v1094 = vmul.f32 %v807, %v1029
      %v1095 = vmul.f32 %v808, %v1031
      %v1096 = vmul.f32 %v809, %v1033
      %v1097 = vmul.f32 %v810, %v1035
      %v1098 = vmul.f32 %v811, %v1037
      %v1099 = vmul.f32 %v812, %v1039
      %v1100 = vmul.f32 %v813, %v1041
      %v1101 = vmul.f32 %v814, %v1043
      %v1102 = vmul.f32 %v815, %v1045
      %v1103 = vmul.f32 %v816, %v1047
      %v1104 = vmul.f32 %v817, %v1049
      %v1105 = vmul.f32 %v818, %v1051
      %v1106 = vmul.f32 %v819, %v1053
      %v1107 = vmul.f32 %v820, %v1055
      %v1108 = vmul.f32 %v821, %v1057
      %v1109 = vmul.f32 %v822, %v1059
      %v1110 = vmul.f32 %v823, %v1061
      %v1111 = vmul.f32 %v824, %v1063
      %v1112 = vmul.f32 %v825, %v1065
      %v1113 = vmul.f32 %v826, %v1067
      %v1114 = vmul.f32 %v827, %v1069
      %v1115 = vmul.f32 %v828, %v1071
      %v1116 = vmul.f32 %v829, %v1073
      %v1117 = vmul.f32 %v830, %v1075
      %v1118 = vmul.f32 %v831, %v1077
      %v1119 = vld [vmem:[%s1] sm:$0xff]
      %v1120 = vld [vmem:[%s1 + $0x8] sm:$0xff]
      %v1121 = vld [vmem:[%s1 + $0x10] sm:$0xff]
      %v1122 = vld [vmem:[%s1 + $0x18] sm:$0xff]
      %v1123 = vld [vmem:[%s1 + $0x20] sm:$0xff]
      %v1124 = vld [vmem:[%s1 + $0x28] sm:$0xff]
      %v1125 = vld [vmem:[%s1 + $0x30] sm:$0xff]
      %v1126 = vld [vmem:[%s1 + $0x38] sm:$0xff]
      %v1127 = vld [vmem:[%s1 + $0x40] sm:$0xff]
      %v1128 = vld [vmem:[%s1 + $0x48] sm:$0xff]
      %v1129 = vld [vmem:[%s1 + $0x50] sm:$0xff]
      %v1130 = vld [vmem:[%s1 + $0x58] sm:$0xff]
      %v1131 = vld [vmem:[%s1 + $0x60] sm:$0xff]
      %v1132 = vld [vmem:[%s1 + $0x68] sm:$0xff]
      %v1133 = vld [vmem:[%s1 + $0x70] sm:$0xff]
      %v1134 = vld [vmem:[%s1 + $0x78] sm:$0xff]
      %v1135 = vld [vmem:[%s1 + $0x80] sm:$0xff]
      %v1136 = vld [vmem:[%s1 + $0x88] sm:$0xff]
      %v1137 = vld [vmem:[%s1 + $0x90] sm:$0xff]
      %v1138 = vld [vmem:[%s1 + $0x98] sm:$0xff]
      %v1139 = vld [vmem:[%s1 + $0xa0] sm:$0xff]
      %v1140 = vld [vmem:[%s1 + $0xa8] sm:$0xff]
      %v1141 = vld [vmem:[%s1 + $0xb0] sm:$0xff]
      %v1142 = vld [vmem:[%s1 + $0xb8] sm:$0xff]
      %v1143 = vld [vmem:[%s1 + $0xc0] sm:$0xff]
      %v1144 = vld [vmem:[%s1 + $0xc8] sm:$0xff]
      %v1145 = vld [vmem:[%s1 + $0xd0] sm:$0xff]
      %v1146 = vld [vmem:[%s1 + $0xd8] sm:$0xff]
      %v1147 = vld [vmem:[%s1 + $0xe0] sm:$0xff]
      %v1148 = vld [vmem:[%s1 + $0xe8] sm:$0xff]
      %v1149 = vld [vmem:[%s1 + $0xf0] sm:$0xff]
      %v1150 = vld [vmem:[%s1 + $0xf8] sm:$0xff]
      %v1151 = vld [vmem:[%s1 + $0x100] sm:$0xff]
      %v1152 = vld [vmem:[%s1 + $0x108] sm:$0xff]
      %v1153 = vld [vmem:[%s1 + $0x110] sm:$0xff]
      %v1154 = vld [vmem:[%s1 + $0x118] sm:$0xff]
      %v1155 = vld [vmem:[%s1 + $0x120] sm:$0xff]
      %v1156 = vld [vmem:[%s1 + $0x128] sm:$0xff]
      %v1157 = vld [vmem:[%s1 + $0x130] sm:$0xff]
      %v1158 = vld [vmem:[%s1 + $0x138] sm:$0xff]
      %v1159 = vld [vmem:[%s1 + $0x140] sm:$0x3f]
      %1161 = vset.pattern.permute.xlu0 0
      %1162 = vperm.xlu0 %1161, %v1119
      %v1163 = vpop.permute.xlu0 %1162
      %1166 = vset.pattern.permute.xlu0 0
      %1167 = vperm.xlu0 %1166, %v1120
      %v1168 = vpop.permute.xlu0 %1167
      %1171 = vset.pattern.permute.xlu0 0
      %1172 = vperm.xlu0 %1171, %v1121
      %v1173 = vpop.permute.xlu0 %1172
      %1176 = vset.pattern.permute.xlu0 0
      %1177 = vperm.xlu0 %1176, %v1122
      %v1178 = vpop.permute.xlu0 %1177
      %1181 = vset.pattern.permute.xlu0 0
      %1182 = vperm.xlu0 %1181, %v1123
      %v1183 = vpop.permute.xlu0 %1182
      %1186 = vset.pattern.permute.xlu0 0
      %1187 = vperm.xlu0 %1186, %v1124
      %v1188 = vpop.permute.xlu0 %1187
      %1191 = vset.pattern.permute.xlu0 0
      %1192 = vperm.xlu0 %1191, %v1125
      %v1193 = vpop.permute.xlu0 %1192
      %1196 = vset.pattern.permute.xlu0 0
      %1197 = vperm.xlu0 %1196, %v1126
      %v1198 = vpop.permute.xlu0 %1197
      %1201 = vset.pattern.permute.xlu0 0
      %1202 = vperm.xlu0 %1201, %v1127
      %v1203 = vpop.permute.xlu0 %1202
      %1206 = vset.pattern.permute.xlu0 0
      %1207 = vperm.xlu0 %1206, %v1128
      %v1208 = vpop.permute.xlu0 %1207
      %1211 = vset.pattern.permute.xlu0 0
      %1212 = vperm.xlu0 %1211, %v1129
      %v1213 = vpop.permute.xlu0 %1212
      %1216 = vset.pattern.permute.xlu0 0
      %1217 = vperm.xlu0 %1216, %v1130
      %v1218 = vpop.permute.xlu0 %1217
      %1221 = vset.pattern.permute.xlu0 0
      %1222 = vperm.xlu0 %1221, %v1131
      %v1223 = vpop.permute.xlu0 %1222
      %1226 = vset.pattern.permute.xlu0 0
      %1227 = vperm.xlu0 %1226, %v1132
      %v1228 = vpop.permute.xlu0 %1227
      %1231 = vset.pattern.permute.xlu0 0
      %1232 = vperm.xlu0 %1231, %v1133
      %v1233 = vpop.permute.xlu0 %1232
      %1236 = vset.pattern.permute.xlu0 0
      %1237 = vperm.xlu0 %1236, %v1134
      %v1238 = vpop.permute.xlu0 %1237
      %1241 = vset.pattern.permute.xlu0 0
      %1242 = vperm.xlu0 %1241, %v1135
      %v1243 = vpop.permute.xlu0 %1242
      %1246 = vset.pattern.permute.xlu0 0
      %1247 = vperm.xlu0 %1246, %v1136
      %v1248 = vpop.permute.xlu0 %1247
      %1251 = vset.pattern.permute.xlu0 0
      %1252 = vperm.xlu0 %1251, %v1137
      %v1253 = vpop.permute.xlu0 %1252
      %1256 = vset.pattern.permute.xlu0 0
      %1257 = vperm.xlu0 %1256, %v1138
      %v1258 = vpop.permute.xlu0 %1257
      %1261 = vset.pattern.permute.xlu0 0
      %1262 = vperm.xlu0 %1261, %v1139
      %v1263 = vpop.permute.xlu0 %1262
      %1266 = vset.pattern.permute.xlu0 0
      %1267 = vperm.xlu0 %1266, %v1140
      %v1268 = vpop.permute.xlu0 %1267
      %1271 = vset.pattern.permute.xlu0 0
      %1272 = vperm.xlu0 %1271, %v1141
      %v1273 = vpop.permute.xlu0 %1272
      %1276 = vset.pattern.permute.xlu0 0
      %1277 = vperm.xlu0 %1276, %v1142
      %v1278 = vpop.permute.xlu0 %1277
      %1281 = vset.pattern.permute.xlu0 0
      %1282 = vperm.xlu0 %1281, %v1143
      %v1283 = vpop.permute.xlu0 %1282
      %1286 = vset.pattern.permute.xlu0 0
      %1287 = vperm.xlu0 %1286, %v1144
      %v1288 = vpop.permute.xlu0 %1287
      %1291 = vset.pattern.permute.xlu0 0
      %1292 = vperm.xlu0 %1291, %v1145
      %v1293 = vpop.permute.xlu0 %1292
      %1296 = vset.pattern.permute.xlu0 0
      %1297 = vperm.xlu0 %1296, %v1146
      %v1298 = vpop.permute.xlu0 %1297
      %1301 = vset.pattern.permute.xlu0 0
      %1302 = vperm.xlu0 %1301, %v1147
      %v1303 = vpop.permute.xlu0 %1302
      %1306 = vset.pattern.permute.xlu0 0
      %1307 = vperm.xlu0 %1306, %v1148
      %v1308 = vpop.permute.xlu0 %1307
      %1311 = vset.pattern.permute.xlu0 0
      %1312 = vperm.xlu0 %1311, %v1149
      %v1313 = vpop.permute.xlu0 %1312
      %1316 = vset.pattern.permute.xlu0 0
      %1317 = vperm.xlu0 %1316, %v1150
      %v1318 = vpop.permute.xlu0 %1317
      %1321 = vset.pattern.permute.xlu0 0
      %1322 = vperm.xlu0 %1321, %v1151
      %v1323 = vpop.permute.xlu0 %1322
      %1326 = vset.pattern.permute.xlu0 0
      %1327 = vperm.xlu0 %1326, %v1152
      %v1328 = vpop.permute.xlu0 %1327
      %1331 = vset.pattern.permute.xlu0 0
      %1332 = vperm.xlu0 %1331, %v1153
      %v1333 = vpop.permute.xlu0 %1332
      %1336 = vset.pattern.permute.xlu0 0
      %1337 = vperm.xlu0 %1336, %v1154
      %v1338 = vpop.permute.xlu0 %1337
      %1341 = vset.pattern.permute.xlu0 0
      %1342 = vperm.xlu0 %1341, %v1155
      %v1343 = vpop.permute.xlu0 %1342
      %1346 = vset.pattern.permute.xlu0 0
      %1347 = vperm.xlu0 %1346, %v1156
      %v1348 = vpop.permute.xlu0 %1347
      %1351 = vset.pattern.permute.xlu0 0
      %1352 = vperm.xlu0 %1351, %v1157
      %v1353 = vpop.permute.xlu0 %1352
      %1356 = vset.pattern.permute.xlu0 0
      %1357 = vperm.xlu0 %1356, %v1158
      %v1358 = vpop.permute.xlu0 %1357
      %1361 = vset.pattern.permute.xlu0 0
      %1362 = vperm.xlu0 %1361, %v1159
      %v1363 = vpop.permute.xlu0 %1362
      %v1365 = vmul.f32 %v1078, %v1163
      %v1366 = vmul.f32 %v1079, %v1168
      %v1367 = vmul.f32 %v1080, %v1173
      %v1368 = vmul.f32 %v1081, %v1178
      %v1369 = vmul.f32 %v1082, %v1183
      %v1370 = vmul.f32 %v1083, %v1188
      %v1371 = vmul.f32 %v1084, %v1193
      %v1372 = vmul.f32 %v1085, %v1198
      %v1373 = vmul.f32 %v1086, %v1203
      %v1374 = vmul.f32 %v1087, %v1208
      %v1375 = vmul.f32 %v1088, %v1213
      %v1376 = vmul.f32 %v1089, %v1218
      %v1377 = vmul.f32 %v1090, %v1223
      %v1378 = vmul.f32 %v1091, %v1228
      %v1379 = vmul.f32 %v1092, %v1233
      %v1380 = vmul.f32 %v1093, %v1238
      %v1381 = vmul.f32 %v1094, %v1243
      %v1382 = vmul.f32 %v1095, %v1248
      %v1383 = vmul.f32 %v1096, %v1253
      %v1384 = vmul.f32 %v1097, %v1258
      %v1385 = vmul.f32 %v1098, %v1263
      %v1386 = vmul.f32 %v1099, %v1268
      %v1387 = vmul.f32 %v1100, %v1273
      %v1388 = vmul.f32 %v1101, %v1278
      %v1389 = vmul.f32 %v1102, %v1283
      %v1390 = vmul.f32 %v1103, %v1288
      %v1391 = vmul.f32 %v1104, %v1293
      %v1392 = vmul.f32 %v1105, %v1298
      %v1393 = vmul.f32 %v1106, %v1303
      %v1394 = vmul.f32 %v1107, %v1308
      %v1395 = vmul.f32 %v1108, %v1313
      %v1396 = vmul.f32 %v1109, %v1318
      %v1397 = vmul.f32 %v1110, %v1323
      %v1398 = vmul.f32 %v1111, %v1328
      %v1399 = vmul.f32 %v1112, %v1333
      %v1400 = vmul.f32 %v1113, %v1338
      %v1401 = vmul.f32 %v1114, %v1343
      %v1402 = vmul.f32 %v1115, %v1348
      %v1403 = vmul.f32 %v1116, %v1353
      %v1404 = vmul.f32 %v1117, %v1358
      %v1405 = vmul.f32 %v1118, %v1363
      %v1406 = vpack.c.bf16 %v1366, %v1365
      %v1407 = vpack.c.bf16 %v1368, %v1367
      %v1408 = vpack.c.bf16 %v1370, %v1369
      %v1409 = vpack.c.bf16 %v1372, %v1371
      %v1410 = vpack.c.bf16 %v1374, %v1373
      %v1411 = vpack.c.bf16 %v1376, %v1375
      %v1412 = vpack.c.bf16 %v1378, %v1377
      %v1413 = vpack.c.bf16 %v1380, %v1379
      %v1414 = vpack.c.bf16 %v1382, %v1381
      %v1415 = vpack.c.bf16 %v1384, %v1383
      %v1416 = vpack.c.bf16 %v1386, %v1385
      %v1417 = vpack.c.bf16 %v1388, %v1387
      %v1418 = vpack.c.bf16 %v1390, %v1389
      %v1419 = vpack.c.bf16 %v1392, %v1391
      %v1420 = vpack.c.bf16 %v1394, %v1393
      %v1421 = vpack.c.bf16 %v1396, %v1395
      %v1422 = vpack.c.bf16 %v1398, %v1397
      %v1423 = vpack.c.bf16 %v1400, %v1399
      %v1424 = vld [vmem:[%s5] sm:$0xf]
      %v1425 = vld [vmem:[%s5 + $0x4] sm:$0xf]
      %v1426 = vld [vmem:[%s5 + $0x8] sm:$0xf]
      %v1427 = vld [vmem:[%s5 + $0xc] sm:$0xf]
      %v1428 = vld [vmem:[%s5 + $0x10] sm:$0xf]
      %v1429 = vld [vmem:[%s5 + $0x14] sm:$0xf]
      %v1430 = vld [vmem:[%s5 + $0x18] sm:$0xf]
      %v1431 = vld [vmem:[%s5 + $0x1c] sm:$0xf]
      %v1432 = vld [vmem:[%s5 + $0x20] sm:$0xf]
      %v1433 = vld [vmem:[%s5 + $0x24] sm:$0xf]
      %v1434 = vld [vmem:[%s5 + $0x28] sm:$0xf]
      %v1435 = vld [vmem:[%s5 + $0x2c] sm:$0xf]
      %v1436 = vld [vmem:[%s5 + $0x30] sm:$0xf]
      %v1437 = vld [vmem:[%s5 + $0x34] sm:$0xf]
      %v1438 = vld [vmem:[%s5 + $0x38] sm:$0xf]
      %v1439 = vld [vmem:[%s5 + $0x3c] sm:$0xf]
      %v1440 = vpack.c.bf16 %v1401, %v1401
      %s1441 = scalar_lea.vmem %s5, 64
      %v1442 = vld [vmem:[%s1441] sm:$0xf]
      %v1443 = vld [vmem:[%s1441 + $0x4] sm:$0xf]
      %v1444 = vld [vmem:[%s1441 + $0x8] sm:$0xf]
      %v1445 = vld [vmem:[%s1441 + $0xc] sm:$0xf]
      %v1446 = vld [vmem:[%s1441 + $0x10] sm:$0xf]
      %v1447 = vld [vmem:[%s1441 + $0x14] sm:$0xf]
      %v1448 = vld [vmem:[%s1441 + $0x18] sm:$0xf]
      %v1449 = vld [vmem:[%s1441 + $0x1c] sm:$0xf]
      %v1450 = vld [vmem:[%s1441 + $0x20] sm:$0xf]
      %v1451 = vld [vmem:[%s1441 + $0x24] sm:$0xf]
      %v1452 = vld [vmem:[%s1441 + $0x28] sm:$0xf]
      %v1453 = vld [vmem:[%s1441 + $0x2c] sm:$0xf]
      %v1454 = vld [vmem:[%s1441 + $0x30] sm:$0xf]
      %v1455 = vld [vmem:[%s1441 + $0x34] sm:$0xf]
      %v1456 = vld [vmem:[%s1441 + $0x38] sm:$0xf]
      %v1457 = vld [vmem:[%s1441 + $0x3c] sm:$0xf]
      %vm1458 = vsmask.f32 7424
      %v1460 = vshrl.u32 %v1406, 16
      %v1462 = vshll.u32 %v1406, 16
      %v1464 = vrot.slane %v1462, 1
      %v1465 = vor.u32 %v1460, %v1464
      %v1467 = vshll.u32 %v1407, 16
      %v1469 = vrot.slane %v1467, 1
      %v1470 = vsel %vm1458, %v1465, %v1469
      %v1471 = vshrl.u32 %v1407, 16
      %v1473 = vor.u32 %v1471, %v1469
      %v1475 = vshll.u32 %v1408, 16
      %v1477 = vrot.slane %v1475, 1
      %v1478 = vsel %vm1458, %v1473, %v1477
      %v1479 = vshrl.u32 %v1408, 16
      %v1481 = vor.u32 %v1479, %v1477
      %v1483 = vshll.u32 %v1409, 16
      %v1485 = vrot.slane %v1483, 1
      %v1486 = vsel %vm1458, %v1481, %v1485
      %v1487 = vshrl.u32 %v1409, 16
      %v1489 = vor.u32 %v1487, %v1485
      %v1491 = vshll.u32 %v1410, 16
      %v1493 = vrot.slane %v1491, 1
      %v1494 = vsel %vm1458, %v1489, %v1493
      %v1495 = vshrl.u32 %v1410, 16
      %v1497 = vor.u32 %v1495, %v1493
      %v1499 = vshll.u32 %v1411, 16
      %v1501 = vrot.slane %v1499, 1
      %v1502 = vsel %vm1458, %v1497, %v1501
      %v1503 = vshrl.u32 %v1411, 16
      %v1505 = vor.u32 %v1503, %v1501
      %v1507 = vshll.u32 %v1412, 16
      %v1509 = vrot.slane %v1507, 1
      %v1510 = vsel %vm1458, %v1505, %v1509
      %v1511 = vshrl.u32 %v1412, 16
      %v1513 = vor.u32 %v1511, %v1509
      %v1515 = vshll.u32 %v1413, 16
      %v1517 = vrot.slane %v1515, 1
      %v1518 = vsel %vm1458, %v1513, %v1517
      %v1519 = vshrl.u32 %v1413, 16
      %v1521 = vor.u32 %v1519, %v1517
      %v1523 = vshll.u32 %v1414, 16
      %v1525 = vrot.slane %v1523, 1
      %v1526 = vsel %vm1458, %v1521, %v1525
      %v1527 = vshrl.u32 %v1414, 16
      %v1529 = vor.u32 %v1527, %v1525
      %v1531 = vshll.u32 %v1415, 16
      %v1533 = vrot.slane %v1531, 1
      %v1534 = vsel %vm1458, %v1529, %v1533
      %v1535 = vshrl.u32 %v1415, 16
      %v1537 = vor.u32 %v1535, %v1533
      %v1539 = vshll.u32 %v1416, 16
      %v1541 = vrot.slane %v1539, 1
      %v1542 = vsel %vm1458, %v1537, %v1541
      %v1543 = vshrl.u32 %v1416, 16
      %v1545 = vor.u32 %v1543, %v1541
      %v1547 = vshll.u32 %v1417, 16
      %v1549 = vrot.slane %v1547, 1
      %v1550 = vsel %vm1458, %v1545, %v1549
      %v1551 = vshrl.u32 %v1417, 16
      %v1553 = vor.u32 %v1551, %v1549
      %v1555 = vshll.u32 %v1418, 16
      %v1557 = vrot.slane %v1555, 1
      %v1558 = vsel %vm1458, %v1553, %v1557
      %v1559 = vshrl.u32 %v1418, 16
      %v1561 = vor.u32 %v1559, %v1557
      %v1563 = vshll.u32 %v1419, 16
      %v1565 = vrot.slane %v1563, 1
      %v1566 = vsel %vm1458, %v1561, %v1565
      %v1567 = vshrl.u32 %v1419, 16
      %v1569 = vor.u32 %v1567, %v1565
      %v1571 = vshll.u32 %v1420, 16
      %v1573 = vrot.slane %v1571, 1
      %v1574 = vsel %vm1458, %v1569, %v1573
      %v1575 = vshrl.u32 %v1420, 16
      %v1577 = vor.u32 %v1575, %v1573
      %v1579 = vshll.u32 %v1421, 16
      %v1581 = vrot.slane %v1579, 1
      %v1582 = vsel %vm1458, %v1577, %v1581
      %v1583 = vshrl.u32 %v1421, 16
      %v1585 = vor.u32 %v1583, %v1581
      %v1587 = vshll.u32 %v1422, 16
      %v1589 = vrot.slane %v1587, 1
      %v1590 = vsel %vm1458, %v1585, %v1589
      %v1591 = vshrl.u32 %v1422, 16
      %v1593 = vor.u32 %v1591, %v1589
      %v1595 = vshll.u32 %v1423, 16
      %v1597 = vrot.slane %v1595, 1
      %v1598 = vsel %vm1458, %v1593, %v1597
      %v1599 = vshrl.u32 %v1423, 16
      %v1601 = vor.u32 %v1599, %v1597
      %v1603 = vshll.u32 %v1440, 16
      %v1605 = vrot.slane %v1603, 1
      %v1606 = vsel %vm1458, %v1601, %v1605
      %v1641 = vunpack.c.l.b16 %v1442
      %v1642 = vunpack.c.l.b16 %v1443
      %v1643 = vunpack.c.l.b16 %v1444
      %v1644 = vunpack.c.l.b16 %v1445
      %v1645 = vunpack.c.l.b16 %v1446
      %v1646 = vunpack.c.l.b16 %v1447
      %v1647 = vunpack.c.l.b16 %v1448
      %v1648 = vunpack.c.l.b16 %v1449
      %v1649 = vunpack.c.l.b16 %v1450
      %v1650 = vunpack.c.l.b16 %v1451
      %v1651 = vunpack.c.l.b16 %v1452
      %v1652 = vunpack.c.l.b16 %v1453
      %v1653 = vunpack.c.l.b16 %v1454
      %v1654 = vunpack.c.l.b16 %v1455
      %v1655 = vunpack.c.l.b16 %v1456
      %v1656 = vunpack.c.l.b16 %v1457
      %v1657 = vpack.c.b16 %v1642, %v1641
      %v1658 = vpack.c.b16 %v1644, %v1643
      %v1659 = vpack.c.b16 %v1646, %v1645
      %v1660 = vpack.c.b16 %v1648, %v1647
      %v1661 = vpack.c.b16 %v1650, %v1649
      %v1662 = vpack.c.b16 %v1652, %v1651
      %v1663 = vpack.c.b16 %v1654, %v1653
      %v1664 = vpack.c.b16 %v1656, %v1655
      %1673 = vmatprep.subr.bf16.mxu0 0
      %1674 = vmatpush1.bf16.msra.mxu0 %v1664
      %1675 = vmatprep.subr.bf16.mxu0 0
      %1676 = vmatpush1.bf16.msra.mxu0 %v1663
      %1677 = vmatprep.subr.bf16.mxu0 0
      %1678 = vmatpush1.bf16.msra.mxu0 %v1662
      %1679 = vmatprep.subr.bf16.mxu0 0
      %1680 = vmatpush1.bf16.msra.mxu0 %v1661
      %1681 = vmatprep.subr.bf16.mxu0 0
      %1682 = vmatpush1.bf16.msra.mxu0 %v1660
      %1683 = vmatprep.subr.bf16.mxu0 0
      %1684 = vmatpush1.bf16.msra.mxu0 %v1659
      %1685 = vmatprep.subr.bf16.mxu0 0
      %1686 = vmatpush1.bf16.msra.mxu0 %v1658
      %1687 = vmatprep.subr.bf16.mxu0 0
      %1688 = vmatpush1.bf16.msra.mxu0 %v1657
      %1689 = vmatprep.subr.bf16.mxu0 0
      %1690 = vmatpush2.bf16.msra.mxu0 0
      %1691 = vmatprep.subr.bf16.mxu0 0
      %1692 = vmatpush2.bf16.msra.mxu0 0
      %1693 = vmatprep.subr.bf16.mxu0 0
      %1694 = vmatpush2.bf16.msra.mxu0 0
      %1695 = vmatprep.subr.bf16.mxu0 0
      %1696 = vmatpush2.bf16.msra.mxu0 0
      %1697 = vmatprep.subr.bf16.mxu0 0
      %1698 = vmatpush2.bf16.msra.mxu0 0
      %1699 = vmatprep.subr.bf16.mxu0 0
      %1700 = vmatpush2.bf16.msra.mxu0 0
      %1701 = vmatprep.subr.bf16.mxu0 0
      %1702 = vmatpush2.bf16.msra.mxu0 0
      %1703 = vmatprep.subr.bf16.mxu0 0
      %1704 = vmatpush2.bf16.msra.mxu0 0
      %1705 = vmatprep.mubr.bf16.mxu0 0
      %1706 = vmatmul.mubr.bf16.gmra.mxu0 %v1470
      %v1707 = vpop.f32.mrf.mxu0
      %v1708 = vadd.f32 0.0, %v1707
      %v1709 = vpop.f32.mrf.mxu0
      %v1710 = vpop.f32.mrf.mxu0
      %v1711 = vadd.f32 0.0, %v1710
      %v1712 = vpop.f32.mrf.mxu0
      %1713 = vmatprep.mubr.bf16.mxu0 0
      %1714 = vmatmul.mubr.bf16.gmra.mxu0 %v1478
      %v1715 = vpop.f32.mrf.mxu0
      %v1716 = vadd.f32 0.0, %v1715
      %v1717 = vpop.f32.mrf.mxu0
      %v1718 = vpop.f32.mrf.mxu0
      %v1719 = vadd.f32 0.0, %v1718
      %v1720 = vpop.f32.mrf.mxu0
      %1721 = vmatprep.mubr.bf16.mxu0 0
      %1722 = vmatmul.mubr.bf16.gmra.mxu0 %v1486
      %v1723 = vpop.f32.mrf.mxu0
      %v1724 = vadd.f32 0.0, %v1723
      %v1725 = vpop.f32.mrf.mxu0
      %v1726 = vpop.f32.mrf.mxu0
      %v1727 = vadd.f32 0.0, %v1726
      %v1728 = vpop.f32.mrf.mxu0
      %1729 = vmatprep.mubr.bf16.mxu0 0
      %1730 = vmatmul.mubr.bf16.gmra.mxu0 %v1494
      %v1731 = vpop.f32.mrf.mxu0
      %v1732 = vadd.f32 0.0, %v1731
      %v1733 = vpop.f32.mrf.mxu0
      %v1734 = vpop.f32.mrf.mxu0
      %v1735 = vadd.f32 0.0, %v1734
      %v1736 = vpop.f32.mrf.mxu0
      %1737 = vmatprep.mubr.bf16.mxu0 0
      %1738 = vmatmul.mubr.bf16.gmra.mxu0 %v1502
      %v1739 = vpop.f32.mrf.mxu0
      %v1740 = vadd.f32 0.0, %v1739
      %v1741 = vpop.f32.mrf.mxu0
      %v1742 = vpop.f32.mrf.mxu0
      %v1743 = vadd.f32 0.0, %v1742
      %v1744 = vpop.f32.mrf.mxu0
      %1745 = vmatprep.mubr.bf16.mxu0 0
      %1746 = vmatmul.mubr.bf16.gmra.mxu0 %v1510
      %v1747 = vpop.f32.mrf.mxu0
      %v1748 = vadd.f32 0.0, %v1747
      %v1749 = vpop.f32.mrf.mxu0
      %v1750 = vpop.f32.mrf.mxu0
      %v1751 = vadd.f32 0.0, %v1750
      %v1752 = vpop.f32.mrf.mxu0
      %1753 = vmatprep.mubr.bf16.mxu0 0
      %1754 = vmatmul.mubr.bf16.gmra.mxu0 %v1518
      %v1755 = vpop.f32.mrf.mxu0
      %v1756 = vadd.f32 0.0, %v1755
      %v1757 = vpop.f32.mrf.mxu0
      %v1758 = vpop.f32.mrf.mxu0
      %v1759 = vadd.f32 0.0, %v1758
      %v1760 = vpop.f32.mrf.mxu0
      %1761 = vmatprep.mubr.bf16.mxu0 0
      %1762 = vmatmul.mubr.bf16.gmra.mxu0 %v1526
      %v1763 = vpop.f32.mrf.mxu0
      %v1764 = vadd.f32 0.0, %v1763
      %v1765 = vpop.f32.mrf.mxu0
      %v1766 = vpop.f32.mrf.mxu0
      %v1767 = vadd.f32 0.0, %v1766
      %v1768 = vpop.f32.mrf.mxu0
      %1769 = vmatprep.mubr.bf16.mxu0 0
      %1770 = vmatmul.mubr.bf16.gmra.mxu0 %v1534
      %v1771 = vpop.f32.mrf.mxu0
      %v1772 = vadd.f32 0.0, %v1771
      %v1773 = vpop.f32.mrf.mxu0
      %v1774 = vpop.f32.mrf.mxu0
      %v1775 = vadd.f32 0.0, %v1774
      %v1776 = vpop.f32.mrf.mxu0
      %1777 = vmatprep.mubr.bf16.mxu0 0
      %1778 = vmatmul.mubr.bf16.gmra.mxu0 %v1542
      %v1779 = vpop.f32.mrf.mxu0
      %v1780 = vadd.f32 0.0, %v1779
      %v1781 = vpop.f32.mrf.mxu0
      %v1782 = vpop.f32.mrf.mxu0
      %v1783 = vadd.f32 0.0, %v1782
      %v1784 = vpop.f32.mrf.mxu0
      %1785 = vmatprep.mubr.bf16.mxu0 0
      %1786 = vmatmul.mubr.bf16.gmra.mxu0 %v1550
      %v1787 = vpop.f32.mrf.mxu0
      %v1788 = vadd.f32 0.0, %v1787
      %v1789 = vpop.f32.mrf.mxu0
      %v1790 = vpop.f32.mrf.mxu0
      %v1791 = vadd.f32 0.0, %v1790
      %v1792 = vpop.f32.mrf.mxu0
      %1793 = vmatprep.mubr.bf16.mxu0 0
      %1794 = vmatmul.mubr.bf16.gmra.mxu0 %v1558
      %v1795 = vpop.f32.mrf.mxu0
      %v1796 = vadd.f32 0.0, %v1795
      %v1797 = vpop.f32.mrf.mxu0
      %v1798 = vpop.f32.mrf.mxu0
      %v1799 = vadd.f32 0.0, %v1798
      %v1800 = vpop.f32.mrf.mxu0
      %1801 = vmatprep.mubr.bf16.mxu0 0
      %1802 = vmatmul.mubr.bf16.gmra.mxu0 %v1566
      %v1803 = vpop.f32.mrf.mxu0
      %v1804 = vadd.f32 0.0, %v1803
      %v1805 = vpop.f32.mrf.mxu0
      %v1806 = vpop.f32.mrf.mxu0
      %v1807 = vadd.f32 0.0, %v1806
      %v1808 = vpop.f32.mrf.mxu0
      %1809 = vmatprep.mubr.bf16.mxu0 0
      %1810 = vmatmul.mubr.bf16.gmra.mxu0 %v1574
      %v1811 = vpop.f32.mrf.mxu0
      %v1812 = vadd.f32 0.0, %v1811
      %v1813 = vpop.f32.mrf.mxu0
      %v1814 = vpop.f32.mrf.mxu0
      %v1815 = vadd.f32 0.0, %v1814
      %v1816 = vpop.f32.mrf.mxu0
      %1817 = vmatprep.mubr.bf16.mxu0 0
      %1818 = vmatmul.mubr.bf16.gmra.mxu0 %v1582
      %v1819 = vpop.f32.mrf.mxu0
      %v1820 = vadd.f32 0.0, %v1819
      %v1821 = vpop.f32.mrf.mxu0
      %v1822 = vpop.f32.mrf.mxu0
      %v1823 = vadd.f32 0.0, %v1822
      %v1824 = vpop.f32.mrf.mxu0
      %1825 = vmatprep.mubr.bf16.mxu0 0
      %1826 = vmatmul.mubr.bf16.gmra.mxu0 %v1590
      %v1827 = vpop.f32.mrf.mxu0
      %v1828 = vadd.f32 0.0, %v1827
      %v1829 = vpop.f32.mrf.mxu0
      %v1830 = vpop.f32.mrf.mxu0
      %v1831 = vadd.f32 0.0, %v1830
      %v1832 = vpop.f32.mrf.mxu0
      %1833 = vmatprep.mubr.bf16.mxu0 0
      %1834 = vmatmul.mubr.bf16.gmra.mxu0 %v1598
      %v1835 = vpop.f32.mrf.mxu0
      %v1836 = vadd.f32 0.0, %v1835
      %v1837 = vpop.f32.mrf.mxu0
      %v1838 = vpop.f32.mrf.mxu0
      %v1839 = vadd.f32 0.0, %v1838
      %v1840 = vpop.f32.mrf.mxu0
      %1841 = vmatprep.mubr.bf16.mxu0 0
      %1842 = vmatmul.mubr.bf16.gmra.mxu0 %v1606
      %v1843 = vpop.f32.mrf.mxu0
      %v1844 = vadd.f32 0.0, %v1843
      %v1845 = vpop.f32.mrf.mxu0
      %v1846 = vpop.f32.mrf.mxu0
      %v1847 = vadd.f32 0.0, %v1846
      %v1848 = vpop.f32.mrf.mxu0
      %1849 = vdwg.mxu0
      %v1866 = vunpack.c.l.b16 %v1424
      %v1867 = vunpack.c.l.b16 %v1425
      %v1868 = vunpack.c.l.b16 %v1426
      %v1869 = vunpack.c.l.b16 %v1427
      %v1870 = vunpack.c.l.b16 %v1428
      %v1871 = vunpack.c.l.b16 %v1429
      %v1872 = vunpack.c.l.b16 %v1430
      %v1873 = vunpack.c.l.b16 %v1431
      %v1874 = vunpack.c.l.b16 %v1432
      %v1875 = vunpack.c.l.b16 %v1433
      %v1876 = vunpack.c.l.b16 %v1434
      %v1877 = vunpack.c.l.b16 %v1435
      %v1878 = vunpack.c.l.b16 %v1436
      %v1879 = vunpack.c.l.b16 %v1437
      %v1880 = vunpack.c.l.b16 %v1438
      %v1881 = vunpack.c.l.b16 %v1439
      %v1882 = vpack.c.b16 %v1867, %v1866
      %v1883 = vpack.c.b16 %v1869, %v1868
      %v1884 = vpack.c.b16 %v1871, %v1870
      %v1885 = vpack.c.b16 %v1873, %v1872
      %v1886 = vpack.c.b16 %v1875, %v1874
      %v1887 = vpack.c.b16 %v1877, %v1876
      %v1888 = vpack.c.b16 %v1879, %v1878
      %v1889 = vpack.c.b16 %v1881, %v1880
      %1898 = vmatprep.subr.bf16.mxu0 0
      %1899 = vmatpush1.bf16.msra.mxu0 %v1889
      %1900 = vmatprep.subr.bf16.mxu0 0
      %1901 = vmatpush1.bf16.msra.mxu0 %v1888
      %1902 = vmatprep.subr.bf16.mxu0 0
      %1903 = vmatpush1.bf16.msra.mxu0 %v1887
      %1904 = vmatprep.subr.bf16.mxu0 0
      %1905 = vmatpush1.bf16.msra.mxu0 %v1886
      %1906 = vmatprep.subr.bf16.mxu0 0
      %1907 = vmatpush1.bf16.msra.mxu0 %v1885
      %1908 = vmatprep.subr.bf16.mxu0 0
      %1909 = vmatpush1.bf16.msra.mxu0 %v1884
      %1910 = vmatprep.subr.bf16.mxu0 0
      %1911 = vmatpush1.bf16.msra.mxu0 %v1883
      %1912 = vmatprep.subr.bf16.mxu0 0
      %1913 = vmatpush1.bf16.msra.mxu0 %v1882
      %1914 = vmatprep.subr.bf16.mxu0 0
      %1915 = vmatpush2.bf16.msra.mxu0 0
      %1916 = vmatprep.subr.bf16.mxu0 0
      %1917 = vmatpush2.bf16.msra.mxu0 0
      %1918 = vmatprep.subr.bf16.mxu0 0
      %1919 = vmatpush2.bf16.msra.mxu0 0
      %1920 = vmatprep.subr.bf16.mxu0 0
      %1921 = vmatpush2.bf16.msra.mxu0 0
      %1922 = vmatprep.subr.bf16.mxu0 0
      %1923 = vmatpush2.bf16.msra.mxu0 0
      %1924 = vmatprep.subr.bf16.mxu0 0
      %1925 = vmatpush2.bf16.msra.mxu0 0
      %1926 = vmatprep.subr.bf16.mxu0 0
      %1927 = vmatpush2.bf16.msra.mxu0 0
      %1928 = vmatprep.subr.bf16.mxu0 0
      %1929 = vmatpush2.bf16.msra.mxu0 0
      %1930 = vmatprep.mubr.bf16.mxu0 0
      %1931 = vmatmul.mubr.bf16.gmra.mxu0 %v1406
      %v1932 = vpop.f32.mrf.mxu0
      %v1933 = vadd.f32 %v1708, %v1932
      %v1934 = vpop.f32.mrf.mxu0
      %v1935 = vpop.f32.mrf.mxu0
      %v1936 = vadd.f32 %v1711, %v1935
      %v1937 = vpop.f32.mrf.mxu0
      %1938 = vmatprep.mubr.bf16.mxu0 0
      %1939 = vmatmul.mubr.bf16.gmra.mxu0 %v1407
      %v1940 = vpop.f32.mrf.mxu0
      %v1941 = vadd.f32 %v1716, %v1940
      %v1942 = vpop.f32.mrf.mxu0
      %v1943 = vpop.f32.mrf.mxu0
      %v1944 = vadd.f32 %v1719, %v1943
      %v1945 = vpop.f32.mrf.mxu0
      %1946 = vmatprep.mubr.bf16.mxu0 0
      %1947 = vmatmul.mubr.bf16.gmra.mxu0 %v1408
      %v1948 = vpop.f32.mrf.mxu0
      %v1949 = vadd.f32 %v1724, %v1948
      %v1950 = vpop.f32.mrf.mxu0
      %v1951 = vpop.f32.mrf.mxu0
      %v1952 = vadd.f32 %v1727, %v1951
      %v1953 = vpop.f32.mrf.mxu0
      %1954 = vmatprep.mubr.bf16.mxu0 0
      %1955 = vmatmul.mubr.bf16.gmra.mxu0 %v1409
      %v1956 = vpop.f32.mrf.mxu0
      %v1957 = vadd.f32 %v1732, %v1956
      %v1958 = vpop.f32.mrf.mxu0
      %v1959 = vpop.f32.mrf.mxu0
      %v1960 = vadd.f32 %v1735, %v1959
      %v1961 = vpop.f32.mrf.mxu0
      %1962 = vmatprep.mubr.bf16.mxu0 0
      %1963 = vmatmul.mubr.bf16.gmra.mxu0 %v1410
      %v1964 = vpop.f32.mrf.mxu0
      %v1965 = vadd.f32 %v1740, %v1964
      %v1966 = vpop.f32.mrf.mxu0
      %v1967 = vpop.f32.mrf.mxu0
      %v1968 = vadd.f32 %v1743, %v1967
      %v1969 = vpop.f32.mrf.mxu0
      %1970 = vmatprep.mubr.bf16.mxu0 0
      %1971 = vmatmul.mubr.bf16.gmra.mxu0 %v1411
      %v1972 = vpop.f32.mrf.mxu0
      %v1973 = vadd.f32 %v1748, %v1972
      %v1974 = vpop.f32.mrf.mxu0
      %v1975 = vpop.f32.mrf.mxu0
      %v1976 = vadd.f32 %v1751, %v1975
      %v1977 = vpop.f32.mrf.mxu0
      %1978 = vmatprep.mubr.bf16.mxu0 0
      %1979 = vmatmul.mubr.bf16.gmra.mxu0 %v1412
      %v1980 = vpop.f32.mrf.mxu0
      %v1981 = vadd.f32 %v1756, %v1980
      %v1982 = vpop.f32.mrf.mxu0
      %v1983 = vpop.f32.mrf.mxu0
      %v1984 = vadd.f32 %v1759, %v1983
      %v1985 = vpop.f32.mrf.mxu0
      %1986 = vmatprep.mubr.bf16.mxu0 0
      %1987 = vmatmul.mubr.bf16.gmra.mxu0 %v1413
      %v1988 = vpop.f32.mrf.mxu0
      %v1989 = vadd.f32 %v1764, %v1988
      %v1990 = vpop.f32.mrf.mxu0
      %v1991 = vpop.f32.mrf.mxu0
      %v1992 = vadd.f32 %v1767, %v1991
      %v1993 = vpop.f32.mrf.mxu0
      %1994 = vmatprep.mubr.bf16.mxu0 0
      %1995 = vmatmul.mubr.bf16.gmra.mxu0 %v1414
      %v1996 = vpop.f32.mrf.mxu0
      %v1997 = vadd.f32 %v1772, %v1996
      %v1998 = vpop.f32.mrf.mxu0
      %v1999 = vpop.f32.mrf.mxu0
      %v2000 = vadd.f32 %v1775, %v1999
      %v2001 = vpop.f32.mrf.mxu0
      %2002 = vmatprep.mubr.bf16.mxu0 0
      %2003 = vmatmul.mubr.bf16.gmra.mxu0 %v1415
      %v2004 = vpop.f32.mrf.mxu0
      %v2005 = vadd.f32 %v1780, %v2004
      %v2006 = vpop.f32.mrf.mxu0
      %v2007 = vpop.f32.mrf.mxu0
      %v2008 = vadd.f32 %v1783, %v2007
      %v2009 = vpop.f32.mrf.mxu0
      %2010 = vmatprep.mubr.bf16.mxu0 0
      %2011 = vmatmul.mubr.bf16.gmra.mxu0 %v1416
      %v2012 = vpop.f32.mrf.mxu0
      %v2013 = vadd.f32 %v1788, %v2012
      %v2014 = vpop.f32.mrf.mxu0
      %v2015 = vpop.f32.mrf.mxu0
      %v2016 = vadd.f32 %v1791, %v2015
      %v2017 = vpop.f32.mrf.mxu0
      %2018 = vmatprep.mubr.bf16.mxu0 0
      %2019 = vmatmul.mubr.bf16.gmra.mxu0 %v1417
      %v2020 = vpop.f32.mrf.mxu0
      %v2021 = vadd.f32 %v1796, %v2020
      %v2022 = vpop.f32.mrf.mxu0
      %v2023 = vpop.f32.mrf.mxu0
      %v2024 = vadd.f32 %v1799, %v2023
      %v2025 = vpop.f32.mrf.mxu0
      %2026 = vmatprep.mubr.bf16.mxu0 0
      %2027 = vmatmul.mubr.bf16.gmra.mxu0 %v1418
      %v2028 = vpop.f32.mrf.mxu0
      %v2029 = vadd.f32 %v1804, %v2028
      %v2030 = vpop.f32.mrf.mxu0
      %v2031 = vpop.f32.mrf.mxu0
      %v2032 = vadd.f32 %v1807, %v2031
      %v2033 = vpop.f32.mrf.mxu0
      %2034 = vmatprep.mubr.bf16.mxu0 0
      %2035 = vmatmul.mubr.bf16.gmra.mxu0 %v1419
      %v2036 = vpop.f32.mrf.mxu0
      %v2037 = vadd.f32 %v1812, %v2036
      %v2038 = vpop.f32.mrf.mxu0
      %v2039 = vpop.f32.mrf.mxu0
      %v2040 = vadd.f32 %v1815, %v2039
      %v2041 = vpop.f32.mrf.mxu0
      %2042 = vmatprep.mubr.bf16.mxu0 0
      %2043 = vmatmul.mubr.bf16.gmra.mxu0 %v1420
      %v2044 = vpop.f32.mrf.mxu0
      %v2045 = vadd.f32 %v1820, %v2044
      %v2046 = vpop.f32.mrf.mxu0
      %v2047 = vpop.f32.mrf.mxu0
      %v2048 = vadd.f32 %v1823, %v2047
      %v2049 = vpop.f32.mrf.mxu0
      %2050 = vmatprep.mubr.bf16.mxu0 0
      %2051 = vmatmul.mubr.bf16.gmra.mxu0 %v1421
      %v2052 = vpop.f32.mrf.mxu0
      %v2053 = vadd.f32 %v1828, %v2052
      %v2054 = vpop.f32.mrf.mxu0
      %v2055 = vpop.f32.mrf.mxu0
      %v2056 = vadd.f32 %v1831, %v2055
      %v2057 = vpop.f32.mrf.mxu0
      %2058 = vmatprep.mubr.bf16.mxu0 0
      %2059 = vmatmul.mubr.bf16.gmra.mxu0 %v1422
      %v2060 = vpop.f32.mrf.mxu0
      %v2061 = vadd.f32 %v1836, %v2060
      %v2062 = vpop.f32.mrf.mxu0
      %v2063 = vpop.f32.mrf.mxu0
      %v2064 = vadd.f32 %v1839, %v2063
      %v2065 = vpop.f32.mrf.mxu0
      %2066 = vmatprep.mubr.bf16.mxu0 0
      %2067 = vmatmul.mubr.bf16.gmra.mxu0 %v1423
      %v2068 = vpop.f32.mrf.mxu0
      %v2069 = vadd.f32 %v1844, %v2068
      %v2070 = vpop.f32.mrf.mxu0
      %v2071 = vpop.f32.mrf.mxu0
      %v2072 = vadd.f32 %v1847, %v2071
      %v2073 = vpop.f32.mrf.mxu0
      %2074 = vdwg.mxu0
      %s2075 = scalar_lea.vmem %s5, 128
      %v2076 = vld [vmem:[%s2075] sm:$0xf]
      %v2077 = vld [vmem:[%s2075 + $0x4] sm:$0xf]
      %v2078 = vld [vmem:[%s2075 + $0x8] sm:$0xf]
      %v2079 = vld [vmem:[%s2075 + $0xc] sm:$0xf]
      %v2080 = vld [vmem:[%s2075 + $0x10] sm:$0xf]
      %v2081 = vld [vmem:[%s2075 + $0x14] sm:$0xf]
      %v2082 = vld [vmem:[%s2075 + $0x18] sm:$0xf]
      %v2083 = vld [vmem:[%s2075 + $0x1c] sm:$0xf]
      %v2084 = vld [vmem:[%s2075 + $0x20] sm:$0xf]
      %v2085 = vld [vmem:[%s2075 + $0x24] sm:$0xf]
      %v2086 = vld [vmem:[%s2075 + $0x28] sm:$0xf]
      %v2087 = vld [vmem:[%s2075 + $0x2c] sm:$0xf]
      %v2088 = vld [vmem:[%s2075 + $0x30] sm:$0xf]
      %v2089 = vld [vmem:[%s2075 + $0x34] sm:$0xf]
      %v2090 = vld [vmem:[%s2075 + $0x38] sm:$0xf]
      %v2091 = vld [vmem:[%s2075 + $0x3c] sm:$0xf]
      %vm2111 = vcmask 1046528
      %v2112 = vrot.slane %v1406, 1
      %v2113 = vrot.slane %v1407, 1
      %v2114 = vsel %vm2111, %v2112, %v2113
      %v2115 = vrot.slane %v1408, 1
      %v2116 = vsel %vm2111, %v2113, %v2115
      %v2117 = vrot.slane %v1409, 1
      %v2118 = vsel %vm2111, %v2115, %v2117
      %v2119 = vrot.slane %v1410, 1
      %v2120 = vsel %vm2111, %v2117, %v2119
      %v2121 = vrot.slane %v1411, 1
      %v2122 = vsel %vm2111, %v2119, %v2121
      %v2123 = vrot.slane %v1412, 1
      %v2124 = vsel %vm2111, %v2121, %v2123
      %v2125 = vrot.slane %v1413, 1
      %v2126 = vsel %vm2111, %v2123, %v2125
      %v2127 = vrot.slane %v1414, 1
      %v2128 = vsel %vm2111, %v2125, %v2127
      %v2129 = vrot.slane %v1415, 1
      %v2130 = vsel %vm2111, %v2127, %v2129
      %v2131 = vrot.slane %v1416, 1
      %v2132 = vsel %vm2111, %v2129, %v2131
      %v2133 = vrot.slane %v1417, 1
      %v2134 = vsel %vm2111, %v2131, %v2133
      %v2135 = vrot.slane %v1418, 1
      %v2136 = vsel %vm2111, %v2133, %v2135
      %v2137 = vrot.slane %v1419, 1
      %v2138 = vsel %vm2111, %v2135, %v2137
      %v2139 = vrot.slane %v1420, 1
      %v2140 = vsel %vm2111, %v2137, %v2139
      %v2141 = vrot.slane %v1421, 1
      %v2142 = vsel %vm2111, %v2139, %v2141
      %v2143 = vrot.slane %v1422, 1
      %v2144 = vsel %vm2111, %v2141, %v2143
      %v2145 = vrot.slane %v1423, 1
      %v2146 = vsel %vm2111, %v2143, %v2145
      %v2147 = vrot.slane %v1440, 1
      %v2148 = vsel %vm2111, %v2145, %v2147
      %v2183 = vunpack.c.l.b16 %v2076
      %v2184 = vunpack.c.l.b16 %v2077
      %v2185 = vunpack.c.l.b16 %v2078
      %v2186 = vunpack.c.l.b16 %v2079
      %v2187 = vunpack.c.l.b16 %v2080
      %v2188 = vunpack.c.l.b16 %v2081
      %v2189 = vunpack.c.l.b16 %v2082
      %v2190 = vunpack.c.l.b16 %v2083
      %v2191 = vunpack.c.l.b16 %v2084
      %v2192 = vunpack.c.l.b16 %v2085
      %v2193 = vunpack.c.l.b16 %v2086
      %v2194 = vunpack.c.l.b16 %v2087
      %v2195 = vunpack.c.l.b16 %v2088
      %v2196 = vunpack.c.l.b16 %v2089
      %v2197 = vunpack.c.l.b16 %v2090
      %v2198 = vunpack.c.l.b16 %v2091
      %v2199 = vpack.c.b16 %v2184, %v2183
      %v2200 = vpack.c.b16 %v2186, %v2185
      %v2201 = vpack.c.b16 %v2188, %v2187
      %v2202 = vpack.c.b16 %v2190, %v2189
      %v2203 = vpack.c.b16 %v2192, %v2191
      %v2204 = vpack.c.b16 %v2194, %v2193
      %v2205 = vpack.c.b16 %v2196, %v2195
      %v2206 = vpack.c.b16 %v2198, %v2197
      %2215 = vmatprep.subr.bf16.mxu0 0
      %2216 = vmatpush1.bf16.msra.mxu0 %v2206
      %2217 = vmatprep.subr.bf16.mxu0 0
      %2218 = vmatpush1.bf16.msra.mxu0 %v2205
      %2219 = vmatprep.subr.bf16.mxu0 0
      %2220 = vmatpush1.bf16.msra.mxu0 %v2204
      %2221 = vmatprep.subr.bf16.mxu0 0
      %2222 = vmatpush1.bf16.msra.mxu0 %v2203
      %2223 = vmatprep.subr.bf16.mxu0 0
      %2224 = vmatpush1.bf16.msra.mxu0 %v2202
      %2225 = vmatprep.subr.bf16.mxu0 0
      %2226 = vmatpush1.bf16.msra.mxu0 %v2201
      %2227 = vmatprep.subr.bf16.mxu0 0
      %2228 = vmatpush1.bf16.msra.mxu0 %v2200
      %2229 = vmatprep.subr.bf16.mxu0 0
      %2230 = vmatpush1.bf16.msra.mxu0 %v2199
      %2231 = vmatprep.subr.bf16.mxu0 0
      %2232 = vmatpush2.bf16.msra.mxu0 0
      %2233 = vmatprep.subr.bf16.mxu0 0
      %2234 = vmatpush2.bf16.msra.mxu0 0
      %2235 = vmatprep.subr.bf16.mxu0 0
      %2236 = vmatpush2.bf16.msra.mxu0 0
      %2237 = vmatprep.subr.bf16.mxu0 0
      %2238 = vmatpush2.bf16.msra.mxu0 0
      %2239 = vmatprep.subr.bf16.mxu0 0
      %2240 = vmatpush2.bf16.msra.mxu0 0
      %2241 = vmatprep.subr.bf16.mxu0 0
      %2242 = vmatpush2.bf16.msra.mxu0 0
      %2243 = vmatprep.subr.bf16.mxu0 0
      %2244 = vmatpush2.bf16.msra.mxu0 0
      %2245 = vmatprep.subr.bf16.mxu0 0
      %2246 = vmatpush2.bf16.msra.mxu0 0
      %2247 = vmatprep.mubr.bf16.mxu0 0
      %2248 = vmatmul.mubr.bf16.gmra.mxu0 %v2114
      %v2249 = vpop.f32.mrf.mxu0
      %v2250 = vadd.f32 0.0, %v2249
      %v2251 = vpop.f32.mrf.mxu0
      %v2252 = vpop.f32.mrf.mxu0
      %v2253 = vadd.f32 0.0, %v2252
      %v2254 = vpop.f32.mrf.mxu0
      %2255 = vmatprep.mubr.bf16.mxu0 0
      %2256 = vmatmul.mubr.bf16.gmra.mxu0 %v2116
      %v2257 = vpop.f32.mrf.mxu0
      %v2258 = vadd.f32 0.0, %v2257
      %v2259 = vpop.f32.mrf.mxu0
      %v2260 = vpop.f32.mrf.mxu0
      %v2261 = vadd.f32 0.0, %v2260
      %v2262 = vpop.f32.mrf.mxu0
      %2263 = vmatprep.mubr.bf16.mxu0 0
      %2264 = vmatmul.mubr.bf16.gmra.mxu0 %v2118
      %v2265 = vpop.f32.mrf.mxu0
      %v2266 = vadd.f32 0.0, %v2265
      %v2267 = vpop.f32.mrf.mxu0
      %v2268 = vpop.f32.mrf.mxu0
      %v2269 = vadd.f32 0.0, %v2268
      %v2270 = vpop.f32.mrf.mxu0
      %2271 = vmatprep.mubr.bf16.mxu0 0
      %2272 = vmatmul.mubr.bf16.gmra.mxu0 %v2120
      %v2273 = vpop.f32.mrf.mxu0
      %v2274 = vadd.f32 0.0, %v2273
      %v2275 = vpop.f32.mrf.mxu0
      %v2276 = vpop.f32.mrf.mxu0
      %v2277 = vadd.f32 0.0, %v2276
      %v2278 = vpop.f32.mrf.mxu0
      %2279 = vmatprep.mubr.bf16.mxu0 0
      %2280 = vmatmul.mubr.bf16.gmra.mxu0 %v2122
      %v2281 = vpop.f32.mrf.mxu0
      %v2282 = vadd.f32 0.0, %v2281
      %v2283 = vpop.f32.mrf.mxu0
      %v2284 = vpop.f32.mrf.mxu0
      %v2285 = vadd.f32 0.0, %v2284
      %v2286 = vpop.f32.mrf.mxu0
      %2287 = vmatprep.mubr.bf16.mxu0 0
      %2288 = vmatmul.mubr.bf16.gmra.mxu0 %v2124
      %v2289 = vpop.f32.mrf.mxu0
      %v2290 = vadd.f32 0.0, %v2289
      %v2291 = vpop.f32.mrf.mxu0
      %v2292 = vpop.f32.mrf.mxu0
      %v2293 = vadd.f32 0.0, %v2292
      %v2294 = vpop.f32.mrf.mxu0
      %2295 = vmatprep.mubr.bf16.mxu0 0
      %2296 = vmatmul.mubr.bf16.gmra.mxu0 %v2126
      %v2297 = vpop.f32.mrf.mxu0
      %v2298 = vadd.f32 0.0, %v2297
      %v2299 = vpop.f32.mrf.mxu0
      %v2300 = vpop.f32.mrf.mxu0
      %v2301 = vadd.f32 0.0, %v2300
      %v2302 = vpop.f32.mrf.mxu0
      %2303 = vmatprep.mubr.bf16.mxu0 0
      %2304 = vmatmul.mubr.bf16.gmra.mxu0 %v2128
      %v2305 = vpop.f32.mrf.mxu0
      %v2306 = vadd.f32 0.0, %v2305
      %v2307 = vpop.f32.mrf.mxu0
      %v2308 = vpop.f32.mrf.mxu0
      %v2309 = vadd.f32 0.0, %v2308
      %v2310 = vpop.f32.mrf.mxu0
      %2311 = vmatprep.mubr.bf16.mxu0 0
      %2312 = vmatmul.mubr.bf16.gmra.mxu0 %v2130
      %v2313 = vpop.f32.mrf.mxu0
      %v2314 = vadd.f32 0.0, %v2313
      %v2315 = vpop.f32.mrf.mxu0
      %v2316 = vpop.f32.mrf.mxu0
      %v2317 = vadd.f32 0.0, %v2316
      %v2318 = vpop.f32.mrf.mxu0
      %2319 = vmatprep.mubr.bf16.mxu0 0
      %2320 = vmatmul.mubr.bf16.gmra.mxu0 %v2132
      %v2321 = vpop.f32.mrf.mxu0
      %v2322 = vadd.f32 0.0, %v2321
      %v2323 = vpop.f32.mrf.mxu0
      %v2324 = vpop.f32.mrf.mxu0
      %v2325 = vadd.f32 0.0, %v2324
      %v2326 = vpop.f32.mrf.mxu0
      %2327 = vmatprep.mubr.bf16.mxu0 0
      %2328 = vmatmul.mubr.bf16.gmra.mxu0 %v2134
      %v2329 = vpop.f32.mrf.mxu0
      %v2330 = vadd.f32 0.0, %v2329
      %v2331 = vpop.f32.mrf.mxu0
      %v2332 = vpop.f32.mrf.mxu0
      %v2333 = vadd.f32 0.0, %v2332
      %v2334 = vpop.f32.mrf.mxu0
      %2335 = vmatprep.mubr.bf16.mxu0 0
      %2336 = vmatmul.mubr.bf16.gmra.mxu0 %v2136
      %v2337 = vpop.f32.mrf.mxu0
      %v2338 = vadd.f32 0.0, %v2337
      %v2339 = vpop.f32.mrf.mxu0
      %v2340 = vpop.f32.mrf.mxu0
      %v2341 = vadd.f32 0.0, %v2340
      %v2342 = vpop.f32.mrf.mxu0
      %2343 = vmatprep.mubr.bf16.mxu0 0
      %2344 = vmatmul.mubr.bf16.gmra.mxu0 %v2138
      %v2345 = vpop.f32.mrf.mxu0
      %v2346 = vadd.f32 0.0, %v2345
      %v2347 = vpop.f32.mrf.mxu0
      %v2348 = vpop.f32.mrf.mxu0
      %v2349 = vadd.f32 0.0, %v2348
      %v2350 = vpop.f32.mrf.mxu0
      %2351 = vmatprep.mubr.bf16.mxu0 0
      %2352 = vmatmul.mubr.bf16.gmra.mxu0 %v2140
      %v2353 = vpop.f32.mrf.mxu0
      %v2354 = vadd.f32 0.0, %v2353
      %v2355 = vpop.f32.mrf.mxu0
      %v2356 = vpop.f32.mrf.mxu0
      %v2357 = vadd.f32 0.0, %v2356
      %v2358 = vpop.f32.mrf.mxu0
      %2359 = vmatprep.mubr.bf16.mxu0 0
      %2360 = vmatmul.mubr.bf16.gmra.mxu0 %v2142
      %v2361 = vpop.f32.mrf.mxu0
      %v2362 = vadd.f32 0.0, %v2361
      %v2363 = vpop.f32.mrf.mxu0
      %v2364 = vpop.f32.mrf.mxu0
      %v2365 = vadd.f32 0.0, %v2364
      %v2366 = vpop.f32.mrf.mxu0
      %2367 = vmatprep.mubr.bf16.mxu0 0
      %2368 = vmatmul.mubr.bf16.gmra.mxu0 %v2144
      %v2369 = vpop.f32.mrf.mxu0
      %v2370 = vadd.f32 0.0, %v2369
      %v2371 = vpop.f32.mrf.mxu0
      %v2372 = vpop.f32.mrf.mxu0
      %v2373 = vadd.f32 0.0, %v2372
      %v2374 = vpop.f32.mrf.mxu0
      %2375 = vmatprep.mubr.bf16.mxu0 0
      %2376 = vmatmul.mubr.bf16.gmra.mxu0 %v2146
      %v2377 = vpop.f32.mrf.mxu0
      %v2378 = vadd.f32 0.0, %v2377
      %v2379 = vpop.f32.mrf.mxu0
      %v2380 = vpop.f32.mrf.mxu0
      %v2381 = vadd.f32 0.0, %v2380
      %v2382 = vpop.f32.mrf.mxu0
      %2383 = vmatprep.mubr.bf16.mxu0 0
      %2384 = vmatmul.mubr.bf16.gmra.mxu0 %v2148
      %v2385 = vpop.f32.mrf.mxu0
      %v2386 = vadd.f32 0.0, %v2385
      %v2387 = vpop.f32.mrf.mxu0
      %v2388 = vpop.f32.mrf.mxu0
      %v2389 = vadd.f32 0.0, %v2388
      %v2390 = vpop.f32.mrf.mxu0
      %2391 = vdwg.mxu0
      %v2392 = vadd.f32 %v1933, %v2250
      %v2393 = vadd.f32 %v1936, %v2253
      %v2394 = vadd.f32 %v1941, %v2258
      %v2395 = vadd.f32 %v1944, %v2261
      %v2396 = vadd.f32 %v1949, %v2266
      %v2397 = vadd.f32 %v1952, %v2269
      %v2398 = vadd.f32 %v1957, %v2274
      %v2399 = vadd.f32 %v1960, %v2277
      %v2400 = vadd.f32 %v1965, %v2282
      %v2401 = vadd.f32 %v1968, %v2285
      %v2402 = vadd.f32 %v1973, %v2290
      %v2403 = vadd.f32 %v1976, %v2293
      %v2404 = vadd.f32 %v1981, %v2298
      %v2405 = vadd.f32 %v1984, %v2301
      %v2406 = vadd.f32 %v1989, %v2306
      %v2407 = vadd.f32 %v1992, %v2309
      %v2408 = vadd.f32 %v1997, %v2314
      %v2409 = vadd.f32 %v2000, %v2317
      %v2410 = vadd.f32 %v2005, %v2322
      %v2411 = vadd.f32 %v2008, %v2325
      %v2412 = vadd.f32 %v2013, %v2330
      %v2413 = vadd.f32 %v2016, %v2333
      %v2414 = vadd.f32 %v2021, %v2338
      %v2415 = vadd.f32 %v2024, %v2341
      %v2416 = vadd.f32 %v2029, %v2346
      %v2417 = vadd.f32 %v2032, %v2349
      %v2418 = vadd.f32 %v2037, %v2354
      %v2419 = vadd.f32 %v2040, %v2357
      %v2420 = vadd.f32 %v2045, %v2362
      %v2421 = vadd.f32 %v2048, %v2365
      %v2422 = vadd.f32 %v2053, %v2370
      %v2423 = vadd.f32 %v2056, %v2373
      %v2424 = vadd.f32 %v2061, %v2378
      %v2425 = vadd.f32 %v2064, %v2381
      %v2426 = vadd.f32 %v2069, %v2386
      %v2427 = vadd.f32 %v2072, %v2389
      %v2428 = vpack.c.bf16 %v1402, %v1401
      %v2429 = vpack.c.bf16 %v1403, %v1403
      %s2430 = scalar_lea.vmem %s5, 192
      %v2431 = vld [vmem:[%s2430] sm:$0xf]
      %v2432 = vld [vmem:[%s2430 + $0x4] sm:$0xf]
      %v2433 = vld [vmem:[%s2430 + $0x8] sm:$0xf]
      %v2434 = vld [vmem:[%s2430 + $0xc] sm:$0xf]
      %v2435 = vld [vmem:[%s2430 + $0x10] sm:$0xf]
      %v2436 = vld [vmem:[%s2430 + $0x14] sm:$0xf]
      %v2437 = vld [vmem:[%s2430 + $0x18] sm:$0xf]
      %v2438 = vld [vmem:[%s2430 + $0x1c] sm:$0xf]
      %v2439 = vld [vmem:[%s2430 + $0x20] sm:$0xf]
      %v2440 = vld [vmem:[%s2430 + $0x24] sm:$0xf]
      %v2441 = vld [vmem:[%s2430 + $0x28] sm:$0xf]
      %v2442 = vld [vmem:[%s2430 + $0x2c] sm:$0xf]
      %v2443 = vld [vmem:[%s2430 + $0x30] sm:$0xf]
      %v2444 = vld [vmem:[%s2430 + $0x34] sm:$0xf]
      %v2445 = vld [vmem:[%s2430 + $0x38] sm:$0xf]
      %v2446 = vld [vmem:[%s2430 + $0x3c] sm:$0xf]
      %v2449 = vrot.slane %v2428, 1
      %v2450 = vsel %vm2111, %v2145, %v2449
      %v2451 = vrot.slane %v2429, 1
      %v2452 = vsel %vm2111, %v2449, %v2451
      %v2471 = vunpack.c.l.b16 %v2431
      %v2472 = vunpack.c.l.b16 %v2432
      %v2473 = vunpack.c.l.b16 %v2433
      %v2474 = vunpack.c.l.b16 %v2434
      %v2475 = vunpack.c.l.b16 %v2435
      %v2476 = vunpack.c.l.b16 %v2436
      %v2477 = vunpack.c.l.b16 %v2437
      %v2478 = vunpack.c.l.b16 %v2438
      %v2479 = vunpack.c.l.b16 %v2439
      %v2480 = vunpack.c.l.b16 %v2440
      %v2481 = vunpack.c.l.b16 %v2441
      %v2482 = vunpack.c.l.b16 %v2442
      %v2483 = vunpack.c.l.b16 %v2443
      %v2484 = vunpack.c.l.b16 %v2444
      %v2485 = vunpack.c.l.b16 %v2445
      %v2486 = vunpack.c.l.b16 %v2446
      %v2487 = vpack.c.b16 %v2472, %v2471
      %v2488 = vpack.c.b16 %v2474, %v2473
      %v2489 = vpack.c.b16 %v2476, %v2475
      %v2490 = vpack.c.b16 %v2478, %v2477
      %v2491 = vpack.c.b16 %v2480, %v2479
      %v2492 = vpack.c.b16 %v2482, %v2481
      %v2493 = vpack.c.b16 %v2484, %v2483
      %v2494 = vpack.c.b16 %v2486, %v2485
      %2503 = vmatprep.subr.bf16.mxu0 0
      %2504 = vmatpush1.bf16.msra.mxu0 %v2494
      %2505 = vmatprep.subr.bf16.mxu0 0
      %2506 = vmatpush1.bf16.msra.mxu0 %v2493
      %2507 = vmatprep.subr.bf16.mxu0 0
      %2508 = vmatpush1.bf16.msra.mxu0 %v2492
      %2509 = vmatprep.subr.bf16.mxu0 0
      %2510 = vmatpush1.bf16.msra.mxu0 %v2491
      %2511 = vmatprep.subr.bf16.mxu0 0
      %2512 = vmatpush1.bf16.msra.mxu0 %v2490
      %2513 = vmatprep.subr.bf16.mxu0 0
      %2514 = vmatpush1.bf16.msra.mxu0 %v2489
      %2515 = vmatprep.subr.bf16.mxu0 0
      %2516 = vmatpush1.bf16.msra.mxu0 %v2488
      %2517 = vmatprep.subr.bf16.mxu0 0
      %2518 = vmatpush1.bf16.msra.mxu0 %v2487
      %2519 = vmatprep.subr.bf16.mxu0 0
      %2520 = vmatpush2.bf16.msra.mxu0 0
      %2521 = vmatprep.subr.bf16.mxu0 0
      %2522 = vmatpush2.bf16.msra.mxu0 0
      %2523 = vmatprep.subr.bf16.mxu0 0
      %2524 = vmatpush2.bf16.msra.mxu0 0
      %2525 = vmatprep.subr.bf16.mxu0 0
      %2526 = vmatpush2.bf16.msra.mxu0 0
      %2527 = vmatprep.subr.bf16.mxu0 0
      %2528 = vmatpush2.bf16.msra.mxu0 0
      %2529 = vmatprep.subr.bf16.mxu0 0
      %2530 = vmatpush2.bf16.msra.mxu0 0
      %2531 = vmatprep.subr.bf16.mxu0 0
      %2532 = vmatpush2.bf16.msra.mxu0 0
      %2533 = vmatprep.subr.bf16.mxu0 0
      %2534 = vmatpush2.bf16.msra.mxu0 0
      %2535 = vmatprep.mubr.bf16.mxu0 0
      %2536 = vmatmul.mubr.bf16.gmra.mxu0 %v2116
      %v2537 = vpop.f32.mrf.mxu0
      %v2538 = vadd.f32 0.0, %v2537
      %v2539 = vpop.f32.mrf.mxu0
      %v2540 = vpop.f32.mrf.mxu0
      %v2541 = vadd.f32 0.0, %v2540
      %v2542 = vpop.f32.mrf.mxu0
      %2543 = vmatprep.mubr.bf16.mxu0 0
      %2544 = vmatmul.mubr.bf16.gmra.mxu0 %v2118
      %v2545 = vpop.f32.mrf.mxu0
      %v2546 = vadd.f32 0.0, %v2545
      %v2547 = vpop.f32.mrf.mxu0
      %v2548 = vpop.f32.mrf.mxu0
      %v2549 = vadd.f32 0.0, %v2548
      %v2550 = vpop.f32.mrf.mxu0
      %2551 = vmatprep.mubr.bf16.mxu0 0
      %2552 = vmatmul.mubr.bf16.gmra.mxu0 %v2120
      %v2553 = vpop.f32.mrf.mxu0
      %v2554 = vadd.f32 0.0, %v2553
      %v2555 = vpop.f32.mrf.mxu0
      %v2556 = vpop.f32.mrf.mxu0
      %v2557 = vadd.f32 0.0, %v2556
      %v2558 = vpop.f32.mrf.mxu0
      %2559 = vmatprep.mubr.bf16.mxu0 0
      %2560 = vmatmul.mubr.bf16.gmra.mxu0 %v2122
      %v2561 = vpop.f32.mrf.mxu0
      %v2562 = vadd.f32 0.0, %v2561
      %v2563 = vpop.f32.mrf.mxu0
      %v2564 = vpop.f32.mrf.mxu0
      %v2565 = vadd.f32 0.0, %v2564
      %v2566 = vpop.f32.mrf.mxu0
      %2567 = vmatprep.mubr.bf16.mxu0 0
      %2568 = vmatmul.mubr.bf16.gmra.mxu0 %v2124
      %v2569 = vpop.f32.mrf.mxu0
      %v2570 = vadd.f32 0.0, %v2569
      %v2571 = vpop.f32.mrf.mxu0
      %v2572 = vpop.f32.mrf.mxu0
      %v2573 = vadd.f32 0.0, %v2572
      %v2574 = vpop.f32.mrf.mxu0
      %2575 = vmatprep.mubr.bf16.mxu0 0
      %2576 = vmatmul.mubr.bf16.gmra.mxu0 %v2126
      %v2577 = vpop.f32.mrf.mxu0
      %v2578 = vadd.f32 0.0, %v2577
      %v2579 = vpop.f32.mrf.mxu0
      %v2580 = vpop.f32.mrf.mxu0
      %v2581 = vadd.f32 0.0, %v2580
      %v2582 = vpop.f32.mrf.mxu0
      %2583 = vmatprep.mubr.bf16.mxu0 0
      %2584 = vmatmul.mubr.bf16.gmra.mxu0 %v2128
      %v2585 = vpop.f32.mrf.mxu0
      %v2586 = vadd.f32 0.0, %v2585
      %v2587 = vpop.f32.mrf.mxu0
      %v2588 = vpop.f32.mrf.mxu0
      %v2589 = vadd.f32 0.0, %v2588
      %v2590 = vpop.f32.mrf.mxu0
      %2591 = vmatprep.mubr.bf16.mxu0 0
      %2592 = vmatmul.mubr.bf16.gmra.mxu0 %v2130
      %v2593 = vpop.f32.mrf.mxu0
      %v2594 = vadd.f32 0.0, %v2593
      %v2595 = vpop.f32.mrf.mxu0
      %v2596 = vpop.f32.mrf.mxu0
      %v2597 = vadd.f32 0.0, %v2596
      %v2598 = vpop.f32.mrf.mxu0
      %2599 = vmatprep.mubr.bf16.mxu0 0
      %2600 = vmatmul.mubr.bf16.gmra.mxu0 %v2132
      %v2601 = vpop.f32.mrf.mxu0
      %v2602 = vadd.f32 0.0, %v2601
      %v2603 = vpop.f32.mrf.mxu0
      %v2604 = vpop.f32.mrf.mxu0
      %v2605 = vadd.f32 0.0, %v2604
      %v2606 = vpop.f32.mrf.mxu0
      %2607 = vmatprep.mubr.bf16.mxu0 0
      %2608 = vmatmul.mubr.bf16.gmra.mxu0 %v2134
      %v2609 = vpop.f32.mrf.mxu0
      %v2610 = vadd.f32 0.0, %v2609
      %v2611 = vpop.f32.mrf.mxu0
      %v2612 = vpop.f32.mrf.mxu0
      %v2613 = vadd.f32 0.0, %v2612
      %v2614 = vpop.f32.mrf.mxu0
      %2615 = vmatprep.mubr.bf16.mxu0 0
      %2616 = vmatmul.mubr.bf16.gmra.mxu0 %v2136
      %v2617 = vpop.f32.mrf.mxu0
      %v2618 = vadd.f32 0.0, %v2617
      %v2619 = vpop.f32.mrf.mxu0
      %v2620 = vpop.f32.mrf.mxu0
      %v2621 = vadd.f32 0.0, %v2620
      %v2622 = vpop.f32.mrf.mxu0
      %2623 = vmatprep.mubr.bf16.mxu0 0
      %2624 = vmatmul.mubr.bf16.gmra.mxu0 %v2138
      %v2625 = vpop.f32.mrf.mxu0
      %v2626 = vadd.f32 0.0, %v2625
      %v2627 = vpop.f32.mrf.mxu0
      %v2628 = vpop.f32.mrf.mxu0
      %v2629 = vadd.f32 0.0, %v2628
      %v2630 = vpop.f32.mrf.mxu0
      %2631 = vmatprep.mubr.bf16.mxu0 0
      %2632 = vmatmul.mubr.bf16.gmra.mxu0 %v2140
      %v2633 = vpop.f32.mrf.mxu0
      %v2634 = vadd.f32 0.0, %v2633
      %v2635 = vpop.f32.mrf.mxu0
      %v2636 = vpop.f32.mrf.mxu0
      %v2637 = vadd.f32 0.0, %v2636
      %v2638 = vpop.f32.mrf.mxu0
      %2639 = vmatprep.mubr.bf16.mxu0 0
      %2640 = vmatmul.mubr.bf16.gmra.mxu0 %v2142
      %v2641 = vpop.f32.mrf.mxu0
      %v2642 = vadd.f32 0.0, %v2641
      %v2643 = vpop.f32.mrf.mxu0
      %v2644 = vpop.f32.mrf.mxu0
      %v2645 = vadd.f32 0.0, %v2644
      %v2646 = vpop.f32.mrf.mxu0
      %2647 = vmatprep.mubr.bf16.mxu0 0
      %2648 = vmatmul.mubr.bf16.gmra.mxu0 %v2144
      %v2649 = vpop.f32.mrf.mxu0
      %v2650 = vadd.f32 0.0, %v2649
      %v2651 = vpop.f32.mrf.mxu0
      %v2652 = vpop.f32.mrf.mxu0
      %v2653 = vadd.f32 0.0, %v2652
      %v2654 = vpop.f32.mrf.mxu0
      %2655 = vmatprep.mubr.bf16.mxu0 0
      %2656 = vmatmul.mubr.bf16.gmra.mxu0 %v2146
      %v2657 = vpop.f32.mrf.mxu0
      %v2658 = vadd.f32 0.0, %v2657
      %v2659 = vpop.f32.mrf.mxu0
      %v2660 = vpop.f32.mrf.mxu0
      %v2661 = vadd.f32 0.0, %v2660
      %v2662 = vpop.f32.mrf.mxu0
      %2663 = vmatprep.mubr.bf16.mxu0 0
      %2664 = vmatmul.mubr.bf16.gmra.mxu0 %v2450
      %v2665 = vpop.f32.mrf.mxu0
      %v2666 = vadd.f32 0.0, %v2665
      %v2667 = vpop.f32.mrf.mxu0
      %v2668 = vpop.f32.mrf.mxu0
      %v2669 = vadd.f32 0.0, %v2668
      %v2670 = vpop.f32.mrf.mxu0
      %2671 = vmatprep.mubr.bf16.mxu0 0
      %2672 = vmatmul.mubr.bf16.gmra.mxu0 %v2452
      %v2673 = vpop.f32.mrf.mxu0
      %v2674 = vadd.f32 0.0, %v2673
      %v2675 = vpop.f32.mrf.mxu0
      %v2676 = vpop.f32.mrf.mxu0
      %v2677 = vadd.f32 0.0, %v2676
      %v2678 = vpop.f32.mrf.mxu0
      %2679 = vdwg.mxu0
      %v2680 = vadd.f32 %v2392, %v2538
      %v2681 = vadd.f32 %v2393, %v2541
      %v2682 = vadd.f32 %v2394, %v2546
      %v2683 = vadd.f32 %v2395, %v2549
      %v2684 = vadd.f32 %v2396, %v2554
      %v2685 = vadd.f32 %v2397, %v2557
      %v2686 = vadd.f32 %v2398, %v2562
      %v2687 = vadd.f32 %v2399, %v2565
      %v2688 = vadd.f32 %v2400, %v2570
      %v2689 = vadd.f32 %v2401, %v2573
      %v2690 = vadd.f32 %v2402, %v2578
      %v2691 = vadd.f32 %v2403, %v2581
      %v2692 = vadd.f32 %v2404, %v2586
      %v2693 = vadd.f32 %v2405, %v2589
      %v2694 = vadd.f32 %v2406, %v2594
      %v2695 = vadd.f32 %v2407, %v2597
      %v2696 = vadd.f32 %v2408, %v2602
      %v2697 = vadd.f32 %v2409, %v2605
      %v2698 = vadd.f32 %v2410, %v2610
      %v2699 = vadd.f32 %v2411, %v2613
      %v2700 = vadd.f32 %v2412, %v2618
      %v2701 = vadd.f32 %v2413, %v2621
      %v2702 = vadd.f32 %v2414, %v2626
      %v2703 = vadd.f32 %v2415, %v2629
      %v2704 = vadd.f32 %v2416, %v2634
      %v2705 = vadd.f32 %v2417, %v2637
      %v2706 = vadd.f32 %v2418, %v2642
      %v2707 = vadd.f32 %v2419, %v2645
      %v2708 = vadd.f32 %v2420, %v2650
      %v2709 = vadd.f32 %v2421, %v2653
      %v2710 = vadd.f32 %v2422, %v2658
      %v2711 = vadd.f32 %v2423, %v2661
      %v2712 = vadd.f32 %v2424, %v2666
      %v2713 = vadd.f32 %v2425, %v2669
      %v2714 = vadd.f32 %v2426, %v2674
      %v2715 = vadd.f32 %v2427, %v2677
      %s2716 = scalar_lea.vmem %s5, 256
      %v2717 = vld [vmem:[%s2716] sm:$0xf]
      %v2718 = vld [vmem:[%s2716 + $0x4] sm:$0xf]
      %v2719 = vld [vmem:[%s2716 + $0x8] sm:$0xf]
      %v2720 = vld [vmem:[%s2716 + $0xc] sm:$0xf]
      %v2721 = vld [vmem:[%s2716 + $0x10] sm:$0xf]
      %v2722 = vld [vmem:[%s2716 + $0x14] sm:$0xf]
      %v2723 = vld [vmem:[%s2716 + $0x18] sm:$0xf]
      %v2724 = vld [vmem:[%s2716 + $0x1c] sm:$0xf]
      %v2725 = vld [vmem:[%s2716 + $0x20] sm:$0xf]
      %v2726 = vld [vmem:[%s2716 + $0x24] sm:$0xf]
      %v2727 = vld [vmem:[%s2716 + $0x28] sm:$0xf]
      %v2728 = vld [vmem:[%s2716 + $0x2c] sm:$0xf]
      %v2729 = vld [vmem:[%s2716 + $0x30] sm:$0xf]
      %v2730 = vld [vmem:[%s2716 + $0x34] sm:$0xf]
      %v2731 = vld [vmem:[%s2716 + $0x38] sm:$0xf]
      %v2732 = vld [vmem:[%s2716 + $0x3c] sm:$0xf]
      %vm2733 = vsmask.f32 6400
      %v2734 = vrot.slane %v1471, 1
      %v2735 = vrot.slane %v1467, 2
      %v2736 = vor.u32 %v2734, %v2735
      %v2737 = vrot.slane %v1479, 1
      %v2738 = vrot.slane %v1475, 2
      %v2739 = vor.u32 %v2737, %v2738
      %v2740 = vsel %vm2733, %v2736, %v2739
      %v2741 = vrot.slane %v1487, 1
      %v2742 = vrot.slane %v1483, 2
      %v2743 = vor.u32 %v2741, %v2742
      %v2744 = vsel %vm2733, %v2739, %v2743
      %v2745 = vrot.slane %v1495, 1
      %v2746 = vrot.slane %v1491, 2
      %v2747 = vor.u32 %v2745, %v2746
      %v2748 = vsel %vm2733, %v2743, %v2747
      %v2749 = vrot.slane %v1503, 1
      %v2750 = vrot.slane %v1499, 2
      %v2751 = vor.u32 %v2749, %v2750
      %v2752 = vsel %vm2733, %v2747, %v2751
      %v2753 = vrot.slane %v1511, 1
      %v2754 = vrot.slane %v1507, 2
      %v2755 = vor.u32 %v2753, %v2754
      %v2756 = vsel %vm2733, %v2751, %v2755
      %v2757 = vrot.slane %v1519, 1
      %v2758 = vrot.slane %v1515, 2
      %v2759 = vor.u32 %v2757, %v2758
      %v2760 = vsel %vm2733, %v2755, %v2759
      %v2761 = vrot.slane %v1527, 1
      %v2762 = vrot.slane %v1523, 2
      %v2763 = vor.u32 %v2761, %v2762
      %v2764 = vsel %vm2733, %v2759, %v2763
      %v2765 = vrot.slane %v1535, 1
      %v2766 = vrot.slane %v1531, 2
      %v2767 = vor.u32 %v2765, %v2766
      %v2768 = vsel %vm2733, %v2763, %v2767
      %v2769 = vrot.slane %v1543, 1
      %v2770 = vrot.slane %v1539, 2
      %v2771 = vor.u32 %v2769, %v2770
      %v2772 = vsel %vm2733, %v2767, %v2771
      %v2773 = vrot.slane %v1551, 1
      %v2774 = vrot.slane %v1547, 2
      %v2775 = vor.u32 %v2773, %v2774
      %v2776 = vsel %vm2733, %v2771, %v2775
      %v2777 = vrot.slane %v1559, 1
      %v2778 = vrot.slane %v1555, 2
      %v2779 = vor.u32 %v2777, %v2778
      %v2780 = vsel %vm2733, %v2775, %v2779
      %v2781 = vrot.slane %v1567, 1
      %v2782 = vrot.slane %v1563, 2
      %v2783 = vor.u32 %v2781, %v2782
      %v2784 = vsel %vm2733, %v2779, %v2783
      %v2785 = vrot.slane %v1575, 1
      %v2786 = vrot.slane %v1571, 2
      %v2787 = vor.u32 %v2785, %v2786
      %v2788 = vsel %vm2733, %v2783, %v2787
      %v2789 = vrot.slane %v1583, 1
      %v2790 = vrot.slane %v1579, 2
      %v2791 = vor.u32 %v2789, %v2790
      %v2792 = vsel %vm2733, %v2787, %v2791
      %v2793 = vrot.slane %v1591, 1
      %v2794 = vrot.slane %v1587, 2
      %v2795 = vor.u32 %v2793, %v2794
      %v2796 = vsel %vm2733, %v2791, %v2795
      %v2797 = vrot.slane %v1599, 1
      %v2798 = vrot.slane %v1595, 2
      %v2799 = vor.u32 %v2797, %v2798
      %v2800 = vsel %vm2733, %v2795, %v2799
      %v2802 = vshrl.u32 %v2428, 16
      %v2804 = vrot.slane %v2802, 1
      %v2805 = vshll.u32 %v2428, 16
      %v2807 = vrot.slane %v2805, 2
      %v2808 = vor.u32 %v2804, %v2807
      %v2809 = vsel %vm2733, %v2799, %v2808
      %v2811 = vshrl.u32 %v2429, 16
      %v2813 = vrot.slane %v2811, 1
      %v2814 = vshll.u32 %v2429, 16
      %v2816 = vrot.slane %v2814, 2
      %v2817 = vor.u32 %v2813, %v2816
      %v2818 = vsel %vm2733, %v2808, %v2817
      %v2853 = vunpack.c.l.b16 %v2717
      %v2854 = vunpack.c.l.b16 %v2718
      %v2855 = vunpack.c.l.b16 %v2719
      %v2856 = vunpack.c.l.b16 %v2720
      %v2857 = vunpack.c.l.b16 %v2721
      %v2858 = vunpack.c.l.b16 %v2722
      %v2859 = vunpack.c.l.b16 %v2723
      %v2860 = vunpack.c.l.b16 %v2724
      %v2861 = vunpack.c.l.b16 %v2725
      %v2862 = vunpack.c.l.b16 %v2726
      %v2863 = vunpack.c.l.b16 %v2727
      %v2864 = vunpack.c.l.b16 %v2728
      %v2865 = vunpack.c.l.b16 %v2729
      %v2866 = vunpack.c.l.b16 %v2730
      %v2867 = vunpack.c.l.b16 %v2731
      %v2868 = vunpack.c.l.b16 %v2732
      %v2869 = vpack.c.b16 %v2854, %v2853
      %v2870 = vpack.c.b16 %v2856, %v2855
      %v2871 = vpack.c.b16 %v2858, %v2857
      %v2872 = vpack.c.b16 %v2860, %v2859
      %v2873 = vpack.c.b16 %v2862, %v2861
      %v2874 = vpack.c.b16 %v2864, %v2863
      %v2875 = vpack.c.b16 %v2866, %v2865
      %v2876 = vpack.c.b16 %v2868, %v2867
      %2885 = vmatprep.subr.bf16.mxu0 0
      %2886 = vmatpush1.bf16.msra.mxu0 %v2876
      %2887 = vmatprep.subr.bf16.mxu0 0
      %2888 = vmatpush1.bf16.msra.mxu0 %v2875
      %2889 = vmatprep.subr.bf16.mxu0 0
      %2890 = vmatpush1.bf16.msra.mxu0 %v2874
      %2891 = vmatprep.subr.bf16.mxu0 0
      %2892 = vmatpush1.bf16.msra.mxu0 %v2873
      %2893 = vmatprep.subr.bf16.mxu0 0
      %2894 = vmatpush1.bf16.msra.mxu0 %v2872
      %2895 = vmatprep.subr.bf16.mxu0 0
      %2896 = vmatpush1.bf16.msra.mxu0 %v2871
      %2897 = vmatprep.subr.bf16.mxu0 0
      %2898 = vmatpush1.bf16.msra.mxu0 %v2870
      %2899 = vmatprep.subr.bf16.mxu0 0
      %2900 = vmatpush1.bf16.msra.mxu0 %v2869
      %2901 = vmatprep.subr.bf16.mxu0 0
      %2902 = vmatpush2.bf16.msra.mxu0 0
      %2903 = vmatprep.subr.bf16.mxu0 0
      %2904 = vmatpush2.bf16.msra.mxu0 0
      %2905 = vmatprep.subr.bf16.mxu0 0
      %2906 = vmatpush2.bf16.msra.mxu0 0
      %2907 = vmatprep.subr.bf16.mxu0 0
      %2908 = vmatpush2.bf16.msra.mxu0 0
      %2909 = vmatprep.subr.bf16.mxu0 0
      %2910 = vmatpush2.bf16.msra.mxu0 0
      %2911 = vmatprep.subr.bf16.mxu0 0
      %2912 = vmatpush2.bf16.msra.mxu0 0
      %2913 = vmatprep.subr.bf16.mxu0 0
      %2914 = vmatpush2.bf16.msra.mxu0 0
      %2915 = vmatprep.subr.bf16.mxu0 0
      %2916 = vmatpush2.bf16.msra.mxu0 0
      %2917 = vmatprep.mubr.bf16.mxu0 0
      %2918 = vmatmul.mubr.bf16.gmra.mxu0 %v2740
      %v2919 = vpop.f32.mrf.mxu0
      %v2920 = vadd.f32 0.0, %v2919
      %v2921 = vpop.f32.mrf.mxu0
      %v2922 = vpop.f32.mrf.mxu0
      %v2923 = vadd.f32 0.0, %v2922
      %v2924 = vpop.f32.mrf.mxu0
      %2925 = vmatprep.mubr.bf16.mxu0 0
      %2926 = vmatmul.mubr.bf16.gmra.mxu0 %v2744
      %v2927 = vpop.f32.mrf.mxu0
      %v2928 = vadd.f32 0.0, %v2927
      %v2929 = vpop.f32.mrf.mxu0
      %v2930 = vpop.f32.mrf.mxu0
      %v2931 = vadd.f32 0.0, %v2930
      %v2932 = vpop.f32.mrf.mxu0
      %2933 = vmatprep.mubr.bf16.mxu0 0
      %2934 = vmatmul.mubr.bf16.gmra.mxu0 %v2748
      %v2935 = vpop.f32.mrf.mxu0
      %v2936 = vadd.f32 0.0, %v2935
      %v2937 = vpop.f32.mrf.mxu0
      %v2938 = vpop.f32.mrf.mxu0
      %v2939 = vadd.f32 0.0, %v2938
      %v2940 = vpop.f32.mrf.mxu0
      %2941 = vmatprep.mubr.bf16.mxu0 0
      %2942 = vmatmul.mubr.bf16.gmra.mxu0 %v2752
      %v2943 = vpop.f32.mrf.mxu0
      %v2944 = vadd.f32 0.0, %v2943
      %v2945 = vpop.f32.mrf.mxu0
      %v2946 = vpop.f32.mrf.mxu0
      %v2947 = vadd.f32 0.0, %v2946
      %v2948 = vpop.f32.mrf.mxu0
      %2949 = vmatprep.mubr.bf16.mxu0 0
      %2950 = vmatmul.mubr.bf16.gmra.mxu0 %v2756
      %v2951 = vpop.f32.mrf.mxu0
      %v2952 = vadd.f32 0.0, %v2951
      %v2953 = vpop.f32.mrf.mxu0
      %v2954 = vpop.f32.mrf.mxu0
      %v2955 = vadd.f32 0.0, %v2954
      %v2956 = vpop.f32.mrf.mxu0
      %2957 = vmatprep.mubr.bf16.mxu0 0
      %2958 = vmatmul.mubr.bf16.gmra.mxu0 %v2760
      %v2959 = vpop.f32.mrf.mxu0
      %v2960 = vadd.f32 0.0, %v2959
      %v2961 = vpop.f32.mrf.mxu0
      %v2962 = vpop.f32.mrf.mxu0
      %v2963 = vadd.f32 0.0, %v2962
      %v2964 = vpop.f32.mrf.mxu0
      %2965 = vmatprep.mubr.bf16.mxu0 0
      %2966 = vmatmul.mubr.bf16.gmra.mxu0 %v2764
      %v2967 = vpop.f32.mrf.mxu0
      %v2968 = vadd.f32 0.0, %v2967
      %v2969 = vpop.f32.mrf.mxu0
      %v2970 = vpop.f32.mrf.mxu0
      %v2971 = vadd.f32 0.0, %v2970
      %v2972 = vpop.f32.mrf.mxu0
      %2973 = vmatprep.mubr.bf16.mxu0 0
      %2974 = vmatmul.mubr.bf16.gmra.mxu0 %v2768
      %v2975 = vpop.f32.mrf.mxu0
      %v2976 = vadd.f32 0.0, %v2975
      %v2977 = vpop.f32.mrf.mxu0
      %v2978 = vpop.f32.mrf.mxu0
      %v2979 = vadd.f32 0.0, %v2978
      %v2980 = vpop.f32.mrf.mxu0
      %2981 = vmatprep.mubr.bf16.mxu0 0
      %2982 = vmatmul.mubr.bf16.gmra.mxu0 %v2772
      %v2983 = vpop.f32.mrf.mxu0
      %v2984 = vadd.f32 0.0, %v2983
      %v2985 = vpop.f32.mrf.mxu0
      %v2986 = vpop.f32.mrf.mxu0
      %v2987 = vadd.f32 0.0, %v2986
      %v2988 = vpop.f32.mrf.mxu0
      %2989 = vmatprep.mubr.bf16.mxu0 0
      %2990 = vmatmul.mubr.bf16.gmra.mxu0 %v2776
      %v2991 = vpop.f32.mrf.mxu0
      %v2992 = vadd.f32 0.0, %v2991
      %v2993 = vpop.f32.mrf.mxu0
      %v2994 = vpop.f32.mrf.mxu0
      %v2995 = vadd.f32 0.0, %v2994
      %v2996 = vpop.f32.mrf.mxu0
      %2997 = vmatprep.mubr.bf16.mxu0 0
      %2998 = vmatmul.mubr.bf16.gmra.mxu0 %v2780
      %v2999 = vpop.f32.mrf.mxu0
      %v3000 = vadd.f32 0.0, %v2999
      %v3001 = vpop.f32.mrf.mxu0
      %v3002 = vpop.f32.mrf.mxu0
      %v3003 = vadd.f32 0.0, %v3002
      %v3004 = vpop.f32.mrf.mxu0
      %3005 = vmatprep.mubr.bf16.mxu0 0
      %3006 = vmatmul.mubr.bf16.gmra.mxu0 %v2784
      %v3007 = vpop.f32.mrf.mxu0
      %v3008 = vadd.f32 0.0, %v3007
      %v3009 = vpop.f32.mrf.mxu0
      %v3010 = vpop.f32.mrf.mxu0
      %v3011 = vadd.f32 0.0, %v3010
      %v3012 = vpop.f32.mrf.mxu0
      %3013 = vmatprep.mubr.bf16.mxu0 0
      %3014 = vmatmul.mubr.bf16.gmra.mxu0 %v2788
      %v3015 = vpop.f32.mrf.mxu0
      %v3016 = vadd.f32 0.0, %v3015
      %v3017 = vpop.f32.mrf.mxu0
      %v3018 = vpop.f32.mrf.mxu0
      %v3019 = vadd.f32 0.0, %v3018
      %v3020 = vpop.f32.mrf.mxu0
      %3021 = vmatprep.mubr.bf16.mxu0 0
      %3022 = vmatmul.mubr.bf16.gmra.mxu0 %v2792
      %v3023 = vpop.f32.mrf.mxu0
      %v3024 = vadd.f32 0.0, %v3023
      %v3025 = vpop.f32.mrf.mxu0
      %v3026 = vpop.f32.mrf.mxu0
      %v3027 = vadd.f32 0.0, %v3026
      %v3028 = vpop.f32.mrf.mxu0
      %3029 = vmatprep.mubr.bf16.mxu0 0
      %3030 = vmatmul.mubr.bf16.gmra.mxu0 %v2796
      %v3031 = vpop.f32.mrf.mxu0
      %v3032 = vadd.f32 0.0, %v3031
      %v3033 = vpop.f32.mrf.mxu0
      %v3034 = vpop.f32.mrf.mxu0
      %v3035 = vadd.f32 0.0, %v3034
      %v3036 = vpop.f32.mrf.mxu0
      %3037 = vmatprep.mubr.bf16.mxu0 0
      %3038 = vmatmul.mubr.bf16.gmra.mxu0 %v2800
      %v3039 = vpop.f32.mrf.mxu0
      %v3040 = vadd.f32 0.0, %v3039
      %v3041 = vpop.f32.mrf.mxu0
      %v3042 = vpop.f32.mrf.mxu0
      %v3043 = vadd.f32 0.0, %v3042
      %v3044 = vpop.f32.mrf.mxu0
      %3045 = vmatprep.mubr.bf16.mxu0 0
      %3046 = vmatmul.mubr.bf16.gmra.mxu0 %v2809
      %v3047 = vpop.f32.mrf.mxu0
      %v3048 = vadd.f32 0.0, %v3047
      %v3049 = vpop.f32.mrf.mxu0
      %v3050 = vpop.f32.mrf.mxu0
      %v3051 = vadd.f32 0.0, %v3050
      %v3052 = vpop.f32.mrf.mxu0
      %3053 = vmatprep.mubr.bf16.mxu0 0
      %3054 = vmatmul.mubr.bf16.gmra.mxu0 %v2818
      %v3055 = vpop.f32.mrf.mxu0
      %v3056 = vadd.f32 0.0, %v3055
      %v3057 = vpop.f32.mrf.mxu0
      %v3058 = vpop.f32.mrf.mxu0
      %v3059 = vadd.f32 0.0, %v3058
      %v3060 = vpop.f32.mrf.mxu0
      %3061 = vdwg.mxu0
      %v3062 = vadd.f32 %v2680, %v2920
      %v3063 = vadd.f32 %v2681, %v2923
      %v3064 = vadd.f32 %v2682, %v2928
      %v3065 = vadd.f32 %v2683, %v2931
      %v3066 = vadd.f32 %v2684, %v2936
      %v3067 = vadd.f32 %v2685, %v2939
      %v3068 = vadd.f32 %v2686, %v2944
      %v3069 = vadd.f32 %v2687, %v2947
      %v3070 = vadd.f32 %v2688, %v2952
      %v3071 = vadd.f32 %v2689, %v2955
      %v3072 = vadd.f32 %v2690, %v2960
      %v3073 = vadd.f32 %v2691, %v2963
      %v3074 = vadd.f32 %v2692, %v2968
      %v3075 = vadd.f32 %v2693, %v2971
      %v3076 = vadd.f32 %v2694, %v2976
      %v3077 = vadd.f32 %v2695, %v2979
      %v3078 = vadd.f32 %v2696, %v2984
      %v3079 = vadd.f32 %v2697, %v2987
      %v3080 = vadd.f32 %v2698, %v2992
      %v3081 = vadd.f32 %v2699, %v2995
      %v3082 = vadd.f32 %v2700, %v3000
      %v3083 = vadd.f32 %v2701, %v3003
      %v3084 = vadd.f32 %v2702, %v3008
      %v3085 = vadd.f32 %v2703, %v3011
      %v3086 = vadd.f32 %v2704, %v3016
      %v3087 = vadd.f32 %v2705, %v3019
      %v3088 = vadd.f32 %v2706, %v3024
      %v3089 = vadd.f32 %v2707, %v3027
      %v3090 = vadd.f32 %v2708, %v3032
      %v3091 = vadd.f32 %v2709, %v3035
      %v3092 = vadd.f32 %v2710, %v3040
      %v3093 = vadd.f32 %v2711, %v3043
      %v3094 = vadd.f32 %v2712, %v3048
      %v3095 = vadd.f32 %v2713, %v3051
      %v3096 = vadd.f32 %v2714, %v3056
      %v3097 = vadd.f32 %v2715, %v3059
      %s3098 = scalar_lea.vmem %s5, 320
      %v3099 = vld [vmem:[%s3098] sm:$0xf]
      %v3100 = vld [vmem:[%s3098 + $0x4] sm:$0xf]
      %v3101 = vld [vmem:[%s3098 + $0x8] sm:$0xf]
      %v3102 = vld [vmem:[%s3098 + $0xc] sm:$0xf]
      %v3103 = vld [vmem:[%s3098 + $0x10] sm:$0xf]
      %v3104 = vld [vmem:[%s3098 + $0x14] sm:$0xf]
      %v3105 = vld [vmem:[%s3098 + $0x18] sm:$0xf]
      %v3106 = vld [vmem:[%s3098 + $0x1c] sm:$0xf]
      %v3107 = vld [vmem:[%s3098 + $0x20] sm:$0xf]
      %v3108 = vld [vmem:[%s3098 + $0x24] sm:$0xf]
      %v3109 = vld [vmem:[%s3098 + $0x28] sm:$0xf]
      %v3110 = vld [vmem:[%s3098 + $0x2c] sm:$0xf]
      %v3111 = vld [vmem:[%s3098 + $0x30] sm:$0xf]
      %v3112 = vld [vmem:[%s3098 + $0x34] sm:$0xf]
      %v3113 = vld [vmem:[%s3098 + $0x38] sm:$0xf]
      %v3114 = vld [vmem:[%s3098 + $0x3c] sm:$0xf]
      %vm3115 = vcmask 1045504
      %v3116 = vrot.slane %v1407, 2
      %v3117 = vrot.slane %v1408, 2
      %v3118 = vsel %vm3115, %v3116, %v3117
      %v3119 = vrot.slane %v1409, 2
      %v3120 = vsel %vm3115, %v3117, %v3119
      %v3121 = vrot.slane %v1410, 2
      %v3122 = vsel %vm3115, %v3119, %v3121
      %v3123 = vrot.slane %v1411, 2
      %v3124 = vsel %vm3115, %v3121, %v3123
      %v3125 = vrot.slane %v1412, 2
      %v3126 = vsel %vm3115, %v3123, %v3125
      %v3127 = vrot.slane %v1413, 2
      %v3128 = vsel %vm3115, %v3125, %v3127
      %v3129 = vrot.slane %v1414, 2
      %v3130 = vsel %vm3115, %v3127, %v3129
      %v3131 = vrot.slane %v1415, 2
      %v3132 = vsel %vm3115, %v3129, %v3131
      %v3133 = vrot.slane %v1416, 2
      %v3134 = vsel %vm3115, %v3131, %v3133
      %v3135 = vrot.slane %v1417, 2
      %v3136 = vsel %vm3115, %v3133, %v3135
      %v3137 = vrot.slane %v1418, 2
      %v3138 = vsel %vm3115, %v3135, %v3137
      %v3139 = vrot.slane %v1419, 2
      %v3140 = vsel %vm3115, %v3137, %v3139
      %v3141 = vrot.slane %v1420, 2
      %v3142 = vsel %vm3115, %v3139, %v3141
      %v3143 = vrot.slane %v1421, 2
      %v3144 = vsel %vm3115, %v3141, %v3143
      %v3145 = vrot.slane %v1422, 2
      %v3146 = vsel %vm3115, %v3143, %v3145
      %v3147 = vrot.slane %v1423, 2
      %v3148 = vsel %vm3115, %v3145, %v3147
      %v3149 = vrot.slane %v2428, 2
      %v3150 = vsel %vm3115, %v3147, %v3149
      %v3151 = vrot.slane %v2429, 2
      %v3152 = vsel %vm3115, %v3149, %v3151
      %v3187 = vunpack.c.l.b16 %v3099
      %v3188 = vunpack.c.l.b16 %v3100
      %v3189 = vunpack.c.l.b16 %v3101
      %v3190 = vunpack.c.l.b16 %v3102
      %v3191 = vunpack.c.l.b16 %v3103
      %v3192 = vunpack.c.l.b16 %v3104
      %v3193 = vunpack.c.l.b16 %v3105
      %v3194 = vunpack.c.l.b16 %v3106
      %v3195 = vunpack.c.l.b16 %v3107
      %v3196 = vunpack.c.l.b16 %v3108
      %v3197 = vunpack.c.l.b16 %v3109
      %v3198 = vunpack.c.l.b16 %v3110
      %v3199 = vunpack.c.l.b16 %v3111
      %v3200 = vunpack.c.l.b16 %v3112
      %v3201 = vunpack.c.l.b16 %v3113
      %v3202 = vunpack.c.l.b16 %v3114
      %v3203 = vpack.c.b16 %v3188, %v3187
      %v3204 = vpack.c.b16 %v3190, %v3189
      %v3205 = vpack.c.b16 %v3192, %v3191
      %v3206 = vpack.c.b16 %v3194, %v3193
      %v3207 = vpack.c.b16 %v3196, %v3195
      %v3208 = vpack.c.b16 %v3198, %v3197
      %v3209 = vpack.c.b16 %v3200, %v3199
      %v3210 = vpack.c.b16 %v3202, %v3201
      %3219 = vmatprep.subr.bf16.mxu0 0
      %3220 = vmatpush1.bf16.msra.mxu0 %v3210
      %3221 = vmatprep.subr.bf16.mxu0 0
      %3222 = vmatpush1.bf16.msra.mxu0 %v3209
      %3223 = vmatprep.subr.bf16.mxu0 0
      %3224 = vmatpush1.bf16.msra.mxu0 %v3208
      %3225 = vmatprep.subr.bf16.mxu0 0
      %3226 = vmatpush1.bf16.msra.mxu0 %v3207
      %3227 = vmatprep.subr.bf16.mxu0 0
      %3228 = vmatpush1.bf16.msra.mxu0 %v3206
      %3229 = vmatprep.subr.bf16.mxu0 0
      %3230 = vmatpush1.bf16.msra.mxu0 %v3205
      %3231 = vmatprep.subr.bf16.mxu0 0
      %3232 = vmatpush1.bf16.msra.mxu0 %v3204
      %3233 = vmatprep.subr.bf16.mxu0 0
      %3234 = vmatpush1.bf16.msra.mxu0 %v3203
      %3235 = vmatprep.subr.bf16.mxu0 0
      %3236 = vmatpush2.bf16.msra.mxu0 0
      %3237 = vmatprep.subr.bf16.mxu0 0
      %3238 = vmatpush2.bf16.msra.mxu0 0
      %3239 = vmatprep.subr.bf16.mxu0 0
      %3240 = vmatpush2.bf16.msra.mxu0 0
      %3241 = vmatprep.subr.bf16.mxu0 0
      %3242 = vmatpush2.bf16.msra.mxu0 0
      %3243 = vmatprep.subr.bf16.mxu0 0
      %3244 = vmatpush2.bf16.msra.mxu0 0
      %3245 = vmatprep.subr.bf16.mxu0 0
      %3246 = vmatpush2.bf16.msra.mxu0 0
      %3247 = vmatprep.subr.bf16.mxu0 0
      %3248 = vmatpush2.bf16.msra.mxu0 0
      %3249 = vmatprep.subr.bf16.mxu0 0
      %3250 = vmatpush2.bf16.msra.mxu0 0
      %3251 = vmatprep.mubr.bf16.mxu0 0
      %3252 = vmatmul.mubr.bf16.gmra.mxu0 %v3118
      %v3253 = vpop.f32.mrf.mxu0
      %v3254 = vadd.f32 0.0, %v3253
      %v3255 = vpop.f32.mrf.mxu0
      %v3256 = vpop.f32.mrf.mxu0
      %v3257 = vadd.f32 0.0, %v3256
      %v3258 = vpop.f32.mrf.mxu0
      %3259 = vmatprep.mubr.bf16.mxu0 0
      %3260 = vmatmul.mubr.bf16.gmra.mxu0 %v3120
      %v3261 = vpop.f32.mrf.mxu0
      %v3262 = vadd.f32 0.0, %v3261
      %v3263 = vpop.f32.mrf.mxu0
      %v3264 = vpop.f32.mrf.mxu0
      %v3265 = vadd.f32 0.0, %v3264
      %v3266 = vpop.f32.mrf.mxu0
      %3267 = vmatprep.mubr.bf16.mxu0 0
      %3268 = vmatmul.mubr.bf16.gmra.mxu0 %v3122
      %v3269 = vpop.f32.mrf.mxu0
      %v3270 = vadd.f32 0.0, %v3269
      %v3271 = vpop.f32.mrf.mxu0
      %v3272 = vpop.f32.mrf.mxu0
      %v3273 = vadd.f32 0.0, %v3272
      %v3274 = vpop.f32.mrf.mxu0
      %3275 = vmatprep.mubr.bf16.mxu0 0
      %3276 = vmatmul.mubr.bf16.gmra.mxu0 %v3124
      %v3277 = vpop.f32.mrf.mxu0
      %v3278 = vadd.f32 0.0, %v3277
      %v3279 = vpop.f32.mrf.mxu0
      %v3280 = vpop.f32.mrf.mxu0
      %v3281 = vadd.f32 0.0, %v3280
      %v3282 = vpop.f32.mrf.mxu0
      %3283 = vmatprep.mubr.bf16.mxu0 0
      %3284 = vmatmul.mubr.bf16.gmra.mxu0 %v3126
      %v3285 = vpop.f32.mrf.mxu0
      %v3286 = vadd.f32 0.0, %v3285
      %v3287 = vpop.f32.mrf.mxu0
      %v3288 = vpop.f32.mrf.mxu0
      %v3289 = vadd.f32 0.0, %v3288
      %v3290 = vpop.f32.mrf.mxu0
      %3291 = vmatprep.mubr.bf16.mxu0 0
      %3292 = vmatmul.mubr.bf16.gmra.mxu0 %v3128
      %v3293 = vpop.f32.mrf.mxu0
      %v3294 = vadd.f32 0.0, %v3293
      %v3295 = vpop.f32.mrf.mxu0
      %v3296 = vpop.f32.mrf.mxu0
      %v3297 = vadd.f32 0.0, %v3296
      %v3298 = vpop.f32.mrf.mxu0
      %3299 = vmatprep.mubr.bf16.mxu0 0
      %3300 = vmatmul.mubr.bf16.gmra.mxu0 %v3130
      %v3301 = vpop.f32.mrf.mxu0
      %v3302 = vadd.f32 0.0, %v3301
      %v3303 = vpop.f32.mrf.mxu0
      %v3304 = vpop.f32.mrf.mxu0
      %v3305 = vadd.f32 0.0, %v3304
      %v3306 = vpop.f32.mrf.mxu0
      %3307 = vmatprep.mubr.bf16.mxu0 0
      %3308 = vmatmul.mubr.bf16.gmra.mxu0 %v3132
      %v3309 = vpop.f32.mrf.mxu0
      %v3310 = vadd.f32 0.0, %v3309
      %v3311 = vpop.f32.mrf.mxu0
      %v3312 = vpop.f32.mrf.mxu0
      %v3313 = vadd.f32 0.0, %v3312
      %v3314 = vpop.f32.mrf.mxu0
      %3315 = vmatprep.mubr.bf16.mxu0 0
      %3316 = vmatmul.mubr.bf16.gmra.mxu0 %v3134
      %v3317 = vpop.f32.mrf.mxu0
      %v3318 = vadd.f32 0.0, %v3317
      %v3319 = vpop.f32.mrf.mxu0
      %v3320 = vpop.f32.mrf.mxu0
      %v3321 = vadd.f32 0.0, %v3320
      %v3322 = vpop.f32.mrf.mxu0
      %3323 = vmatprep.mubr.bf16.mxu0 0
      %3324 = vmatmul.mubr.bf16.gmra.mxu0 %v3136
      %v3325 = vpop.f32.mrf.mxu0
      %v3326 = vadd.f32 0.0, %v3325
      %v3327 = vpop.f32.mrf.mxu0
      %v3328 = vpop.f32.mrf.mxu0
      %v3329 = vadd.f32 0.0, %v3328
      %v3330 = vpop.f32.mrf.mxu0
      %3331 = vmatprep.mubr.bf16.mxu0 0
      %3332 = vmatmul.mubr.bf16.gmra.mxu0 %v3138
      %v3333 = vpop.f32.mrf.mxu0
      %v3334 = vadd.f32 0.0, %v3333
      %v3335 = vpop.f32.mrf.mxu0
      %v3336 = vpop.f32.mrf.mxu0
      %v3337 = vadd.f32 0.0, %v3336
      %v3338 = vpop.f32.mrf.mxu0
      %3339 = vmatprep.mubr.bf16.mxu0 0
      %3340 = vmatmul.mubr.bf16.gmra.mxu0 %v3140
      %v3341 = vpop.f32.mrf.mxu0
      %v3342 = vadd.f32 0.0, %v3341
      %v3343 = vpop.f32.mrf.mxu0
      %v3344 = vpop.f32.mrf.mxu0
      %v3345 = vadd.f32 0.0, %v3344
      %v3346 = vpop.f32.mrf.mxu0
      %3347 = vmatprep.mubr.bf16.mxu0 0
      %3348 = vmatmul.mubr.bf16.gmra.mxu0 %v3142
      %v3349 = vpop.f32.mrf.mxu0
      %v3350 = vadd.f32 0.0, %v3349
      %v3351 = vpop.f32.mrf.mxu0
      %v3352 = vpop.f32.mrf.mxu0
      %v3353 = vadd.f32 0.0, %v3352
      %v3354 = vpop.f32.mrf.mxu0
      %3355 = vmatprep.mubr.bf16.mxu0 0
      %3356 = vmatmul.mubr.bf16.gmra.mxu0 %v3144
      %v3357 = vpop.f32.mrf.mxu0
      %v3358 = vadd.f32 0.0, %v3357
      %v3359 = vpop.f32.mrf.mxu0
      %v3360 = vpop.f32.mrf.mxu0
      %v3361 = vadd.f32 0.0, %v3360
      %v3362 = vpop.f32.mrf.mxu0
      %3363 = vmatprep.mubr.bf16.mxu0 0
      %3364 = vmatmul.mubr.bf16.gmra.mxu0 %v3146
      %v3365 = vpop.f32.mrf.mxu0
      %v3366 = vadd.f32 0.0, %v3365
      %v3367 = vpop.f32.mrf.mxu0
      %v3368 = vpop.f32.mrf.mxu0
      %v3369 = vadd.f32 0.0, %v3368
      %v3370 = vpop.f32.mrf.mxu0
      %3371 = vmatprep.mubr.bf16.mxu0 0
      %3372 = vmatmul.mubr.bf16.gmra.mxu0 %v3148
      %v3373 = vpop.f32.mrf.mxu0
      %v3374 = vadd.f32 0.0, %v3373
      %v3375 = vpop.f32.mrf.mxu0
      %v3376 = vpop.f32.mrf.mxu0
      %v3377 = vadd.f32 0.0, %v3376
      %v3378 = vpop.f32.mrf.mxu0
      %3379 = vmatprep.mubr.bf16.mxu0 0
      %3380 = vmatmul.mubr.bf16.gmra.mxu0 %v3150
      %v3381 = vpop.f32.mrf.mxu0
      %v3382 = vadd.f32 0.0, %v3381
      %v3383 = vpop.f32.mrf.mxu0
      %v3384 = vpop.f32.mrf.mxu0
      %v3385 = vadd.f32 0.0, %v3384
      %v3386 = vpop.f32.mrf.mxu0
      %3387 = vmatprep.mubr.bf16.mxu0 0
      %3388 = vmatmul.mubr.bf16.gmra.mxu0 %v3152
      %v3389 = vpop.f32.mrf.mxu0
      %v3390 = vadd.f32 0.0, %v3389
      %v3391 = vpop.f32.mrf.mxu0
      %v3392 = vpop.f32.mrf.mxu0
      %v3393 = vadd.f32 0.0, %v3392
      %v3394 = vpop.f32.mrf.mxu0
      %3395 = vdwg.mxu0
      %v3396 = vadd.f32 %v3062, %v3254
      %v3397 = vadd.f32 %v3063, %v3257
      %v3398 = vadd.f32 %v3064, %v3262
      %v3399 = vadd.f32 %v3065, %v3265
      %v3400 = vadd.f32 %v3066, %v3270
      %v3401 = vadd.f32 %v3067, %v3273
      %v3402 = vadd.f32 %v3068, %v3278
      %v3403 = vadd.f32 %v3069, %v3281
      %v3404 = vadd.f32 %v3070, %v3286
      %v3405 = vadd.f32 %v3071, %v3289
      %v3406 = vadd.f32 %v3072, %v3294
      %v3407 = vadd.f32 %v3073, %v3297
      %v3408 = vadd.f32 %v3074, %v3302
      %v3409 = vadd.f32 %v3075, %v3305
      %v3410 = vadd.f32 %v3076, %v3310
      %v3411 = vadd.f32 %v3077, %v3313
      %v3412 = vadd.f32 %v3078, %v3318
      %v3413 = vadd.f32 %v3079, %v3321
      %v3414 = vadd.f32 %v3080, %v3326
      %v3415 = vadd.f32 %v3081, %v3329
      %v3416 = vadd.f32 %v3082, %v3334
      %v3417 = vadd.f32 %v3083, %v3337
      %v3418 = vadd.f32 %v3084, %v3342
      %v3419 = vadd.f32 %v3085, %v3345
      %v3420 = vadd.f32 %v3086, %v3350
      %v3421 = vadd.f32 %v3087, %v3353
      %v3422 = vadd.f32 %v3088, %v3358
      %v3423 = vadd.f32 %v3089, %v3361
      %v3424 = vadd.f32 %v3090, %v3366
      %v3425 = vadd.f32 %v3091, %v3369
      %v3426 = vadd.f32 %v3092, %v3374
      %v3427 = vadd.f32 %v3093, %v3377
      %v3428 = vadd.f32 %v3094, %v3382
      %v3429 = vadd.f32 %v3095, %v3385
      %v3430 = vadd.f32 %v3096, %v3390
      %v3431 = vadd.f32 %v3097, %v3393
      %v3432 = vpack.c.bf16 %v1404, %v1403
      %v3433 = vpack.c.bf16 %v1405, %v1405
      %s3434 = scalar_lea.vmem %s5, 384
      %v3435 = vld [vmem:[%s3434] sm:$0xf]
      %v3436 = vld [vmem:[%s3434 + $0x4] sm:$0xf]
      %v3437 = vld [vmem:[%s3434 + $0x8] sm:$0xf]
      %v3438 = vld [vmem:[%s3434 + $0xc] sm:$0xf]
      %v3439 = vld [vmem:[%s3434 + $0x10] sm:$0xf]
      %v3440 = vld [vmem:[%s3434 + $0x14] sm:$0xf]
      %v3441 = vld [vmem:[%s3434 + $0x18] sm:$0xf]
      %v3442 = vld [vmem:[%s3434 + $0x1c] sm:$0xf]
      %v3443 = vld [vmem:[%s3434 + $0x20] sm:$0xf]
      %v3444 = vld [vmem:[%s3434 + $0x24] sm:$0xf]
      %v3445 = vld [vmem:[%s3434 + $0x28] sm:$0xf]
      %v3446 = vld [vmem:[%s3434 + $0x2c] sm:$0xf]
      %v3447 = vld [vmem:[%s3434 + $0x30] sm:$0xf]
      %v3448 = vld [vmem:[%s3434 + $0x34] sm:$0xf]
      %v3449 = vld [vmem:[%s3434 + $0x38] sm:$0xf]
      %v3450 = vld [vmem:[%s3434 + $0x3c] sm:$0xf]
      %v3453 = vrot.slane %v3432, 2
      %v3454 = vsel %vm3115, %v3149, %v3453
      %v3455 = vrot.slane %v3433, 2
      %v3456 = vsel %vm3115, %v3453, %v3455
      %v3475 = vunpack.c.l.b16 %v3435
      %v3476 = vunpack.c.l.b16 %v3436
      %v3477 = vunpack.c.l.b16 %v3437
      %v3478 = vunpack.c.l.b16 %v3438
      %v3479 = vunpack.c.l.b16 %v3439
      %v3480 = vunpack.c.l.b16 %v3440
      %v3481 = vunpack.c.l.b16 %v3441
      %v3482 = vunpack.c.l.b16 %v3442
      %v3483 = vunpack.c.l.b16 %v3443
      %v3484 = vunpack.c.l.b16 %v3444
      %v3485 = vunpack.c.l.b16 %v3445
      %v3486 = vunpack.c.l.b16 %v3446
      %v3487 = vunpack.c.l.b16 %v3447
      %v3488 = vunpack.c.l.b16 %v3448
      %v3489 = vunpack.c.l.b16 %v3449
      %v3490 = vunpack.c.l.b16 %v3450
      %v3491 = vpack.c.b16 %v3476, %v3475
      %v3492 = vpack.c.b16 %v3478, %v3477
      %v3493 = vpack.c.b16 %v3480, %v3479
      %v3494 = vpack.c.b16 %v3482, %v3481
      %v3495 = vpack.c.b16 %v3484, %v3483
      %v3496 = vpack.c.b16 %v3486, %v3485
      %v3497 = vpack.c.b16 %v3488, %v3487
      %v3498 = vpack.c.b16 %v3490, %v3489
      %3507 = vmatprep.subr.bf16.mxu0 0
      %3508 = vmatpush1.bf16.msra.mxu0 %v3498
      %3509 = vmatprep.subr.bf16.mxu0 0
      %3510 = vmatpush1.bf16.msra.mxu0 %v3497
      %3511 = vmatprep.subr.bf16.mxu0 0
      %3512 = vmatpush1.bf16.msra.mxu0 %v3496
      %3513 = vmatprep.subr.bf16.mxu0 0
      %3514 = vmatpush1.bf16.msra.mxu0 %v3495
      %3515 = vmatprep.subr.bf16.mxu0 0
      %3516 = vmatpush1.bf16.msra.mxu0 %v3494
      %3517 = vmatprep.subr.bf16.mxu0 0
      %3518 = vmatpush1.bf16.msra.mxu0 %v3493
      %3519 = vmatprep.subr.bf16.mxu0 0
      %3520 = vmatpush1.bf16.msra.mxu0 %v3492
      %3521 = vmatprep.subr.bf16.mxu0 0
      %3522 = vmatpush1.bf16.msra.mxu0 %v3491
      %3523 = vmatprep.subr.bf16.mxu0 0
      %3524 = vmatpush2.bf16.msra.mxu0 0
      %3525 = vmatprep.subr.bf16.mxu0 0
      %3526 = vmatpush2.bf16.msra.mxu0 0
      %3527 = vmatprep.subr.bf16.mxu0 0
      %3528 = vmatpush2.bf16.msra.mxu0 0
      %3529 = vmatprep.subr.bf16.mxu0 0
      %3530 = vmatpush2.bf16.msra.mxu0 0
      %3531 = vmatprep.subr.bf16.mxu0 0
      %3532 = vmatpush2.bf16.msra.mxu0 0
      %3533 = vmatprep.subr.bf16.mxu0 0
      %3534 = vmatpush2.bf16.msra.mxu0 0
      %3535 = vmatprep.subr.bf16.mxu0 0
      %3536 = vmatpush2.bf16.msra.mxu0 0
      %3537 = vmatprep.subr.bf16.mxu0 0
      %3538 = vmatpush2.bf16.msra.mxu0 0
      %3539 = vmatprep.mubr.bf16.mxu0 0
      %3540 = vmatmul.mubr.bf16.gmra.mxu0 %v3120
      %v3541 = vpop.f32.mrf.mxu0
      %v3542 = vadd.f32 0.0, %v3541
      %v3543 = vpop.f32.mrf.mxu0
      %v3544 = vpop.f32.mrf.mxu0
      %v3545 = vadd.f32 0.0, %v3544
      %v3546 = vpop.f32.mrf.mxu0
      %3547 = vmatprep.mubr.bf16.mxu0 0
      %3548 = vmatmul.mubr.bf16.gmra.mxu0 %v3122
      %v3549 = vpop.f32.mrf.mxu0
      %v3550 = vadd.f32 0.0, %v3549
      %v3551 = vpop.f32.mrf.mxu0
      %v3552 = vpop.f32.mrf.mxu0
      %v3553 = vadd.f32 0.0, %v3552
      %v3554 = vpop.f32.mrf.mxu0
      %3555 = vmatprep.mubr.bf16.mxu0 0
      %3556 = vmatmul.mubr.bf16.gmra.mxu0 %v3124
      %v3557 = vpop.f32.mrf.mxu0
      %v3558 = vadd.f32 0.0, %v3557
      %v3559 = vpop.f32.mrf.mxu0
      %v3560 = vpop.f32.mrf.mxu0
      %v3561 = vadd.f32 0.0, %v3560
      %v3562 = vpop.f32.mrf.mxu0
      %3563 = vmatprep.mubr.bf16.mxu0 0
      %3564 = vmatmul.mubr.bf16.gmra.mxu0 %v3126
      %v3565 = vpop.f32.mrf.mxu0
      %v3566 = vadd.f32 0.0, %v3565
      %v3567 = vpop.f32.mrf.mxu0
      %v3568 = vpop.f32.mrf.mxu0
      %v3569 = vadd.f32 0.0, %v3568
      %v3570 = vpop.f32.mrf.mxu0
      %3571 = vmatprep.mubr.bf16.mxu0 0
      %3572 = vmatmul.mubr.bf16.gmra.mxu0 %v3128
      %v3573 = vpop.f32.mrf.mxu0
      %v3574 = vadd.f32 0.0, %v3573
      %v3575 = vpop.f32.mrf.mxu0
      %v3576 = vpop.f32.mrf.mxu0
      %v3577 = vadd.f32 0.0, %v3576
      %v3578 = vpop.f32.mrf.mxu0
      %3579 = vmatprep.mubr.bf16.mxu0 0
      %3580 = vmatmul.mubr.bf16.gmra.mxu0 %v3130
      %v3581 = vpop.f32.mrf.mxu0
      %v3582 = vadd.f32 0.0, %v3581
      %v3583 = vpop.f32.mrf.mxu0
      %v3584 = vpop.f32.mrf.mxu0
      %v3585 = vadd.f32 0.0, %v3584
      %v3586 = vpop.f32.mrf.mxu0
      %3587 = vmatprep.mubr.bf16.mxu0 0
      %3588 = vmatmul.mubr.bf16.gmra.mxu0 %v3132
      %v3589 = vpop.f32.mrf.mxu0
      %v3590 = vadd.f32 0.0, %v3589
      %v3591 = vpop.f32.mrf.mxu0
      %v3592 = vpop.f32.mrf.mxu0
      %v3593 = vadd.f32 0.0, %v3592
      %v3594 = vpop.f32.mrf.mxu0
      %3595 = vmatprep.mubr.bf16.mxu0 0
      %3596 = vmatmul.mubr.bf16.gmra.mxu0 %v3134
      %v3597 = vpop.f32.mrf.mxu0
      %v3598 = vadd.f32 0.0, %v3597
      %v3599 = vpop.f32.mrf.mxu0
      %v3600 = vpop.f32.mrf.mxu0
      %v3601 = vadd.f32 0.0, %v3600
      %v3602 = vpop.f32.mrf.mxu0
      %3603 = vmatprep.mubr.bf16.mxu0 0
      %3604 = vmatmul.mubr.bf16.gmra.mxu0 %v3136
      %v3605 = vpop.f32.mrf.mxu0
      %v3606 = vadd.f32 0.0, %v3605
      %v3607 = vpop.f32.mrf.mxu0
      %v3608 = vpop.f32.mrf.mxu0
      %v3609 = vadd.f32 0.0, %v3608
      %v3610 = vpop.f32.mrf.mxu0
      %3611 = vmatprep.mubr.bf16.mxu0 0
      %3612 = vmatmul.mubr.bf16.gmra.mxu0 %v3138
      %v3613 = vpop.f32.mrf.mxu0
      %v3614 = vadd.f32 0.0, %v3613
      %v3615 = vpop.f32.mrf.mxu0
      %v3616 = vpop.f32.mrf.mxu0
      %v3617 = vadd.f32 0.0, %v3616
      %v3618 = vpop.f32.mrf.mxu0
      %3619 = vmatprep.mubr.bf16.mxu0 0
      %3620 = vmatmul.mubr.bf16.gmra.mxu0 %v3140
      %v3621 = vpop.f32.mrf.mxu0
      %v3622 = vadd.f32 0.0, %v3621
      %v3623 = vpop.f32.mrf.mxu0
      %v3624 = vpop.f32.mrf.mxu0
      %v3625 = vadd.f32 0.0, %v3624
      %v3626 = vpop.f32.mrf.mxu0
      %3627 = vmatprep.mubr.bf16.mxu0 0
      %3628 = vmatmul.mubr.bf16.gmra.mxu0 %v3142
      %v3629 = vpop.f32.mrf.mxu0
      %v3630 = vadd.f32 0.0, %v3629
      %v3631 = vpop.f32.mrf.mxu0
      %v3632 = vpop.f32.mrf.mxu0
      %v3633 = vadd.f32 0.0, %v3632
      %v3634 = vpop.f32.mrf.mxu0
      %3635 = vmatprep.mubr.bf16.mxu0 0
      %3636 = vmatmul.mubr.bf16.gmra.mxu0 %v3144
      %v3637 = vpop.f32.mrf.mxu0
      %v3638 = vadd.f32 0.0, %v3637
      %v3639 = vpop.f32.mrf.mxu0
      %v3640 = vpop.f32.mrf.mxu0
      %v3641 = vadd.f32 0.0, %v3640
      %v3642 = vpop.f32.mrf.mxu0
      %3643 = vmatprep.mubr.bf16.mxu0 0
      %3644 = vmatmul.mubr.bf16.gmra.mxu0 %v3146
      %v3645 = vpop.f32.mrf.mxu0
      %v3646 = vadd.f32 0.0, %v3645
      %v3647 = vpop.f32.mrf.mxu0
      %v3648 = vpop.f32.mrf.mxu0
      %v3649 = vadd.f32 0.0, %v3648
      %v3650 = vpop.f32.mrf.mxu0
      %3651 = vmatprep.mubr.bf16.mxu0 0
      %3652 = vmatmul.mubr.bf16.gmra.mxu0 %v3148
      %v3653 = vpop.f32.mrf.mxu0
      %v3654 = vadd.f32 0.0, %v3653
      %v3655 = vpop.f32.mrf.mxu0
      %v3656 = vpop.f32.mrf.mxu0
      %v3657 = vadd.f32 0.0, %v3656
      %v3658 = vpop.f32.mrf.mxu0
      %3659 = vmatprep.mubr.bf16.mxu0 0
      %3660 = vmatmul.mubr.bf16.gmra.mxu0 %v3150
      %v3661 = vpop.f32.mrf.mxu0
      %v3662 = vadd.f32 0.0, %v3661
      %v3663 = vpop.f32.mrf.mxu0
      %v3664 = vpop.f32.mrf.mxu0
      %v3665 = vadd.f32 0.0, %v3664
      %v3666 = vpop.f32.mrf.mxu0
      %3667 = vmatprep.mubr.bf16.mxu0 0
      %3668 = vmatmul.mubr.bf16.gmra.mxu0 %v3454
      %v3669 = vpop.f32.mrf.mxu0
      %v3670 = vadd.f32 0.0, %v3669
      %v3671 = vpop.f32.mrf.mxu0
      %v3672 = vpop.f32.mrf.mxu0
      %v3673 = vadd.f32 0.0, %v3672
      %v3674 = vpop.f32.mrf.mxu0
      %3675 = vmatprep.mubr.bf16.mxu0 0
      %3676 = vmatmul.mubr.bf16.gmra.mxu0 %v3456
      %v3677 = vpop.f32.mrf.mxu0
      %v3678 = vadd.f32 0.0, %v3677
      %v3679 = vpop.f32.mrf.mxu0
      %v3680 = vpop.f32.mrf.mxu0
      %v3681 = vadd.f32 0.0, %v3680
      %v3682 = vpop.f32.mrf.mxu0
      %3683 = vdwg.mxu0
      %v3684 = vadd.f32 %v3396, %v3542
      %v3685 = vadd.f32 %v3397, %v3545
      %v3686 = vadd.f32 %v3398, %v3550
      %v3687 = vadd.f32 %v3399, %v3553
      %v3688 = vadd.f32 %v3400, %v3558
      %v3689 = vadd.f32 %v3401, %v3561
      %v3690 = vadd.f32 %v3402, %v3566
      %v3691 = vadd.f32 %v3403, %v3569
      %v3692 = vadd.f32 %v3404, %v3574
      %v3693 = vadd.f32 %v3405, %v3577
      %v3694 = vadd.f32 %v3406, %v3582
      %v3695 = vadd.f32 %v3407, %v3585
      %v3696 = vadd.f32 %v3408, %v3590
      %v3697 = vadd.f32 %v3409, %v3593
      %v3698 = vadd.f32 %v3410, %v3598
      %v3699 = vadd.f32 %v3411, %v3601
      %v3700 = vadd.f32 %v3412, %v3606
      %v3701 = vadd.f32 %v3413, %v3609
      %v3702 = vadd.f32 %v3414, %v3614
      %v3703 = vadd.f32 %v3415, %v3617
      %v3704 = vadd.f32 %v3416, %v3622
      %v3705 = vadd.f32 %v3417, %v3625
      %v3706 = vadd.f32 %v3418, %v3630
      %v3707 = vadd.f32 %v3419, %v3633
      %v3708 = vadd.f32 %v3420, %v3638
      %v3709 = vadd.f32 %v3421, %v3641
      %v3710 = vadd.f32 %v3422, %v3646
      %v3711 = vadd.f32 %v3423, %v3649
      %v3712 = vadd.f32 %v3424, %v3654
      %v3713 = vadd.f32 %v3425, %v3657
      %v3714 = vadd.f32 %v3426, %v3662
      %v3715 = vadd.f32 %v3427, %v3665
      %v3716 = vadd.f32 %v3428, %v3670
      %v3717 = vadd.f32 %v3429, %v3673
      %v3718 = vadd.f32 %v3430, %v3678
      %v3719 = vadd.f32 %v3431, %v3681
      %s3720 = scalar_lea.vmem %s5, 448
      %v3721 = vld [vmem:[%s3720] sm:$0xf]
      %v3722 = vld [vmem:[%s3720 + $0x4] sm:$0xf]
      %v3723 = vld [vmem:[%s3720 + $0x8] sm:$0xf]
      %v3724 = vld [vmem:[%s3720 + $0xc] sm:$0xf]
      %v3725 = vld [vmem:[%s3720 + $0x10] sm:$0xf]
      %v3726 = vld [vmem:[%s3720 + $0x14] sm:$0xf]
      %v3727 = vld [vmem:[%s3720 + $0x18] sm:$0xf]
      %v3728 = vld [vmem:[%s3720 + $0x1c] sm:$0xf]
      %v3729 = vld [vmem:[%s3720 + $0x20] sm:$0xf]
      %v3730 = vld [vmem:[%s3720 + $0x24] sm:$0xf]
      %v3731 = vld [vmem:[%s3720 + $0x28] sm:$0xf]
      %v3732 = vld [vmem:[%s3720 + $0x2c] sm:$0xf]
      %v3733 = vld [vmem:[%s3720 + $0x30] sm:$0xf]
      %v3734 = vld [vmem:[%s3720 + $0x34] sm:$0xf]
      %v3735 = vld [vmem:[%s3720 + $0x38] sm:$0xf]
      %v3736 = vld [vmem:[%s3720 + $0x3c] sm:$0xf]
      %vm3737 = vsmask.f32 5376
      %v3738 = vrot.slane %v1479, 2
      %v3739 = vrot.slane %v1475, 3
      %v3740 = vor.u32 %v3738, %v3739
      %v3741 = vrot.slane %v1487, 2
      %v3742 = vrot.slane %v1483, 3
      %v3743 = vor.u32 %v3741, %v3742
      %v3744 = vsel %vm3737, %v3740, %v3743
      %v3745 = vrot.slane %v1495, 2
      %v3746 = vrot.slane %v1491, 3
      %v3747 = vor.u32 %v3745, %v3746
      %v3748 = vsel %vm3737, %v3743, %v3747
      %v3749 = vrot.slane %v1503, 2
      %v3750 = vrot.slane %v1499, 3
      %v3751 = vor.u32 %v3749, %v3750
      %v3752 = vsel %vm3737, %v3747, %v3751
      %v3753 = vrot.slane %v1511, 2
      %v3754 = vrot.slane %v1507, 3
      %v3755 = vor.u32 %v3753, %v3754
      %v3756 = vsel %vm3737, %v3751, %v3755
      %v3757 = vrot.slane %v1519, 2
      %v3758 = vrot.slane %v1515, 3
      %v3759 = vor.u32 %v3757, %v3758
      %v3760 = vsel %vm3737, %v3755, %v3759
      %v3761 = vrot.slane %v1527, 2
      %v3762 = vrot.slane %v1523, 3
      %v3763 = vor.u32 %v3761, %v3762
      %v3764 = vsel %vm3737, %v3759, %v3763
      %v3765 = vrot.slane %v1535, 2
      %v3766 = vrot.slane %v1531, 3
      %v3767 = vor.u32 %v3765, %v3766
      %v3768 = vsel %vm3737, %v3763, %v3767
      %v3769 = vrot.slane %v1543, 2
      %v3770 = vrot.slane %v1539, 3
      %v3771 = vor.u32 %v3769, %v3770
      %v3772 = vsel %vm3737, %v3767, %v3771
      %v3773 = vrot.slane %v1551, 2
      %v3774 = vrot.slane %v1547, 3
      %v3775 = vor.u32 %v3773, %v3774
      %v3776 = vsel %vm3737, %v3771, %v3775
      %v3777 = vrot.slane %v1559, 2
      %v3778 = vrot.slane %v1555, 3
      %v3779 = vor.u32 %v3777, %v3778
      %v3780 = vsel %vm3737, %v3775, %v3779
      %v3781 = vrot.slane %v1567, 2
      %v3782 = vrot.slane %v1563, 3
      %v3783 = vor.u32 %v3781, %v3782
      %v3784 = vsel %vm3737, %v3779, %v3783
      %v3785 = vrot.slane %v1575, 2
      %v3786 = vrot.slane %v1571, 3
      %v3787 = vor.u32 %v3785, %v3786
      %v3788 = vsel %vm3737, %v3783, %v3787
      %v3789 = vrot.slane %v1583, 2
      %v3790 = vrot.slane %v1579, 3
      %v3791 = vor.u32 %v3789, %v3790
      %v3792 = vsel %vm3737, %v3787, %v3791
      %v3793 = vrot.slane %v1591, 2
      %v3794 = vrot.slane %v1587, 3
      %v3795 = vor.u32 %v3793, %v3794
      %v3796 = vsel %vm3737, %v3791, %v3795
      %v3797 = vrot.slane %v1599, 2
      %v3798 = vrot.slane %v1595, 3
      %v3799 = vor.u32 %v3797, %v3798
      %v3800 = vsel %vm3737, %v3795, %v3799
      %v3801 = vrot.slane %v2802, 2
      %v3802 = vrot.slane %v2805, 3
      %v3803 = vor.u32 %v3801, %v3802
      %v3804 = vsel %vm3737, %v3799, %v3803
      %v3806 = vshrl.u32 %v3432, 16
      %v3808 = vrot.slane %v3806, 2
      %v3809 = vshll.u32 %v3432, 16
      %v3811 = vrot.slane %v3809, 3
      %v3812 = vor.u32 %v3808, %v3811
      %v3813 = vsel %vm3737, %v3803, %v3812
      %v3815 = vshrl.u32 %v3433, 16
      %v3817 = vrot.slane %v3815, 2
      %v3818 = vshll.u32 %v3433, 16
      %v3820 = vrot.slane %v3818, 3
      %v3821 = vor.u32 %v3817, %v3820
      %v3822 = vsel %vm3737, %v3812, %v3821
      %v3857 = vunpack.c.l.b16 %v3721
      %v3858 = vunpack.c.l.b16 %v3722
      %v3859 = vunpack.c.l.b16 %v3723
      %v3860 = vunpack.c.l.b16 %v3724
      %v3861 = vunpack.c.l.b16 %v3725
      %v3862 = vunpack.c.l.b16 %v3726
      %v3863 = vunpack.c.l.b16 %v3727
      %v3864 = vunpack.c.l.b16 %v3728
      %v3865 = vunpack.c.l.b16 %v3729
      %v3866 = vunpack.c.l.b16 %v3730
      %v3867 = vunpack.c.l.b16 %v3731
      %v3868 = vunpack.c.l.b16 %v3732
      %v3869 = vunpack.c.l.b16 %v3733
      %v3870 = vunpack.c.l.b16 %v3734
      %v3871 = vunpack.c.l.b16 %v3735
      %v3872 = vunpack.c.l.b16 %v3736
      %v3873 = vpack.c.b16 %v3858, %v3857
      %v3874 = vpack.c.b16 %v3860, %v3859
      %v3875 = vpack.c.b16 %v3862, %v3861
      %v3876 = vpack.c.b16 %v3864, %v3863
      %v3877 = vpack.c.b16 %v3866, %v3865
      %v3878 = vpack.c.b16 %v3868, %v3867
      %v3879 = vpack.c.b16 %v3870, %v3869
      %v3880 = vpack.c.b16 %v3872, %v3871
      %3889 = vmatprep.subr.bf16.mxu0 0
      %3890 = vmatpush1.bf16.msra.mxu0 %v3880
      %3891 = vmatprep.subr.bf16.mxu0 0
      %3892 = vmatpush1.bf16.msra.mxu0 %v3879
      %3893 = vmatprep.subr.bf16.mxu0 0
      %3894 = vmatpush1.bf16.msra.mxu0 %v3878
      %3895 = vmatprep.subr.bf16.mxu0 0
      %3896 = vmatpush1.bf16.msra.mxu0 %v3877
      %3897 = vmatprep.subr.bf16.mxu0 0
      %3898 = vmatpush1.bf16.msra.mxu0 %v3876
      %3899 = vmatprep.subr.bf16.mxu0 0
      %3900 = vmatpush1.bf16.msra.mxu0 %v3875
      %3901 = vmatprep.subr.bf16.mxu0 0
      %3902 = vmatpush1.bf16.msra.mxu0 %v3874
      %3903 = vmatprep.subr.bf16.mxu0 0
      %3904 = vmatpush1.bf16.msra.mxu0 %v3873
      %3905 = vmatprep.subr.bf16.mxu0 0
      %3906 = vmatpush2.bf16.msra.mxu0 0
      %3907 = vmatprep.subr.bf16.mxu0 0
      %3908 = vmatpush2.bf16.msra.mxu0 0
      %3909 = vmatprep.subr.bf16.mxu0 0
      %3910 = vmatpush2.bf16.msra.mxu0 0
      %3911 = vmatprep.subr.bf16.mxu0 0
      %3912 = vmatpush2.bf16.msra.mxu0 0
      %3913 = vmatprep.subr.bf16.mxu0 0
      %3914 = vmatpush2.bf16.msra.mxu0 0
      %3915 = vmatprep.subr.bf16.mxu0 0
      %3916 = vmatpush2.bf16.msra.mxu0 0
      %3917 = vmatprep.subr.bf16.mxu0 0
      %3918 = vmatpush2.bf16.msra.mxu0 0
      %3919 = vmatprep.subr.bf16.mxu0 0
      %3920 = vmatpush2.bf16.msra.mxu0 0
      %3921 = vmatprep.mubr.bf16.mxu0 0
      %3922 = vmatmul.mubr.bf16.gmra.mxu0 %v3744
      %v3923 = vpop.f32.mrf.mxu0
      %v3924 = vadd.f32 0.0, %v3923
      %v3925 = vpop.f32.mrf.mxu0
      %v3926 = vpop.f32.mrf.mxu0
      %v3927 = vadd.f32 0.0, %v3926
      %v3928 = vpop.f32.mrf.mxu0
      %3929 = vmatprep.mubr.bf16.mxu0 0
      %3930 = vmatmul.mubr.bf16.gmra.mxu0 %v3748
      %v3931 = vpop.f32.mrf.mxu0
      %v3932 = vadd.f32 0.0, %v3931
      %v3933 = vpop.f32.mrf.mxu0
      %v3934 = vpop.f32.mrf.mxu0
      %v3935 = vadd.f32 0.0, %v3934
      %v3936 = vpop.f32.mrf.mxu0
      %3937 = vmatprep.mubr.bf16.mxu0 0
      %3938 = vmatmul.mubr.bf16.gmra.mxu0 %v3752
      %v3939 = vpop.f32.mrf.mxu0
      %v3940 = vadd.f32 0.0, %v3939
      %v3941 = vpop.f32.mrf.mxu0
      %v3942 = vpop.f32.mrf.mxu0
      %v3943 = vadd.f32 0.0, %v3942
      %v3944 = vpop.f32.mrf.mxu0
      %3945 = vmatprep.mubr.bf16.mxu0 0
      %3946 = vmatmul.mubr.bf16.gmra.mxu0 %v3756
      %v3947 = vpop.f32.mrf.mxu0
      %v3948 = vadd.f32 0.0, %v3947
      %v3949 = vpop.f32.mrf.mxu0
      %v3950 = vpop.f32.mrf.mxu0
      %v3951 = vadd.f32 0.0, %v3950
      %v3952 = vpop.f32.mrf.mxu0
      %3953 = vmatprep.mubr.bf16.mxu0 0
      %3954 = vmatmul.mubr.bf16.gmra.mxu0 %v3760
      %v3955 = vpop.f32.mrf.mxu0
      %v3956 = vadd.f32 0.0, %v3955
      %v3957 = vpop.f32.mrf.mxu0
      %v3958 = vpop.f32.mrf.mxu0
      %v3959 = vadd.f32 0.0, %v3958
      %v3960 = vpop.f32.mrf.mxu0
      %3961 = vmatprep.mubr.bf16.mxu0 0
      %3962 = vmatmul.mubr.bf16.gmra.mxu0 %v3764
      %v3963 = vpop.f32.mrf.mxu0
      %v3964 = vadd.f32 0.0, %v3963
      %v3965 = vpop.f32.mrf.mxu0
      %v3966 = vpop.f32.mrf.mxu0
      %v3967 = vadd.f32 0.0, %v3966
      %v3968 = vpop.f32.mrf.mxu0
      %3969 = vmatprep.mubr.bf16.mxu0 0
      %3970 = vmatmul.mubr.bf16.gmra.mxu0 %v3768
      %v3971 = vpop.f32.mrf.mxu0
      %v3972 = vadd.f32 0.0, %v3971
      %v3973 = vpop.f32.mrf.mxu0
      %v3974 = vpop.f32.mrf.mxu0
      %v3975 = vadd.f32 0.0, %v3974
      %v3976 = vpop.f32.mrf.mxu0
      %3977 = vmatprep.mubr.bf16.mxu0 0
      %3978 = vmatmul.mubr.bf16.gmra.mxu0 %v3772
      %v3979 = vpop.f32.mrf.mxu0
      %v3980 = vadd.f32 0.0, %v3979
      %v3981 = vpop.f32.mrf.mxu0
      %v3982 = vpop.f32.mrf.mxu0
      %v3983 = vadd.f32 0.0, %v3982
      %v3984 = vpop.f32.mrf.mxu0
      %3985 = vmatprep.mubr.bf16.mxu0 0
      %3986 = vmatmul.mubr.bf16.gmra.mxu0 %v3776
      %v3987 = vpop.f32.mrf.mxu0
      %v3988 = vadd.f32 0.0, %v3987
      %v3989 = vpop.f32.mrf.mxu0
      %v3990 = vpop.f32.mrf.mxu0
      %v3991 = vadd.f32 0.0, %v3990
      %v3992 = vpop.f32.mrf.mxu0
      %3993 = vmatprep.mubr.bf16.mxu0 0
      %3994 = vmatmul.mubr.bf16.gmra.mxu0 %v3780
      %v3995 = vpop.f32.mrf.mxu0
      %v3996 = vadd.f32 0.0, %v3995
      %v3997 = vpop.f32.mrf.mxu0
      %v3998 = vpop.f32.mrf.mxu0
      %v3999 = vadd.f32 0.0, %v3998
      %v4000 = vpop.f32.mrf.mxu0
      %4001 = vmatprep.mubr.bf16.mxu0 0
      %4002 = vmatmul.mubr.bf16.gmra.mxu0 %v3784
      %v4003 = vpop.f32.mrf.mxu0
      %v4004 = vadd.f32 0.0, %v4003
      %v4005 = vpop.f32.mrf.mxu0
      %v4006 = vpop.f32.mrf.mxu0
      %v4007 = vadd.f32 0.0, %v4006
      %v4008 = vpop.f32.mrf.mxu0
      %4009 = vmatprep.mubr.bf16.mxu0 0
      %4010 = vmatmul.mubr.bf16.gmra.mxu0 %v3788
      %v4011 = vpop.f32.mrf.mxu0
      %v4012 = vadd.f32 0.0, %v4011
      %v4013 = vpop.f32.mrf.mxu0
      %v4014 = vpop.f32.mrf.mxu0
      %v4015 = vadd.f32 0.0, %v4014
      %v4016 = vpop.f32.mrf.mxu0
      %4017 = vmatprep.mubr.bf16.mxu0 0
      %4018 = vmatmul.mubr.bf16.gmra.mxu0 %v3792
      %v4019 = vpop.f32.mrf.mxu0
      %v4020 = vadd.f32 0.0, %v4019
      %v4021 = vpop.f32.mrf.mxu0
      %v4022 = vpop.f32.mrf.mxu0
      %v4023 = vadd.f32 0.0, %v4022
      %v4024 = vpop.f32.mrf.mxu0
      %4025 = vmatprep.mubr.bf16.mxu0 0
      %4026 = vmatmul.mubr.bf16.gmra.mxu0 %v3796
      %v4027 = vpop.f32.mrf.mxu0
      %v4028 = vadd.f32 0.0, %v4027
      %v4029 = vpop.f32.mrf.mxu0
      %v4030 = vpop.f32.mrf.mxu0
      %v4031 = vadd.f32 0.0, %v4030
      %v4032 = vpop.f32.mrf.mxu0
      %4033 = vmatprep.mubr.bf16.mxu0 0
      %4034 = vmatmul.mubr.bf16.gmra.mxu0 %v3800
      %v4035 = vpop.f32.mrf.mxu0
      %v4036 = vadd.f32 0.0, %v4035
      %v4037 = vpop.f32.mrf.mxu0
      %v4038 = vpop.f32.mrf.mxu0
      %v4039 = vadd.f32 0.0, %v4038
      %v4040 = vpop.f32.mrf.mxu0
      %4041 = vmatprep.mubr.bf16.mxu0 0
      %4042 = vmatmul.mubr.bf16.gmra.mxu0 %v3804
      %v4043 = vpop.f32.mrf.mxu0
      %v4044 = vadd.f32 0.0, %v4043
      %v4045 = vpop.f32.mrf.mxu0
      %v4046 = vpop.f32.mrf.mxu0
      %v4047 = vadd.f32 0.0, %v4046
      %v4048 = vpop.f32.mrf.mxu0
      %4049 = vmatprep.mubr.bf16.mxu0 0
      %4050 = vmatmul.mubr.bf16.gmra.mxu0 %v3813
      %v4051 = vpop.f32.mrf.mxu0
      %v4052 = vadd.f32 0.0, %v4051
      %v4053 = vpop.f32.mrf.mxu0
      %v4054 = vpop.f32.mrf.mxu0
      %v4055 = vadd.f32 0.0, %v4054
      %v4056 = vpop.f32.mrf.mxu0
      %4057 = vmatprep.mubr.bf16.mxu0 0
      %4058 = vmatmul.mubr.bf16.gmra.mxu0 %v3822
      %v4059 = vpop.f32.mrf.mxu0
      %v4060 = vadd.f32 0.0, %v4059
      %v4061 = vpop.f32.mrf.mxu0
      %v4062 = vpop.f32.mrf.mxu0
      %v4063 = vadd.f32 0.0, %v4062
      %v4064 = vpop.f32.mrf.mxu0
      %4065 = vdwg.mxu0
      %v4066 = vadd.f32 %v3684, %v3924
      %v4067 = vadd.f32 %v3685, %v3927
      %v4068 = vadd.f32 %v3686, %v3932
      %v4069 = vadd.f32 %v3687, %v3935
      %v4070 = vadd.f32 %v3688, %v3940
      %v4071 = vadd.f32 %v3689, %v3943
      %v4072 = vadd.f32 %v3690, %v3948
      %v4073 = vadd.f32 %v3691, %v3951
      %v4074 = vadd.f32 %v3692, %v3956
      %v4075 = vadd.f32 %v3693, %v3959
      %v4076 = vadd.f32 %v3694, %v3964
      %v4077 = vadd.f32 %v3695, %v3967
      %v4078 = vadd.f32 %v3696, %v3972
      %v4079 = vadd.f32 %v3697, %v3975
      %v4080 = vadd.f32 %v3698, %v3980
      %v4081 = vadd.f32 %v3699, %v3983
      %v4082 = vadd.f32 %v3700, %v3988
      %v4083 = vadd.f32 %v3701, %v3991
      %v4084 = vadd.f32 %v3702, %v3996
      %v4085 = vadd.f32 %v3703, %v3999
      %v4086 = vadd.f32 %v3704, %v4004
      %v4087 = vadd.f32 %v3705, %v4007
      %v4088 = vadd.f32 %v3706, %v4012
      %v4089 = vadd.f32 %v3707, %v4015
      %v4090 = vadd.f32 %v3708, %v4020
      %v4091 = vadd.f32 %v3709, %v4023
      %v4092 = vadd.f32 %v3710, %v4028
      %v4093 = vadd.f32 %v3711, %v4031
      %v4094 = vadd.f32 %v3712, %v4036
      %v4095 = vadd.f32 %v3713, %v4039
      %v4096 = vadd.f32 %v3714, %v4044
      %v4097 = vadd.f32 %v3715, %v4047
      %v4098 = vadd.f32 %v3716, %v4052
      %v4099 = vadd.f32 %v3717, %v4055
      %v4100 = vadd.f32 %v3718, %v4060
      %v4101 = vadd.f32 %v3719, %v4063
      %s4102 = scalar_lea.vmem %s5, 512
      %v4103 = vld [vmem:[%s4102] sm:$0xf]
      %v4104 = vld [vmem:[%s4102 + $0x4] sm:$0xf]
      %v4105 = vld [vmem:[%s4102 + $0x8] sm:$0xf]
      %v4106 = vld [vmem:[%s4102 + $0xc] sm:$0xf]
      %v4107 = vld [vmem:[%s4102 + $0x10] sm:$0xf]
      %v4108 = vld [vmem:[%s4102 + $0x14] sm:$0xf]
      %v4109 = vld [vmem:[%s4102 + $0x18] sm:$0xf]
      %v4110 = vld [vmem:[%s4102 + $0x1c] sm:$0xf]
      %v4111 = vld [vmem:[%s4102 + $0x20] sm:$0xf]
      %v4112 = vld [vmem:[%s4102 + $0x24] sm:$0xf]
      %v4113 = vld [vmem:[%s4102 + $0x28] sm:$0xf]
      %v4114 = vld [vmem:[%s4102 + $0x2c] sm:$0xf]
      %v4115 = vld [vmem:[%s4102 + $0x30] sm:$0xf]
      %v4116 = vld [vmem:[%s4102 + $0x34] sm:$0xf]
      %v4117 = vld [vmem:[%s4102 + $0x38] sm:$0xf]
      %v4118 = vld [vmem:[%s4102 + $0x3c] sm:$0xf]
      %vm4119 = vcmask 1044480
      %v4120 = vrot.slane %v1408, 3
      %v4121 = vrot.slane %v1409, 3
      %v4122 = vsel %vm4119, %v4120, %v4121
      %v4123 = vrot.slane %v1410, 3
      %v4124 = vsel %vm4119, %v4121, %v4123
      %v4125 = vrot.slane %v1411, 3
      %v4126 = vsel %vm4119, %v4123, %v4125
      %v4127 = vrot.slane %v1412, 3
      %v4128 = vsel %vm4119, %v4125, %v4127
      %v4129 = vrot.slane %v1413, 3
      %v4130 = vsel %vm4119, %v4127, %v4129
      %v4131 = vrot.slane %v1414, 3
      %v4132 = vsel %vm4119, %v4129, %v4131
      %v4133 = vrot.slane %v1415, 3
      %v4134 = vsel %vm4119, %v4131, %v4133
      %v4135 = vrot.slane %v1416, 3
      %v4136 = vsel %vm4119, %v4133, %v4135
      %v4137 = vrot.slane %v1417, 3
      %v4138 = vsel %vm4119, %v4135, %v4137
      %v4139 = vrot.slane %v1418, 3
      %v4140 = vsel %vm4119, %v4137, %v4139
      %v4141 = vrot.slane %v1419, 3
      %v4142 = vsel %vm4119, %v4139, %v4141
      %v4143 = vrot.slane %v1420, 3
      %v4144 = vsel %vm4119, %v4141, %v4143
      %v4145 = vrot.slane %v1421, 3
      %v4146 = vsel %vm4119, %v4143, %v4145
      %v4147 = vrot.slane %v1422, 3
      %v4148 = vsel %vm4119, %v4145, %v4147
      %v4149 = vrot.slane %v1423, 3
      %v4150 = vsel %vm4119, %v4147, %v4149
      %v4151 = vrot.slane %v2428, 3
      %v4152 = vsel %vm4119, %v4149, %v4151
      %v4153 = vrot.slane %v3432, 3
      %v4154 = vsel %vm4119, %v4151, %v4153
      %v4155 = vrot.slane %v3433, 3
      %v4156 = vsel %vm4119, %v4153, %v4155
      %v4191 = vunpack.c.l.b16 %v4103
      %v4192 = vunpack.c.l.b16 %v4104
      %v4193 = vunpack.c.l.b16 %v4105
      %v4194 = vunpack.c.l.b16 %v4106
      %v4195 = vunpack.c.l.b16 %v4107
      %v4196 = vunpack.c.l.b16 %v4108
      %v4197 = vunpack.c.l.b16 %v4109
      %v4198 = vunpack.c.l.b16 %v4110
      %v4199 = vunpack.c.l.b16 %v4111
      %v4200 = vunpack.c.l.b16 %v4112
      %v4201 = vunpack.c.l.b16 %v4113
      %v4202 = vunpack.c.l.b16 %v4114
      %v4203 = vunpack.c.l.b16 %v4115
      %v4204 = vunpack.c.l.b16 %v4116
      %v4205 = vunpack.c.l.b16 %v4117
      %v4206 = vunpack.c.l.b16 %v4118
      %v4207 = vpack.c.b16 %v4192, %v4191
      %v4208 = vpack.c.b16 %v4194, %v4193
      %v4209 = vpack.c.b16 %v4196, %v4195
      %v4210 = vpack.c.b16 %v4198, %v4197
      %v4211 = vpack.c.b16 %v4200, %v4199
      %v4212 = vpack.c.b16 %v4202, %v4201
      %v4213 = vpack.c.b16 %v4204, %v4203
      %v4214 = vpack.c.b16 %v4206, %v4205
      %4223 = vmatprep.subr.bf16.mxu0 0
      %4224 = vmatpush1.bf16.msra.mxu0 %v4214
      %4225 = vmatprep.subr.bf16.mxu0 0
      %4226 = vmatpush1.bf16.msra.mxu0 %v4213
      %4227 = vmatprep.subr.bf16.mxu0 0
      %4228 = vmatpush1.bf16.msra.mxu0 %v4212
      %4229 = vmatprep.subr.bf16.mxu0 0
      %4230 = vmatpush1.bf16.msra.mxu0 %v4211
      %4231 = vmatprep.subr.bf16.mxu0 0
      %4232 = vmatpush1.bf16.msra.mxu0 %v4210
      %4233 = vmatprep.subr.bf16.mxu0 0
      %4234 = vmatpush1.bf16.msra.mxu0 %v4209
      %4235 = vmatprep.subr.bf16.mxu0 0
      %4236 = vmatpush1.bf16.msra.mxu0 %v4208
      %4237 = vmatprep.subr.bf16.mxu0 0
      %4238 = vmatpush1.bf16.msra.mxu0 %v4207
      %4239 = vmatprep.subr.bf16.mxu0 0
      %4240 = vmatpush2.bf16.msra.mxu0 0
      %4241 = vmatprep.subr.bf16.mxu0 0
      %4242 = vmatpush2.bf16.msra.mxu0 0
      %4243 = vmatprep.subr.bf16.mxu0 0
      %4244 = vmatpush2.bf16.msra.mxu0 0
      %4245 = vmatprep.subr.bf16.mxu0 0
      %4246 = vmatpush2.bf16.msra.mxu0 0
      %4247 = vmatprep.subr.bf16.mxu0 0
      %4248 = vmatpush2.bf16.msra.mxu0 0
      %4249 = vmatprep.subr.bf16.mxu0 0
      %4250 = vmatpush2.bf16.msra.mxu0 0
      %4251 = vmatprep.subr.bf16.mxu0 0
      %4252 = vmatpush2.bf16.msra.mxu0 0
      %4253 = vmatprep.subr.bf16.mxu0 0
      %4254 = vmatpush2.bf16.msra.mxu0 0
      %4255 = vmatprep.mubr.bf16.mxu0 0
      %4256 = vmatmul.mubr.bf16.gmra.mxu0 %v4122
      %v4257 = vpop.f32.mrf.mxu0
      %v4258 = vadd.f32 0.0, %v4257
      %v4259 = vpop.f32.mrf.mxu0
      %v4260 = vpop.f32.mrf.mxu0
      %v4261 = vadd.f32 0.0, %v4260
      %v4262 = vpop.f32.mrf.mxu0
      %4263 = vmatprep.mubr.bf16.mxu0 0
      %4264 = vmatmul.mubr.bf16.gmra.mxu0 %v4124
      %v4265 = vpop.f32.mrf.mxu0
      %v4266 = vadd.f32 0.0, %v4265
      %v4267 = vpop.f32.mrf.mxu0
      %v4268 = vpop.f32.mrf.mxu0
      %v4269 = vadd.f32 0.0, %v4268
      %v4270 = vpop.f32.mrf.mxu0
      %4271 = vmatprep.mubr.bf16.mxu0 0
      %4272 = vmatmul.mubr.bf16.gmra.mxu0 %v4126
      %v4273 = vpop.f32.mrf.mxu0
      %v4274 = vadd.f32 0.0, %v4273
      %v4275 = vpop.f32.mrf.mxu0
      %v4276 = vpop.f32.mrf.mxu0
      %v4277 = vadd.f32 0.0, %v4276
      %v4278 = vpop.f32.mrf.mxu0
      %4279 = vmatprep.mubr.bf16.mxu0 0
      %4280 = vmatmul.mubr.bf16.gmra.mxu0 %v4128
      %v4281 = vpop.f32.mrf.mxu0
      %v4282 = vadd.f32 0.0, %v4281
      %v4283 = vpop.f32.mrf.mxu0
      %v4284 = vpop.f32.mrf.mxu0
      %v4285 = vadd.f32 0.0, %v4284
      %v4286 = vpop.f32.mrf.mxu0
      %4287 = vmatprep.mubr.bf16.mxu0 0
      %4288 = vmatmul.mubr.bf16.gmra.mxu0 %v4130
      %v4289 = vpop.f32.mrf.mxu0
      %v4290 = vadd.f32 0.0, %v4289
      %v4291 = vpop.f32.mrf.mxu0
      %v4292 = vpop.f32.mrf.mxu0
      %v4293 = vadd.f32 0.0, %v4292
      %v4294 = vpop.f32.mrf.mxu0
      %4295 = vmatprep.mubr.bf16.mxu0 0
      %4296 = vmatmul.mubr.bf16.gmra.mxu0 %v4132
      %v4297 = vpop.f32.mrf.mxu0
      %v4298 = vadd.f32 0.0, %v4297
      %v4299 = vpop.f32.mrf.mxu0
      %v4300 = vpop.f32.mrf.mxu0
      %v4301 = vadd.f32 0.0, %v4300
      %v4302 = vpop.f32.mrf.mxu0
      %4303 = vmatprep.mubr.bf16.mxu0 0
      %4304 = vmatmul.mubr.bf16.gmra.mxu0 %v4134
      %v4305 = vpop.f32.mrf.mxu0
      %v4306 = vadd.f32 0.0, %v4305
      %v4307 = vpop.f32.mrf.mxu0
      %v4308 = vpop.f32.mrf.mxu0
      %v4309 = vadd.f32 0.0, %v4308
      %v4310 = vpop.f32.mrf.mxu0
      %4311 = vmatprep.mubr.bf16.mxu0 0
      %4312 = vmatmul.mubr.bf16.gmra.mxu0 %v4136
      %v4313 = vpop.f32.mrf.mxu0
      %v4314 = vadd.f32 0.0, %v4313
      %v4315 = vpop.f32.mrf.mxu0
      %v4316 = vpop.f32.mrf.mxu0
      %v4317 = vadd.f32 0.0, %v4316
      %v4318 = vpop.f32.mrf.mxu0
      %4319 = vmatprep.mubr.bf16.mxu0 0
      %4320 = vmatmul.mubr.bf16.gmra.mxu0 %v4138
      %v4321 = vpop.f32.mrf.mxu0
      %v4322 = vadd.f32 0.0, %v4321
      %v4323 = vpop.f32.mrf.mxu0
      %v4324 = vpop.f32.mrf.mxu0
      %v4325 = vadd.f32 0.0, %v4324
      %v4326 = vpop.f32.mrf.mxu0
      %4327 = vmatprep.mubr.bf16.mxu0 0
      %4328 = vmatmul.mubr.bf16.gmra.mxu0 %v4140
      %v4329 = vpop.f32.mrf.mxu0
      %v4330 = vadd.f32 0.0, %v4329
      %v4331 = vpop.f32.mrf.mxu0
      %v4332 = vpop.f32.mrf.mxu0
      %v4333 = vadd.f32 0.0, %v4332
      %v4334 = vpop.f32.mrf.mxu0
      %4335 = vmatprep.mubr.bf16.mxu0 0
      %4336 = vmatmul.mubr.bf16.gmra.mxu0 %v4142
      %v4337 = vpop.f32.mrf.mxu0
      %v4338 = vadd.f32 0.0, %v4337
      %v4339 = vpop.f32.mrf.mxu0
      %v4340 = vpop.f32.mrf.mxu0
      %v4341 = vadd.f32 0.0, %v4340
      %v4342 = vpop.f32.mrf.mxu0
      %4343 = vmatprep.mubr.bf16.mxu0 0
      %4344 = vmatmul.mubr.bf16.gmra.mxu0 %v4144
      %v4345 = vpop.f32.mrf.mxu0
      %v4346 = vadd.f32 0.0, %v4345
      %v4347 = vpop.f32.mrf.mxu0
      %v4348 = vpop.f32.mrf.mxu0
      %v4349 = vadd.f32 0.0, %v4348
      %v4350 = vpop.f32.mrf.mxu0
      %4351 = vmatprep.mubr.bf16.mxu0 0
      %4352 = vmatmul.mubr.bf16.gmra.mxu0 %v4146
      %v4353 = vpop.f32.mrf.mxu0
      %v4354 = vadd.f32 0.0, %v4353
      %v4355 = vpop.f32.mrf.mxu0
      %v4356 = vpop.f32.mrf.mxu0
      %v4357 = vadd.f32 0.0, %v4356
      %v4358 = vpop.f32.mrf.mxu0
      %4359 = vmatprep.mubr.bf16.mxu0 0
      %4360 = vmatmul.mubr.bf16.gmra.mxu0 %v4148
      %v4361 = vpop.f32.mrf.mxu0
      %v4362 = vadd.f32 0.0, %v4361
      %v4363 = vpop.f32.mrf.mxu0
      %v4364 = vpop.f32.mrf.mxu0
      %v4365 = vadd.f32 0.0, %v4364
      %v4366 = vpop.f32.mrf.mxu0
      %4367 = vmatprep.mubr.bf16.mxu0 0
      %4368 = vmatmul.mubr.bf16.gmra.mxu0 %v4150
      %v4369 = vpop.f32.mrf.mxu0
      %v4370 = vadd.f32 0.0, %v4369
      %v4371 = vpop.f32.mrf.mxu0
      %v4372 = vpop.f32.mrf.mxu0
      %v4373 = vadd.f32 0.0, %v4372
      %v4374 = vpop.f32.mrf.mxu0
      %4375 = vmatprep.mubr.bf16.mxu0 0
      %4376 = vmatmul.mubr.bf16.gmra.mxu0 %v4152
      %v4377 = vpop.f32.mrf.mxu0
      %v4378 = vadd.f32 0.0, %v4377
      %v4379 = vpop.f32.mrf.mxu0
      %v4380 = vpop.f32.mrf.mxu0
      %v4381 = vadd.f32 0.0, %v4380
      %v4382 = vpop.f32.mrf.mxu0
      %4383 = vmatprep.mubr.bf16.mxu0 0
      %4384 = vmatmul.mubr.bf16.gmra.mxu0 %v4154
      %v4385 = vpop.f32.mrf.mxu0
      %v4386 = vadd.f32 0.0, %v4385
      %v4387 = vpop.f32.mrf.mxu0
      %v4388 = vpop.f32.mrf.mxu0
      %v4389 = vadd.f32 0.0, %v4388
      %v4390 = vpop.f32.mrf.mxu0
      %4391 = vmatprep.mubr.bf16.mxu0 0
      %4392 = vmatmul.mubr.bf16.gmra.mxu0 %v4156
      %v4393 = vpop.f32.mrf.mxu0
      %v4394 = vadd.f32 0.0, %v4393
      %v4395 = vpop.f32.mrf.mxu0
      %v4396 = vpop.f32.mrf.mxu0
      %v4397 = vadd.f32 0.0, %v4396
      %v4398 = vpop.f32.mrf.mxu0
      %4399 = vdwg.mxu0
      %v4400 = vadd.f32 %v4066, %v4258
      %v4401 = vadd.f32 %v4067, %v4261
      %v4402 = vadd.f32 %v4068, %v4266
      %v4403 = vadd.f32 %v4069, %v4269
      %v4404 = vadd.f32 %v4070, %v4274
      %v4405 = vadd.f32 %v4071, %v4277
      %v4406 = vadd.f32 %v4072, %v4282
      %v4407 = vadd.f32 %v4073, %v4285
      %v4408 = vadd.f32 %v4074, %v4290
      %v4409 = vadd.f32 %v4075, %v4293
      %v4410 = vadd.f32 %v4076, %v4298
      %v4411 = vadd.f32 %v4077, %v4301
      %v4412 = vadd.f32 %v4078, %v4306
      %v4413 = vadd.f32 %v4079, %v4309
      %v4414 = vadd.f32 %v4080, %v4314
      %v4415 = vadd.f32 %v4081, %v4317
      %v4416 = vadd.f32 %v4082, %v4322
      %v4417 = vadd.f32 %v4083, %v4325
      %v4418 = vadd.f32 %v4084, %v4330
      %v4419 = vadd.f32 %v4085, %v4333
      %v4420 = vadd.f32 %v4086, %v4338
      %v4421 = vadd.f32 %v4087, %v4341
      %v4422 = vadd.f32 %v4088, %v4346
      %v4423 = vadd.f32 %v4089, %v4349
      %v4424 = vadd.f32 %v4090, %v4354
      %v4425 = vadd.f32 %v4091, %v4357
      %v4426 = vadd.f32 %v4092, %v4362
      %v4427 = vadd.f32 %v4093, %v4365
      %v4428 = vadd.f32 %v4094, %v4370
      %v4429 = vadd.f32 %v4095, %v4373
      %v4430 = vadd.f32 %v4096, %v4378
      %v4431 = vadd.f32 %v4097, %v4381
      %v4432 = vadd.f32 %v4098, %v4386
      %v4433 = vadd.f32 %v4099, %v4389
      %v4434 = vadd.f32 %v4100, %v4394
      %v4435 = vadd.f32 %v4101, %v4397
      %v4436 = vld [vmem:[%s6] sm:$0x1]
      %v4438 = vlaneseq
      %v4439 = vshrl.u32 %v4438, 7
      %v4440 = vsub.s32 0, %v4439
      %v4441 = vrot.slane %v4436, %v4440
      %v4443 = vmul.f32 %v4400, %v4441
      %v4444 = vmul.f32 %v4401, %v4441
      %v4445 = vmul.f32 %v4402, %v4441
      %v4446 = vmul.f32 %v4403, %v4441
      %v4447 = vmul.f32 %v4404, %v4441
      %v4448 = vmul.f32 %v4405, %v4441
      %v4449 = vmul.f32 %v4406, %v4441
      %v4450 = vmul.f32 %v4407, %v4441
      %v4451 = vmul.f32 %v4408, %v4441
      %v4452 = vmul.f32 %v4409, %v4441
      %v4453 = vmul.f32 %v4410, %v4441
      %v4454 = vmul.f32 %v4411, %v4441
      %v4455 = vmul.f32 %v4412, %v4441
      %v4456 = vmul.f32 %v4413, %v4441
      %v4457 = vmul.f32 %v4414, %v4441
      %v4458 = vmul.f32 %v4415, %v4441
      %v4459 = vmul.f32 %v4416, %v4441
      %v4460 = vmul.f32 %v4417, %v4441
      %v4461 = vmul.f32 %v4418, %v4441
      %v4462 = vmul.f32 %v4419, %v4441
      %v4463 = vmul.f32 %v4420, %v4441
      %v4464 = vmul.f32 %v4421, %v4441
      %v4465 = vmul.f32 %v4422, %v4441
      %v4466 = vmul.f32 %v4423, %v4441
      %v4467 = vmul.f32 %v4424, %v4441
      %v4468 = vmul.f32 %v4425, %v4441
      %v4469 = vmul.f32 %v4426, %v4441
      %v4470 = vmul.f32 %v4427, %v4441
      %v4471 = vmul.f32 %v4428, %v4441
      %v4472 = vmul.f32 %v4429, %v4441
      %v4473 = vmul.f32 %v4430, %v4441
      %v4474 = vmul.f32 %v4431, %v4441
      %v4475 = vmul.f32 %v4432, %v4441
      %v4476 = vmul.f32 %v4433, %v4441
      %v4477 = vmul.f32 %v4434, %v4441
      %v4478 = vmul.f32 %v4435, %v4441
      %v4479 = vld [vmem:[%s7] sm:$0x1]
      %v4481 = vlaneseq
      %v4482 = vshrl.u32 %v4481, 7
      %v4483 = vsub.s32 0, %v4482
      %v4484 = vrot.slane %v4479, %v4483
      %v4486 = vadd.f32 %v4443, %v4484
      %v4487 = vadd.f32 %v4444, %v4484
      %v4488 = vadd.f32 %v4445, %v4484
      %v4489 = vadd.f32 %v4446, %v4484
      %v4490 = vadd.f32 %v4447, %v4484
      %v4491 = vadd.f32 %v4448, %v4484
      %v4492 = vadd.f32 %v4449, %v4484
      %v4493 = vadd.f32 %v4450, %v4484
      %v4494 = vadd.f32 %v4451, %v4484
      %v4495 = vadd.f32 %v4452, %v4484
      %v4496 = vadd.f32 %v4453, %v4484
      %v4497 = vadd.f32 %v4454, %v4484
      %v4498 = vadd.f32 %v4455, %v4484
      %v4499 = vadd.f32 %v4456, %v4484
      %v4500 = vadd.f32 %v4457, %v4484
      %v4501 = vadd.f32 %v4458, %v4484
      %v4502 = vadd.f32 %v4459, %v4484
      %v4503 = vadd.f32 %v4460, %v4484
      %v4504 = vadd.f32 %v4461, %v4484
      %v4505 = vadd.f32 %v4462, %v4484
      %v4506 = vadd.f32 %v4463, %v4484
      %v4507 = vadd.f32 %v4464, %v4484
      %v4508 = vadd.f32 %v4465, %v4484
      %v4509 = vadd.f32 %v4466, %v4484
      %v4510 = vadd.f32 %v4467, %v4484
      %v4511 = vadd.f32 %v4468, %v4484
      %v4512 = vadd.f32 %v4469, %v4484
      %v4513 = vadd.f32 %v4470, %v4484
      %v4514 = vadd.f32 %v4471, %v4484
      %v4515 = vadd.f32 %v4472, %v4484
      %v4516 = vadd.f32 %v4473, %v4484
      %v4517 = vadd.f32 %v4474, %v4484
      %v4518 = vadd.f32 %v4475, %v4484
      %v4519 = vadd.f32 %v4476, %v4484
      %v4520 = vadd.f32 %v4477, %v4484
      %v4521 = vadd.f32 %v4478, %v4484
      %v4522 = vsub.f32 0.0, %v4486
      %v4523 = vsub.f32 0.0, %v4487
      %v4524 = vsub.f32 0.0, %v4488
      %v4525 = vsub.f32 0.0, %v4489
      %v4526 = vsub.f32 0.0, %v4490
      %v4527 = vsub.f32 0.0, %v4491
      %v4528 = vsub.f32 0.0, %v4492
      %v4529 = vsub.f32 0.0, %v4493
      %v4530 = vsub.f32 0.0, %v4494
      %v4531 = vsub.f32 0.0, %v4495
      %v4532 = vsub.f32 0.0, %v4496
      %v4533 = vsub.f32 0.0, %v4497
      %v4534 = vsub.f32 0.0, %v4498
      %v4535 = vsub.f32 0.0, %v4499
      %v4536 = vsub.f32 0.0, %v4500
      %v4537 = vsub.f32 0.0, %v4501
      %v4538 = vsub.f32 0.0, %v4502
      %v4539 = vsub.f32 0.0, %v4503
      %v4540 = vsub.f32 0.0, %v4504
      %v4541 = vsub.f32 0.0, %v4505
      %v4542 = vsub.f32 0.0, %v4506
      %v4543 = vsub.f32 0.0, %v4507
      %v4544 = vsub.f32 0.0, %v4508
      %v4545 = vsub.f32 0.0, %v4509
      %v4546 = vsub.f32 0.0, %v4510
      %v4547 = vsub.f32 0.0, %v4511
      %v4548 = vsub.f32 0.0, %v4512
      %v4549 = vsub.f32 0.0, %v4513
      %v4550 = vsub.f32 0.0, %v4514
      %v4551 = vsub.f32 0.0, %v4515
      %v4552 = vsub.f32 0.0, %v4516
      %v4553 = vsub.f32 0.0, %v4517
      %v4554 = vsub.f32 0.0, %v4518
      %v4555 = vsub.f32 0.0, %v4519
      %v4556 = vsub.f32 0.0, %v4520
      %v4557 = vsub.f32 0.0, %v4521
      %v4558 = vmul.f32 %v4522, 1.442695
      %v4559 = vpow.pop %v4558
      %v4560 = vmul.f32 %v4523, 1.442695
      %v4561 = vpow.pop %v4560
      %v4562 = vmul.f32 %v4524, 1.442695
      %v4563 = vpow.pop %v4562
      %v4564 = vmul.f32 %v4525, 1.442695
      %v4565 = vpow.pop %v4564
      %v4566 = vmul.f32 %v4526, 1.442695
      %v4567 = vpow.pop %v4566
      %v4568 = vmul.f32 %v4527, 1.442695
      %v4569 = vpow.pop %v4568
      %v4570 = vmul.f32 %v4528, 1.442695
      %v4571 = vpow.pop %v4570
      %v4572 = vmul.f32 %v4529, 1.442695
      %v4573 = vpow.pop %v4572
      %v4574 = vmul.f32 %v4530, 1.442695
      %v4575 = vpow.pop %v4574
      %v4576 = vmul.f32 %v4531, 1.442695
      %v4577 = vpow.pop %v4576
      %v4578 = vmul.f32 %v4532, 1.442695
      %v4579 = vpow.pop %v4578
      %v4580 = vmul.f32 %v4533, 1.442695
      %v4581 = vpow.pop %v4580
      %v4582 = vmul.f32 %v4534, 1.442695
      %v4583 = vpow.pop %v4582
      %v4584 = vmul.f32 %v4535, 1.442695
      %v4585 = vpow.pop %v4584
      %v4586 = vmul.f32 %v4536, 1.442695
      %v4587 = vpow.pop %v4586
      %v4588 = vmul.f32 %v4537, 1.442695
      %v4589 = vpow.pop %v4588
      %v4590 = vmul.f32 %v4538, 1.442695
      %v4591 = vpow.pop %v4590
      %v4592 = vmul.f32 %v4539, 1.442695
      %v4593 = vpow.pop %v4592
      %v4594 = vmul.f32 %v4540, 1.442695
      %v4595 = vpow.pop %v4594
      %v4596 = vmul.f32 %v4541, 1.442695
      %v4597 = vpow.pop %v4596
      %v4598 = vmul.f32 %v4542, 1.442695
      %v4599 = vpow.pop %v4598
      %v4600 = vmul.f32 %v4543, 1.442695
      %v4601 = vpow.pop %v4600
      %v4602 = vmul.f32 %v4544, 1.442695
      %v4603 = vpow.pop %v4602
      %v4604 = vmul.f32 %v4545, 1.442695
      %v4605 = vpow.pop %v4604
      %v4606 = vmul.f32 %v4546, 1.442695
      %v4607 = vpow.pop %v4606
      %v4608 = vmul.f32 %v4547, 1.442695
      %v4609 = vpow.pop %v4608
      %v4610 = vmul.f32 %v4548, 1.442695
      %v4611 = vpow.pop %v4610
      %v4612 = vmul.f32 %v4549, 1.442695
      %v4613 = vpow.pop %v4612
      %v4614 = vmul.f32 %v4550, 1.442695
      %v4615 = vpow.pop %v4614
      %v4616 = vmul.f32 %v4551, 1.442695
      %v4617 = vpow.pop %v4616
      %v4618 = vmul.f32 %v4552, 1.442695
      %v4619 = vpow.pop %v4618
      %v4620 = vmul.f32 %v4553, 1.442695
      %v4621 = vpow.pop %v4620
      %v4622 = vmul.f32 %v4554, 1.442695
      %v4623 = vpow.pop %v4622
      %v4624 = vmul.f32 %v4555, 1.442695
      %v4625 = vpow.pop %v4624
      %v4626 = vmul.f32 %v4556, 1.442695
      %v4627 = vpow.pop %v4626
      %v4628 = vmul.f32 %v4557, 1.442695
      %v4629 = vpow.pop %v4628
      %v4630 = vadd.f32 %v4559, 1.0
      %v4631 = vadd.f32 %v4561, 1.0
      %v4632 = vadd.f32 %v4563, 1.0
      %v4633 = vadd.f32 %v4565, 1.0
      %v4634 = vadd.f32 %v4567, 1.0
      %v4635 = vadd.f32 %v4569, 1.0
      %v4636 = vadd.f32 %v4571, 1.0
      %v4637 = vadd.f32 %v4573, 1.0
      %v4638 = vadd.f32 %v4575, 1.0
      %v4639 = vadd.f32 %v4577, 1.0
      %v4640 = vadd.f32 %v4579, 1.0
      %v4641 = vadd.f32 %v4581, 1.0
      %v4642 = vadd.f32 %v4583, 1.0
      %v4643 = vadd.f32 %v4585, 1.0
      %v4644 = vadd.f32 %v4587, 1.0
      %v4645 = vadd.f32 %v4589, 1.0
      %v4646 = vadd.f32 %v4591, 1.0
      %v4647 = vadd.f32 %v4593, 1.0
      %v4648 = vadd.f32 %v4595, 1.0
      %v4649 = vadd.f32 %v4597, 1.0
      %v4650 = vadd.f32 %v4599, 1.0
      %v4651 = vadd.f32 %v4601, 1.0
      %v4652 = vadd.f32 %v4603, 1.0
      %v4653 = vadd.f32 %v4605, 1.0
      %v4654 = vadd.f32 %v4607, 1.0
      %v4655 = vadd.f32 %v4609, 1.0
      %v4656 = vadd.f32 %v4611, 1.0
      %v4657 = vadd.f32 %v4613, 1.0
      %v4658 = vadd.f32 %v4615, 1.0
      %v4659 = vadd.f32 %v4617, 1.0
      %v4660 = vadd.f32 %v4619, 1.0
      %v4661 = vadd.f32 %v4621, 1.0
      %v4662 = vadd.f32 %v4623, 1.0
      %v4663 = vadd.f32 %v4625, 1.0
      %v4664 = vadd.f32 %v4627, 1.0
      %v4665 = vadd.f32 %v4629, 1.0
      %v4666 = vrcp.pop %v4630
      %v4667 = vmul.f32 1.0, %v4666
      %v4668 = vrcp.pop %v4631
      %v4669 = vmul.f32 1.0, %v4668
      %v4670 = vrcp.pop %v4632
      %v4671 = vmul.f32 1.0, %v4670
      %v4672 = vrcp.pop %v4633
      %v4673 = vmul.f32 1.0, %v4672
      %v4674 = vrcp.pop %v4634
      %v4675 = vmul.f32 1.0, %v4674
      %v4676 = vrcp.pop %v4635
      %v4677 = vmul.f32 1.0, %v4676
      %v4678 = vrcp.pop %v4636
      %v4679 = vmul.f32 1.0, %v4678
      %v4680 = vrcp.pop %v4637
      %v4681 = vmul.f32 1.0, %v4680
      %v4682 = vrcp.pop %v4638
      %v4683 = vmul.f32 1.0, %v4682
      %v4684 = vrcp.pop %v4639
      %v4685 = vmul.f32 1.0, %v4684
      %v4686 = vrcp.pop %v4640
      %v4687 = vmul.f32 1.0, %v4686
      %v4688 = vrcp.pop %v4641
      %v4689 = vmul.f32 1.0, %v4688
      %v4690 = vrcp.pop %v4642
      %v4691 = vmul.f32 1.0, %v4690
      %v4692 = vrcp.pop %v4643
      %v4693 = vmul.f32 1.0, %v4692
      %v4694 = vrcp.pop %v4644
      %v4695 = vmul.f32 1.0, %v4694
      %v4696 = vrcp.pop %v4645
      %v4697 = vmul.f32 1.0, %v4696
      %v4698 = vrcp.pop %v4646
      %v4699 = vmul.f32 1.0, %v4698
      %v4700 = vrcp.pop %v4647
      %v4701 = vmul.f32 1.0, %v4700
      %v4702 = vrcp.pop %v4648
      %v4703 = vmul.f32 1.0, %v4702
      %v4704 = vrcp.pop %v4649
      %v4705 = vmul.f32 1.0, %v4704
      %v4706 = vrcp.pop %v4650
      %v4707 = vmul.f32 1.0, %v4706
      %v4708 = vrcp.pop %v4651
      %v4709 = vmul.f32 1.0, %v4708
      %v4710 = vrcp.pop %v4652
      %v4711 = vmul.f32 1.0, %v4710
      %v4712 = vrcp.pop %v4653
      %v4713 = vmul.f32 1.0, %v4712
      %v4714 = vrcp.pop %v4654
      %v4715 = vmul.f32 1.0, %v4714
      %v4716 = vrcp.pop %v4655
      %v4717 = vmul.f32 1.0, %v4716
      %v4718 = vrcp.pop %v4656
      %v4719 = vmul.f32 1.0, %v4718
      %v4720 = vrcp.pop %v4657
      %v4721 = vmul.f32 1.0, %v4720
      %v4722 = vrcp.pop %v4658
      %v4723 = vmul.f32 1.0, %v4722
      %v4724 = vrcp.pop %v4659
      %v4725 = vmul.f32 1.0, %v4724
      %v4726 = vrcp.pop %v4660
      %v4727 = vmul.f32 1.0, %v4726
      %v4728 = vrcp.pop %v4661
      %v4729 = vmul.f32 1.0, %v4728
      %v4730 = vrcp.pop %v4662
      %v4731 = vmul.f32 1.0, %v4730
      %v4732 = vrcp.pop %v4663
      %v4733 = vmul.f32 1.0, %v4732
      %v4734 = vrcp.pop %v4664
      %v4735 = vmul.f32 1.0, %v4734
      %v4736 = vrcp.pop %v4665
      %v4737 = vmul.f32 1.0, %v4736
      %v4738 = vmul.f32 %v4486, %v4667
      %v4739 = vmul.f32 %v4487, %v4669
      %v4740 = vmul.f32 %v4488, %v4671
      %v4741 = vmul.f32 %v4489, %v4673
      %v4742 = vmul.f32 %v4490, %v4675
      %v4743 = vmul.f32 %v4491, %v4677
      %v4744 = vmul.f32 %v4492, %v4679
      %v4745 = vmul.f32 %v4493, %v4681
      %v4746 = vmul.f32 %v4494, %v4683
      %v4747 = vmul.f32 %v4495, %v4685
      %v4748 = vmul.f32 %v4496, %v4687
      %v4749 = vmul.f32 %v4497, %v4689
      %v4750 = vmul.f32 %v4498, %v4691
      %v4751 = vmul.f32 %v4499, %v4693
      %v4752 = vmul.f32 %v4500, %v4695
      %v4753 = vmul.f32 %v4501, %v4697
      %v4754 = vmul.f32 %v4502, %v4699
      %v4755 = vmul.f32 %v4503, %v4701
      %v4756 = vmul.f32 %v4504, %v4703
      %v4757 = vmul.f32 %v4505, %v4705
      %v4758 = vmul.f32 %v4506, %v4707
      %v4759 = vmul.f32 %v4507, %v4709
      %v4760 = vmul.f32 %v4508, %v4711
      %v4761 = vmul.f32 %v4509, %v4713
      %v4762 = vmul.f32 %v4510, %v4715
      %v4763 = vmul.f32 %v4511, %v4717
      %v4764 = vmul.f32 %v4512, %v4719
      %v4765 = vmul.f32 %v4513, %v4721
      %v4766 = vmul.f32 %v4514, %v4723
      %v4767 = vmul.f32 %v4515, %v4725
      %v4768 = vmul.f32 %v4516, %v4727
      %v4769 = vmul.f32 %v4517, %v4729
      %v4770 = vmul.f32 %v4518, %v4731
      %v4771 = vmul.f32 %v4519, %v4733
      %v4772 = vmul.f32 %v4520, %v4735
      %v4773 = vmul.f32 %v4521, %v4737
      %v4774 = vunpack.c.l.bf16 %v309
      %v4775 = vunpack.c.l.bf16 %v310
      %v4776 = vunpack.c.l.bf16 %v311
      %v4777 = vunpack.c.l.bf16 %v312
      %v4778 = vunpack.c.l.bf16 %v313
      %v4779 = vunpack.c.l.bf16 %v314
      %v4780 = vunpack.c.l.bf16 %v315
      %v4781 = vunpack.c.l.bf16 %v316
      %v4782 = vunpack.c.l.bf16 %v317
      %v4783 = vunpack.c.l.bf16 %v318
      %v4784 = vunpack.c.l.bf16 %v319
      %v4785 = vunpack.c.l.bf16 %v320
      %v4786 = vunpack.c.l.bf16 %v321
      %v4787 = vunpack.c.l.bf16 %v322
      %v4788 = vunpack.c.l.bf16 %v323
      %v4789 = vunpack.c.l.bf16 %v324
      %v4790 = vunpack.c.l.bf16 %v325
      %v4791 = vunpack.c.l.bf16 %v326
      %v4792 = vunpack.c.l.bf16 %v327
      %v4793 = vunpack.c.l.bf16 %v328
      %v4794 = vunpack.c.l.bf16 %v329
      %v4795 = vunpack.c.l.bf16 %v330
      %v4796 = vunpack.c.l.bf16 %v331
      %v4797 = vunpack.c.l.bf16 %v332
      %v4798 = vunpack.c.l.bf16 %v333
      %v4799 = vunpack.c.l.bf16 %v334
      %v4800 = vunpack.c.l.bf16 %v335
      %v4801 = vunpack.c.l.bf16 %v336
      %v4802 = vunpack.c.l.bf16 %v337
      %v4803 = vunpack.c.l.bf16 %v338
      %v4804 = vunpack.c.l.bf16 %v339
      %v4805 = vunpack.c.l.bf16 %v340
      %v4806 = vunpack.c.l.bf16 %v341
      %v4807 = vunpack.c.l.bf16 %v342
      %v4808 = vunpack.c.l.bf16 %v343
      %v4809 = vunpack.c.l.bf16 %v344
      %v4810 = vunpack.c.l.bf16 %v345
      %vm4848 = vcmask 1044480
      %v4849 = vrot.slane %v4774, 3
      %v4850 = vrot.slane %v4775, 3
      %v4851 = vsel %vm4848, %v4849, %v4850
      %v4852 = vrot.slane %v4776, 3
      %v4853 = vsel %vm4848, %v4850, %v4852
      %v4854 = vrot.slane %v4777, 3
      %v4855 = vsel %vm4848, %v4852, %v4854
      %v4856 = vrot.slane %v4778, 3
      %v4857 = vsel %vm4848, %v4854, %v4856
      %v4858 = vrot.slane %v4779, 3
      %v4859 = vsel %vm4848, %v4856, %v4858
      %v4860 = vrot.slane %v4780, 3
      %v4861 = vsel %vm4848, %v4858, %v4860
      %v4862 = vrot.slane %v4781, 3
      %v4863 = vsel %vm4848, %v4860, %v4862
      %v4864 = vrot.slane %v4782, 3
      %v4865 = vsel %vm4848, %v4862, %v4864
      %v4866 = vrot.slane %v4783, 3
      %v4867 = vsel %vm4848, %v4864, %v4866
      %v4868 = vrot.slane %v4784, 3
      %v4869 = vsel %vm4848, %v4866, %v4868
      %v4870 = vrot.slane %v4785, 3
      %v4871 = vsel %vm4848, %v4868, %v4870
      %v4872 = vrot.slane %v4786, 3
      %v4873 = vsel %vm4848, %v4870, %v4872
      %v4874 = vrot.slane %v4787, 3
      %v4875 = vsel %vm4848, %v4872, %v4874
      %v4876 = vrot.slane %v4788, 3
      %v4877 = vsel %vm4848, %v4874, %v4876
      %v4878 = vrot.slane %v4789, 3
      %v4879 = vsel %vm4848, %v4876, %v4878
      %v4880 = vrot.slane %v4790, 3
      %v4881 = vsel %vm4848, %v4878, %v4880
      %v4882 = vrot.slane %v4791, 3
      %v4883 = vsel %vm4848, %v4880, %v4882
      %v4884 = vrot.slane %v4792, 3
      %v4885 = vsel %vm4848, %v4882, %v4884
      %v4886 = vrot.slane %v4793, 3
      %v4887 = vsel %vm4848, %v4884, %v4886
      %v4888 = vrot.slane %v4794, 3
      %v4889 = vsel %vm4848, %v4886, %v4888
      %v4890 = vrot.slane %v4795, 3
      %v4891 = vsel %vm4848, %v4888, %v4890
      %v4892 = vrot.slane %v4796, 3
      %v4893 = vsel %vm4848, %v4890, %v4892
      %v4894 = vrot.slane %v4797, 3
      %v4895 = vsel %vm4848, %v4892, %v4894
      %v4896 = vrot.slane %v4798, 3
      %v4897 = vsel %vm4848, %v4894, %v4896
      %v4898 = vrot.slane %v4799, 3
      %v4899 = vsel %vm4848, %v4896, %v4898
      %v4900 = vrot.slane %v4800, 3
      %v4901 = vsel %vm4848, %v4898, %v4900
      %v4902 = vrot.slane %v4801, 3
      %v4903 = vsel %vm4848, %v4900, %v4902
      %v4904 = vrot.slane %v4802, 3
      %v4905 = vsel %vm4848, %v4902, %v4904
      %v4906 = vrot.slane %v4803, 3
      %v4907 = vsel %vm4848, %v4904, %v4906
      %v4908 = vrot.slane %v4804, 3
      %v4909 = vsel %vm4848, %v4906, %v4908
      %v4910 = vrot.slane %v4805, 3
      %v4911 = vsel %vm4848, %v4908, %v4910
      %v4912 = vrot.slane %v4806, 3
      %v4913 = vsel %vm4848, %v4910, %v4912
      %v4914 = vrot.slane %v4807, 3
      %v4915 = vsel %vm4848, %v4912, %v4914
      %v4916 = vrot.slane %v4808, 3
      %v4917 = vsel %vm4848, %v4914, %v4916
      %v4918 = vrot.slane %v4809, 3
      %v4919 = vsel %vm4848, %v4916, %v4918
      %v4920 = vrot.slane %v4810, 3
      %v4921 = vsel %vm4848, %v4918, %v4920
      %v4958 = vadd.f32 %v4738, %v4851
      %v4959 = vadd.f32 %v4739, %v4853
      %v4960 = vadd.f32 %v4740, %v4855
      %v4961 = vadd.f32 %v4741, %v4857
      %v4962 = vadd.f32 %v4742, %v4859
      %v4963 = vadd.f32 %v4743, %v4861
      %v4964 = vadd.f32 %v4744, %v4863
      %v4965 = vadd.f32 %v4745, %v4865
      %v4966 = vadd.f32 %v4746, %v4867
      %v4967 = vadd.f32 %v4747, %v4869
      %v4968 = vadd.f32 %v4748, %v4871
      %v4969 = vadd.f32 %v4749, %v4873
      %v4970 = vadd.f32 %v4750, %v4875
      %v4971 = vadd.f32 %v4751, %v4877
      %v4972 = vadd.f32 %v4752, %v4879
      %v4973 = vadd.f32 %v4753, %v4881
      %v4974 = vadd.f32 %v4754, %v4883
      %v4975 = vadd.f32 %v4755, %v4885
      %v4976 = vadd.f32 %v4756, %v4887
      %v4977 = vadd.f32 %v4757, %v4889
      %v4978 = vadd.f32 %v4758, %v4891
      %v4979 = vadd.f32 %v4759, %v4893
      %v4980 = vadd.f32 %v4760, %v4895
      %v4981 = vadd.f32 %v4761, %v4897
      %v4982 = vadd.f32 %v4762, %v4899
      %v4983 = vadd.f32 %v4763, %v4901
      %v4984 = vadd.f32 %v4764, %v4903
      %v4985 = vadd.f32 %v4765, %v4905
      %v4986 = vadd.f32 %v4766, %v4907
      %v4987 = vadd.f32 %v4767, %v4909
      %v4988 = vadd.f32 %v4768, %v4911
      %v4989 = vadd.f32 %v4769, %v4913
      %v4990 = vadd.f32 %v4770, %v4915
      %v4991 = vadd.f32 %v4771, %v4917
      %v4992 = vadd.f32 %v4772, %v4919
      %v4993 = vadd.f32 %v4773, %v4921
      %v4994 = vpack.c.bf16 %v4959, %v4958
      %v4995 = vpack.c.bf16 %v4961, %v4960
      %v4996 = vpack.c.bf16 %v4963, %v4962
      %v4997 = vpack.c.bf16 %v4965, %v4964
      %v4998 = vpack.c.bf16 %v4967, %v4966
      %v4999 = vpack.c.bf16 %v4969, %v4968
      %v5000 = vpack.c.bf16 %v4971, %v4970
      %v5001 = vpack.c.bf16 %v4973, %v4972
      %v5002 = vpack.c.bf16 %v4975, %v4974
      %v5003 = vpack.c.bf16 %v4977, %v4976
      %v5004 = vpack.c.bf16 %v4979, %v4978
      %v5005 = vpack.c.bf16 %v4981, %v4980
      %v5006 = vpack.c.bf16 %v4983, %v4982
      %v5007 = vpack.c.bf16 %v4985, %v4984
      %v5008 = vpack.c.bf16 %v4987, %v4986
      %v5009 = vpack.c.bf16 %v4989, %v4988
      %v5010 = vpack.c.bf16 %v4991, %v4990
      %v5011 = vpack.c.bf16 %v4993, %v4992
      %v5030 = vunpack.c.l.b16 %v4994
      %v5031 = vunpack.c.h.b16 %v4994
      %v5032 = vunpack.c.l.b16 %v4995
      %v5033 = vunpack.c.h.b16 %v4995
      %v5034 = vunpack.c.l.b16 %v4996
      %v5035 = vunpack.c.h.b16 %v4996
      %v5036 = vunpack.c.l.b16 %v4997
      %v5037 = vunpack.c.h.b16 %v4997
      %v5038 = vunpack.c.l.b16 %v4998
      %v5039 = vunpack.c.h.b16 %v4998
      %v5040 = vunpack.c.l.b16 %v4999
      %v5041 = vunpack.c.h.b16 %v4999
      %v5042 = vunpack.c.l.b16 %v5000
      %v5043 = vunpack.c.h.b16 %v5000
      %v5044 = vunpack.c.l.b16 %v5001
      %v5045 = vunpack.c.h.b16 %v5001
      %v5046 = vunpack.c.l.b16 %v5002
      %v5047 = vunpack.c.h.b16 %v5002
      %v5048 = vunpack.c.l.b16 %v5003
      %v5049 = vunpack.c.h.b16 %v5003
      %v5050 = vunpack.c.l.b16 %v5004
      %v5051 = vunpack.c.h.b16 %v5004
      %v5052 = vunpack.c.l.b16 %v5005
      %v5053 = vunpack.c.h.b16 %v5005
      %v5054 = vunpack.c.l.b16 %v5006
      %v5055 = vunpack.c.h.b16 %v5006
      %v5056 = vunpack.c.l.b16 %v5007
      %v5057 = vunpack.c.h.b16 %v5007
      %v5058 = vunpack.c.l.b16 %v5008
      %v5059 = vunpack.c.h.b16 %v5008
      %v5060 = vunpack.c.l.b16 %v5009
      %v5061 = vunpack.c.h.b16 %v5009
      %v5062 = vunpack.c.l.b16 %v5010
      %v5063 = vunpack.c.h.b16 %v5010
      %v5064 = vunpack.c.l.b16 %v5011
      %v5065 = vunpack.c.h.b16 %v5011
      %v5066 = vpack.c.b16 %v5030, %v5030
      %v5067 = vpack.c.b16 %v5031, %v5031
      %v5068 = vpack.c.b16 %v5032, %v5032
      %v5069 = vpack.c.b16 %v5033, %v5033
      %v5070 = vpack.c.b16 %v5034, %v5034
      %v5071 = vpack.c.b16 %v5035, %v5035
      %v5072 = vpack.c.b16 %v5036, %v5036
      %v5073 = vpack.c.b16 %v5037, %v5037
      %v5074 = vpack.c.b16 %v5038, %v5038
      %v5075 = vpack.c.b16 %v5039, %v5039
      %v5076 = vpack.c.b16 %v5040, %v5040
      %v5077 = vpack.c.b16 %v5041, %v5041
      %v5078 = vpack.c.b16 %v5042, %v5042
      %v5079 = vpack.c.b16 %v5043, %v5043
      %v5080 = vpack.c.b16 %v5044, %v5044
      %v5081 = vpack.c.b16 %v5045, %v5045
      %v5082 = vpack.c.b16 %v5046, %v5046
      %v5083 = vpack.c.b16 %v5047, %v5047
      %v5084 = vpack.c.b16 %v5048, %v5048
      %v5085 = vpack.c.b16 %v5049, %v5049
      %v5086 = vpack.c.b16 %v5050, %v5050
      %v5087 = vpack.c.b16 %v5051, %v5051
      %v5088 = vpack.c.b16 %v5052, %v5052
      %v5089 = vpack.c.b16 %v5053, %v5053
      %v5090 = vpack.c.b16 %v5054, %v5054
      %v5091 = vpack.c.b16 %v5055, %v5055
      %v5092 = vpack.c.b16 %v5056, %v5056
      %v5093 = vpack.c.b16 %v5057, %v5057
      %v5094 = vpack.c.b16 %v5058, %v5058
      %v5095 = vpack.c.b16 %v5059, %v5059
      %v5096 = vpack.c.b16 %v5060, %v5060
      %v5097 = vpack.c.b16 %v5061, %v5061
      %v5098 = vpack.c.b16 %v5062, %v5062
      %v5099 = vpack.c.b16 %v5063, %v5063
      %v5100 = vpack.c.b16 %v5064, %v5064
      %v5101 = vpack.c.b16 %v5065, %v5065
      %5138 = vst [vmem:[%s305] sm:$0xf] %v5066
      %5139 = vst [vmem:[%s305 + $0x4] sm:$0xf] %v5067
      %5140 = vst [vmem:[%s305 + $0x8] sm:$0xf] %v5068
      %5141 = vst [vmem:[%s305 + $0xc] sm:$0xf] %v5069
      %5142 = vst [vmem:[%s305 + $0x10] sm:$0xf] %v5070
      %5143 = vst [vmem:[%s305 + $0x14] sm:$0xf] %v5071
      %5144 = vst [vmem:[%s305 + $0x18] sm:$0xf] %v5072
      %5145 = vst [vmem:[%s305 + $0x1c] sm:$0xf] %v5073
      %5146 = vst [vmem:[%s305 + $0x20] sm:$0xf] %v5074
      %5147 = vst [vmem:[%s305 + $0x24] sm:$0xf] %v5075
      %5148 = vst [vmem:[%s305 + $0x28] sm:$0xf] %v5076
      %5149 = vst [vmem:[%s305 + $0x2c] sm:$0xf] %v5077
      %5150 = vst [vmem:[%s305 + $0x30] sm:$0xf] %v5078
      %5151 = vst [vmem:[%s305 + $0x34] sm:$0xf] %v5079
      %5152 = vst [vmem:[%s305 + $0x38] sm:$0xf] %v5080
      %5153 = vst [vmem:[%s305 + $0x3c] sm:$0xf] %v5081
      %5154 = vst [vmem:[%s305 + $0x40] sm:$0xf] %v5082
      %5155 = vst [vmem:[%s305 + $0x44] sm:$0xf] %v5083
      %5156 = vst [vmem:[%s305 + $0x48] sm:$0xf] %v5084
      %5157 = vst [vmem:[%s305 + $0x4c] sm:$0xf] %v5085
      %5158 = vst [vmem:[%s305 + $0x50] sm:$0xf] %v5086
      %5159 = vst [vmem:[%s305 + $0x54] sm:$0xf] %v5087
      %5160 = vst [vmem:[%s305 + $0x58] sm:$0xf] %v5088
      %5161 = vst [vmem:[%s305 + $0x5c] sm:$0xf] %v5089
      %5162 = vst [vmem:[%s305 + $0x60] sm:$0xf] %v5090
      %5163 = vst [vmem:[%s305 + $0x64] sm:$0xf] %v5091
      %5164 = vst [vmem:[%s305 + $0x68] sm:$0xf] %v5092
      %5165 = vst [vmem:[%s305 + $0x6c] sm:$0xf] %v5093
      %5166 = vst [vmem:[%s305 + $0x70] sm:$0xf] %v5094
      %5167 = vst [vmem:[%s305 + $0x74] sm:$0xf] %v5095
      %5168 = vst [vmem:[%s305 + $0x78] sm:$0xf] %v5096
      %5169 = vst [vmem:[%s305 + $0x7c] sm:$0xf] %v5097
      %5170 = vst [vmem:[%s305 + $0x80] sm:$0xf] %v5098
      %5171 = vst [vmem:[%s305 + $0x84] sm:$0xf] %v5099
      %5172 = vst [vmem:[%s305 + $0x88] sm:$0xf] %v5100
      %5173 = vst [vmem:[%s305 + $0x8c] sm:$0xf] %v5101
      %p5174 = scmp.lt.s32.totalorder %s19, 1
      %s5175 = scalar_select %p5174, %s19, 1
      %s5176 = smul.addr %s5175, 36
      %s5177 = smul.addr %s5176, 4
      %s5178 = scalar_lea.vmem %s8, %s5177
      // Predicated region
      $region53: #{bottleneck_csp_forward.4} parent=51 // pred_check
        %p5179 = pneg %p210
      $region54: #{bottleneck_csp_forward.4} parent=51 // pred_check_branch
        %5181 = sbr.rel (%p5179) target = $region56
      $region55: #{bottleneck_csp_forward.4} parent=51 // pred_region
        _
      $region56: #{bottleneck_csp_forward.4} parent=51 // pred_fallthru
        _
    $region52: #{bottleneck_csp_forward.4} parent=5 // pred_fallthru
      _
    %p5182 = scmp.le.s32.totalorder 2, %s14
    // Predicated region
    $region57: #{bottleneck_csp_forward.4} parent=5 // pred_check
      %p5183 = pneg %p5182
    $region58: #{bottleneck_csp_forward.4} parent=5 // pred_check_branch
      %5185 = sbr.rel (%p5183) target = $region60
    $region59: #{bottleneck_csp_forward.4} parent=5 // pred_region
      %s5186 = ssub.s32 %s14, 2
      // Predicated region
      $region61: #{bottleneck_csp_forward.4} parent=59 // pred_check
        %p5187 = pneg %p216
      $region62: #{bottleneck_csp_forward.4} parent=59 // pred_check_branch
        %5189 = sbr.rel (%p5187) target = $region64
      $region63: #{bottleneck_csp_forward.4} parent=59 // pred_region
        %p5190 = scmp.lt.s32.totalorder %s20, 1
        %s5191 = scalar_select %p5190, %s20, 1
        %s5192 = smul.addr %s5191, 36
        %s5193 = smul.addr %s5192, 4
        %s5194 = scalar_lea.vmem %s8, %s5193
      $region64: #{bottleneck_csp_forward.4} parent=59 // pred_fallthru
        _
    $region60: #{bottleneck_csp_forward.4} parent=5 // pred_fallthru
      _
  $region6: #{bottleneck_csp_forward.4} parent=0 // loop_footer
    %s18 = sadd.s32 1, %s14
  $region7: #{bottleneck_csp_forward.4} parent=0 // loop_footer_branch
    %13 = sbr.rel target = $region3
  $region8: #{bottleneck_csp_forward.4} parent=0 // loop_exit
    _

</llo_original>
